<compile_context>
chip_gen: v5e
topology: v5e:2x2
jax: 0.10.0
libtpu: 0.0.40
codegen_flags: <defaults>
</compile_context>

<pallas_src>
import functools
import numpy as np
import jax
import jax.numpy as jnp
from jax import lax
from jax.experimental import pallas as pl
from jax.experimental.pallas import tpu as pltpu

PAD = 0  # Constants.PAD
LN_EPS = 1e-3
NEG_INF = -1e30  # finite fill: avoids NaN (inf - inf) on fully-masked rows


def _round_up(x, m):
    return ((x + m - 1) // m) * m


def _pad_vocab(v):
    """Pad vocab to a lane-dense tile multiple (128 small, 2048 large)."""
    return _round_up(v, 128) if v <= 2048 else _round_up(v, 2048)


@functools.lru_cache(maxsize=None)
def _vmem_limit_bytes():
    """~80% of physical VMEM, capped at 100 MiB (v5e/v6e 128 MiB, v7x 64 MiB)."""
    try:
        cap = int(pltpu.get_tpu_info().vmem_capacity_bytes)
    except Exception:
        cap = 64 << 20  # conservative fallback, safe on every generation
    return min(int(cap * 0.8), 100 << 20)


def _row_tile_target():
    # Bigger row tiles on 128-MiB-VMEM parts (v5e/v6e), 512 where VMEM is tight (v7x).
    return 1024 if _vmem_limit_bytes() >= (96 << 20) else 512


# --------------------------------------------------------------------------
# Fused multi-head attention kernel (QKV proj + attention + out proj + add&LN)
# --------------------------------------------------------------------------

def _mha_kernel(xq_ref, xkv_ref, pad_ref, wq_ref, wk_ref, wv_ref,
                pw_ref, pb_ref, ga_ref, gb_ref, o_ref, cc_ref,
                *, n_head, d_k, d_v, temper, causal, eps, q_tile):
    xq = xq_ref[...]                        # (TQ, D) bf16 -- also the residual
    xkv = xkv_ref[...]                      # (Lk, D) bf16
    TQ, d_model = xq.shape
    Lk = xkv.shape[0]

    inv_temper = 1.0 / temper
    # Fused per-head projections: one MXU matmul each over all heads (bf16, f32 acc).
    # 1/temper folded into q once (cheaper than scaling H score matrices).
    q = (jnp.dot(xq, wq_ref[...], preferred_element_type=jnp.float32)
         * inv_temper).astype(jnp.bfloat16)                               # (TQ, H*dk)
    k = jnp.dot(xkv, wk_ref[...],
                preferred_element_type=jnp.float32).astype(jnp.bfloat16)  # (Lk, H*dk)
    v = jnp.dot(xkv, wv_ref[...],
                preferred_element_type=jnp.float32).astype(jnp.bfloat16)  # (Lk, H*dv)

    # Mask: compressed key padding (1, Lk) + optional in-kernel causal mask.
    mask = jnp.broadcast_to(pad_ref[...] > 0, (TQ, Lk))
    if causal:
        row = lax.broadcasted_iota(jnp.int32, (TQ, Lk), 0) + pl.program_id(1) * q_tile
        col = lax.broadcasted_iota(jnp.int32, (TQ, Lk), 1)
        mask = jnp.logical_or(mask, col > row)

    # Heads statically unrolled; each head's AV result goes straight into its column
    # slice of the VMEM scratch (head-major concat, no jnp.concatenate).
    for h in range(n_head):
        qh = q[:, h * d_k:(h + 1) * d_k]
        kh = k[:, h * d_k:(h + 1) * d_k]
        vh = v[:, h * d_v:(h + 1) * d_v]
        s = lax.dot_general(qh, kh, (((1,), (1,)), ((), ())),
                            preferred_element_type=jnp.float32)          # (TQ, Lk)
        s = jnp.where(mask, NEG_INF, s)
        s = s - jnp.max(s, axis=-1, keepdims=True)
        p = jnp.exp(s)
        attn = (p * pl.reciprocal(jnp.sum(p, axis=-1, keepdims=True), approx=True)
                ).astype(jnp.bfloat16)
        cc_ref[:, h * d_v:(h + 1) * d_v] = jnp.dot(
            attn, vh, preferred_element_type=jnp.float32)

    concat = cc_ref[...].astype(jnp.bfloat16)                            # (TQ, H*dv)
    out = jnp.dot(concat, pw_ref[...], preferred_element_type=jnp.float32) + pb_ref[...]

    # Residual add + LayerNormalization (unbiased std, eps added to sigma, exact recip).
    z = out + xq.astype(jnp.float32)
    mu = jnp.mean(z, axis=-1, keepdims=True)
    var = jnp.sum((z - mu) ** 2, axis=-1, keepdims=True) / (d_model - 1)
    inv_sigma = 1.0 / (jnp.sqrt(var) + eps)
    o_ref[...] = ((z - mu) * inv_sigma * ga_ref[...] + gb_ref[...]).astype(o_ref.dtype)


def multi_head_attention(x_q, x_kv, key_pad, p, cfg, causal=False):
    n_head, d_k, d_v, d_model = cfg["n_head"], cfg["d_k"], cfg["d_v"], cfg["d_model"]
    B, Lq, _ = x_q.shape
    Lk = x_kv.shape[1]

    # Tile long query sequences (pad to 256 multiple); short ones use a full block.
    if Lq > 256:
        TQ = 256
        Lq_pad = _round_up(Lq, TQ)
        if Lq_pad != Lq:
            x_q = jnp.pad(x_q, ((0, 0), (0, Lq_pad - Lq), (0, 0)))
    else:
        TQ, Lq_pad = Lq, Lq

    kernel = functools.partial(
        _mha_kernel, n_head=n_head, d_k=d_k, d_v=d_v,
        temper=float(np.sqrt(d_model)), causal=causal, eps=LN_EPS, q_tile=TQ)

    out = pl.pallas_call(
        kernel,
        out_shape=jax.ShapeDtypeStruct((B, Lq_pad, d_model), jnp.bfloat16),
        grid=(B, Lq_pad // TQ),
        in_specs=[
            pl.BlockSpec((None, TQ, d_model), lambda b, i: (b, i, 0)),     # x_q tile
            pl.BlockSpec((None, Lk, d_model), lambda b, i: (b, 0, 0)),     # x_kv (full)
            pl.BlockSpec((None, 1, Lk), lambda b, i: (b, 0, 0)),           # key padding
            pl.BlockSpec((d_model, n_head * d_k), lambda b, i: (0, 0)),    # w_q (fused)
            pl.BlockSpec((d_model, n_head * d_k), lambda b, i: (0, 0)),    # w_k
            pl.BlockSpec((d_model, n_head * d_v), lambda b, i: (0, 0)),    # w_v
            pl.BlockSpec((n_head * d_v, d_model), lambda b, i: (0, 0)),    # proj_w
            pl.BlockSpec((1, d_model), lambda b, i: (0, 0)),               # proj_b
            pl.BlockSpec((1, d_model), lambda b, i: (0, 0)),               # ln_a
            pl.BlockSpec((1, d_model), lambda b, i: (0, 0)),               # ln_b
        ],
        out_specs=pl.BlockSpec((None, TQ, d_model), lambda b, i: (b, i, 0)),
        scratch_shapes=[pltpu.VMEM((TQ, n_head * d_v), jnp.float32)],      # head concat
        compiler_params=pltpu.CompilerParams(
            dimension_semantics=("parallel", "parallel"),
            vmem_limit_bytes=_vmem_limit_bytes()),
    )(x_q, x_kv, key_pad, p["w_q"], p["w_k"], p["w_v"],
      p["proj_w"], p["proj_b"], p["ln_a"], p["ln_b"])
    return out[:, :Lq, :]


# --------------------------------------------------------------------------
# Fused position-wise FFN kernel (linear+relu, linear, residual add + LN)
# --------------------------------------------------------------------------

def _ffn_kernel(x_ref, w1_ref, b1_ref, w2_ref, b2_ref, ga_ref, gb_ref, o_ref, *, eps):
    x = x_ref[...]                                                        # (TM, D) bf16
    h = jnp.dot(x, w1_ref[...], preferred_element_type=jnp.float32) + b1_ref[...]
    h = jnp.maximum(h, 0.0).astype(jnp.bfloat16)
    y = jnp.dot(h, w2_ref[...], preferred_element_type=jnp.float32) + b2_ref[...]
    z = y + x.astype(jnp.float32)
    d = z.shape[-1]
    mu = jnp.mean(z, axis=-1, keepdims=True)
    var = jnp.sum((z - mu) ** 2, axis=-1, keepdims=True) / (d - 1)
    inv_sigma = 1.0 / (jnp.sqrt(var) + eps)
    o_ref[...] = ((z - mu) * inv_sigma * ga_ref[...] + gb_ref[...]).astype(o_ref.dtype)


def pos_ffn(x, p):
    B, L, d_model = x.shape
    d_inner = p["w1"].shape[1]
    M = B * L
    flat = x.reshape(M, d_model)

    M_pad = _round_up(M, 8)
    TM = min(_row_tile_target(), M_pad)
    M_pad = _round_up(M_pad, TM)
    if M_pad != M:
        flat = jnp.pad(flat, ((0, M_pad - M), (0, 0)))

    cost = pl.CostEstimate(
        flops=4 * M_pad * d_model * d_inner,
        transcendentals=M_pad,
        bytes_accessed=2 * (2 * M_pad * d_model + 2 * d_model * d_inner))

    out = pl.pallas_call(
        functools.partial(_ffn_kernel, eps=LN_EPS),
        out_shape=jax.ShapeDtypeStruct((M_pad, d_model), jnp.bfloat16),
        grid=(M_pad // TM,),
        in_specs=[
            pl.BlockSpec((TM, d_model), lambda i: (i, 0)),
            pl.BlockSpec((d_model, d_inner), lambda i: (0, 0)),
            pl.BlockSpec((1, d_inner), lambda i: (0, 0)),
            pl.BlockSpec((d_inner, d_model), lambda i: (0, 0)),
            pl.BlockSpec((1, d_model), lambda i: (0, 0)),
            pl.BlockSpec((1, d_model), lambda i: (0, 0)),
            pl.BlockSpec((1, d_model), lambda i: (0, 0)),
        ],
        out_specs=pl.BlockSpec((TM, d_model), lambda i: (i, 0)),
        compiler_params=pltpu.CompilerParams(
            dimension_semantics=("parallel",),
            vmem_limit_bytes=_vmem_limit_bytes()),
        cost_estimate=cost,
    )(flat, p["w1"], p["b1"], p["w2"], p["b2"], p["ln_a"], p["ln_b"])
    return out[:M].reshape(B, L, d_model)


# --------------------------------------------------------------------------
# Tiled shared-weight vocab projection (no bias), pre-transposed (D, V_pad) weight
# --------------------------------------------------------------------------

def _vocab_kernel(x_ref, w_ref, o_ref):
    # Plain NN matmul: no in-kernel transpose of the weight tile (MXU-only work).
    o_ref[...] = jnp.dot(x_ref[...], w_ref[...], preferred_element_type=jnp.float32)


def vocab_projection(x, emb_t, n_vocab):
    M, D = x.shape
    V_pad = emb_t.shape[1]                    # already padded at init (128/2048 multiple)

    M_pad = _round_up(M, 8)
    TM = min(_row_tile_target(), M_pad)
    M_pad = _round_up(M_pad, TM)
    if M_pad != M:
        x = jnp.pad(x, ((0, M_pad - M), (0, 0)))
    TN = V_pad if V_pad <= 2048 else 2048     # V_pad is a multiple of TN by construction

    cost = pl.CostEstimate(
        flops=2 * M_pad * V_pad * D,
        transcendentals=0,
        bytes_accessed=2 * M_pad * D + 2 * D * V_pad + 4 * M_pad * V_pad)

    out = pl.pallas_call(
        _vocab_kernel,
        out_shape=jax.ShapeDtypeStruct((M_pad, V_pad), jnp.float32),
        grid=(M_pad // TM, V_pad // TN),
        in_specs=[pl.BlockSpec((TM, D), lambda i, j: (i, 0)),
                  pl.BlockSpec((D, TN), lambda i, j: (0, j))],
        out_specs=pl.BlockSpec((TM, TN), lambda i, j: (i, j)),
        compiler_params=pltpu.CompilerParams(
            dimension_semantics=("parallel", "parallel"),
            vmem_limit_bytes=_vmem_limit_bytes()),
        cost_estimate=cost,
    )(x, emb_t)
    return out[:M, :n_vocab]


# --------------------------------------------------------------------------
# Model glue (plain JAX around the kernels)
# --------------------------------------------------------------------------

def position_encoding_init(n_position, d_pos_vec):
    position_enc = np.array(
        [[pos / np.power(10000, 2 * (j // 2) / d_pos_vec) for j in range(d_pos_vec)]
         if pos != 0 else np.zeros(d_pos_vec) for pos in range(n_position)])
    position_enc[1:, 0::2] = np.sin(position_enc[1:, 0::2])
    position_enc[1:, 1::2] = np.cos(position_enc[1:, 1::2])
    return jnp.asarray(position_enc, dtype=jnp.float32)


def key_padding_mask(seq_k):
    """Compressed padding mask: (B, 1, Lk) int32, 1 where key is PAD."""
    B, Lk = seq_k.shape
    return (seq_k == PAD).astype(jnp.int32).reshape(B, 1, Lk)


def transformer_forward(params, src_seq, src_pos, tgt_seq, tgt_pos, cfg):
    d_model = cfg["d_model"]
    n_vocab = cfg["n_vocab"]

    # slicing exactly as in Transformer.forward
    src_seq = src_seq[:, 1:-1]
    src_pos = src_pos[:, 1:-1]
    tgt_seq = tgt_seq[:, :-1]
    tgt_pos = tgt_pos[:, :-1]

    emb = params["word_emb"]        # (V, D) bf16, shared src/tgt emb & output projection
    emb_t = params["word_emb_t"]    # (D, V_pad) bf16, pre-transposed + padded at init
    pos_tab = params["pos_enc"]

    B, Lt = tgt_seq.shape
    src_pad = key_padding_mask(src_seq)
    tgt_pad = key_padding_mask(tgt_seq)

    # ---------------- Encoder (reference adds no positional encoding) ----------------
    enc_out = emb[src_seq]                                   # bf16 inter-kernel activations
    for lp in params["enc_layers"]:
        enc_out = multi_head_attention(enc_out, enc_out, src_pad, lp["slf_attn"], cfg,
                                       causal=False)
        enc_out = pos_ffn(enc_out, lp["pos_ffn"])

    # ---------------- Decoder ----------------
    dec_out = (emb[tgt_seq].astype(jnp.float32) + pos_tab[tgt_pos]).astype(jnp.bfloat16)
    for lp in params["dec_layers"]:
        dec_out = multi_head_attention(dec_out, dec_out, tgt_pad, lp["slf_attn"], cfg,
                                       causal=True)          # pad OR subsequent mask
        dec_out = multi_head_attention(dec_out, enc_out, src_pad, lp["enc_attn"], cfg,
                                       causal=False)
        dec_out = pos_ffn(dec_out, lp["pos_ffn"])

    # ---------------- Shared-weight output projection (no bias) ----------------
    logits = vocab_projection(dec_out.reshape(B * Lt, d_model), emb_t, n_vocab)
    return logits                                            # (B*Lt, n_vocab) f32


# --------------------------------------------------------------------------
# Deterministic parameter init (synthetic, no checkpoint)
# --------------------------------------------------------------------------

def init_mha(key, n_head, d_model, d_k, d_v):
    ks = jax.random.split(key, 4)
    bf = jnp.bfloat16
    return dict(
        # per-head weights pre-folded: column block h holds head h's projection
        w_q=(jax.random.normal(ks[0], (d_model, n_head * d_k), jnp.float32) * 0.1).astype(bf),
        w_k=(jax.random.normal(ks[1], (d_model, n_head * d_k), jnp.float32) * 0.1).astype(bf),
        w_v=(jax.random.normal(ks[2], (d_model, n_head * d_v), jnp.float32) * 0.1).astype(bf),
        proj_w=(jax.random.normal(ks[3], (n_head * d_v, d_model), jnp.float32) * 0.1).astype(bf),
        proj_b=jnp.zeros((1, d_model), jnp.float32),
        ln_a=jnp.ones((1, d_model), jnp.float32),
        ln_b=jnp.zeros((1, d_model), jnp.float32),
    )


def init_ffn(key, d_model, d_inner):
    ks = jax.random.split(key, 2)
    bf = jnp.bfloat16
    return dict(
        w1=(jax.random.normal(ks[0], (d_model, d_inner), jnp.float32) * 0.1).astype(bf),
        b1=jnp.zeros((1, d_inner), jnp.float32),
        w2=(jax.random.normal(ks[1], (d_inner, d_model), jnp.float32) * 0.1).astype(bf),
        b2=jnp.zeros((1, d_model), jnp.float32),
        ln_a=jnp.ones((1, d_model), jnp.float32),
        ln_b=jnp.zeros((1, d_model), jnp.float32),
    )


def init_params(key, n_vocab, n_max_seq, n_layers, n_head, d_model, d_k, d_v, d_inner):
    k_emb, key = jax.random.split(key)
    emb_f32 = jax.random.normal(k_emb, (n_vocab, d_model), jnp.float32) * 0.1
    v_pad = _pad_vocab(n_vocab)
    params = dict(
        word_emb=emb_f32.astype(jnp.bfloat16),                            # (V, D) lookups
        # one-time transpose + zero-pad so the vocab kernel is a plain NN matmul
        word_emb_t=jnp.pad(emb_f32.T, ((0, 0), (0, v_pad - n_vocab))).astype(jnp.bfloat16),
        pos_enc=position_encoding_init(n_max_seq + 1, d_model),
        enc_layers=[], dec_layers=[],
    )
    for _ in range(n_layers):
        k1, k2, key = jax.random.split(key, 3)
        params["enc_layers"].append(dict(slf_attn=init_mha(k1, n_head, d_model, d_k, d_v),
                                         pos_ffn=init_ffn(k2, d_model, d_inner)))
    for _ in range(n_layers):
        k1, k2, k3, key = jax.random.split(key, 4)
        params["dec_layers"].append(dict(slf_attn=init_mha(k1, n_head, d_model, d_k, d_v),
                                         enc_attn=init_mha(k2, n_head, d_model, d_k, d_v),
                                         pos_ffn=init_ffn(k3, d_model, d_inner)))
    return params


# --------------------------------------------------------------------------

if __name__ == "__main__":
    # Small, lane-friendly demo dims (reference production dims: d_model=300, 6 heads of 50).
    cfg = dict(n_head=4, d_k=32, d_v=32, d_model=128, d_inner=256, n_layers=2, n_vocab=300)
    n_max_seq = 12
    B = 2
    Lsrc_raw, Ltgt_raw = 10, 9    # sliced to 8 / 8 inside forward

    key = jax.random.PRNGKey(0)
    kp, ks, kt = jax.random.split(key, 3)
    params = init_params(kp, cfg["n_vocab"], n_max_seq, cfg["n_layers"], cfg["n_head"],
                         cfg["d_model"], cfg["d_k"], cfg["d_v"], cfg["d_inner"])

    # tokens avoid PAD (=0); fully-masked rows are handled anyway via the -1e30 fill
    src_seq = jax.random.randint(ks, (B, Lsrc_raw), 4, cfg["n_vocab"], dtype=jnp.int32)
    tgt_seq = jax.random.randint(kt, (B, Ltgt_raw), 4, cfg["n_vocab"], dtype=jnp.int32)
    src_pos = jnp.broadcast_to(jnp.arange(1, Lsrc_raw + 1, dtype=jnp.int32)[None], (B, Lsrc_raw))
    tgt_pos = jnp.broadcast_to(jnp.arange(1, Ltgt_raw + 1, dtype=jnp.int32)[None], (B, Ltgt_raw))

    fwd = jax.jit(lambda p, a, b, c, d: transformer_forward(p, a, b, c, d, cfg))
    logits = fwd(params, src_seq, src_pos, tgt_seq, tgt_pos)
    logits = jax.block_until_ready(logits)

    expected = (B * (Ltgt_raw - 1), cfg["n_vocab"])
    assert logits.shape == expected, (logits.shape, expected)
    assert logits.dtype == jnp.float32
    assert bool(jnp.all(jnp.isfinite(logits)))
    print("KERNEL_OK")
</pallas_src>

<mosaic_0001>
module attributes {stable_mosaic.version = 11 : i64} {
  func.func @_ffn_kernel(%arg0: i32, %arg1: memref<16x128xbf16, #tpu.memory_space<vmem>>, %arg2: memref<128x256xbf16, #tpu.memory_space<vmem>>, %arg3: memref<1x256xf32, #tpu.memory_space<vmem>>, %arg4: memref<256x128xbf16, #tpu.memory_space<vmem>>, %arg5: memref<1x128xf32, #tpu.memory_space<vmem>>, %arg6: memref<1x128xf32, #tpu.memory_space<vmem>>, %arg7: memref<1x128xf32, #tpu.memory_space<vmem>>, %arg8: memref<16x128xbf16, #tpu.memory_space<vmem>>) attributes {dimension_semantics = [#tpu.dimension_semantics<parallel>], iteration_bounds = array<i64: 1>, scalar_prefetch = 0 : i64, scratch_operands = 0 : i64, tpu.core_type = #tpu.core_type<tc>, window_params = [{transform_indices = @transform_0, window_bounds = array<i64: 16, 128>}, {pipeline_mode = #tpu.pipeline_mode<synchronous>, transform_indices = @transform_1, window_bounds = array<i64: 128, 256>}, {pipeline_mode = #tpu.pipeline_mode<synchronous>, transform_indices = @transform_2, window_bounds = array<i64: 1, 256>}, {pipeline_mode = #tpu.pipeline_mode<synchronous>, transform_indices = @transform_3, window_bounds = array<i64: 256, 128>}, {pipeline_mode = #tpu.pipeline_mode<synchronous>, transform_indices = @transform_4, window_bounds = array<i64: 1, 128>}, {pipeline_mode = #tpu.pipeline_mode<synchronous>, transform_indices = @transform_5, window_bounds = array<i64: 1, 128>}, {pipeline_mode = #tpu.pipeline_mode<synchronous>, transform_indices = @transform_6, window_bounds = array<i64: 1, 128>}, {transform_indices = @transform_7, window_bounds = array<i64: 16, 128>}]} {
    %c0 = arith.constant 0 : index
    %c0_0 = arith.constant 0 : index
    %0 = vector.load %arg1[%c0, %c0_0] : memref<16x128xbf16, #tpu.memory_space<vmem>>, vector<16x128xbf16>
    %c0_1 = arith.constant 0 : index
    %c0_2 = arith.constant 0 : index
    %1 = vector.load %arg2[%c0_1, %c0_2] : memref<128x256xbf16, #tpu.memory_space<vmem>>, vector<128x256xbf16>
    %cst = arith.constant dense<0.000000e+00> : vector<16x256xf32>
    %2 = tpu.matmul %0, %1, %cst {dimension_numbers = #tpu.dot_dimension_numbers<[1], [0], [0], [1], [0, 0, 1, 1], [], []>} : vector<16x128xbf16>, vector<128x256xbf16>, vector<16x256xf32> -> vector<16x256xf32>
    %c0_3 = arith.constant 0 : index
    %c0_4 = arith.constant 0 : index
    %3 = vector.load %arg3[%c0_3, %c0_4] : memref<1x256xf32, #tpu.memory_space<vmem>>, vector<1x256xf32>
    %4 = vector.broadcast %3 : vector<1x256xf32> to vector<16x256xf32>
    %5 = arith.addf %2, %4 : vector<16x256xf32>
    %cst_5 = arith.constant 0.000000e+00 : f32
    %6 = vector.broadcast %cst_5 : f32 to vector<16x256xf32>
    %7 = arith.maximumf %5, %6 : vector<16x256xf32>
    %8 = arith.truncf %7 : vector<16x256xf32> to vector<16x256xbf16>
    %c0_6 = arith.constant 0 : index
    %c0_7 = arith.constant 0 : index
    %9 = vector.load %arg4[%c0_6, %c0_7] : memref<256x128xbf16, #tpu.memory_space<vmem>>, vector<256x128xbf16>
    %cst_8 = arith.constant dense<0.000000e+00> : vector<16x128xf32>
    %10 = tpu.matmul %8, %9, %cst_8 {dimension_numbers = #tpu.dot_dimension_numbers<[1], [0], [0], [1], [0, 0, 1, 1], [], []>} : vector<16x256xbf16>, vector<256x128xbf16>, vector<16x128xf32> -> vector<16x128xf32>
    %c0_9 = arith.constant 0 : index
    %c0_10 = arith.constant 0 : index
    %11 = vector.load %arg5[%c0_9, %c0_10] : memref<1x128xf32, #tpu.memory_space<vmem>>, vector<1x128xf32>
    %12 = vector.broadcast %11 : vector<1x128xf32> to vector<16x128xf32>
    %13 = arith.addf %10, %12 : vector<16x128xf32>
    %14 = arith.extf %0 : vector<16x128xbf16> to vector<16x128xf32>
    %15 = arith.addf %13, %14 : vector<16x128xf32>
    %cst_11 = arith.constant dense<0.000000e+00> : vector<16xf32>
    %16 = vector.multi_reduction <add>, %15, %cst_11 [1] : vector<16x128xf32> to vector<16xf32>
    %17 = vector.shape_cast %16 : vector<16xf32> to vector<16x1xf32>
    %cst_12 = arith.constant 1.280000e+02 : f32
    %18 = vector.broadcast %cst_12 : f32 to vector<16x1xf32>
    %19 = arith.divf %17, %18 : vector<16x1xf32>
    %20 = vector.broadcast %19 : vector<16x1xf32> to vector<16x128xf32>
    %21 = arith.subf %15, %20 : vector<16x128xf32>
    %22 = arith.mulf %21, %21 : vector<16x128xf32>
    %cst_13 = arith.constant dense<0.000000e+00> : vector<16xf32>
    %23 = vector.multi_reduction <add>, %22, %cst_13 [1] : vector<16x128xf32> to vector<16xf32>
    %24 = vector.shape_cast %23 : vector<16xf32> to vector<16x1xf32>
    %cst_14 = arith.constant 1.270000e+02 : f32
    %25 = vector.broadcast %cst_14 : f32 to vector<16x1xf32>
    %26 = arith.divf %24, %25 : vector<16x1xf32>
    %27 = math.sqrt %26 : vector<16x1xf32>
    %cst_15 = arith.constant 1.000000e-03 : f32
    %28 = vector.broadcast %cst_15 : f32 to vector<16x1xf32>
    %29 = arith.addf %27, %28 : vector<16x1xf32>
    %cst_16 = arith.constant 1.000000e+00 : f32
    %30 = vector.broadcast %cst_16 : f32 to vector<16x1xf32>
    %31 = arith.divf %30, %29 : vector<16x1xf32>
    %32 = vector.broadcast %19 : vector<16x1xf32> to vector<16x128xf32>
    %33 = arith.subf %15, %32 : vector<16x128xf32>
    %34 = vector.broadcast %31 : vector<16x1xf32> to vector<16x128xf32>
    %35 = arith.mulf %33, %34 : vector<16x128xf32>
    %c0_17 = arith.constant 0 : index
    %c0_18 = arith.constant 0 : index
    %36 = vector.load %arg6[%c0_17, %c0_18] : memref<1x128xf32, #tpu.memory_space<vmem>>, vector<1x128xf32>
    %37 = vector.broadcast %36 : vector<1x128xf32> to vector<16x128xf32>
    %38 = arith.mulf %35, %37 : vector<16x128xf32>
    %c0_19 = arith.constant 0 : index
    %c0_20 = arith.constant 0 : index
    %39 = vector.load %arg7[%c0_19, %c0_20] : memref<1x128xf32, #tpu.memory_space<vmem>>, vector<1x128xf32>
    %40 = vector.broadcast %39 : vector<1x128xf32> to vector<16x128xf32>
    %41 = arith.addf %38, %40 : vector<16x128xf32>
    %42 = arith.truncf %41 : vector<16x128xf32> to vector<16x128xbf16>
    %c0_21 = arith.constant 0 : index
    %c0_22 = arith.constant 0 : index
    %43 = vector.load %arg8[%c0_21, %c0_22] : memref<16x128xbf16, #tpu.memory_space<vmem>>, vector<16x128xbf16>
    tpu.vector_store %arg8[%c0_21, %c0_22], %42 {strides = array<i32>} : memref<16x128xbf16, #tpu.memory_space<vmem>>, vector<16x128xbf16>,
    return
  }
  func.func @transform_0(%arg0: i32) -> (i32, i32) {
    %c0_i32 = arith.constant 0 : i32
    %c0_i32_0 = arith.constant 0 : i32
    return %arg0, %c0_i32 : i32, i32
  }
  func.func @transform_1(%arg0: i32) -> (i32, i32) {
    %c0_i32 = arith.constant 0 : i32
    %c0_i32_0 = arith.constant 0 : i32
    %c0_i32_1 = arith.constant 0 : i32
    return %c0_i32, %c0_i32_0 : i32, i32
  }
  func.func @transform_2(%arg0: i32) -> (i32, i32) {
    %c0_i32 = arith.constant 0 : i32
    %c0_i32_0 = arith.constant 0 : i32
    %c0_i32_1 = arith.constant 0 : i32
    return %c0_i32, %c0_i32_0 : i32, i32
  }
  func.func @transform_3(%arg0: i32) -> (i32, i32) {
    %c0_i32 = arith.constant 0 : i32
    %c0_i32_0 = arith.constant 0 : i32
    %c0_i32_1 = arith.constant 0 : i32
    return %c0_i32, %c0_i32_0 : i32, i32
  }
  func.func @transform_4(%arg0: i32) -> (i32, i32) {
    %c0_i32 = arith.constant 0 : i32
    %c0_i32_0 = arith.constant 0 : i32
    %c0_i32_1 = arith.constant 0 : i32
    return %c0_i32, %c0_i32_0 : i32, i32
  }
  func.func @transform_5(%arg0: i32) -> (i32, i32) {
    %c0_i32 = arith.constant 0 : i32
    %c0_i32_0 = arith.constant 0 : i32
    %c0_i32_1 = arith.constant 0 : i32
    return %c0_i32, %c0_i32_0 : i32, i32
  }
  func.func @transform_6(%arg0: i32) -> (i32, i32) {
    %c0_i32 = arith.constant 0 : i32
    %c0_i32_0 = arith.constant 0 : i32
    %c0_i32_1 = arith.constant 0 : i32
    return %c0_i32, %c0_i32_0 : i32, i32
  }
  func.func @transform_7(%arg0: i32) -> (i32, i32) {
    %c0_i32 = arith.constant 0 : i32
    %c0_i32_0 = arith.constant 0 : i32
    return %arg0, %c0_i32 : i32, i32
  }
}

module attributes {stable_mosaic.version = 11 : i64} {
  func.func @_mha_kernel(%arg0: i32, %arg1: i32, %arg2: memref<1x8x128xbf16, #tpu.memory_space<vmem>>, %arg3: memref<1x8x128xbf16, #tpu.memory_space<vmem>>, %arg4: memref<1x1x8xi32, #tpu.memory_space<vmem>>, %arg5: memref<128x128xbf16, #tpu.memory_space<vmem>>, %arg6: memref<128x128xbf16, #tpu.memory_space<vmem>>, %arg7: memref<128x128xbf16, #tpu.memory_space<vmem>>, %arg8: memref<128x128xbf16, #tpu.memory_space<vmem>>, %arg9: memref<1x128xf32, #tpu.memory_space<vmem>>, %arg10: memref<1x128xf32, #tpu.memory_space<vmem>>, %arg11: memref<1x128xf32, #tpu.memory_space<vmem>>, %arg12: memref<1x8x128xbf16, #tpu.memory_space<vmem>>, %arg13: memref<8x128xf32, #tpu.memory_space<vmem>>) attributes {dimension_semantics = [#tpu.dimension_semantics<parallel>, #tpu.dimension_semantics<parallel>], iteration_bounds = array<i64: 2, 1>, scalar_prefetch = 0 : i64, scratch_operands = 1 : i64, tpu.core_type = #tpu.core_type<tc>, window_params = [{transform_indices = @transform_0, window_bounds = array<i64: 1, 8, 128>}, {transform_indices = @transform_1, window_bounds = array<i64: 1, 8, 128>}, {transform_indices = @transform_2, window_bounds = array<i64: 1, 1, 8>}, {pipeline_mode = #tpu.pipeline_mode<synchronous>, transform_indices = @transform_3, window_bounds = array<i64: 128, 128>}, {pipeline_mode = #tpu.pipeline_mode<synchronous>, transform_indices = @transform_4, window_bounds = array<i64: 128, 128>}, {pipeline_mode = #tpu.pipeline_mode<synchronous>, transform_indices = @transform_5, window_bounds = array<i64: 128, 128>}, {pipeline_mode = #tpu.pipeline_mode<synchronous>, transform_indices = @transform_6, window_bounds = array<i64: 128, 128>}, {pipeline_mode = #tpu.pipeline_mode<synchronous>, transform_indices = @transform_7, window_bounds = array<i64: 1, 128>}, {pipeline_mode = #tpu.pipeline_mode<synchronous>, transform_indices = @transform_8, window_bounds = array<i64: 1, 128>}, {pipeline_mode = #tpu.pipeline_mode<synchronous>, transform_indices = @transform_9, window_bounds = array<i64: 1, 128>}, {transform_indices = @transform_10, window_bounds = array<i64: 1, 8, 128>}]} {
    %c0 = arith.constant 0 : index
    %c0_0 = arith.constant 0 : index
    %c0_1 = arith.constant 0 : index
    %0 = vector.load %arg2[%c0, %c0_0, %c0_1] : memref<1x8x128xbf16, #tpu.memory_space<vmem>>, vector<1x8x128xbf16>
    %1 = vector.shape_cast %0 : vector<1x8x128xbf16> to vector<8x128xbf16>
    %c0_2 = arith.constant 0 : index
    %c0_3 = arith.constant 0 : index
    %c0_4 = arith.constant 0 : index
    %2 = vector.load %arg3[%c0_2, %c0_3, %c0_4] : memref<1x8x128xbf16, #tpu.memory_space<vmem>>, vector<1x8x128xbf16>
    %3 = vector.shape_cast %2 : vector<1x8x128xbf16> to vector<8x128xbf16>
    %c0_5 = arith.constant 0 : index
    %c0_6 = arith.constant 0 : index
    %4 = vector.load %arg5[%c0_5, %c0_6] : memref<128x128xbf16, #tpu.memory_space<vmem>>, vector<128x128xbf16>
    %cst = arith.constant dense<0.000000e+00> : vector<8x128xf32>
    %5 = tpu.matmul %1, %4, %cst {dimension_numbers = #tpu.dot_dimension_numbers<[1], [0], [0], [1], [0, 0, 1, 1], [], []>} : vector<8x128xbf16>, vector<128x128xbf16>, vector<8x128xf32> -> vector<8x128xf32>
    %cst_7 = arith.constant 0.0883883461 : f32
    %6 = vector.broadcast %cst_7 : f32 to vector<8x128xf32>
    %7 = arith.mulf %5, %6 : vector<8x128xf32>
    %8 = arith.truncf %7 : vector<8x128xf32> to vector<8x128xbf16>
    %c0_8 = arith.constant 0 : index
    %c0_9 = arith.constant 0 : index
    %9 = vector.load %arg6[%c0_8, %c0_9] : memref<128x128xbf16, #tpu.memory_space<vmem>>, vector<128x128xbf16>
    %cst_10 = arith.constant dense<0.000000e+00> : vector<8x128xf32>
    %10 = tpu.matmul %3, %9, %cst_10 {dimension_numbers = #tpu.dot_dimension_numbers<[1], [0], [0], [1], [0, 0, 1, 1], [], []>} : vector<8x128xbf16>, vector<128x128xbf16>, vector<8x128xf32> -> vector<8x128xf32>
    %11 = arith.truncf %10 : vector<8x128xf32> to vector<8x128xbf16>
    %c0_11 = arith.constant 0 : index
    %c0_12 = arith.constant 0 : index
    %12 = vector.load %arg7[%c0_11, %c0_12] : memref<128x128xbf16, #tpu.memory_space<vmem>>, vector<128x128xbf16>
    %cst_13 = arith.constant dense<0.000000e+00> : vector<8x128xf32>
    %13 = tpu.matmul %3, %12, %cst_13 {dimension_numbers = #tpu.dot_dimension_numbers<[1], [0], [0], [1], [0, 0, 1, 1], [], []>} : vector<8x128xbf16>, vector<128x128xbf16>, vector<8x128xf32> -> vector<8x128xf32>
    %14 = arith.truncf %13 : vector<8x128xf32> to vector<8x128xbf16>
    %c0_14 = arith.constant 0 : index
    %c0_15 = arith.constant 0 : index
    %c0_16 = arith.constant 0 : index
    %15 = vector.load %arg4[%c0_14, %c0_15, %c0_16] : memref<1x1x8xi32, #tpu.memory_space<vmem>>, vector<1x1x8xi32>
    %16 = vector.shape_cast %15 : vector<1x1x8xi32> to vector<1x8xi32>
    %c0_i32 = arith.constant 0 : i32
    %17 = vector.broadcast %c0_i32 : i32 to vector<1x8xi32>
    %18 = arith.cmpi sgt, %16, %17 : vector<1x8xi32>
    %19 = vector.shape_cast %18 : vector<1x8xi1> to vector<1x8xi1>
    %20 = vector.broadcast %19 : vector<1x8xi1> to vector<8x8xi1>
    %21 = vector.extract_strided_slice %8 {offsets = [0, 0], sizes = [8, 32], strides = [1, 1]} : vector<8x128xbf16> to vector<8x32xbf16>
    %22 = vector.extract_strided_slice %11 {offsets = [0, 0], sizes = [8, 32], strides = [1, 1]} : vector<8x128xbf16> to vector<8x32xbf16>
    %23 = vector.extract_strided_slice %14 {offsets = [0, 0], sizes = [8, 32], strides = [1, 1]} : vector<8x128xbf16> to vector<8x32xbf16>
    %cst_17 = arith.constant dense<0.000000e+00> : vector<8x8xf32>
    %24 = tpu.matmul %21, %22, %cst_17 {dimension_numbers = #tpu.dot_dimension_numbers<[1], [1], [0], [0], [0, 0, 1, 0], [], []>} : vector<8x32xbf16>, vector<8x32xbf16>, vector<8x8xf32> -> vector<8x8xf32>
    %cst_18 = arith.constant -1.000000e+30 : f32
    %25 = vector.broadcast %cst_18 : f32 to vector<8x8xf32>
    %26 = arith.select %20, %25, %24 : vector<8x8xi1>, vector<8x8xf32>
    %cst_19 = arith.constant dense<0xFF800000> : vector<8xf32>
    %27 = vector.multi_reduction <maximumf>, %26, %cst_19 [1] : vector<8x8xf32> to vector<8xf32>
    %28 = vector.shape_cast %27 : vector<8xf32> to vector<8x1xf32>
    %29 = vector.broadcast %28 : vector<8x1xf32> to vector<8x8xf32>
    %30 = arith.subf %26, %29 : vector<8x8xf32>
    %31 = math.exp %30 : vector<8x8xf32>
    %cst_20 = arith.constant dense<0.000000e+00> : vector<8xf32>
    %32 = vector.multi_reduction <add>, %31, %cst_20 [1] : vector<8x8xf32> to vector<8xf32>
    %33 = vector.shape_cast %32 : vector<8xf32> to vector<8x1xf32>
    %34 = tpu.reciprocal %33 {approx = true} : vector<8x1xf32> -> vector<8x1xf32>
    %35 = vector.broadcast %34 : vector<8x1xf32> to vector<8x8xf32>
    %36 = arith.mulf %31, %35 : vector<8x8xf32>
    %37 = arith.truncf %36 : vector<8x8xf32> to vector<8x8xbf16>
    %cst_21 = arith.constant dense<0.000000e+00> : vector<8x32xf32>
    %38 = tpu.matmul %37, %23, %cst_21 {dimension_numbers = #tpu.dot_dimension_numbers<[1], [0], [0], [1], [0, 0, 1, 1], [], []>} : vector<8x8xbf16>, vector<8x32xbf16>, vector<8x32xf32> -> vector<8x32xf32>
    %c0_22 = arith.constant 0 : index
    %c0_23 = arith.constant 0 : index
    %39 = vector.load %arg13[%c0_22, %c0_23] : memref<8x128xf32, #tpu.memory_space<vmem>>, vector<8x32xf32>
    tpu.vector_store %arg13[%c0_22, %c0_23], %38 {strides = array<i32>} : memref<8x128xf32, #tpu.memory_space<vmem>>, vector<8x32xf32>,
    %40 = vector.extract_strided_slice %8 {offsets = [0, 32], sizes = [8, 32], strides = [1, 1]} : vector<8x128xbf16> to vector<8x32xbf16>
    %41 = vector.extract_strided_slice %11 {offsets = [0, 32], sizes = [8, 32], strides = [1, 1]} : vector<8x128xbf16> to vector<8x32xbf16>
    %42 = vector.extract_strided_slice %14 {offsets = [0, 32], sizes = [8, 32], strides = [1, 1]} : vector<8x128xbf16> to vector<8x32xbf16>
    %cst_24 = arith.constant dense<0.000000e+00> : vector<8x8xf32>
    %43 = tpu.matmul %40, %41, %cst_24 {dimension_numbers = #tpu.dot_dimension_numbers<[1], [1], [0], [0], [0, 0, 1, 0], [], []>} : vector<8x32xbf16>, vector<8x32xbf16>, vector<8x8xf32> -> vector<8x8xf32>
    %cst_25 = arith.constant -1.000000e+30 : f32
    %44 = vector.broadcast %cst_25 : f32 to vector<8x8xf32>
    %45 = arith.select %20, %44, %43 : vector<8x8xi1>, vector<8x8xf32>
    %cst_26 = arith.constant dense<0xFF800000> : vector<8xf32>
    %46 = vector.multi_reduction <maximumf>, %45, %cst_26 [1] : vector<8x8xf32> to vector<8xf32>
    %47 = vector.shape_cast %46 : vector<8xf32> to vector<8x1xf32>
    %48 = vector.broadcast %47 : vector<8x1xf32> to vector<8x8xf32>
    %49 = arith.subf %45, %48 : vector<8x8xf32>
    %50 = math.exp %49 : vector<8x8xf32>
    %cst_27 = arith.constant dense<0.000000e+00> : vector<8xf32>
    %51 = vector.multi_reduction <add>, %50, %cst_27 [1] : vector<8x8xf32> to vector<8xf32>
    %52 = vector.shape_cast %51 : vector<8xf32> to vector<8x1xf32>
    %53 = tpu.reciprocal %52 {approx = true} : vector<8x1xf32> -> vector<8x1xf32>
    %54 = vector.broadcast %53 : vector<8x1xf32> to vector<8x8xf32>
    %55 = arith.mulf %50, %54 : vector<8x8xf32>
    %56 = arith.truncf %55 : vector<8x8xf32> to vector<8x8xbf16>
    %cst_28 = arith.constant dense<0.000000e+00> : vector<8x32xf32>
    %57 = tpu.matmul %56, %42, %cst_28 {dimension_numbers = #tpu.dot_dimension_numbers<[1], [0], [0], [1], [0, 0, 1, 1], [], []>} : vector<8x8xbf16>, vector<8x32xbf16>, vector<8x32xf32> -> vector<8x32xf32>
    %c0_29 = arith.constant 0 : index
    %c32 = arith.constant 32 : index
    %58 = vector.load %arg13[%c0_29, %c32] : memref<8x128xf32, #tpu.memory_space<vmem>>, vector<8x32xf32>
    tpu.vector_store %arg13[%c0_29, %c32], %57 {strides = array<i32>} : memref<8x128xf32, #tpu.memory_space<vmem>>, vector<8x32xf32>,
    %59 = vector.extract_strided_slice %8 {offsets = [0, 64], sizes = [8, 32], strides = [1, 1]} : vector<8x128xbf16> to vector<8x32xbf16>
    %60 = vector.extract_strided_slice %11 {offsets = [0, 64], sizes = [8, 32], strides = [1, 1]} : vector<8x128xbf16> to vector<8x32xbf16>
    %61 = vector.extract_strided_slice %14 {offsets = [0, 64], sizes = [8, 32], strides = [1, 1]} : vector<8x128xbf16> to vector<8x32xbf16>
    %cst_30 = arith.constant dense<0.000000e+00> : vector<8x8xf32>
    %62 = tpu.matmul %59, %60, %cst_30 {dimension_numbers = #tpu.dot_dimension_numbers<[1], [1], [0], [0], [0, 0, 1, 0], [], []>} : vector<8x32xbf16>, vector<8x32xbf16>, vector<8x8xf32> -> vector<8x8xf32>
    %cst_31 = arith.constant -1.000000e+30 : f32
    %63 = vector.broadcast %cst_31 : f32 to vector<8x8xf32>
    %64 = arith.select %20, %63, %62 : vector<8x8xi1>, vector<8x8xf32>
    %cst_32 = arith.constant dense<0xFF800000> : vector<8xf32>
    %65 = vector.multi_reduction <maximumf>, %64, %cst_32 [1] : vector<8x8xf32> to vector<8xf32>
    %66 = vector.shape_cast %65 : vector<8xf32> to vector<8x1xf32>
    %67 = vector.broadcast %66 : vector<8x1xf32> to vector<8x8xf32>
    %68 = arith.subf %64, %67 : vector<8x8xf32>
    %69 = math.exp %68 : vector<8x8xf32>
    %cst_33 = arith.constant dense<0.000000e+00> : vector<8xf32>
    %70 = vector.multi_reduction <add>, %69, %cst_33 [1] : vector<8x8xf32> to vector<8xf32>
    %71 = vector.shape_cast %70 : vector<8xf32> to vector<8x1xf32>
    %72 = tpu.reciprocal %71 {approx = true} : vector<8x1xf32> -> vector<8x1xf32>
    %73 = vector.broadcast %72 : vector<8x1xf32> to vector<8x8xf32>
    %74 = arith.mulf %69, %73 : vector<8x8xf32>
    %75 = arith.truncf %74 : vector<8x8xf32> to vector<8x8xbf16>
    %cst_34 = arith.constant dense<0.000000e+00> : vector<8x32xf32>
    %76 = tpu.matmul %75, %61, %cst_34 {dimension_numbers = #tpu.dot_dimension_numbers<[1], [0], [0], [1], [0, 0, 1, 1], [], []>} : vector<8x8xbf16>, vector<8x32xbf16>, vector<8x32xf32> -> vector<8x32xf32>
    %c0_35 = arith.constant 0 : index
    %c64 = arith.constant 64 : index
    %77 = vector.load %arg13[%c0_35, %c64] : memref<8x128xf32, #tpu.memory_space<vmem>>, vector<8x32xf32>
    tpu.vector_store %arg13[%c0_35, %c64], %76 {strides = array<i32>} : memref<8x128xf32, #tpu.memory_space<vmem>>, vector<8x32xf32>,
    %78 = vector.extract_strided_slice %8 {offsets = [0, 96], sizes = [8, 32], strides = [1, 1]} : vector<8x128xbf16> to vector<8x32xbf16>
    %79 = vector.extract_strided_slice %11 {offsets = [0, 96], sizes = [8, 32], strides = [1, 1]} : vector<8x128xbf16> to vector<8x32xbf16>
    %80 = vector.extract_strided_slice %14 {offsets = [0, 96], sizes = [8, 32], strides = [1, 1]} : vector<8x128xbf16> to vector<8x32xbf16>
    %cst_36 = arith.constant dense<0.000000e+00> : vector<8x8xf32>
    %81 = tpu.matmul %78, %79, %cst_36 {dimension_numbers = #tpu.dot_dimension_numbers<[1], [1], [0], [0], [0, 0, 1, 0], [], []>} : vector<8x32xbf16>, vector<8x32xbf16>, vector<8x8xf32> -> vector<8x8xf32>
    %cst_37 = arith.constant -1.000000e+30 : f32
    %82 = vector.broadcast %cst_37 : f32 to vector<8x8xf32>
    %83 = arith.select %20, %82, %81 : vector<8x8xi1>, vector<8x8xf32>
    %cst_38 = arith.constant dense<0xFF800000> : vector<8xf32>
    %84 = vector.multi_reduction <maximumf>, %83, %cst_38 [1] : vector<8x8xf32> to vector<8xf32>
    %85 = vector.shape_cast %84 : vector<8xf32> to vector<8x1xf32>
    %86 = vector.broadcast %85 : vector<8x1xf32> to vector<8x8xf32>
    %87 = arith.subf %83, %86 : vector<8x8xf32>
    %88 = math.exp %87 : vector<8x8xf32>
    %cst_39 = arith.constant dense<0.000000e+00> : vector<8xf32>
    %89 = vector.multi_reduction <add>, %88, %cst_39 [1] : vector<8x8xf32> to vector<8xf32>
    %90 = vector.shape_cast %89 : vector<8xf32> to vector<8x1xf32>
    %91 = tpu.reciprocal %90 {approx = true} : vector<8x1xf32> -> vector<8x1xf32>
    %92 = vector.broadcast %91 : vector<8x1xf32> to vector<8x8xf32>
    %93 = arith.mulf %88, %92 : vector<8x8xf32>
    %94 = arith.truncf %93 : vector<8x8xf32> to vector<8x8xbf16>
    %cst_40 = arith.constant dense<0.000000e+00> : vector<8x32xf32>
    %95 = tpu.matmul %94, %80, %cst_40 {dimension_numbers = #tpu.dot_dimension_numbers<[1], [0], [0], [1], [0, 0, 1, 1], [], []>} : vector<8x8xbf16>, vector<8x32xbf16>, vector<8x32xf32> -> vector<8x32xf32>
    %c0_41 = arith.constant 0 : index
    %c96 = arith.constant 96 : index
    %96 = vector.load %arg13[%c0_41, %c96] : memref<8x128xf32, #tpu.memory_space<vmem>>, vector<8x32xf32>
    tpu.vector_store %arg13[%c0_41, %c96], %95 {strides = array<i32>} : memref<8x128xf32, #tpu.memory_space<vmem>>, vector<8x32xf32>,
    %c0_42 = arith.constant 0 : index
    %c0_43 = arith.constant 0 : index
    %97 = vector.load %arg13[%c0_42, %c0_43] : memref<8x128xf32, #tpu.memory_space<vmem>>, vector<8x128xf32>
    %98 = arith.truncf %97 : vector<8x128xf32> to vector<8x128xbf16>
    %c0_44 = arith.constant 0 : index
    %c0_45 = arith.constant 0 : index
    %99 = vector.load %arg8[%c0_44, %c0_45] : memref<128x128xbf16, #tpu.memory_space<vmem>>, vector<128x128xbf16>
    %cst_46 = arith.constant dense<0.000000e+00> : vector<8x128xf32>
    %100 = tpu.matmul %98, %99, %cst_46 {dimension_numbers = #tpu.dot_dimension_numbers<[1], [0], [0], [1], [0, 0, 1, 1], [], []>} : vector<8x128xbf16>, vector<128x128xbf16>, vector<8x128xf32> -> vector<8x128xf32>
    %c0_47 = arith.constant 0 : index
    %c0_48 = arith.constant 0 : index
    %101 = vector.load %arg9[%c0_47, %c0_48] : memref<1x128xf32, #tpu.memory_space<vmem>>, vector<1x128xf32>
    %102 = vector.broadcast %101 : vector<1x128xf32> to vector<8x128xf32>
    %103 = arith.addf %100, %102 : vector<8x128xf32>
    %104 = arith.extf %1 : vector<8x128xbf16> to vector<8x128xf32>
    %105 = arith.addf %103, %104 : vector<8x128xf32>
    %cst_49 = arith.constant dense<0.000000e+00> : vector<8xf32>
    %106 = vector.multi_reduction <add>, %105, %cst_49 [1] : vector<8x128xf32> to vector<8xf32>
    %107 = vector.shape_cast %106 : vector<8xf32> to vector<8x1xf32>
    %cst_50 = arith.constant 1.280000e+02 : f32
    %108 = vector.broadcast %cst_50 : f32 to vector<8x1xf32>
    %109 = arith.divf %107, %108 : vector<8x1xf32>
    %110 = vector.broadcast %109 : vector<8x1xf32> to vector<8x128xf32>
    %111 = arith.subf %105, %110 : vector<8x128xf32>
    %112 = arith.mulf %111, %111 : vector<8x128xf32>
    %cst_51 = arith.constant dense<0.000000e+00> : vector<8xf32>
    %113 = vector.multi_reduction <add>, %112, %cst_51 [1] : vector<8x128xf32> to vector<8xf32>
    %114 = vector.shape_cast %113 : vector<8xf32> to vector<8x1xf32>
    %cst_52 = arith.constant 1.270000e+02 : f32
    %115 = vector.broadcast %cst_52 : f32 to vector<8x1xf32>
    %116 = arith.divf %114, %115 : vector<8x1xf32>
    %117 = math.sqrt %116 : vector<8x1xf32>
    %cst_53 = arith.constant 1.000000e-03 : f32
    %118 = vector.broadcast %cst_53 : f32 to vector<8x1xf32>
    %119 = arith.addf %117, %118 : vector<8x1xf32>
    %cst_54 = arith.constant 1.000000e+00 : f32
    %120 = vector.broadcast %cst_54 : f32 to vector<8x1xf32>
    %121 = arith.divf %120, %119 : vector<8x1xf32>
    %122 = vector.broadcast %109 : vector<8x1xf32> to vector<8x128xf32>
    %123 = arith.subf %105, %122 : vector<8x128xf32>
    %124 = vector.broadcast %121 : vector<8x1xf32> to vector<8x128xf32>
    %125 = arith.mulf %123, %124 : vector<8x128xf32>
    %c0_55 = arith.constant 0 : index
    %c0_56 = arith.constant 0 : index
    %126 = vector.load %arg10[%c0_55, %c0_56] : memref<1x128xf32, #tpu.memory_space<vmem>>, vector<1x128xf32>
    %127 = vector.broadcast %126 : vector<1x128xf32> to vector<8x128xf32>
    %128 = arith.mulf %125, %127 : vector<8x128xf32>
    %c0_57 = arith.constant 0 : index
    %c0_58 = arith.constant 0 : index
    %129 = vector.load %arg11[%c0_57, %c0_58] : memref<1x128xf32, #tpu.memory_space<vmem>>, vector<1x128xf32>
    %130 = vector.broadcast %129 : vector<1x128xf32> to vector<8x128xf32>
    %131 = arith.addf %128, %130 : vector<8x128xf32>
    %132 = arith.truncf %131 : vector<8x128xf32> to vector<8x128xbf16>
    %c0_59 = arith.constant 0 : index
    %c0_60 = arith.constant 0 : index
    %c0_61 = arith.constant 0 : index
    %133 = vector.load %arg12[%c0_59, %c0_60, %c0_61] : memref<1x8x128xbf16, #tpu.memory_space<vmem>>, vector<1x8x128xbf16>
    %134 = vector.shape_cast %133 : vector<1x8x128xbf16> to vector<8x128xbf16>
    %135 = vector.shape_cast %132 : vector<8x128xbf16> to vector<1x8x128xbf16>
    tpu.vector_store %arg12[%c0_59, %c0_60, %c0_61], %135 {strides = array<i32>} : memref<1x8x128xbf16, #tpu.memory_space<vmem>>, vector<1x8x128xbf16>,
    return
  }
  func.func @transform_0(%arg0: i32, %arg1: i32) -> (i32, i32, i32) {
    %c0_i32 = arith.constant 0 : i32
    %c0_i32_0 = arith.constant 0 : i32
    return %arg0, %arg1, %c0_i32 : i32, i32, i32
  }
  func.func @transform_1(%arg0: i32, %arg1: i32) -> (i32, i32, i32) {
    %c0_i32 = arith.constant 0 : i32
    %c0_i32_0 = arith.constant 0 : i32
    %c0_i32_1 = arith.constant 0 : i32
    return %arg0, %c0_i32, %c0_i32_0 : i32, i32, i32
  }
  func.func @transform_2(%arg0: i32, %arg1: i32) -> (i32, i32, i32) {
    %c0_i32 = arith.constant 0 : i32
    %c0_i32_0 = arith.constant 0 : i32
    %c0_i32_1 = arith.constant 0 : i32
    return %arg0, %c0_i32, %c0_i32_0 : i32, i32, i32
  }
  func.func @transform_3(%arg0: i32, %arg1: i32) -> (i32, i32) {
    %c0_i32 = arith.constant 0 : i32
    %c0_i32_0 = arith.constant 0 : i32
    %c0_i32_1 = arith.constant 0 : i32
    return %c0_i32, %c0_i32_0 : i32, i32
  }
  func.func @transform_4(%arg0: i32, %arg1: i32) -> (i32, i32) {
    %c0_i32 = arith.constant 0 : i32
    %c0_i32_0 = arith.constant 0 : i32
    %c0_i32_1 = arith.constant 0 : i32
    return %c0_i32, %c0_i32_0 : i32, i32
  }
  func.func @transform_5(%arg0: i32, %arg1: i32) -> (i32, i32) {
    %c0_i32 = arith.constant 0 : i32
    %c0_i32_0 = arith.constant 0 : i32
    %c0_i32_1 = arith.constant 0 : i32
    return %c0_i32, %c0_i32_0 : i32, i32
  }
  func.func @transform_6(%arg0: i32, %arg1: i32) -> (i32, i32) {
    %c0_i32 = arith.constant 0 : i32
    %c0_i32_0 = arith.constant 0 : i32
    %c0_i32_1 = arith.constant 0 : i32
    return %c0_i32, %c0_i32_0 : i32, i32
  }
  func.func @transform_7(%arg0: i32, %arg1: i32) -> (i32, i32) {
    %c0_i32 = arith.constant 0 : i32
    %c0_i32_0 = arith.constant 0 : i32
    %c0_i32_1 = arith.constant 0 : i32
    return %c0_i32, %c0_i32_0 : i32, i32
  }
  func.func @transform_8(%arg0: i32, %arg1: i32) -> (i32, i32) {
    %c0_i32 = arith.constant 0 : i32
    %c0_i32_0 = arith.constant 0 : i32
    %c0_i32_1 = arith.constant 0 : i32
    return %c0_i32, %c0_i32_0 : i32, i32
  }
  func.func @transform_9(%arg0: i32, %arg1: i32) -> (i32, i32) {
    %c0_i32 = arith.constant 0 : i32
    %c0_i32_0 = arith.constant 0 : i32
    %c0_i32_1 = arith.constant 0 : i32
    return %c0_i32, %c0_i32_0 : i32, i32
  }
  func.func @transform_10(%arg0: i32, %arg1: i32) -> (i32, i32, i32) {
    %c0_i32 = arith.constant 0 : i32
    %c0_i32_0 = arith.constant 0 : i32
    return %arg0, %arg1, %c0_i32 : i32, i32, i32
  }
}

module attributes {stable_mosaic.version = 11 : i64} {
  func.func @_mha_kernel(%arg0: i32, %arg1: i32, %arg2: memref<1x8x128xbf16, #tpu.memory_space<vmem>>, %arg3: memref<1x8x128xbf16, #tpu.memory_space<vmem>>, %arg4: memref<1x1x8xi32, #tpu.memory_space<vmem>>, %arg5: memref<128x128xbf16, #tpu.memory_space<vmem>>, %arg6: memref<128x128xbf16, #tpu.memory_space<vmem>>, %arg7: memref<128x128xbf16, #tpu.memory_space<vmem>>, %arg8: memref<128x128xbf16, #tpu.memory_space<vmem>>, %arg9: memref<1x128xf32, #tpu.memory_space<vmem>>, %arg10: memref<1x128xf32, #tpu.memory_space<vmem>>, %arg11: memref<1x128xf32, #tpu.memory_space<vmem>>, %arg12: memref<1x8x128xbf16, #tpu.memory_space<vmem>>, %arg13: memref<8x128xf32, #tpu.memory_space<vmem>>) attributes {dimension_semantics = [#tpu.dimension_semantics<parallel>, #tpu.dimension_semantics<parallel>], iteration_bounds = array<i64: 2, 1>, scalar_prefetch = 0 : i64, scratch_operands = 1 : i64, tpu.core_type = #tpu.core_type<tc>, window_params = [{transform_indices = @transform_0, window_bounds = array<i64: 1, 8, 128>}, {transform_indices = @transform_1, window_bounds = array<i64: 1, 8, 128>}, {transform_indices = @transform_2, window_bounds = array<i64: 1, 1, 8>}, {pipeline_mode = #tpu.pipeline_mode<synchronous>, transform_indices = @transform_3, window_bounds = array<i64: 128, 128>}, {pipeline_mode = #tpu.pipeline_mode<synchronous>, transform_indices = @transform_4, window_bounds = array<i64: 128, 128>}, {pipeline_mode = #tpu.pipeline_mode<synchronous>, transform_indices = @transform_5, window_bounds = array<i64: 128, 128>}, {pipeline_mode = #tpu.pipeline_mode<synchronous>, transform_indices = @transform_6, window_bounds = array<i64: 128, 128>}, {pipeline_mode = #tpu.pipeline_mode<synchronous>, transform_indices = @transform_7, window_bounds = array<i64: 1, 128>}, {pipeline_mode = #tpu.pipeline_mode<synchronous>, transform_indices = @transform_8, window_bounds = array<i64: 1, 128>}, {pipeline_mode = #tpu.pipeline_mode<synchronous>, transform_indices = @transform_9, window_bounds = array<i64: 1, 128>}, {transform_indices = @transform_10, window_bounds = array<i64: 1, 8, 128>}]} {
    %c0 = arith.constant 0 : index
    %c0_0 = arith.constant 0 : index
    %c0_1 = arith.constant 0 : index
    %0 = vector.load %arg2[%c0, %c0_0, %c0_1] : memref<1x8x128xbf16, #tpu.memory_space<vmem>>, vector<1x8x128xbf16>
    %1 = vector.shape_cast %0 : vector<1x8x128xbf16> to vector<8x128xbf16>
    %c0_2 = arith.constant 0 : index
    %c0_3 = arith.constant 0 : index
    %c0_4 = arith.constant 0 : index
    %2 = vector.load %arg3[%c0_2, %c0_3, %c0_4] : memref<1x8x128xbf16, #tpu.memory_space<vmem>>, vector<1x8x128xbf16>
    %3 = vector.shape_cast %2 : vector<1x8x128xbf16> to vector<8x128xbf16>
    %c0_5 = arith.constant 0 : index
    %c0_6 = arith.constant 0 : index
    %4 = vector.load %arg5[%c0_5, %c0_6] : memref<128x128xbf16, #tpu.memory_space<vmem>>, vector<128x128xbf16>
    %cst = arith.constant dense<0.000000e+00> : vector<8x128xf32>
    %5 = tpu.matmul %1, %4, %cst {dimension_numbers = #tpu.dot_dimension_numbers<[1], [0], [0], [1], [0, 0, 1, 1], [], []>} : vector<8x128xbf16>, vector<128x128xbf16>, vector<8x128xf32> -> vector<8x128xf32>
    %cst_7 = arith.constant 0.0883883461 : f32
    %6 = vector.broadcast %cst_7 : f32 to vector<8x128xf32>
    %7 = arith.mulf %5, %6 : vector<8x128xf32>
    %8 = arith.truncf %7 : vector<8x128xf32> to vector<8x128xbf16>
    %c0_8 = arith.constant 0 : index
    %c0_9 = arith.constant 0 : index
    %9 = vector.load %arg6[%c0_8, %c0_9] : memref<128x128xbf16, #tpu.memory_space<vmem>>, vector<128x128xbf16>
    %cst_10 = arith.constant dense<0.000000e+00> : vector<8x128xf32>
    %10 = tpu.matmul %3, %9, %cst_10 {dimension_numbers = #tpu.dot_dimension_numbers<[1], [0], [0], [1], [0, 0, 1, 1], [], []>} : vector<8x128xbf16>, vector<128x128xbf16>, vector<8x128xf32> -> vector<8x128xf32>
    %11 = arith.truncf %10 : vector<8x128xf32> to vector<8x128xbf16>
    %c0_11 = arith.constant 0 : index
    %c0_12 = arith.constant 0 : index
    %12 = vector.load %arg7[%c0_11, %c0_12] : memref<128x128xbf16, #tpu.memory_space<vmem>>, vector<128x128xbf16>
    %cst_13 = arith.constant dense<0.000000e+00> : vector<8x128xf32>
    %13 = tpu.matmul %3, %12, %cst_13 {dimension_numbers = #tpu.dot_dimension_numbers<[1], [0], [0], [1], [0, 0, 1, 1], [], []>} : vector<8x128xbf16>, vector<128x128xbf16>, vector<8x128xf32> -> vector<8x128xf32>
    %14 = arith.truncf %13 : vector<8x128xf32> to vector<8x128xbf16>
    %c0_14 = arith.constant 0 : index
    %c0_15 = arith.constant 0 : index
    %c0_16 = arith.constant 0 : index
    %15 = vector.load %arg4[%c0_14, %c0_15, %c0_16] : memref<1x1x8xi32, #tpu.memory_space<vmem>>, vector<1x1x8xi32>
    %16 = vector.shape_cast %15 : vector<1x1x8xi32> to vector<1x8xi32>
    %c0_i32 = arith.constant 0 : i32
    %17 = vector.broadcast %c0_i32 : i32 to vector<1x8xi32>
    %18 = arith.cmpi sgt, %16, %17 : vector<1x8xi32>
    %19 = vector.shape_cast %18 : vector<1x8xi1> to vector<1x8xi1>
    %20 = vector.broadcast %19 : vector<1x8xi1> to vector<8x8xi1>
    %21 = vector.extract_strided_slice %8 {offsets = [0, 0], sizes = [8, 32], strides = [1, 1]} : vector<8x128xbf16> to vector<8x32xbf16>
    %22 = vector.extract_strided_slice %11 {offsets = [0, 0], sizes = [8, 32], strides = [1, 1]} : vector<8x128xbf16> to vector<8x32xbf16>
    %23 = vector.extract_strided_slice %14 {offsets = [0, 0], sizes = [8, 32], strides = [1, 1]} : vector<8x128xbf16> to vector<8x32xbf16>
    %cst_17 = arith.constant dense<0.000000e+00> : vector<8x8xf32>
    %24 = tpu.matmul %21, %22, %cst_17 {dimension_numbers = #tpu.dot_dimension_numbers<[1], [1], [0], [0], [0, 0, 1, 0], [], []>} : vector<8x32xbf16>, vector<8x32xbf16>, vector<8x8xf32> -> vector<8x8xf32>
    %cst_18 = arith.constant -1.000000e+30 : f32
    %25 = vector.broadcast %cst_18 : f32 to vector<8x8xf32>
    %26 = arith.select %20, %25, %24 : vector<8x8xi1>, vector<8x8xf32>
    %cst_19 = arith.constant dense<0xFF800000> : vector<8xf32>
    %27 = vector.multi_reduction <maximumf>, %26, %cst_19 [1] : vector<8x8xf32> to vector<8xf32>
    %28 = vector.shape_cast %27 : vector<8xf32> to vector<8x1xf32>
    %29 = vector.broadcast %28 : vector<8x1xf32> to vector<8x8xf32>
    %30 = arith.subf %26, %29 : vector<8x8xf32>
    %31 = math.exp %30 : vector<8x8xf32>
    %cst_20 = arith.constant dense<0.000000e+00> : vector<8xf32>
    %32 = vector.multi_reduction <add>, %31, %cst_20 [1] : vector<8x8xf32> to vector<8xf32>
    %33 = vector.shape_cast %32 : vector<8xf32> to vector<8x1xf32>
    %34 = tpu.reciprocal %33 {approx = true} : vector<8x1xf32> -> vector<8x1xf32>
    %35 = vector.broadcast %34 : vector<8x1xf32> to vector<8x8xf32>
    %36 = arith.mulf %31, %35 : vector<8x8xf32>
    %37 = arith.truncf %36 : vector<8x8xf32> to vector<8x8xbf16>
    %cst_21 = arith.constant dense<0.000000e+00> : vector<8x32xf32>
    %38 = tpu.matmul %37, %23, %cst_21 {dimension_numbers = #tpu.dot_dimension_numbers<[1], [0], [0], [1], [0, 0, 1, 1], [], []>} : vector<8x8xbf16>, vector<8x32xbf16>, vector<8x32xf32> -> vector<8x32xf32>
    %c0_22 = arith.constant 0 : index
    %c0_23 = arith.constant 0 : index
    %39 = vector.load %arg13[%c0_22, %c0_23] : memref<8x128xf32, #tpu.memory_space<vmem>>, vector<8x32xf32>
    tpu.vector_store %arg13[%c0_22, %c0_23], %38 {strides = array<i32>} : memref<8x128xf32, #tpu.memory_space<vmem>>, vector<8x32xf32>,
    %40 = vector.extract_strided_slice %8 {offsets = [0, 32], sizes = [8, 32], strides = [1, 1]} : vector<8x128xbf16> to vector<8x32xbf16>
    %41 = vector.extract_strided_slice %11 {offsets = [0, 32], sizes = [8, 32], strides = [1, 1]} : vector<8x128xbf16> to vector<8x32xbf16>
    %42 = vector.extract_strided_slice %14 {offsets = [0, 32], sizes = [8, 32], strides = [1, 1]} : vector<8x128xbf16> to vector<8x32xbf16>
    %cst_24 = arith.constant dense<0.000000e+00> : vector<8x8xf32>
    %43 = tpu.matmul %40, %41, %cst_24 {dimension_numbers = #tpu.dot_dimension_numbers<[1], [1], [0], [0], [0, 0, 1, 0], [], []>} : vector<8x32xbf16>, vector<8x32xbf16>, vector<8x8xf32> -> vector<8x8xf32>
    %cst_25 = arith.constant -1.000000e+30 : f32
    %44 = vector.broadcast %cst_25 : f32 to vector<8x8xf32>
    %45 = arith.select %20, %44, %43 : vector<8x8xi1>, vector<8x8xf32>
    %cst_26 = arith.constant dense<0xFF800000> : vector<8xf32>
    %46 = vector.multi_reduction <maximumf>, %45, %cst_26 [1] : vector<8x8xf32> to vector<8xf32>
    %47 = vector.shape_cast %46 : vector<8xf32> to vector<8x1xf32>
    %48 = vector.broadcast %47 : vector<8x1xf32> to vector<8x8xf32>
    %49 = arith.subf %45, %48 : vector<8x8xf32>
    %50 = math.exp %49 : vector<8x8xf32>
    %cst_27 = arith.constant dense<0.000000e+00> : vector<8xf32>
    %51 = vector.multi_reduction <add>, %50, %cst_27 [1] : vector<8x8xf32> to vector<8xf32>
    %52 = vector.shape_cast %51 : vector<8xf32> to vector<8x1xf32>
    %53 = tpu.reciprocal %52 {approx = true} : vector<8x1xf32> -> vector<8x1xf32>
    %54 = vector.broadcast %53 : vector<8x1xf32> to vector<8x8xf32>
    %55 = arith.mulf %50, %54 : vector<8x8xf32>
    %56 = arith.truncf %55 : vector<8x8xf32> to vector<8x8xbf16>
    %cst_28 = arith.constant dense<0.000000e+00> : vector<8x32xf32>
    %57 = tpu.matmul %56, %42, %cst_28 {dimension_numbers = #tpu.dot_dimension_numbers<[1], [0], [0], [1], [0, 0, 1, 1], [], []>} : vector<8x8xbf16>, vector<8x32xbf16>, vector<8x32xf32> -> vector<8x32xf32>
    %c0_29 = arith.constant 0 : index
    %c32 = arith.constant 32 : index
    %58 = vector.load %arg13[%c0_29, %c32] : memref<8x128xf32, #tpu.memory_space<vmem>>, vector<8x32xf32>
    tpu.vector_store %arg13[%c0_29, %c32], %57 {strides = array<i32>} : memref<8x128xf32, #tpu.memory_space<vmem>>, vector<8x32xf32>,
    %59 = vector.extract_strided_slice %8 {offsets = [0, 64], sizes = [8, 32], strides = [1, 1]} : vector<8x128xbf16> to vector<8x32xbf16>
    %60 = vector.extract_strided_slice %11 {offsets = [0, 64], sizes = [8, 32], strides = [1, 1]} : vector<8x128xbf16> to vector<8x32xbf16>
    %61 = vector.extract_strided_slice %14 {offsets = [0, 64], sizes = [8, 32], strides = [1, 1]} : vector<8x128xbf16> to vector<8x32xbf16>
    %cst_30 = arith.constant dense<0.000000e+00> : vector<8x8xf32>
    %62 = tpu.matmul %59, %60, %cst_30 {dimension_numbers = #tpu.dot_dimension_numbers<[1], [1], [0], [0], [0, 0, 1, 0], [], []>} : vector<8x32xbf16>, vector<8x32xbf16>, vector<8x8xf32> -> vector<8x8xf32>
    %cst_31 = arith.constant -1.000000e+30 : f32
    %63 = vector.broadcast %cst_31 : f32 to vector<8x8xf32>
    %64 = arith.select %20, %63, %62 : vector<8x8xi1>, vector<8x8xf32>
    %cst_32 = arith.constant dense<0xFF800000> : vector<8xf32>
    %65 = vector.multi_reduction <maximumf>, %64, %cst_32 [1] : vector<8x8xf32> to vector<8xf32>
    %66 = vector.shape_cast %65 : vector<8xf32> to vector<8x1xf32>
    %67 = vector.broadcast %66 : vector<8x1xf32> to vector<8x8xf32>
    %68 = arith.subf %64, %67 : vector<8x8xf32>
    %69 = math.exp %68 : vector<8x8xf32>
    %cst_33 = arith.constant dense<0.000000e+00> : vector<8xf32>
    %70 = vector.multi_reduction <add>, %69, %cst_33 [1] : vector<8x8xf32> to vector<8xf32>
    %71 = vector.shape_cast %70 : vector<8xf32> to vector<8x1xf32>
    %72 = tpu.reciprocal %71 {approx = true} : vector<8x1xf32> -> vector<8x1xf32>
    %73 = vector.broadcast %72 : vector<8x1xf32> to vector<8x8xf32>
    %74 = arith.mulf %69, %73 : vector<8x8xf32>
    %75 = arith.truncf %74 : vector<8x8xf32> to vector<8x8xbf16>
    %cst_34 = arith.constant dense<0.000000e+00> : vector<8x32xf32>
    %76 = tpu.matmul %75, %61, %cst_34 {dimension_numbers = #tpu.dot_dimension_numbers<[1], [0], [0], [1], [0, 0, 1, 1], [], []>} : vector<8x8xbf16>, vector<8x32xbf16>, vector<8x32xf32> -> vector<8x32xf32>
    %c0_35 = arith.constant 0 : index
    %c64 = arith.constant 64 : index
    %77 = vector.load %arg13[%c0_35, %c64] : memref<8x128xf32, #tpu.memory_space<vmem>>, vector<8x32xf32>
    tpu.vector_store %arg13[%c0_35, %c64], %76 {strides = array<i32>} : memref<8x128xf32, #tpu.memory_space<vmem>>, vector<8x32xf32>,
    %78 = vector.extract_strided_slice %8 {offsets = [0, 96], sizes = [8, 32], strides = [1, 1]} : vector<8x128xbf16> to vector<8x32xbf16>
    %79 = vector.extract_strided_slice %11 {offsets = [0, 96], sizes = [8, 32], strides = [1, 1]} : vector<8x128xbf16> to vector<8x32xbf16>
    %80 = vector.extract_strided_slice %14 {offsets = [0, 96], sizes = [8, 32], strides = [1, 1]} : vector<8x128xbf16> to vector<8x32xbf16>
    %cst_36 = arith.constant dense<0.000000e+00> : vector<8x8xf32>
    %81 = tpu.matmul %78, %79, %cst_36 {dimension_numbers = #tpu.dot_dimension_numbers<[1], [1], [0], [0], [0, 0, 1, 0], [], []>} : vector<8x32xbf16>, vector<8x32xbf16>, vector<8x8xf32> -> vector<8x8xf32>
    %cst_37 = arith.constant -1.000000e+30 : f32
    %82 = vector.broadcast %cst_37 : f32 to vector<8x8xf32>
    %83 = arith.select %20, %82, %81 : vector<8x8xi1>, vector<8x8xf32>
    %cst_38 = arith.constant dense<0xFF800000> : vector<8xf32>
    %84 = vector.multi_reduction <maximumf>, %83, %cst_38 [1] : vector<8x8xf32> to vector<8xf32>
    %85 = vector.shape_cast %84 : vector<8xf32> to vector<8x1xf32>
    %86 = vector.broadcast %85 : vector<8x1xf32> to vector<8x8xf32>
    %87 = arith.subf %83, %86 : vector<8x8xf32>
    %88 = math.exp %87 : vector<8x8xf32>
    %cst_39 = arith.constant dense<0.000000e+00> : vector<8xf32>
    %89 = vector.multi_reduction <add>, %88, %cst_39 [1] : vector<8x8xf32> to vector<8xf32>
    %90 = vector.shape_cast %89 : vector<8xf32> to vector<8x1xf32>
    %91 = tpu.reciprocal %90 {approx = true} : vector<8x1xf32> -> vector<8x1xf32>
    %92 = vector.broadcast %91 : vector<8x1xf32> to vector<8x8xf32>
    %93 = arith.mulf %88, %92 : vector<8x8xf32>
    %94 = arith.truncf %93 : vector<8x8xf32> to vector<8x8xbf16>
    %cst_40 = arith.constant dense<0.000000e+00> : vector<8x32xf32>
    %95 = tpu.matmul %94, %80, %cst_40 {dimension_numbers = #tpu.dot_dimension_numbers<[1], [0], [0], [1], [0, 0, 1, 1], [], []>} : vector<8x8xbf16>, vector<8x32xbf16>, vector<8x32xf32> -> vector<8x32xf32>
    %c0_41 = arith.constant 0 : index
    %c96 = arith.constant 96 : index
    %96 = vector.load %arg13[%c0_41, %c96] : memref<8x128xf32, #tpu.memory_space<vmem>>, vector<8x32xf32>
    tpu.vector_store %arg13[%c0_41, %c96], %95 {strides = array<i32>} : memref<8x128xf32, #tpu.memory_space<vmem>>, vector<8x32xf32>,
    %c0_42 = arith.constant 0 : index
    %c0_43 = arith.constant 0 : index
    %97 = vector.load %arg13[%c0_42, %c0_43] : memref<8x128xf32, #tpu.memory_space<vmem>>, vector<8x128xf32>
    %98 = arith.truncf %97 : vector<8x128xf32> to vector<8x128xbf16>
    %c0_44 = arith.constant 0 : index
    %c0_45 = arith.constant 0 : index
    %99 = vector.load %arg8[%c0_44, %c0_45] : memref<128x128xbf16, #tpu.memory_space<vmem>>, vector<128x128xbf16>
    %cst_46 = arith.constant dense<0.000000e+00> : vector<8x128xf32>
    %100 = tpu.matmul %98, %99, %cst_46 {dimension_numbers = #tpu.dot_dimension_numbers<[1], [0], [0], [1], [0, 0, 1, 1], [], []>} : vector<8x128xbf16>, vector<128x128xbf16>, vector<8x128xf32> -> vector<8x128xf32>
    %c0_47 = arith.constant 0 : index
    %c0_48 = arith.constant 0 : index
    %101 = vector.load %arg9[%c0_47, %c0_48] : memref<1x128xf32, #tpu.memory_space<vmem>>, vector<1x128xf32>
    %102 = vector.broadcast %101 : vector<1x128xf32> to vector<8x128xf32>
    %103 = arith.addf %100, %102 : vector<8x128xf32>
    %104 = arith.extf %1 : vector<8x128xbf16> to vector<8x128xf32>
    %105 = arith.addf %103, %104 : vector<8x128xf32>
    %cst_49 = arith.constant dense<0.000000e+00> : vector<8xf32>
    %106 = vector.multi_reduction <add>, %105, %cst_49 [1] : vector<8x128xf32> to vector<8xf32>
    %107 = vector.shape_cast %106 : vector<8xf32> to vector<8x1xf32>
    %cst_50 = arith.constant 1.280000e+02 : f32
    %108 = vector.broadcast %cst_50 : f32 to vector<8x1xf32>
    %109 = arith.divf %107, %108 : vector<8x1xf32>
    %110 = vector.broadcast %109 : vector<8x1xf32> to vector<8x128xf32>
    %111 = arith.subf %105, %110 : vector<8x128xf32>
    %112 = arith.mulf %111, %111 : vector<8x128xf32>
    %cst_51 = arith.constant dense<0.000000e+00> : vector<8xf32>
    %113 = vector.multi_reduction <add>, %112, %cst_51 [1] : vector<8x128xf32> to vector<8xf32>
    %114 = vector.shape_cast %113 : vector<8xf32> to vector<8x1xf32>
    %cst_52 = arith.constant 1.270000e+02 : f32
    %115 = vector.broadcast %cst_52 : f32 to vector<8x1xf32>
    %116 = arith.divf %114, %115 : vector<8x1xf32>
    %117 = math.sqrt %116 : vector<8x1xf32>
    %cst_53 = arith.constant 1.000000e-03 : f32
    %118 = vector.broadcast %cst_53 : f32 to vector<8x1xf32>
    %119 = arith.addf %117, %118 : vector<8x1xf32>
    %cst_54 = arith.constant 1.000000e+00 : f32
    %120 = vector.broadcast %cst_54 : f32 to vector<8x1xf32>
    %121 = arith.divf %120, %119 : vector<8x1xf32>
    %122 = vector.broadcast %109 : vector<8x1xf32> to vector<8x128xf32>
    %123 = arith.subf %105, %122 : vector<8x128xf32>
    %124 = vector.broadcast %121 : vector<8x1xf32> to vector<8x128xf32>
    %125 = arith.mulf %123, %124 : vector<8x128xf32>
    %c0_55 = arith.constant 0 : index
    %c0_56 = arith.constant 0 : index
    %126 = vector.load %arg10[%c0_55, %c0_56] : memref<1x128xf32, #tpu.memory_space<vmem>>, vector<1x128xf32>
    %127 = vector.broadcast %126 : vector<1x128xf32> to vector<8x128xf32>
    %128 = arith.mulf %125, %127 : vector<8x128xf32>
    %c0_57 = arith.constant 0 : index
    %c0_58 = arith.constant 0 : index
    %129 = vector.load %arg11[%c0_57, %c0_58] : memref<1x128xf32, #tpu.memory_space<vmem>>, vector<1x128xf32>
    %130 = vector.broadcast %129 : vector<1x128xf32> to vector<8x128xf32>
    %131 = arith.addf %128, %130 : vector<8x128xf32>
    %132 = arith.truncf %131 : vector<8x128xf32> to vector<8x128xbf16>
    %c0_59 = arith.constant 0 : index
    %c0_60 = arith.constant 0 : index
    %c0_61 = arith.constant 0 : index
    %133 = vector.load %arg12[%c0_59, %c0_60, %c0_61] : memref<1x8x128xbf16, #tpu.memory_space<vmem>>, vector<1x8x128xbf16>
    %134 = vector.shape_cast %133 : vector<1x8x128xbf16> to vector<8x128xbf16>
    %135 = vector.shape_cast %132 : vector<8x128xbf16> to vector<1x8x128xbf16>
    tpu.vector_store %arg12[%c0_59, %c0_60, %c0_61], %135 {strides = array<i32>} : memref<1x8x128xbf16, #tpu.memory_space<vmem>>, vector<1x8x128xbf16>,
    return
  }
  func.func @transform_0(%arg0: i32, %arg1: i32) -> (i32, i32, i32) {
    %c0_i32 = arith.constant 0 : i32
    %c0_i32_0 = arith.constant 0 : i32
    return %arg0, %arg1, %c0_i32 : i32, i32, i32
  }
  func.func @transform_1(%arg0: i32, %arg1: i32) -> (i32, i32, i32) {
    %c0_i32 = arith.constant 0 : i32
    %c0_i32_0 = arith.constant 0 : i32
    %c0_i32_1 = arith.constant 0 : i32
    return %arg0, %c0_i32, %c0_i32_0 : i32, i32, i32
  }
  func.func @transform_2(%arg0: i32, %arg1: i32) -> (i32, i32, i32) {
    %c0_i32 = arith.constant 0 : i32
    %c0_i32_0 = arith.constant 0 : i32
    %c0_i32_1 = arith.constant 0 : i32
    return %arg0, %c0_i32, %c0_i32_0 : i32, i32, i32
  }
  func.func @transform_3(%arg0: i32, %arg1: i32) -> (i32, i32) {
    %c0_i32 = arith.constant 0 : i32
    %c0_i32_0 = arith.constant 0 : i32
    %c0_i32_1 = arith.constant 0 : i32
    return %c0_i32, %c0_i32_0 : i32, i32
  }
  func.func @transform_4(%arg0: i32, %arg1: i32) -> (i32, i32) {
    %c0_i32 = arith.constant 0 : i32
    %c0_i32_0 = arith.constant 0 : i32
    %c0_i32_1 = arith.constant 0 : i32
    return %c0_i32, %c0_i32_0 : i32, i32
  }
  func.func @transform_5(%arg0: i32, %arg1: i32) -> (i32, i32) {
    %c0_i32 = arith.constant 0 : i32
    %c0_i32_0 = arith.constant 0 : i32
    %c0_i32_1 = arith.constant 0 : i32
    return %c0_i32, %c0_i32_0 : i32, i32
  }
  func.func @transform_6(%arg0: i32, %arg1: i32) -> (i32, i32) {
    %c0_i32 = arith.constant 0 : i32
    %c0_i32_0 = arith.constant 0 : i32
    %c0_i32_1 = arith.constant 0 : i32
    return %c0_i32, %c0_i32_0 : i32, i32
  }
  func.func @transform_7(%arg0: i32, %arg1: i32) -> (i32, i32) {
    %c0_i32 = arith.constant 0 : i32
    %c0_i32_0 = arith.constant 0 : i32
    %c0_i32_1 = arith.constant 0 : i32
    return %c0_i32, %c0_i32_0 : i32, i32
  }
  func.func @transform_8(%arg0: i32, %arg1: i32) -> (i32, i32) {
    %c0_i32 = arith.constant 0 : i32
    %c0_i32_0 = arith.constant 0 : i32
    %c0_i32_1 = arith.constant 0 : i32
    return %c0_i32, %c0_i32_0 : i32, i32
  }
  func.func @transform_9(%arg0: i32, %arg1: i32) -> (i32, i32) {
    %c0_i32 = arith.constant 0 : i32
    %c0_i32_0 = arith.constant 0 : i32
    %c0_i32_1 = arith.constant 0 : i32
    return %c0_i32, %c0_i32_0 : i32, i32
  }
  func.func @transform_10(%arg0: i32, %arg1: i32) -> (i32, i32, i32) {
    %c0_i32 = arith.constant 0 : i32
    %c0_i32_0 = arith.constant 0 : i32
    return %arg0, %arg1, %c0_i32 : i32, i32, i32
  }
}

module attributes {stable_mosaic.version = 11 : i64} {
  func.func @_ffn_kernel(%arg0: i32, %arg1: memref<16x128xbf16, #tpu.memory_space<vmem>>, %arg2: memref<128x256xbf16, #tpu.memory_space<vmem>>, %arg3: memref<1x256xf32, #tpu.memory_space<vmem>>, %arg4: memref<256x128xbf16, #tpu.memory_space<vmem>>, %arg5: memref<1x128xf32, #tpu.memory_space<vmem>>, %arg6: memref<1x128xf32, #tpu.memory_space<vmem>>, %arg7: memref<1x128xf32, #tpu.memory_space<vmem>>, %arg8: memref<16x128xbf16, #tpu.memory_space<vmem>>) attributes {dimension_semantics = [#tpu.dimension_semantics<parallel>], iteration_bounds = array<i64: 1>, scalar_prefetch = 0 : i64, scratch_operands = 0 : i64, tpu.core_type = #tpu.core_type<tc>, window_params = [{transform_indices = @transform_0, window_bounds = array<i64: 16, 128>}, {pipeline_mode = #tpu.pipeline_mode<synchronous>, transform_indices = @transform_1, window_bounds = array<i64: 128, 256>}, {pipeline_mode = #tpu.pipeline_mode<synchronous>, transform_indices = @transform_2, window_bounds = array<i64: 1, 256>}, {pipeline_mode = #tpu.pipeline_mode<synchronous>, transform_indices = @transform_3, window_bounds = array<i64: 256, 128>}, {pipeline_mode = #tpu.pipeline_mode<synchronous>, transform_indices = @transform_4, window_bounds = array<i64: 1, 128>}, {pipeline_mode = #tpu.pipeline_mode<synchronous>, transform_indices = @transform_5, window_bounds = array<i64: 1, 128>}, {pipeline_mode = #tpu.pipeline_mode<synchronous>, transform_indices = @transform_6, window_bounds = array<i64: 1, 128>}, {transform_indices = @transform_7, window_bounds = array<i64: 16, 128>}]} {
    %c0 = arith.constant 0 : index
    %c0_0 = arith.constant 0 : index
    %0 = vector.load %arg1[%c0, %c0_0] : memref<16x128xbf16, #tpu.memory_space<vmem>>, vector<16x128xbf16>
    %c0_1 = arith.constant 0 : index
    %c0_2 = arith.constant 0 : index
    %1 = vector.load %arg2[%c0_1, %c0_2] : memref<128x256xbf16, #tpu.memory_space<vmem>>, vector<128x256xbf16>
    %cst = arith.constant dense<0.000000e+00> : vector<16x256xf32>
    %2 = tpu.matmul %0, %1, %cst {dimension_numbers = #tpu.dot_dimension_numbers<[1], [0], [0], [1], [0, 0, 1, 1], [], []>} : vector<16x128xbf16>, vector<128x256xbf16>, vector<16x256xf32> -> vector<16x256xf32>
    %c0_3 = arith.constant 0 : index
    %c0_4 = arith.constant 0 : index
    %3 = vector.load %arg3[%c0_3, %c0_4] : memref<1x256xf32, #tpu.memory_space<vmem>>, vector<1x256xf32>
    %4 = vector.broadcast %3 : vector<1x256xf32> to vector<16x256xf32>
    %5 = arith.addf %2, %4 : vector<16x256xf32>
    %cst_5 = arith.constant 0.000000e+00 : f32
    %6 = vector.broadcast %cst_5 : f32 to vector<16x256xf32>
    %7 = arith.maximumf %5, %6 : vector<16x256xf32>
    %8 = arith.truncf %7 : vector<16x256xf32> to vector<16x256xbf16>
    %c0_6 = arith.constant 0 : index
    %c0_7 = arith.constant 0 : index
    %9 = vector.load %arg4[%c0_6, %c0_7] : memref<256x128xbf16, #tpu.memory_space<vmem>>, vector<256x128xbf16>
    %cst_8 = arith.constant dense<0.000000e+00> : vector<16x128xf32>
    %10 = tpu.matmul %8, %9, %cst_8 {dimension_numbers = #tpu.dot_dimension_numbers<[1], [0], [0], [1], [0, 0, 1, 1], [], []>} : vector<16x256xbf16>, vector<256x128xbf16>, vector<16x128xf32> -> vector<16x128xf32>
    %c0_9 = arith.constant 0 : index
    %c0_10 = arith.constant 0 : index
    %11 = vector.load %arg5[%c0_9, %c0_10] : memref<1x128xf32, #tpu.memory_space<vmem>>, vector<1x128xf32>
    %12 = vector.broadcast %11 : vector<1x128xf32> to vector<16x128xf32>
    %13 = arith.addf %10, %12 : vector<16x128xf32>
    %14 = arith.extf %0 : vector<16x128xbf16> to vector<16x128xf32>
    %15 = arith.addf %13, %14 : vector<16x128xf32>
    %cst_11 = arith.constant dense<0.000000e+00> : vector<16xf32>
    %16 = vector.multi_reduction <add>, %15, %cst_11 [1] : vector<16x128xf32> to vector<16xf32>
    %17 = vector.shape_cast %16 : vector<16xf32> to vector<16x1xf32>
    %cst_12 = arith.constant 1.280000e+02 : f32
    %18 = vector.broadcast %cst_12 : f32 to vector<16x1xf32>
    %19 = arith.divf %17, %18 : vector<16x1xf32>
    %20 = vector.broadcast %19 : vector<16x1xf32> to vector<16x128xf32>
    %21 = arith.subf %15, %20 : vector<16x128xf32>
    %22 = arith.mulf %21, %21 : vector<16x128xf32>
    %cst_13 = arith.constant dense<0.000000e+00> : vector<16xf32>
    %23 = vector.multi_reduction <add>, %22, %cst_13 [1] : vector<16x128xf32> to vector<16xf32>
    %24 = vector.shape_cast %23 : vector<16xf32> to vector<16x1xf32>
    %cst_14 = arith.constant 1.270000e+02 : f32
    %25 = vector.broadcast %cst_14 : f32 to vector<16x1xf32>
    %26 = arith.divf %24, %25 : vector<16x1xf32>
    %27 = math.sqrt %26 : vector<16x1xf32>
    %cst_15 = arith.constant 1.000000e-03 : f32
    %28 = vector.broadcast %cst_15 : f32 to vector<16x1xf32>
    %29 = arith.addf %27, %28 : vector<16x1xf32>
    %cst_16 = arith.constant 1.000000e+00 : f32
    %30 = vector.broadcast %cst_16 : f32 to vector<16x1xf32>
    %31 = arith.divf %30, %29 : vector<16x1xf32>
    %32 = vector.broadcast %19 : vector<16x1xf32> to vector<16x128xf32>
    %33 = arith.subf %15, %32 : vector<16x128xf32>
    %34 = vector.broadcast %31 : vector<16x1xf32> to vector<16x128xf32>
    %35 = arith.mulf %33, %34 : vector<16x128xf32>
    %c0_17 = arith.constant 0 : index
    %c0_18 = arith.constant 0 : index
    %36 = vector.load %arg6[%c0_17, %c0_18] : memref<1x128xf32, #tpu.memory_space<vmem>>, vector<1x128xf32>
    %37 = vector.broadcast %36 : vector<1x128xf32> to vector<16x128xf32>
    %38 = arith.mulf %35, %37 : vector<16x128xf32>
    %c0_19 = arith.constant 0 : index
    %c0_20 = arith.constant 0 : index
    %39 = vector.load %arg7[%c0_19, %c0_20] : memref<1x128xf32, #tpu.memory_space<vmem>>, vector<1x128xf32>
    %40 = vector.broadcast %39 : vector<1x128xf32> to vector<16x128xf32>
    %41 = arith.addf %38, %40 : vector<16x128xf32>
    %42 = arith.truncf %41 : vector<16x128xf32> to vector<16x128xbf16>
    %c0_21 = arith.constant 0 : index
    %c0_22 = arith.constant 0 : index
    %43 = vector.load %arg8[%c0_21, %c0_22] : memref<16x128xbf16, #tpu.memory_space<vmem>>, vector<16x128xbf16>
    tpu.vector_store %arg8[%c0_21, %c0_22], %42 {strides = array<i32>} : memref<16x128xbf16, #tpu.memory_space<vmem>>, vector<16x128xbf16>,
    return
  }
  func.func @transform_0(%arg0: i32) -> (i32, i32) {
    %c0_i32 = arith.constant 0 : i32
    %c0_i32_0 = arith.constant 0 : i32
    return %arg0, %c0_i32 : i32, i32
  }
  func.func @transform_1(%arg0: i32) -> (i32, i32) {
    %c0_i32 = arith.constant 0 : i32
    %c0_i32_0 = arith.constant 0 : i32
    %c0_i32_1 = arith.constant 0 : i32
    return %c0_i32, %c0_i32_0 : i32, i32
  }
  func.func @transform_2(%arg0: i32) -> (i32, i32) {
    %c0_i32 = arith.constant 0 : i32
    %c0_i32_0 = arith.constant 0 : i32
    %c0_i32_1 = arith.constant 0 : i32
    return %c0_i32, %c0_i32_0 : i32, i32
  }
  func.func @transform_3(%arg0: i32) -> (i32, i32) {
    %c0_i32 = arith.constant 0 : i32
    %c0_i32_0 = arith.constant 0 : i32
    %c0_i32_1 = arith.constant 0 : i32
    return %c0_i32, %c0_i32_0 : i32, i32
  }
  func.func @transform_4(%arg0: i32) -> (i32, i32) {
    %c0_i32 = arith.constant 0 : i32
    %c0_i32_0 = arith.constant 0 : i32
    %c0_i32_1 = arith.constant 0 : i32
    return %c0_i32, %c0_i32_0 : i32, i32
  }
  func.func @transform_5(%arg0: i32) -> (i32, i32) {
    %c0_i32 = arith.constant 0 : i32
    %c0_i32_0 = arith.constant 0 : i32
    %c0_i32_1 = arith.constant 0 : i32
    return %c0_i32, %c0_i32_0 : i32, i32
  }
  func.func @transform_6(%arg0: i32) -> (i32, i32) {
    %c0_i32 = arith.constant 0 : i32
    %c0_i32_0 = arith.constant 0 : i32
    %c0_i32_1 = arith.constant 0 : i32
    return %c0_i32, %c0_i32_0 : i32, i32
  }
  func.func @transform_7(%arg0: i32) -> (i32, i32) {
    %c0_i32 = arith.constant 0 : i32
    %c0_i32_0 = arith.constant 0 : i32
    return %arg0, %c0_i32 : i32, i32
  }
}

module attributes {stable_mosaic.version = 11 : i64} {
  func.func @_mha_kernel(%arg0: i32, %arg1: i32, %arg2: memref<1x8x128xbf16, #tpu.memory_space<vmem>>, %arg3: memref<1x8x128xbf16, #tpu.memory_space<vmem>>, %arg4: memref<1x1x8xi32, #tpu.memory_space<vmem>>, %arg5: memref<128x128xbf16, #tpu.memory_space<vmem>>, %arg6: memref<128x128xbf16, #tpu.memory_space<vmem>>, %arg7: memref<128x128xbf16, #tpu.memory_space<vmem>>, %arg8: memref<128x128xbf16, #tpu.memory_space<vmem>>, %arg9: memref<1x128xf32, #tpu.memory_space<vmem>>, %arg10: memref<1x128xf32, #tpu.memory_space<vmem>>, %arg11: memref<1x128xf32, #tpu.memory_space<vmem>>, %arg12: memref<1x8x128xbf16, #tpu.memory_space<vmem>>, %arg13: memref<8x128xf32, #tpu.memory_space<vmem>>) attributes {dimension_semantics = [#tpu.dimension_semantics<parallel>, #tpu.dimension_semantics<parallel>], iteration_bounds = array<i64: 2, 1>, scalar_prefetch = 0 : i64, scratch_operands = 1 : i64, tpu.core_type = #tpu.core_type<tc>, window_params = [{transform_indices = @transform_0, window_bounds = array<i64: 1, 8, 128>}, {transform_indices = @transform_1, window_bounds = array<i64: 1, 8, 128>}, {transform_indices = @transform_2, window_bounds = array<i64: 1, 1, 8>}, {pipeline_mode = #tpu.pipeline_mode<synchronous>, transform_indices = @transform_3, window_bounds = array<i64: 128, 128>}, {pipeline_mode = #tpu.pipeline_mode<synchronous>, transform_indices = @transform_4, window_bounds = array<i64: 128, 128>}, {pipeline_mode = #tpu.pipeline_mode<synchronous>, transform_indices = @transform_5, window_bounds = array<i64: 128, 128>}, {pipeline_mode = #tpu.pipeline_mode<synchronous>, transform_indices = @transform_6, window_bounds = array<i64: 128, 128>}, {pipeline_mode = #tpu.pipeline_mode<synchronous>, transform_indices = @transform_7, window_bounds = array<i64: 1, 128>}, {pipeline_mode = #tpu.pipeline_mode<synchronous>, transform_indices = @transform_8, window_bounds = array<i64: 1, 128>}, {pipeline_mode = #tpu.pipeline_mode<synchronous>, transform_indices = @transform_9, window_bounds = array<i64: 1, 128>}, {transform_indices = @transform_10, window_bounds = array<i64: 1, 8, 128>}]} {
    %c0 = arith.constant 0 : index
    %c0_0 = arith.constant 0 : index
    %c0_1 = arith.constant 0 : index
    %0 = vector.load %arg2[%c0, %c0_0, %c0_1] : memref<1x8x128xbf16, #tpu.memory_space<vmem>>, vector<1x8x128xbf16>
    %1 = vector.shape_cast %0 : vector<1x8x128xbf16> to vector<8x128xbf16>
    %c0_2 = arith.constant 0 : index
    %c0_3 = arith.constant 0 : index
    %c0_4 = arith.constant 0 : index
    %2 = vector.load %arg3[%c0_2, %c0_3, %c0_4] : memref<1x8x128xbf16, #tpu.memory_space<vmem>>, vector<1x8x128xbf16>
    %3 = vector.shape_cast %2 : vector<1x8x128xbf16> to vector<8x128xbf16>
    %c0_5 = arith.constant 0 : index
    %c0_6 = arith.constant 0 : index
    %4 = vector.load %arg5[%c0_5, %c0_6] : memref<128x128xbf16, #tpu.memory_space<vmem>>, vector<128x128xbf16>
    %cst = arith.constant dense<0.000000e+00> : vector<8x128xf32>
    %5 = tpu.matmul %1, %4, %cst {dimension_numbers = #tpu.dot_dimension_numbers<[1], [0], [0], [1], [0, 0, 1, 1], [], []>} : vector<8x128xbf16>, vector<128x128xbf16>, vector<8x128xf32> -> vector<8x128xf32>
    %cst_7 = arith.constant 0.0883883461 : f32
    %6 = vector.broadcast %cst_7 : f32 to vector<8x128xf32>
    %7 = arith.mulf %5, %6 : vector<8x128xf32>
    %8 = arith.truncf %7 : vector<8x128xf32> to vector<8x128xbf16>
    %c0_8 = arith.constant 0 : index
    %c0_9 = arith.constant 0 : index
    %9 = vector.load %arg6[%c0_8, %c0_9] : memref<128x128xbf16, #tpu.memory_space<vmem>>, vector<128x128xbf16>
    %cst_10 = arith.constant dense<0.000000e+00> : vector<8x128xf32>
    %10 = tpu.matmul %3, %9, %cst_10 {dimension_numbers = #tpu.dot_dimension_numbers<[1], [0], [0], [1], [0, 0, 1, 1], [], []>} : vector<8x128xbf16>, vector<128x128xbf16>, vector<8x128xf32> -> vector<8x128xf32>
    %11 = arith.truncf %10 : vector<8x128xf32> to vector<8x128xbf16>
    %c0_11 = arith.constant 0 : index
    %c0_12 = arith.constant 0 : index
    %12 = vector.load %arg7[%c0_11, %c0_12] : memref<128x128xbf16, #tpu.memory_space<vmem>>, vector<128x128xbf16>
    %cst_13 = arith.constant dense<0.000000e+00> : vector<8x128xf32>
    %13 = tpu.matmul %3, %12, %cst_13 {dimension_numbers = #tpu.dot_dimension_numbers<[1], [0], [0], [1], [0, 0, 1, 1], [], []>} : vector<8x128xbf16>, vector<128x128xbf16>, vector<8x128xf32> -> vector<8x128xf32>
    %14 = arith.truncf %13 : vector<8x128xf32> to vector<8x128xbf16>
    %c0_14 = arith.constant 0 : index
    %c0_15 = arith.constant 0 : index
    %c0_16 = arith.constant 0 : index
    %15 = vector.load %arg4[%c0_14, %c0_15, %c0_16] : memref<1x1x8xi32, #tpu.memory_space<vmem>>, vector<1x1x8xi32>
    %16 = vector.shape_cast %15 : vector<1x1x8xi32> to vector<1x8xi32>
    %c0_i32 = arith.constant 0 : i32
    %17 = vector.broadcast %c0_i32 : i32 to vector<1x8xi32>
    %18 = arith.cmpi sgt, %16, %17 : vector<1x8xi32>
    %19 = vector.shape_cast %18 : vector<1x8xi1> to vector<1x8xi1>
    %20 = vector.broadcast %19 : vector<1x8xi1> to vector<8x8xi1>
    %21 = tpu.iota {dimensions = array<i32: 0>} : vector<8x8xi32>
    %c8_i32 = arith.constant 8 : i32
    %22 = arith.muli %arg1, %c8_i32 : i32
    %23 = vector.broadcast %22 : i32 to vector<8x8xi32>
    %24 = arith.addi %21, %23 : vector<8x8xi32>
    %25 = tpu.iota {dimensions = array<i32: 1>} : vector<8x8xi32>
    %26 = arith.cmpi sgt, %25, %24 : vector<8x8xi32>
    %27 = arith.ori %20, %26 : vector<8x8xi1>
    %28 = vector.extract_strided_slice %8 {offsets = [0, 0], sizes = [8, 32], strides = [1, 1]} : vector<8x128xbf16> to vector<8x32xbf16>
    %29 = vector.extract_strided_slice %11 {offsets = [0, 0], sizes = [8, 32], strides = [1, 1]} : vector<8x128xbf16> to vector<8x32xbf16>
    %30 = vector.extract_strided_slice %14 {offsets = [0, 0], sizes = [8, 32], strides = [1, 1]} : vector<8x128xbf16> to vector<8x32xbf16>
    %cst_17 = arith.constant dense<0.000000e+00> : vector<8x8xf32>
    %31 = tpu.matmul %28, %29, %cst_17 {dimension_numbers = #tpu.dot_dimension_numbers<[1], [1], [0], [0], [0, 0, 1, 0], [], []>} : vector<8x32xbf16>, vector<8x32xbf16>, vector<8x8xf32> -> vector<8x8xf32>
    %cst_18 = arith.constant -1.000000e+30 : f32
    %32 = vector.broadcast %cst_18 : f32 to vector<8x8xf32>
    %33 = arith.select %27, %32, %31 : vector<8x8xi1>, vector<8x8xf32>
    %cst_19 = arith.constant dense<0xFF800000> : vector<8xf32>
    %34 = vector.multi_reduction <maximumf>, %33, %cst_19 [1] : vector<8x8xf32> to vector<8xf32>
    %35 = vector.shape_cast %34 : vector<8xf32> to vector<8x1xf32>
    %36 = vector.broadcast %35 : vector<8x1xf32> to vector<8x8xf32>
    %37 = arith.subf %33, %36 : vector<8x8xf32>
    %38 = math.exp %37 : vector<8x8xf32>
    %cst_20 = arith.constant dense<0.000000e+00> : vector<8xf32>
    %39 = vector.multi_reduction <add>, %38, %cst_20 [1] : vector<8x8xf32> to vector<8xf32>
    %40 = vector.shape_cast %39 : vector<8xf32> to vector<8x1xf32>
    %41 = tpu.reciprocal %40 {approx = true} : vector<8x1xf32> -> vector<8x1xf32>
    %42 = vector.broadcast %41 : vector<8x1xf32> to vector<8x8xf32>
    %43 = arith.mulf %38, %42 : vector<8x8xf32>
    %44 = arith.truncf %43 : vector<8x8xf32> to vector<8x8xbf16>
    %cst_21 = arith.constant dense<0.000000e+00> : vector<8x32xf32>
    %45 = tpu.matmul %44, %30, %cst_21 {dimension_numbers = #tpu.dot_dimension_numbers<[1], [0], [0], [1], [0, 0, 1, 1], [], []>} : vector<8x8xbf16>, vector<8x32xbf16>, vector<8x32xf32> -> vector<8x32xf32>
    %c0_22 = arith.constant 0 : index
    %c0_23 = arith.constant 0 : index
    %46 = vector.load %arg13[%c0_22, %c0_23] : memref<8x128xf32, #tpu.memory_space<vmem>>, vector<8x32xf32>
    tpu.vector_store %arg13[%c0_22, %c0_23], %45 {strides = array<i32>} : memref<8x128xf32, #tpu.memory_space<vmem>>, vector<8x32xf32>,
    %47 = vector.extract_strided_slice %8 {offsets = [0, 32], sizes = [8, 32], strides = [1, 1]} : vector<8x128xbf16> to vector<8x32xbf16>
    %48 = vector.extract_strided_slice %11 {offsets = [0, 32], sizes = [8, 32], strides = [1, 1]} : vector<8x128xbf16> to vector<8x32xbf16>
    %49 = vector.extract_strided_slice %14 {offsets = [0, 32], sizes = [8, 32], strides = [1, 1]} : vector<8x128xbf16> to vector<8x32xbf16>
    %cst_24 = arith.constant dense<0.000000e+00> : vector<8x8xf32>
    %50 = tpu.matmul %47, %48, %cst_24 {dimension_numbers = #tpu.dot_dimension_numbers<[1], [1], [0], [0], [0, 0, 1, 0], [], []>} : vector<8x32xbf16>, vector<8x32xbf16>, vector<8x8xf32> -> vector<8x8xf32>
    %cst_25 = arith.constant -1.000000e+30 : f32
    %51 = vector.broadcast %cst_25 : f32 to vector<8x8xf32>
    %52 = arith.select %27, %51, %50 : vector<8x8xi1>, vector<8x8xf32>
    %cst_26 = arith.constant dense<0xFF800000> : vector<8xf32>
    %53 = vector.multi_reduction <maximumf>, %52, %cst_26 [1] : vector<8x8xf32> to vector<8xf32>
    %54 = vector.shape_cast %53 : vector<8xf32> to vector<8x1xf32>
    %55 = vector.broadcast %54 : vector<8x1xf32> to vector<8x8xf32>
    %56 = arith.subf %52, %55 : vector<8x8xf32>
    %57 = math.exp %56 : vector<8x8xf32>
    %cst_27 = arith.constant dense<0.000000e+00> : vector<8xf32>
    %58 = vector.multi_reduction <add>, %57, %cst_27 [1] : vector<8x8xf32> to vector<8xf32>
    %59 = vector.shape_cast %58 : vector<8xf32> to vector<8x1xf32>
    %60 = tpu.reciprocal %59 {approx = true} : vector<8x1xf32> -> vector<8x1xf32>
    %61 = vector.broadcast %60 : vector<8x1xf32> to vector<8x8xf32>
    %62 = arith.mulf %57, %61 : vector<8x8xf32>
    %63 = arith.truncf %62 : vector<8x8xf32> to vector<8x8xbf16>
    %cst_28 = arith.constant dense<0.000000e+00> : vector<8x32xf32>
    %64 = tpu.matmul %63, %49, %cst_28 {dimension_numbers = #tpu.dot_dimension_numbers<[1], [0], [0], [1], [0, 0, 1, 1], [], []>} : vector<8x8xbf16>, vector<8x32xbf16>, vector<8x32xf32> -> vector<8x32xf32>
    %c0_29 = arith.constant 0 : index
    %c32 = arith.constant 32 : index
    %65 = vector.load %arg13[%c0_29, %c32] : memref<8x128xf32, #tpu.memory_space<vmem>>, vector<8x32xf32>
    tpu.vector_store %arg13[%c0_29, %c32], %64 {strides = array<i32>} : memref<8x128xf32, #tpu.memory_space<vmem>>, vector<8x32xf32>,
    %66 = vector.extract_strided_slice %8 {offsets = [0, 64], sizes = [8, 32], strides = [1, 1]} : vector<8x128xbf16> to vector<8x32xbf16>
    %67 = vector.extract_strided_slice %11 {offsets = [0, 64], sizes = [8, 32], strides = [1, 1]} : vector<8x128xbf16> to vector<8x32xbf16>
    %68 = vector.extract_strided_slice %14 {offsets = [0, 64], sizes = [8, 32], strides = [1, 1]} : vector<8x128xbf16> to vector<8x32xbf16>
    %cst_30 = arith.constant dense<0.000000e+00> : vector<8x8xf32>
    %69 = tpu.matmul %66, %67, %cst_30 {dimension_numbers = #tpu.dot_dimension_numbers<[1], [1], [0], [0], [0, 0, 1, 0], [], []>} : vector<8x32xbf16>, vector<8x32xbf16>, vector<8x8xf32> -> vector<8x8xf32>
    %cst_31 = arith.constant -1.000000e+30 : f32
    %70 = vector.broadcast %cst_31 : f32 to vector<8x8xf32>
    %71 = arith.select %27, %70, %69 : vector<8x8xi1>, vector<8x8xf32>
    %cst_32 = arith.constant dense<0xFF800000> : vector<8xf32>
    %72 = vector.multi_reduction <maximumf>, %71, %cst_32 [1] : vector<8x8xf32> to vector<8xf32>
    %73 = vector.shape_cast %72 : vector<8xf32> to vector<8x1xf32>
    %74 = vector.broadcast %73 : vector<8x1xf32> to vector<8x8xf32>
    %75 = arith.subf %71, %74 : vector<8x8xf32>
    %76 = math.exp %75 : vector<8x8xf32>
    %cst_33 = arith.constant dense<0.000000e+00> : vector<8xf32>
    %77 = vector.multi_reduction <add>, %76, %cst_33 [1] : vector<8x8xf32> to vector<8xf32>
    %78 = vector.shape_cast %77 : vector<8xf32> to vector<8x1xf32>
    %79 = tpu.reciprocal %78 {approx = true} : vector<8x1xf32> -> vector<8x1xf32>
    %80 = vector.broadcast %79 : vector<8x1xf32> to vector<8x8xf32>
    %81 = arith.mulf %76, %80 : vector<8x8xf32>
    %82 = arith.truncf %81 : vector<8x8xf32> to vector<8x8xbf16>
    %cst_34 = arith.constant dense<0.000000e+00> : vector<8x32xf32>
    %83 = tpu.matmul %82, %68, %cst_34 {dimension_numbers = #tpu.dot_dimension_numbers<[1], [0], [0], [1], [0, 0, 1, 1], [], []>} : vector<8x8xbf16>, vector<8x32xbf16>, vector<8x32xf32> -> vector<8x32xf32>
    %c0_35 = arith.constant 0 : index
    %c64 = arith.constant 64 : index
    %84 = vector.load %arg13[%c0_35, %c64] : memref<8x128xf32, #tpu.memory_space<vmem>>, vector<8x32xf32>
    tpu.vector_store %arg13[%c0_35, %c64], %83 {strides = array<i32>} : memref<8x128xf32, #tpu.memory_space<vmem>>, vector<8x32xf32>,
    %85 = vector.extract_strided_slice %8 {offsets = [0, 96], sizes = [8, 32], strides = [1, 1]} : vector<8x128xbf16> to vector<8x32xbf16>
    %86 = vector.extract_strided_slice %11 {offsets = [0, 96], sizes = [8, 32], strides = [1, 1]} : vector<8x128xbf16> to vector<8x32xbf16>
    %87 = vector.extract_strided_slice %14 {offsets = [0, 96], sizes = [8, 32], strides = [1, 1]} : vector<8x128xbf16> to vector<8x32xbf16>
    %cst_36 = arith.constant dense<0.000000e+00> : vector<8x8xf32>
    %88 = tpu.matmul %85, %86, %cst_36 {dimension_numbers = #tpu.dot_dimension_numbers<[1], [1], [0], [0], [0, 0, 1, 0], [], []>} : vector<8x32xbf16>, vector<8x32xbf16>, vector<8x8xf32> -> vector<8x8xf32>
    %cst_37 = arith.constant -1.000000e+30 : f32
    %89 = vector.broadcast %cst_37 : f32 to vector<8x8xf32>
    %90 = arith.select %27, %89, %88 : vector<8x8xi1>, vector<8x8xf32>
    %cst_38 = arith.constant dense<0xFF800000> : vector<8xf32>
    %91 = vector.multi_reduction <maximumf>, %90, %cst_38 [1] : vector<8x8xf32> to vector<8xf32>
    %92 = vector.shape_cast %91 : vector<8xf32> to vector<8x1xf32>
    %93 = vector.broadcast %92 : vector<8x1xf32> to vector<8x8xf32>
    %94 = arith.subf %90, %93 : vector<8x8xf32>
    %95 = math.exp %94 : vector<8x8xf32>
    %cst_39 = arith.constant dense<0.000000e+00> : vector<8xf32>
    %96 = vector.multi_reduction <add>, %95, %cst_39 [1] : vector<8x8xf32> to vector<8xf32>
    %97 = vector.shape_cast %96 : vector<8xf32> to vector<8x1xf32>
    %98 = tpu.reciprocal %97 {approx = true} : vector<8x1xf32> -> vector<8x1xf32>
    %99 = vector.broadcast %98 : vector<8x1xf32> to vector<8x8xf32>
    %100 = arith.mulf %95, %99 : vector<8x8xf32>
    %101 = arith.truncf %100 : vector<8x8xf32> to vector<8x8xbf16>
    %cst_40 = arith.constant dense<0.000000e+00> : vector<8x32xf32>
    %102 = tpu.matmul %101, %87, %cst_40 {dimension_numbers = #tpu.dot_dimension_numbers<[1], [0], [0], [1], [0, 0, 1, 1], [], []>} : vector<8x8xbf16>, vector<8x32xbf16>, vector<8x32xf32> -> vector<8x32xf32>
    %c0_41 = arith.constant 0 : index
    %c96 = arith.constant 96 : index
    %103 = vector.load %arg13[%c0_41, %c96] : memref<8x128xf32, #tpu.memory_space<vmem>>, vector<8x32xf32>
    tpu.vector_store %arg13[%c0_41, %c96], %102 {strides = array<i32>} : memref<8x128xf32, #tpu.memory_space<vmem>>, vector<8x32xf32>,
    %c0_42 = arith.constant 0 : index
    %c0_43 = arith.constant 0 : index
    %104 = vector.load %arg13[%c0_42, %c0_43] : memref<8x128xf32, #tpu.memory_space<vmem>>, vector<8x128xf32>
    %105 = arith.truncf %104 : vector<8x128xf32> to vector<8x128xbf16>
    %c0_44 = arith.constant 0 : index
    %c0_45 = arith.constant 0 : index
    %106 = vector.load %arg8[%c0_44, %c0_45] : memref<128x128xbf16, #tpu.memory_space<vmem>>, vector<128x128xbf16>
    %cst_46 = arith.constant dense<0.000000e+00> : vector<8x128xf32>
    %107 = tpu.matmul %105, %106, %cst_46 {dimension_numbers = #tpu.dot_dimension_numbers<[1], [0], [0], [1], [0, 0, 1, 1], [], []>} : vector<8x128xbf16>, vector<128x128xbf16>, vector<8x128xf32> -> vector<8x128xf32>
    %c0_47 = arith.constant 0 : index
    %c0_48 = arith.constant 0 : index
    %108 = vector.load %arg9[%c0_47, %c0_48] : memref<1x128xf32, #tpu.memory_space<vmem>>, vector<1x128xf32>
    %109 = vector.broadcast %108 : vector<1x128xf32> to vector<8x128xf32>
    %110 = arith.addf %107, %109 : vector<8x128xf32>
    %111 = arith.extf %1 : vector<8x128xbf16> to vector<8x128xf32>
    %112 = arith.addf %110, %111 : vector<8x128xf32>
    %cst_49 = arith.constant dense<0.000000e+00> : vector<8xf32>
    %113 = vector.multi_reduction <add>, %112, %cst_49 [1] : vector<8x128xf32> to vector<8xf32>
    %114 = vector.shape_cast %113 : vector<8xf32> to vector<8x1xf32>
    %cst_50 = arith.constant 1.280000e+02 : f32
    %115 = vector.broadcast %cst_50 : f32 to vector<8x1xf32>
    %116 = arith.divf %114, %115 : vector<8x1xf32>
    %117 = vector.broadcast %116 : vector<8x1xf32> to vector<8x128xf32>
    %118 = arith.subf %112, %117 : vector<8x128xf32>
    %119 = arith.mulf %118, %118 : vector<8x128xf32>
    %cst_51 = arith.constant dense<0.000000e+00> : vector<8xf32>
    %120 = vector.multi_reduction <add>, %119, %cst_51 [1] : vector<8x128xf32> to vector<8xf32>
    %121 = vector.shape_cast %120 : vector<8xf32> to vector<8x1xf32>
    %cst_52 = arith.constant 1.270000e+02 : f32
    %122 = vector.broadcast %cst_52 : f32 to vector<8x1xf32>
    %123 = arith.divf %121, %122 : vector<8x1xf32>
    %124 = math.sqrt %123 : vector<8x1xf32>
    %cst_53 = arith.constant 1.000000e-03 : f32
    %125 = vector.broadcast %cst_53 : f32 to vector<8x1xf32>
    %126 = arith.addf %124, %125 : vector<8x1xf32>
    %cst_54 = arith.constant 1.000000e+00 : f32
    %127 = vector.broadcast %cst_54 : f32 to vector<8x1xf32>
    %128 = arith.divf %127, %126 : vector<8x1xf32>
    %129 = vector.broadcast %116 : vector<8x1xf32> to vector<8x128xf32>
    %130 = arith.subf %112, %129 : vector<8x128xf32>
    %131 = vector.broadcast %128 : vector<8x1xf32> to vector<8x128xf32>
    %132 = arith.mulf %130, %131 : vector<8x128xf32>
    %c0_55 = arith.constant 0 : index
    %c0_56 = arith.constant 0 : index
    %133 = vector.load %arg10[%c0_55, %c0_56] : memref<1x128xf32, #tpu.memory_space<vmem>>, vector<1x128xf32>
    %134 = vector.broadcast %133 : vector<1x128xf32> to vector<8x128xf32>
    %135 = arith.mulf %132, %134 : vector<8x128xf32>
    %c0_57 = arith.constant 0 : index
    %c0_58 = arith.constant 0 : index
    %136 = vector.load %arg11[%c0_57, %c0_58] : memref<1x128xf32, #tpu.memory_space<vmem>>, vector<1x128xf32>
    %137 = vector.broadcast %136 : vector<1x128xf32> to vector<8x128xf32>
    %138 = arith.addf %135, %137 : vector<8x128xf32>
    %139 = arith.truncf %138 : vector<8x128xf32> to vector<8x128xbf16>
    %c0_59 = arith.constant 0 : index
    %c0_60 = arith.constant 0 : index
    %c0_61 = arith.constant 0 : index
    %140 = vector.load %arg12[%c0_59, %c0_60, %c0_61] : memref<1x8x128xbf16, #tpu.memory_space<vmem>>, vector<1x8x128xbf16>
    %141 = vector.shape_cast %140 : vector<1x8x128xbf16> to vector<8x128xbf16>
    %142 = vector.shape_cast %139 : vector<8x128xbf16> to vector<1x8x128xbf16>
    tpu.vector_store %arg12[%c0_59, %c0_60, %c0_61], %142 {strides = array<i32>} : memref<1x8x128xbf16, #tpu.memory_space<vmem>>, vector<1x8x128xbf16>,
    return
  }
  func.func @transform_0(%arg0: i32, %arg1: i32) -> (i32, i32, i32) {
    %c0_i32 = arith.constant 0 : i32
    %c0_i32_0 = arith.constant 0 : i32
    return %arg0, %arg1, %c0_i32 : i32, i32, i32
  }
  func.func @transform_1(%arg0: i32, %arg1: i32) -> (i32, i32, i32) {
    %c0_i32 = arith.constant 0 : i32
    %c0_i32_0 = arith.constant 0 : i32
    %c0_i32_1 = arith.constant 0 : i32
    return %arg0, %c0_i32, %c0_i32_0 : i32, i32, i32
  }
  func.func @transform_2(%arg0: i32, %arg1: i32) -> (i32, i32, i32) {
    %c0_i32 = arith.constant 0 : i32
    %c0_i32_0 = arith.constant 0 : i32
    %c0_i32_1 = arith.constant 0 : i32
    return %arg0, %c0_i32, %c0_i32_0 : i32, i32, i32
  }
  func.func @transform_3(%arg0: i32, %arg1: i32) -> (i32, i32) {
    %c0_i32 = arith.constant 0 : i32
    %c0_i32_0 = arith.constant 0 : i32
    %c0_i32_1 = arith.constant 0 : i32
    return %c0_i32, %c0_i32_0 : i32, i32
  }
  func.func @transform_4(%arg0: i32, %arg1: i32) -> (i32, i32) {
    %c0_i32 = arith.constant 0 : i32
    %c0_i32_0 = arith.constant 0 : i32
    %c0_i32_1 = arith.constant 0 : i32
    return %c0_i32, %c0_i32_0 : i32, i32
  }
  func.func @transform_5(%arg0: i32, %arg1: i32) -> (i32, i32) {
    %c0_i32 = arith.constant 0 : i32
    %c0_i32_0 = arith.constant 0 : i32
    %c0_i32_1 = arith.constant 0 : i32
    return %c0_i32, %c0_i32_0 : i32, i32
  }
  func.func @transform_6(%arg0: i32, %arg1: i32) -> (i32, i32) {
    %c0_i32 = arith.constant 0 : i32
    %c0_i32_0 = arith.constant 0 : i32
    %c0_i32_1 = arith.constant 0 : i32
    return %c0_i32, %c0_i32_0 : i32, i32
  }
  func.func @transform_7(%arg0: i32, %arg1: i32) -> (i32, i32) {
    %c0_i32 = arith.constant 0 : i32
    %c0_i32_0 = arith.constant 0 : i32
    %c0_i32_1 = arith.constant 0 : i32
    return %c0_i32, %c0_i32_0 : i32, i32
  }
  func.func @transform_8(%arg0: i32, %arg1: i32) -> (i32, i32) {
    %c0_i32 = arith.constant 0 : i32
    %c0_i32_0 = arith.constant 0 : i32
    %c0_i32_1 = arith.constant 0 : i32
    return %c0_i32, %c0_i32_0 : i32, i32
  }
  func.func @transform_9(%arg0: i32, %arg1: i32) -> (i32, i32) {
    %c0_i32 = arith.constant 0 : i32
    %c0_i32_0 = arith.constant 0 : i32
    %c0_i32_1 = arith.constant 0 : i32
    return %c0_i32, %c0_i32_0 : i32, i32
  }
  func.func @transform_10(%arg0: i32, %arg1: i32) -> (i32, i32, i32) {
    %c0_i32 = arith.constant 0 : i32
    %c0_i32_0 = arith.constant 0 : i32
    return %arg0, %arg1, %c0_i32 : i32, i32, i32
  }
}

module attributes {stable_mosaic.version = 11 : i64} {
  func.func @_vocab_kernel(%arg0: i32, %arg1: i32, %arg2: memref<16x128xbf16, #tpu.memory_space<vmem>>, %arg3: memref<128x384xbf16, #tpu.memory_space<vmem>>, %arg4: memref<16x384xf32, #tpu.memory_space<vmem>>) attributes {dimension_semantics = [#tpu.dimension_semantics<parallel>, #tpu.dimension_semantics<parallel>], iteration_bounds = array<i64: 1, 1>, scalar_prefetch = 0 : i64, scratch_operands = 0 : i64, tpu.core_type = #tpu.core_type<tc>, window_params = [{transform_indices = @transform_0, window_bounds = array<i64: 16, 128>}, {transform_indices = @transform_1, window_bounds = array<i64: 128, 384>}, {transform_indices = @transform_2, window_bounds = array<i64: 16, 384>}]} {
    %c0 = arith.constant 0 : index
    %c0_0 = arith.constant 0 : index
    %0 = vector.load %arg2[%c0, %c0_0] : memref<16x128xbf16, #tpu.memory_space<vmem>>, vector<16x128xbf16>
    %c0_1 = arith.constant 0 : index
    %c0_2 = arith.constant 0 : index
    %1 = vector.load %arg3[%c0_1, %c0_2] : memref<128x384xbf16, #tpu.memory_space<vmem>>, vector<128x384xbf16>
    %cst = arith.constant dense<0.000000e+00> : vector<16x384xf32>
    %2 = tpu.matmul %0, %1, %cst {dimension_numbers = #tpu.dot_dimension_numbers<[1], [0], [0], [1], [0, 0, 1, 1], [], []>} : vector<16x128xbf16>, vector<128x384xbf16>, vector<16x384xf32> -> vector<16x384xf32>
    %c0_3 = arith.constant 0 : index
    %c0_4 = arith.constant 0 : index
    %3 = vector.load %arg4[%c0_3, %c0_4] : memref<16x384xf32, #tpu.memory_space<vmem>>, vector<16x384xf32>
    tpu.vector_store %arg4[%c0_3, %c0_4], %2 {strides = array<i32>} : memref<16x384xf32, #tpu.memory_space<vmem>>, vector<16x384xf32>,
    return
  }
  func.func @transform_0(%arg0: i32, %arg1: i32) -> (i32, i32) {
    %c0_i32 = arith.constant 0 : i32
    %c0_i32_0 = arith.constant 0 : i32
    return %arg0, %c0_i32 : i32, i32
  }
  func.func @transform_1(%arg0: i32, %arg1: i32) -> (i32, i32) {
    %c0_i32 = arith.constant 0 : i32
    %c0_i32_0 = arith.constant 0 : i32
    return %c0_i32, %arg1 : i32, i32
  }
  func.func @transform_2(%arg0: i32, %arg1: i32) -> (i32, i32) {
    %c0_i32 = arith.constant 0 : i32
    return %arg0, %arg1 : i32, i32
  }
}

module attributes {stable_mosaic.version = 11 : i64} {
  func.func @_mha_kernel(%arg0: i32, %arg1: i32, %arg2: memref<1x8x128xbf16, #tpu.memory_space<vmem>>, %arg3: memref<1x8x128xbf16, #tpu.memory_space<vmem>>, %arg4: memref<1x1x8xi32, #tpu.memory_space<vmem>>, %arg5: memref<128x128xbf16, #tpu.memory_space<vmem>>, %arg6: memref<128x128xbf16, #tpu.memory_space<vmem>>, %arg7: memref<128x128xbf16, #tpu.memory_space<vmem>>, %arg8: memref<128x128xbf16, #tpu.memory_space<vmem>>, %arg9: memref<1x128xf32, #tpu.memory_space<vmem>>, %arg10: memref<1x128xf32, #tpu.memory_space<vmem>>, %arg11: memref<1x128xf32, #tpu.memory_space<vmem>>, %arg12: memref<1x8x128xbf16, #tpu.memory_space<vmem>>, %arg13: memref<8x128xf32, #tpu.memory_space<vmem>>) attributes {dimension_semantics = [#tpu.dimension_semantics<parallel>, #tpu.dimension_semantics<parallel>], iteration_bounds = array<i64: 2, 1>, scalar_prefetch = 0 : i64, scratch_operands = 1 : i64, tpu.core_type = #tpu.core_type<tc>, window_params = [{transform_indices = @transform_0, window_bounds = array<i64: 1, 8, 128>}, {transform_indices = @transform_1, window_bounds = array<i64: 1, 8, 128>}, {transform_indices = @transform_2, window_bounds = array<i64: 1, 1, 8>}, {pipeline_mode = #tpu.pipeline_mode<synchronous>, transform_indices = @transform_3, window_bounds = array<i64: 128, 128>}, {pipeline_mode = #tpu.pipeline_mode<synchronous>, transform_indices = @transform_4, window_bounds = array<i64: 128, 128>}, {pipeline_mode = #tpu.pipeline_mode<synchronous>, transform_indices = @transform_5, window_bounds = array<i64: 128, 128>}, {pipeline_mode = #tpu.pipeline_mode<synchronous>, transform_indices = @transform_6, window_bounds = array<i64: 128, 128>}, {pipeline_mode = #tpu.pipeline_mode<synchronous>, transform_indices = @transform_7, window_bounds = array<i64: 1, 128>}, {pipeline_mode = #tpu.pipeline_mode<synchronous>, transform_indices = @transform_8, window_bounds = array<i64: 1, 128>}, {pipeline_mode = #tpu.pipeline_mode<synchronous>, transform_indices = @transform_9, window_bounds = array<i64: 1, 128>}, {transform_indices = @transform_10, window_bounds = array<i64: 1, 8, 128>}]} {
    %c0 = arith.constant 0 : index
    %c0_0 = arith.constant 0 : index
    %c0_1 = arith.constant 0 : index
    %0 = vector.load %arg2[%c0, %c0_0, %c0_1] : memref<1x8x128xbf16, #tpu.memory_space<vmem>>, vector<1x8x128xbf16>
    %1 = vector.shape_cast %0 : vector<1x8x128xbf16> to vector<8x128xbf16>
    %c0_2 = arith.constant 0 : index
    %c0_3 = arith.constant 0 : index
    %c0_4 = arith.constant 0 : index
    %2 = vector.load %arg3[%c0_2, %c0_3, %c0_4] : memref<1x8x128xbf16, #tpu.memory_space<vmem>>, vector<1x8x128xbf16>
    %3 = vector.shape_cast %2 : vector<1x8x128xbf16> to vector<8x128xbf16>
    %c0_5 = arith.constant 0 : index
    %c0_6 = arith.constant 0 : index
    %4 = vector.load %arg5[%c0_5, %c0_6] : memref<128x128xbf16, #tpu.memory_space<vmem>>, vector<128x128xbf16>
    %cst = arith.constant dense<0.000000e+00> : vector<8x128xf32>
    %5 = tpu.matmul %1, %4, %cst {dimension_numbers = #tpu.dot_dimension_numbers<[1], [0], [0], [1], [0, 0, 1, 1], [], []>} : vector<8x128xbf16>, vector<128x128xbf16>, vector<8x128xf32> -> vector<8x128xf32>
    %cst_7 = arith.constant 0.0883883461 : f32
    %6 = vector.broadcast %cst_7 : f32 to vector<8x128xf32>
    %7 = arith.mulf %5, %6 : vector<8x128xf32>
    %8 = arith.truncf %7 : vector<8x128xf32> to vector<8x128xbf16>
    %c0_8 = arith.constant 0 : index
    %c0_9 = arith.constant 0 : index
    %9 = vector.load %arg6[%c0_8, %c0_9] : memref<128x128xbf16, #tpu.memory_space<vmem>>, vector<128x128xbf16>
    %cst_10 = arith.constant dense<0.000000e+00> : vector<8x128xf32>
    %10 = tpu.matmul %3, %9, %cst_10 {dimension_numbers = #tpu.dot_dimension_numbers<[1], [0], [0], [1], [0, 0, 1, 1], [], []>} : vector<8x128xbf16>, vector<128x128xbf16>, vector<8x128xf32> -> vector<8x128xf32>
    %11 = arith.truncf %10 : vector<8x128xf32> to vector<8x128xbf16>
    %c0_11 = arith.constant 0 : index
    %c0_12 = arith.constant 0 : index
    %12 = vector.load %arg7[%c0_11, %c0_12] : memref<128x128xbf16, #tpu.memory_space<vmem>>, vector<128x128xbf16>
    %cst_13 = arith.constant dense<0.000000e+00> : vector<8x128xf32>
    %13 = tpu.matmul %3, %12, %cst_13 {dimension_numbers = #tpu.dot_dimension_numbers<[1], [0], [0], [1], [0, 0, 1, 1], [], []>} : vector<8x128xbf16>, vector<128x128xbf16>, vector<8x128xf32> -> vector<8x128xf32>
    %14 = arith.truncf %13 : vector<8x128xf32> to vector<8x128xbf16>
    %c0_14 = arith.constant 0 : index
    %c0_15 = arith.constant 0 : index
    %c0_16 = arith.constant 0 : index
    %15 = vector.load %arg4[%c0_14, %c0_15, %c0_16] : memref<1x1x8xi32, #tpu.memory_space<vmem>>, vector<1x1x8xi32>
    %16 = vector.shape_cast %15 : vector<1x1x8xi32> to vector<1x8xi32>
    %c0_i32 = arith.constant 0 : i32
    %17 = vector.broadcast %c0_i32 : i32 to vector<1x8xi32>
    %18 = arith.cmpi sgt, %16, %17 : vector<1x8xi32>
    %19 = vector.shape_cast %18 : vector<1x8xi1> to vector<1x8xi1>
    %20 = vector.broadcast %19 : vector<1x8xi1> to vector<8x8xi1>
    %21 = tpu.iota {dimensions = array<i32: 0>} : vector<8x8xi32>
    %c8_i32 = arith.constant 8 : i32
    %22 = arith.muli %arg1, %c8_i32 : i32
    %23 = vector.broadcast %22 : i32 to vector<8x8xi32>
    %24 = arith.addi %21, %23 : vector<8x8xi32>
    %25 = tpu.iota {dimensions = array<i32: 1>} : vector<8x8xi32>
    %26 = arith.cmpi sgt, %25, %24 : vector<8x8xi32>
    %27 = arith.ori %20, %26 : vector<8x8xi1>
    %28 = vector.extract_strided_slice %8 {offsets = [0, 0], sizes = [8, 32], strides = [1, 1]} : vector<8x128xbf16> to vector<8x32xbf16>
    %29 = vector.extract_strided_slice %11 {offsets = [0, 0], sizes = [8, 32], strides = [1, 1]} : vector<8x128xbf16> to vector<8x32xbf16>
    %30 = vector.extract_strided_slice %14 {offsets = [0, 0], sizes = [8, 32], strides = [1, 1]} : vector<8x128xbf16> to vector<8x32xbf16>
    %cst_17 = arith.constant dense<0.000000e+00> : vector<8x8xf32>
    %31 = tpu.matmul %28, %29, %cst_17 {dimension_numbers = #tpu.dot_dimension_numbers<[1], [1], [0], [0], [0, 0, 1, 0], [], []>} : vector<8x32xbf16>, vector<8x32xbf16>, vector<8x8xf32> -> vector<8x8xf32>
    %cst_18 = arith.constant -1.000000e+30 : f32
    %32 = vector.broadcast %cst_18 : f32 to vector<8x8xf32>
    %33 = arith.select %27, %32, %31 : vector<8x8xi1>, vector<8x8xf32>
    %cst_19 = arith.constant dense<0xFF800000> : vector<8xf32>
    %34 = vector.multi_reduction <maximumf>, %33, %cst_19 [1] : vector<8x8xf32> to vector<8xf32>
    %35 = vector.shape_cast %34 : vector<8xf32> to vector<8x1xf32>
    %36 = vector.broadcast %35 : vector<8x1xf32> to vector<8x8xf32>
    %37 = arith.subf %33, %36 : vector<8x8xf32>
    %38 = math.exp %37 : vector<8x8xf32>
    %cst_20 = arith.constant dense<0.000000e+00> : vector<8xf32>
    %39 = vector.multi_reduction <add>, %38, %cst_20 [1] : vector<8x8xf32> to vector<8xf32>
    %40 = vector.shape_cast %39 : vector<8xf32> to vector<8x1xf32>
    %41 = tpu.reciprocal %40 {approx = true} : vector<8x1xf32> -> vector<8x1xf32>
    %42 = vector.broadcast %41 : vector<8x1xf32> to vector<8x8xf32>
    %43 = arith.mulf %38, %42 : vector<8x8xf32>
    %44 = arith.truncf %43 : vector<8x8xf32> to vector<8x8xbf16>
    %cst_21 = arith.constant dense<0.000000e+00> : vector<8x32xf32>
    %45 = tpu.matmul %44, %30, %cst_21 {dimension_numbers = #tpu.dot_dimension_numbers<[1], [0], [0], [1], [0, 0, 1, 1], [], []>} : vector<8x8xbf16>, vector<8x32xbf16>, vector<8x32xf32> -> vector<8x32xf32>
    %c0_22 = arith.constant 0 : index
    %c0_23 = arith.constant 0 : index
    %46 = vector.load %arg13[%c0_22, %c0_23] : memref<8x128xf32, #tpu.memory_space<vmem>>, vector<8x32xf32>
    tpu.vector_store %arg13[%c0_22, %c0_23], %45 {strides = array<i32>} : memref<8x128xf32, #tpu.memory_space<vmem>>, vector<8x32xf32>,
    %47 = vector.extract_strided_slice %8 {offsets = [0, 32], sizes = [8, 32], strides = [1, 1]} : vector<8x128xbf16> to vector<8x32xbf16>
    %48 = vector.extract_strided_slice %11 {offsets = [0, 32], sizes = [8, 32], strides = [1, 1]} : vector<8x128xbf16> to vector<8x32xbf16>
    %49 = vector.extract_strided_slice %14 {offsets = [0, 32], sizes = [8, 32], strides = [1, 1]} : vector<8x128xbf16> to vector<8x32xbf16>
    %cst_24 = arith.constant dense<0.000000e+00> : vector<8x8xf32>
    %50 = tpu.matmul %47, %48, %cst_24 {dimension_numbers = #tpu.dot_dimension_numbers<[1], [1], [0], [0], [0, 0, 1, 0], [], []>} : vector<8x32xbf16>, vector<8x32xbf16>, vector<8x8xf32> -> vector<8x8xf32>
    %cst_25 = arith.constant -1.000000e+30 : f32
    %51 = vector.broadcast %cst_25 : f32 to vector<8x8xf32>
    %52 = arith.select %27, %51, %50 : vector<8x8xi1>, vector<8x8xf32>
    %cst_26 = arith.constant dense<0xFF800000> : vector<8xf32>
    %53 = vector.multi_reduction <maximumf>, %52, %cst_26 [1] : vector<8x8xf32> to vector<8xf32>
    %54 = vector.shape_cast %53 : vector<8xf32> to vector<8x1xf32>
    %55 = vector.broadcast %54 : vector<8x1xf32> to vector<8x8xf32>
    %56 = arith.subf %52, %55 : vector<8x8xf32>
    %57 = math.exp %56 : vector<8x8xf32>
    %cst_27 = arith.constant dense<0.000000e+00> : vector<8xf32>
    %58 = vector.multi_reduction <add>, %57, %cst_27 [1] : vector<8x8xf32> to vector<8xf32>
    %59 = vector.shape_cast %58 : vector<8xf32> to vector<8x1xf32>
    %60 = tpu.reciprocal %59 {approx = true} : vector<8x1xf32> -> vector<8x1xf32>
    %61 = vector.broadcast %60 : vector<8x1xf32> to vector<8x8xf32>
    %62 = arith.mulf %57, %61 : vector<8x8xf32>
    %63 = arith.truncf %62 : vector<8x8xf32> to vector<8x8xbf16>
    %cst_28 = arith.constant dense<0.000000e+00> : vector<8x32xf32>
    %64 = tpu.matmul %63, %49, %cst_28 {dimension_numbers = #tpu.dot_dimension_numbers<[1], [0], [0], [1], [0, 0, 1, 1], [], []>} : vector<8x8xbf16>, vector<8x32xbf16>, vector<8x32xf32> -> vector<8x32xf32>
    %c0_29 = arith.constant 0 : index
    %c32 = arith.constant 32 : index
    %65 = vector.load %arg13[%c0_29, %c32] : memref<8x128xf32, #tpu.memory_space<vmem>>, vector<8x32xf32>
    tpu.vector_store %arg13[%c0_29, %c32], %64 {strides = array<i32>} : memref<8x128xf32, #tpu.memory_space<vmem>>, vector<8x32xf32>,
    %66 = vector.extract_strided_slice %8 {offsets = [0, 64], sizes = [8, 32], strides = [1, 1]} : vector<8x128xbf16> to vector<8x32xbf16>
    %67 = vector.extract_strided_slice %11 {offsets = [0, 64], sizes = [8, 32], strides = [1, 1]} : vector<8x128xbf16> to vector<8x32xbf16>
    %68 = vector.extract_strided_slice %14 {offsets = [0, 64], sizes = [8, 32], strides = [1, 1]} : vector<8x128xbf16> to vector<8x32xbf16>
    %cst_30 = arith.constant dense<0.000000e+00> : vector<8x8xf32>
    %69 = tpu.matmul %66, %67, %cst_30 {dimension_numbers = #tpu.dot_dimension_numbers<[1], [1], [0], [0], [0, 0, 1, 0], [], []>} : vector<8x32xbf16>, vector<8x32xbf16>, vector<8x8xf32> -> vector<8x8xf32>
    %cst_31 = arith.constant -1.000000e+30 : f32
    %70 = vector.broadcast %cst_31 : f32 to vector<8x8xf32>
    %71 = arith.select %27, %70, %69 : vector<8x8xi1>, vector<8x8xf32>
    %cst_32 = arith.constant dense<0xFF800000> : vector<8xf32>
    %72 = vector.multi_reduction <maximumf>, %71, %cst_32 [1] : vector<8x8xf32> to vector<8xf32>
    %73 = vector.shape_cast %72 : vector<8xf32> to vector<8x1xf32>
    %74 = vector.broadcast %73 : vector<8x1xf32> to vector<8x8xf32>
    %75 = arith.subf %71, %74 : vector<8x8xf32>
    %76 = math.exp %75 : vector<8x8xf32>
    %cst_33 = arith.constant dense<0.000000e+00> : vector<8xf32>
    %77 = vector.multi_reduction <add>, %76, %cst_33 [1] : vector<8x8xf32> to vector<8xf32>
    %78 = vector.shape_cast %77 : vector<8xf32> to vector<8x1xf32>
    %79 = tpu.reciprocal %78 {approx = true} : vector<8x1xf32> -> vector<8x1xf32>
    %80 = vector.broadcast %79 : vector<8x1xf32> to vector<8x8xf32>
    %81 = arith.mulf %76, %80 : vector<8x8xf32>
    %82 = arith.truncf %81 : vector<8x8xf32> to vector<8x8xbf16>
    %cst_34 = arith.constant dense<0.000000e+00> : vector<8x32xf32>
    %83 = tpu.matmul %82, %68, %cst_34 {dimension_numbers = #tpu.dot_dimension_numbers<[1], [0], [0], [1], [0, 0, 1, 1], [], []>} : vector<8x8xbf16>, vector<8x32xbf16>, vector<8x32xf32> -> vector<8x32xf32>
    %c0_35 = arith.constant 0 : index
    %c64 = arith.constant 64 : index
    %84 = vector.load %arg13[%c0_35, %c64] : memref<8x128xf32, #tpu.memory_space<vmem>>, vector<8x32xf32>
    tpu.vector_store %arg13[%c0_35, %c64], %83 {strides = array<i32>} : memref<8x128xf32, #tpu.memory_space<vmem>>, vector<8x32xf32>,
    %85 = vector.extract_strided_slice %8 {offsets = [0, 96], sizes = [8, 32], strides = [1, 1]} : vector<8x128xbf16> to vector<8x32xbf16>
    %86 = vector.extract_strided_slice %11 {offsets = [0, 96], sizes = [8, 32], strides = [1, 1]} : vector<8x128xbf16> to vector<8x32xbf16>
    %87 = vector.extract_strided_slice %14 {offsets = [0, 96], sizes = [8, 32], strides = [1, 1]} : vector<8x128xbf16> to vector<8x32xbf16>
    %cst_36 = arith.constant dense<0.000000e+00> : vector<8x8xf32>
    %88 = tpu.matmul %85, %86, %cst_36 {dimension_numbers = #tpu.dot_dimension_numbers<[1], [1], [0], [0], [0, 0, 1, 0], [], []>} : vector<8x32xbf16>, vector<8x32xbf16>, vector<8x8xf32> -> vector<8x8xf32>
    %cst_37 = arith.constant -1.000000e+30 : f32
    %89 = vector.broadcast %cst_37 : f32 to vector<8x8xf32>
    %90 = arith.select %27, %89, %88 : vector<8x8xi1>, vector<8x8xf32>
    %cst_38 = arith.constant dense<0xFF800000> : vector<8xf32>
    %91 = vector.multi_reduction <maximumf>, %90, %cst_38 [1] : vector<8x8xf32> to vector<8xf32>
    %92 = vector.shape_cast %91 : vector<8xf32> to vector<8x1xf32>
    %93 = vector.broadcast %92 : vector<8x1xf32> to vector<8x8xf32>
    %94 = arith.subf %90, %93 : vector<8x8xf32>
    %95 = math.exp %94 : vector<8x8xf32>
    %cst_39 = arith.constant dense<0.000000e+00> : vector<8xf32>
    %96 = vector.multi_reduction <add>, %95, %cst_39 [1] : vector<8x8xf32> to vector<8xf32>
    %97 = vector.shape_cast %96 : vector<8xf32> to vector<8x1xf32>
    %98 = tpu.reciprocal %97 {approx = true} : vector<8x1xf32> -> vector<8x1xf32>
    %99 = vector.broadcast %98 : vector<8x1xf32> to vector<8x8xf32>
    %100 = arith.mulf %95, %99 : vector<8x8xf32>
    %101 = arith.truncf %100 : vector<8x8xf32> to vector<8x8xbf16>
    %cst_40 = arith.constant dense<0.000000e+00> : vector<8x32xf32>
    %102 = tpu.matmul %101, %87, %cst_40 {dimension_numbers = #tpu.dot_dimension_numbers<[1], [0], [0], [1], [0, 0, 1, 1], [], []>} : vector<8x8xbf16>, vector<8x32xbf16>, vector<8x32xf32> -> vector<8x32xf32>
    %c0_41 = arith.constant 0 : index
    %c96 = arith.constant 96 : index
    %103 = vector.load %arg13[%c0_41, %c96] : memref<8x128xf32, #tpu.memory_space<vmem>>, vector<8x32xf32>
    tpu.vector_store %arg13[%c0_41, %c96], %102 {strides = array<i32>} : memref<8x128xf32, #tpu.memory_space<vmem>>, vector<8x32xf32>,
    %c0_42 = arith.constant 0 : index
    %c0_43 = arith.constant 0 : index
    %104 = vector.load %arg13[%c0_42, %c0_43] : memref<8x128xf32, #tpu.memory_space<vmem>>, vector<8x128xf32>
    %105 = arith.truncf %104 : vector<8x128xf32> to vector<8x128xbf16>
    %c0_44 = arith.constant 0 : index
    %c0_45 = arith.constant 0 : index
    %106 = vector.load %arg8[%c0_44, %c0_45] : memref<128x128xbf16, #tpu.memory_space<vmem>>, vector<128x128xbf16>
    %cst_46 = arith.constant dense<0.000000e+00> : vector<8x128xf32>
    %107 = tpu.matmul %105, %106, %cst_46 {dimension_numbers = #tpu.dot_dimension_numbers<[1], [0], [0], [1], [0, 0, 1, 1], [], []>} : vector<8x128xbf16>, vector<128x128xbf16>, vector<8x128xf32> -> vector<8x128xf32>
    %c0_47 = arith.constant 0 : index
    %c0_48 = arith.constant 0 : index
    %108 = vector.load %arg9[%c0_47, %c0_48] : memref<1x128xf32, #tpu.memory_space<vmem>>, vector<1x128xf32>
    %109 = vector.broadcast %108 : vector<1x128xf32> to vector<8x128xf32>
    %110 = arith.addf %107, %109 : vector<8x128xf32>
    %111 = arith.extf %1 : vector<8x128xbf16> to vector<8x128xf32>
    %112 = arith.addf %110, %111 : vector<8x128xf32>
    %cst_49 = arith.constant dense<0.000000e+00> : vector<8xf32>
    %113 = vector.multi_reduction <add>, %112, %cst_49 [1] : vector<8x128xf32> to vector<8xf32>
    %114 = vector.shape_cast %113 : vector<8xf32> to vector<8x1xf32>
    %cst_50 = arith.constant 1.280000e+02 : f32
    %115 = vector.broadcast %cst_50 : f32 to vector<8x1xf32>
    %116 = arith.divf %114, %115 : vector<8x1xf32>
    %117 = vector.broadcast %116 : vector<8x1xf32> to vector<8x128xf32>
    %118 = arith.subf %112, %117 : vector<8x128xf32>
    %119 = arith.mulf %118, %118 : vector<8x128xf32>
    %cst_51 = arith.constant dense<0.000000e+00> : vector<8xf32>
    %120 = vector.multi_reduction <add>, %119, %cst_51 [1] : vector<8x128xf32> to vector<8xf32>
    %121 = vector.shape_cast %120 : vector<8xf32> to vector<8x1xf32>
    %cst_52 = arith.constant 1.270000e+02 : f32
    %122 = vector.broadcast %cst_52 : f32 to vector<8x1xf32>
    %123 = arith.divf %121, %122 : vector<8x1xf32>
    %124 = math.sqrt %123 : vector<8x1xf32>
    %cst_53 = arith.constant 1.000000e-03 : f32
    %125 = vector.broadcast %cst_53 : f32 to vector<8x1xf32>
    %126 = arith.addf %124, %125 : vector<8x1xf32>
    %cst_54 = arith.constant 1.000000e+00 : f32
    %127 = vector.broadcast %cst_54 : f32 to vector<8x1xf32>
    %128 = arith.divf %127, %126 : vector<8x1xf32>
    %129 = vector.broadcast %116 : vector<8x1xf32> to vector<8x128xf32>
    %130 = arith.subf %112, %129 : vector<8x128xf32>
    %131 = vector.broadcast %128 : vector<8x1xf32> to vector<8x128xf32>
    %132 = arith.mulf %130, %131 : vector<8x128xf32>
    %c0_55 = arith.constant 0 : index
    %c0_56 = arith.constant 0 : index
    %133 = vector.load %arg10[%c0_55, %c0_56] : memref<1x128xf32, #tpu.memory_space<vmem>>, vector<1x128xf32>
    %134 = vector.broadcast %133 : vector<1x128xf32> to vector<8x128xf32>
    %135 = arith.mulf %132, %134 : vector<8x128xf32>
    %c0_57 = arith.constant 0 : index
    %c0_58 = arith.constant 0 : index
    %136 = vector.load %arg11[%c0_57, %c0_58] : memref<1x128xf32, #tpu.memory_space<vmem>>, vector<1x128xf32>
    %137 = vector.broadcast %136 : vector<1x128xf32> to vector<8x128xf32>
    %138 = arith.addf %135, %137 : vector<8x128xf32>
    %139 = arith.truncf %138 : vector<8x128xf32> to vector<8x128xbf16>
    %c0_59 = arith.constant 0 : index
    %c0_60 = arith.constant 0 : index
    %c0_61 = arith.constant 0 : index
    %140 = vector.load %arg12[%c0_59, %c0_60, %c0_61] : memref<1x8x128xbf16, #tpu.memory_space<vmem>>, vector<1x8x128xbf16>
    %141 = vector.shape_cast %140 : vector<1x8x128xbf16> to vector<8x128xbf16>
    %142 = vector.shape_cast %139 : vector<8x128xbf16> to vector<1x8x128xbf16>
    tpu.vector_store %arg12[%c0_59, %c0_60, %c0_61], %142 {strides = array<i32>} : memref<1x8x128xbf16, #tpu.memory_space<vmem>>, vector<1x8x128xbf16>,
    return
  }
  func.func @transform_0(%arg0: i32, %arg1: i32) -> (i32, i32, i32) {
    %c0_i32 = arith.constant 0 : i32
    %c0_i32_0 = arith.constant 0 : i32
    return %arg0, %arg1, %c0_i32 : i32, i32, i32
  }
  func.func @transform_1(%arg0: i32, %arg1: i32) -> (i32, i32, i32) {
    %c0_i32 = arith.constant 0 : i32
    %c0_i32_0 = arith.constant 0 : i32
    %c0_i32_1 = arith.constant 0 : i32
    return %arg0, %c0_i32, %c0_i32_0 : i32, i32, i32
  }
  func.func @transform_2(%arg0: i32, %arg1: i32) -> (i32, i32, i32) {
    %c0_i32 = arith.constant 0 : i32
    %c0_i32_0 = arith.constant 0 : i32
    %c0_i32_1 = arith.constant 0 : i32
    return %arg0, %c0_i32, %c0_i32_0 : i32, i32, i32
  }
  func.func @transform_3(%arg0: i32, %arg1: i32) -> (i32, i32) {
    %c0_i32 = arith.constant 0 : i32
    %c0_i32_0 = arith.constant 0 : i32
    %c0_i32_1 = arith.constant 0 : i32
    return %c0_i32, %c0_i32_0 : i32, i32
  }
  func.func @transform_4(%arg0: i32, %arg1: i32) -> (i32, i32) {
    %c0_i32 = arith.constant 0 : i32
    %c0_i32_0 = arith.constant 0 : i32
    %c0_i32_1 = arith.constant 0 : i32
    return %c0_i32, %c0_i32_0 : i32, i32
  }
  func.func @transform_5(%arg0: i32, %arg1: i32) -> (i32, i32) {
    %c0_i32 = arith.constant 0 : i32
    %c0_i32_0 = arith.constant 0 : i32
    %c0_i32_1 = arith.constant 0 : i32
    return %c0_i32, %c0_i32_0 : i32, i32
  }
  func.func @transform_6(%arg0: i32, %arg1: i32) -> (i32, i32) {
    %c0_i32 = arith.constant 0 : i32
    %c0_i32_0 = arith.constant 0 : i32
    %c0_i32_1 = arith.constant 0 : i32
    return %c0_i32, %c0_i32_0 : i32, i32
  }
  func.func @transform_7(%arg0: i32, %arg1: i32) -> (i32, i32) {
    %c0_i32 = arith.constant 0 : i32
    %c0_i32_0 = arith.constant 0 : i32
    %c0_i32_1 = arith.constant 0 : i32
    return %c0_i32, %c0_i32_0 : i32, i32
  }
  func.func @transform_8(%arg0: i32, %arg1: i32) -> (i32, i32) {
    %c0_i32 = arith.constant 0 : i32
    %c0_i32_0 = arith.constant 0 : i32
    %c0_i32_1 = arith.constant 0 : i32
    return %c0_i32, %c0_i32_0 : i32, i32
  }
  func.func @transform_9(%arg0: i32, %arg1: i32) -> (i32, i32) {
    %c0_i32 = arith.constant 0 : i32
    %c0_i32_0 = arith.constant 0 : i32
    %c0_i32_1 = arith.constant 0 : i32
    return %c0_i32, %c0_i32_0 : i32, i32
  }
  func.func @transform_10(%arg0: i32, %arg1: i32) -> (i32, i32, i32) {
    %c0_i32 = arith.constant 0 : i32
    %c0_i32_0 = arith.constant 0 : i32
    return %arg0, %arg1, %c0_i32 : i32, i32, i32
  }
}

</mosaic_0001>

<llo_original>
// kernel: _lambda_.13
$region0: #{_lambda_.13}
  #allocation0 [shape = 'u32[]', space=smem, size = 0x4, offset = 0x4, fixed_abs, tag = 'smem constant byte address 0x4 - core index']
  #allocation1 [shape = 'u32[72,128]{1,0:T(1,128)}', space=vmem, size = 0x9000, scoped, tag = 'internal scratch']
  #allocation2 [shape = 'f32[8,128]{1,0:T(8,128)}', space=vmem, size = 0x1000, scoped, tag = 'scratch operand']
  %s0 = inlined_call_operand.vmem [shape: bf16[2,8,128], index: 0, kind: input, shape index: {}, may-alias: {0,1}]
  %s1 = inlined_call_operand.vmem [shape: bf16[2,8,128], index: 1, kind: input, shape index: {}, may-alias: {0,1}]
  %s2 = inlined_call_operand.vmem [shape: s32[2,1,8], index: 2, kind: input, shape index: {}]
  %s3 = inlined_call_operand.hbm [shape: bf16[128,128], index: 3, kind: input, shape index: {}]
  %s4 = inlined_call_operand.hbm [shape: bf16[128,128], index: 4, kind: input, shape index: {}]
  %s5 = inlined_call_operand.hbm [shape: bf16[128,128], index: 5, kind: input, shape index: {}]
  %s6 = inlined_call_operand.hbm [shape: bf16[128,128], index: 6, kind: input, shape index: {}]
  %s7 = inlined_call_operand.vmem [shape: f32[1,128], index: 7, kind: input, shape index: {}]
  %s8 = inlined_call_operand.vmem [shape: f32[1,128], index: 8, kind: input, shape index: {}]
  %s9 = inlined_call_operand.vmem [shape: f32[1,128], index: 9, kind: input, shape index: {}]
  %s10 = inlined_call_operand.vmem [shape: bf16[2,8,128], index: 10, kind: output, shape index: {}]
  %s11 = sld [smem:[#allocation0]]
  $region89: #{_lambda_.13} parent=0
    _
  %s13 = ssub.s32 1, %s11
  %s14 = scalar_select 0, %s13, %s11
  $region1: #{_lambda_.13} parent=0
    #allocation3 [shape = 'u8[32768]{0}', space=vmem, size = 0x8000, scoped, tag = 'input window, operand 3, single buffered']
    #allocation4 [shape = 's32[2]{0}', space=sflag, size = 0x8, scoped, tag = 'scoped memory for _lambda_.13']
    #allocation5 [shape = 'u8[32768]{0}', space=vmem, size = 0x8000, scoped, tag = 'input window, operand 4, single buffered']
    #allocation6 [shape = 's32[1]{0}', space=sflag, size = 0x4, scoped, tag = 'scoped memory for _lambda_.13']
    #allocation7 [shape = 'u8[32768]{0}', space=vmem, size = 0x8000, scoped, tag = 'input window, operand 5, single buffered']
    #allocation8 [shape = 'u8[32768]{0}', space=vmem, size = 0x8000, scoped, tag = 'input window, operand 6, single buffered']
    #allocation9 [shape = 's32[1]{0}', space=sflag, size = 0x4, scoped, tag = 'scoped memory for _lambda_.13']
    %15 = vsyncpa [#allocation4], 0
    %16 = vsyncpa [#allocation6], 0
    %17 = vsyncpa [#allocation9], 0
    loop: start=0, step=1, limit=4
    $region2: #{_lambda_.13} parent=1 // loop_pre_header
      _
    $region3: #{_lambda_.13} parent=1 // loop_header
      %s19 = sphi 0, %s23
      %p20 = scmp.ge.s32.totalorder %s19, 4
      %s26 = sphi 0, %s38
      %s27 = sphi 0, %s34
      %s28 = sphi 0, %s26
      %s29 = sphi 0, %s27
      %s30 = sphi 0, %s28
      %s31 = sphi 0, %s29
      %s43 = sphi 0, %s45
      %s46 = sphi 0, %s43
      %s47 = sphi 0, %s46
      %s63 = sphi 0, %s47
      %s69 = sphi 0, %s71
      %s72 = sphi 0, %s69
      %s73 = sphi 0, %s72
      %s89 = sphi 0, %s73
      %s95 = sphi 0, %s97
      %s98 = sphi 0, %s95
      %s99 = sphi 0, %s98
      %s115 = sphi 0, %s99
      %s119 = sphi 0, %s119
      %s121 = sphi 0, %s119
      %s122 = sphi 0, %s121
      %s136 = sphi 0, %s122
      %s140 = sphi 0, %s140
      %s142 = sphi 0, %s140
      %s143 = sphi 0, %s142
      %s157 = sphi 0, %s143
      %s161 = sphi 0, %s161
      %s163 = sphi 0, %s161
      %s164 = sphi 0, %s163
      %s178 = sphi 0, %s164
      %s182 = sphi 0, %s182
      %s184 = sphi 0, %s182
      %s185 = sphi 0, %s184
      %s199 = sphi 0, %s185
      %s203 = sphi 0, %s203
      %s205 = sphi 0, %s203
      %s206 = sphi 0, %s205
      %s220 = sphi 0, %s206
      %s224 = sphi 0, %s224
      %s226 = sphi 0, %s224
      %s227 = sphi 0, %s226
      %s241 = sphi 0, %s227
      %s245 = sphi 0, %s245
      %s247 = sphi 0, %s245
      %s248 = sphi 0, %s247
      %s262 = sphi 0, %s248
      %s270 = sphi 0, %s272
      %s273 = sphi 0, %s270
      %s274 = sphi 0, %s273
      %s290 = sphi 0, %s274
    $region4: #{_lambda_.13} parent=1 // loop_header_branch
      %22 = sbr.rel (%p20) target = $region8
    $region5: #{_lambda_.13} parent=1 // loop_body
      %s24 = ssub.s32 %s19, 1
      %s25 = ssub.s32 %s19, 2
      %s32 = sadd.s32 1, %s27
      %p33 = scmp.ge.s32.totalorder %s32, 1
      %s34 = scalar_select %p33, 0, %s32
      %s35 = sadd.s32 1, %s26
      %s36 = scalar_select %p33, %s35, %s26
      %p37 = scmp.ge.s32.totalorder %s36, 2
      %s38 = scalar_select %p37, 0, %s36
      %s39 = ssub.s32 %s26, %s38
      %s40 = ssub.s32 %s27, %s34
      %s41 = sor.u32 %s39, %s40
      %p42 = scmp.eq.s32.totalorder %s41, 0
      %s44 = sadd.s32 %s43, 1
      %s45 = scalar_select %p42, %s43, %s44
      %p48 = pneg %p42
      %p49 = scmp.eq.s32.totalorder %s19, 1
      %p50 = por %p48, %p49
      %p51 = scmp.ne.s32.totalorder %s43, %s46
      %p52 = scmp.eq.s32.totalorder %s19, 0
      %p53 = por %p51, %p52
      %p54 = scmp.ne.s32.totalorder %s43, %s46
      %p55 = scmp.eq.s32.totalorder %s24, 1
      %p56 = por %p54, %p55
      %p57 = scmp.ne.s32.totalorder %s46, %s47
      %p58 = scmp.eq.s32.totalorder %s24, 0
      %p59 = por %p57, %p58
      %p60 = scmp.ne.s32.totalorder %s46, %s47
      %p61 = scmp.eq.s32.totalorder %s25, 1
      %p62 = por %p60, %p61
      %p64 = scmp.ne.s32.totalorder %s47, %s63
      %p65 = scmp.eq.s32.totalorder %s25, 0
      %p66 = por %p64, %p65
      %s67 = ssub.s32 %s26, %s38
      %p68 = scmp.eq.s32.totalorder %s67, 0
      %s70 = sadd.s32 %s69, 1
      %s71 = scalar_select %p68, %s69, %s70
      %p74 = pneg %p68
      %p75 = scmp.eq.s32.totalorder %s19, 1
      %p76 = por %p74, %p75
      %p77 = scmp.ne.s32.totalorder %s69, %s72
      %p78 = scmp.eq.s32.totalorder %s19, 0
      %p79 = por %p77, %p78
      %p80 = scmp.ne.s32.totalorder %s69, %s72
      %p81 = scmp.eq.s32.totalorder %s24, 1
      %p82 = por %p80, %p81
      %p83 = scmp.ne.s32.totalorder %s72, %s73
      %p84 = scmp.eq.s32.totalorder %s24, 0
      %p85 = por %p83, %p84
      %p86 = scmp.ne.s32.totalorder %s72, %s73
      %p87 = scmp.eq.s32.totalorder %s25, 1
      %p88 = por %p86, %p87
      %p90 = scmp.ne.s32.totalorder %s73, %s89
      %p91 = scmp.eq.s32.totalorder %s25, 0
      %p92 = por %p90, %p91
      %s93 = ssub.s32 %s26, %s38
      %p94 = scmp.eq.s32.totalorder %s93, 0
      %s96 = sadd.s32 %s95, 1
      %s97 = scalar_select %p94, %s95, %s96
      %p100 = pneg %p94
      %p101 = scmp.eq.s32.totalorder %s19, 1
      %p102 = por %p100, %p101
      %p103 = scmp.ne.s32.totalorder %s95, %s98
      %p104 = scmp.eq.s32.totalorder %s19, 0
      %p105 = por %p103, %p104
      %p106 = scmp.ne.s32.totalorder %s95, %s98
      %p107 = scmp.eq.s32.totalorder %s24, 1
      %p108 = por %p106, %p107
      %p109 = scmp.ne.s32.totalorder %s98, %s99
      %p110 = scmp.eq.s32.totalorder %s24, 0
      %p111 = por %p109, %p110
      %p112 = scmp.ne.s32.totalorder %s98, %s99
      %p113 = scmp.eq.s32.totalorder %s25, 1
      %p114 = por %p112, %p113
      %p116 = scmp.ne.s32.totalorder %s99, %s115
      %p117 = scmp.eq.s32.totalorder %s25, 0
      %p118 = por %p116, %p117
      %s120 = sadd.s32 %s119, 1
      %p123 = scmp.eq.s32.totalorder %s19, 1
      %p124 = scmp.ne.s32.totalorder %s119, %s121
      %p125 = scmp.eq.s32.totalorder %s19, 0
      %p126 = por %p124, %p125
      %p127 = scmp.ne.s32.totalorder %s119, %s121
      %p128 = scmp.eq.s32.totalorder %s24, 1
      %p129 = por %p127, %p128
      %p130 = scmp.ne.s32.totalorder %s121, %s122
      %p131 = scmp.eq.s32.totalorder %s24, 0
      %p132 = por %p130, %p131
      %p133 = scmp.ne.s32.totalorder %s121, %s122
      %p134 = scmp.eq.s32.totalorder %s25, 1
      %p135 = por %p133, %p134
      %p137 = scmp.ne.s32.totalorder %s122, %s136
      %p138 = scmp.eq.s32.totalorder %s25, 0
      %p139 = por %p137, %p138
      %s141 = sadd.s32 %s140, 1
      %p144 = scmp.eq.s32.totalorder %s19, 1
      %p145 = scmp.ne.s32.totalorder %s140, %s142
      %p146 = scmp.eq.s32.totalorder %s19, 0
      %p147 = por %p145, %p146
      %p148 = scmp.ne.s32.totalorder %s140, %s142
      %p149 = scmp.eq.s32.totalorder %s24, 1
      %p150 = por %p148, %p149
      %p151 = scmp.ne.s32.totalorder %s142, %s143
      %p152 = scmp.eq.s32.totalorder %s24, 0
      %p153 = por %p151, %p152
      %p154 = scmp.ne.s32.totalorder %s142, %s143
      %p155 = scmp.eq.s32.totalorder %s25, 1
      %p156 = por %p154, %p155
      %p158 = scmp.ne.s32.totalorder %s143, %s157
      %p159 = scmp.eq.s32.totalorder %s25, 0
      %p160 = por %p158, %p159
      %s162 = sadd.s32 %s161, 1
      %p165 = scmp.eq.s32.totalorder %s19, 1
      %p166 = scmp.ne.s32.totalorder %s161, %s163
      %p167 = scmp.eq.s32.totalorder %s19, 0
      %p168 = por %p166, %p167
      %p169 = scmp.ne.s32.totalorder %s161, %s163
      %p170 = scmp.eq.s32.totalorder %s24, 1
      %p171 = por %p169, %p170
      %p172 = scmp.ne.s32.totalorder %s163, %s164
      %p173 = scmp.eq.s32.totalorder %s24, 0
      %p174 = por %p172, %p173
      %p175 = scmp.ne.s32.totalorder %s163, %s164
      %p176 = scmp.eq.s32.totalorder %s25, 1
      %p177 = por %p175, %p176
      %p179 = scmp.ne.s32.totalorder %s164, %s178
      %p180 = scmp.eq.s32.totalorder %s25, 0
      %p181 = por %p179, %p180
      %s183 = sadd.s32 %s182, 1
      %p186 = scmp.eq.s32.totalorder %s19, 1
      %p187 = scmp.ne.s32.totalorder %s182, %s184
      %p188 = scmp.eq.s32.totalorder %s19, 0
      %p189 = por %p187, %p188
      %p190 = scmp.ne.s32.totalorder %s182, %s184
      %p191 = scmp.eq.s32.totalorder %s24, 1
      %p192 = por %p190, %p191
      %p193 = scmp.ne.s32.totalorder %s184, %s185
      %p194 = scmp.eq.s32.totalorder %s24, 0
      %p195 = por %p193, %p194
      %p196 = scmp.ne.s32.totalorder %s184, %s185
      %p197 = scmp.eq.s32.totalorder %s25, 1
      %p198 = por %p196, %p197
      %p200 = scmp.ne.s32.totalorder %s185, %s199
      %p201 = scmp.eq.s32.totalorder %s25, 0
      %p202 = por %p200, %p201
      %s204 = sadd.s32 %s203, 1
      %p207 = scmp.eq.s32.totalorder %s19, 1
      %p208 = scmp.ne.s32.totalorder %s203, %s205
      %p209 = scmp.eq.s32.totalorder %s19, 0
      %p210 = por %p208, %p209
      %p211 = scmp.ne.s32.totalorder %s203, %s205
      %p212 = scmp.eq.s32.totalorder %s24, 1
      %p213 = por %p211, %p212
      %p214 = scmp.ne.s32.totalorder %s205, %s206
      %p215 = scmp.eq.s32.totalorder %s24, 0
      %p216 = por %p214, %p215
      %p217 = scmp.ne.s32.totalorder %s205, %s206
      %p218 = scmp.eq.s32.totalorder %s25, 1
      %p219 = por %p217, %p218
      %p221 = scmp.ne.s32.totalorder %s206, %s220
      %p222 = scmp.eq.s32.totalorder %s25, 0
      %p223 = por %p221, %p222
      %s225 = sadd.s32 %s224, 1
      %p228 = scmp.eq.s32.totalorder %s19, 1
      %p229 = scmp.ne.s32.totalorder %s224, %s226
      %p230 = scmp.eq.s32.totalorder %s19, 0
      %p231 = por %p229, %p230
      %p232 = scmp.ne.s32.totalorder %s224, %s226
      %p233 = scmp.eq.s32.totalorder %s24, 1
      %p234 = por %p232, %p233
      %p235 = scmp.ne.s32.totalorder %s226, %s227
      %p236 = scmp.eq.s32.totalorder %s24, 0
      %p237 = por %p235, %p236
      %p238 = scmp.ne.s32.totalorder %s226, %s227
      %p239 = scmp.eq.s32.totalorder %s25, 1
      %p240 = por %p238, %p239
      %p242 = scmp.ne.s32.totalorder %s227, %s241
      %p243 = scmp.eq.s32.totalorder %s25, 0
      %p244 = por %p242, %p243
      %s246 = sadd.s32 %s245, 1
      %p249 = scmp.eq.s32.totalorder %s19, 1
      %p250 = scmp.ne.s32.totalorder %s245, %s247
      %p251 = scmp.eq.s32.totalorder %s19, 0
      %p252 = por %p250, %p251
      %p253 = scmp.ne.s32.totalorder %s245, %s247
      %p254 = scmp.eq.s32.totalorder %s24, 1
      %p255 = por %p253, %p254
      %p256 = scmp.ne.s32.totalorder %s247, %s248
      %p257 = scmp.eq.s32.totalorder %s24, 0
      %p258 = por %p256, %p257
      %p259 = scmp.ne.s32.totalorder %s247, %s248
      %p260 = scmp.eq.s32.totalorder %s25, 1
      %p261 = por %p259, %p260
      %p263 = scmp.ne.s32.totalorder %s248, %s262
      %p264 = scmp.eq.s32.totalorder %s25, 0
      %p265 = por %p263, %p264
      %s266 = ssub.s32 %s26, %s38
      %s267 = ssub.s32 %s27, %s34
      %s268 = sor.u32 %s266, %s267
      %p269 = scmp.eq.s32.totalorder %s268, 0
      %s271 = sadd.s32 %s270, 1
      %s272 = scalar_select %p269, %s270, %s271
      %p275 = pneg %p269
      %p276 = scmp.eq.s32.totalorder %s19, 1
      %p277 = por %p275, %p276
      %p278 = scmp.ne.s32.totalorder %s270, %s273
      %p279 = scmp.eq.s32.totalorder %s19, 0
      %p280 = por %p278, %p279
      %p281 = scmp.ne.s32.totalorder %s270, %s273
      %p282 = scmp.eq.s32.totalorder %s24, 1
      %p283 = por %p281, %p282
      %p284 = scmp.ne.s32.totalorder %s273, %s274
      %p285 = scmp.eq.s32.totalorder %s24, 0
      %p286 = por %p284, %p285
      %p287 = scmp.ne.s32.totalorder %s273, %s274
      %p288 = scmp.eq.s32.totalorder %s25, 1
      %p289 = por %p287, %p288
      %p291 = scmp.ne.s32.totalorder %s274, %s290
      %p292 = scmp.eq.s32.totalorder %s25, 0
      %p293 = por %p291, %p292
      %p294 = scmp.le.s32.totalorder 1, %s19
      %p295 = scmp.lt.s32.totalorder %s19, 3
      %p296 = pnand %p294, %p295
      %p297 = pneg %p296
      // Predicated region
      $region9: #{_lambda_.13} parent=5 // pred_check
        _
      $region10: #{_lambda_.13} parent=5 // pred_check_branch
        %299 = sbr.rel (%p296) target = $region12
      $region11: #{_lambda_.13} parent=5 // pred_region
        %s300 = ssub.s32 %s19, 1
        // Predicated region
        $region13: #{_lambda_.13} parent=11 // pred_check
          %p301 = pneg %p132
        $region14: #{_lambda_.13} parent=11 // pred_check_branch
          %303 = sbr.rel (%p301) target = $region16
        $region15: #{_lambda_.13} parent=11 // pred_region
          %305 = vsyncadd [#allocation4], 0
          %s306 = sshll.u32 %s3, 4
          %s307 = int_to_ptr.hbm [resolvable:$true] %s306
          %s308 = sshll.u32 [#allocation3], 4
          %s309 = int_to_ptr.vmem [resolvable:$true] %s308
          %314 = dma.hbm_to_vmem [thread:$0]  %s307, 1024, %s309, [#allocation4], 64, 64, 4
        $region16: #{_lambda_.13} parent=11 // pred_fallthru
          _
        // Predicated region
        $region17: #{_lambda_.13} parent=11 // pred_check
          %p315 = pneg %p153
        $region18: #{_lambda_.13} parent=11 // pred_check_branch
          %317 = sbr.rel (%p315) target = $region20
        $region19: #{_lambda_.13} parent=11 // pred_region
          %319 = vsyncadd [#allocation6], 0
          %s320 = sshll.u32 %s4, 4
          %s321 = int_to_ptr.hbm [resolvable:$true] %s320
          %s322 = sshll.u32 [#allocation5], 4
          %s323 = int_to_ptr.vmem [resolvable:$true] %s322
          %328 = dma.hbm_to_vmem [thread:$0]  %s321, 1024, %s323, [#allocation6], 64, 64, 4
        $region20: #{_lambda_.13} parent=11 // pred_fallthru
          _
        // Predicated region
        $region21: #{_lambda_.13} parent=11 // pred_check
          %p329 = pneg %p174
        $region22: #{_lambda_.13} parent=11 // pred_check_branch
          %331 = sbr.rel (%p329) target = $region24
        $region23: #{_lambda_.13} parent=11 // pred_region
          %333 = vsyncadd [#allocation6], 0
          %s334 = sshll.u32 %s5, 4
          %s335 = int_to_ptr.hbm [resolvable:$true] %s334
          %s336 = sshll.u32 [#allocation7], 4
          %s337 = int_to_ptr.vmem [resolvable:$true] %s336
          %342 = dma.hbm_to_vmem [thread:$0]  %s335, 1024, %s337, [#allocation6], 64, 64, 4
        $region24: #{_lambda_.13} parent=11 // pred_fallthru
          _
        // Predicated region
        $region25: #{_lambda_.13} parent=11 // pred_check
          %p343 = pneg %p195
        $region26: #{_lambda_.13} parent=11 // pred_check_branch
          %345 = sbr.rel (%p343) target = $region28
        $region27: #{_lambda_.13} parent=11 // pred_region
          %347 = vsyncadd [#allocation9], 0
          %s348 = sshll.u32 %s6, 4
          %s349 = int_to_ptr.hbm [resolvable:$true] %s348
          %s350 = sshll.u32 [#allocation8], 4
          %s351 = int_to_ptr.vmem [resolvable:$true] %s350
          %356 = dma.hbm_to_vmem [thread:$0]  %s349, 1024, %s351, [#allocation9], 64, 64, 4
        $region28: #{_lambda_.13} parent=11 // pred_fallthru
          _
        // Predicated region
        $region29: #{_lambda_.13} parent=11 // pred_check
          %p357 = pneg %p216
        $region30: #{_lambda_.13} parent=11 // pred_check_branch
          %359 = sbr.rel (%p357) target = $region32
        $region31: #{_lambda_.13} parent=11 // pred_region
          _
        $region32: #{_lambda_.13} parent=11 // pred_fallthru
          _
        // Predicated region
        $region33: #{_lambda_.13} parent=11 // pred_check
          %p360 = pneg %p237
        $region34: #{_lambda_.13} parent=11 // pred_check_branch
          %362 = sbr.rel (%p360) target = $region36
        $region35: #{_lambda_.13} parent=11 // pred_region
          _
        $region36: #{_lambda_.13} parent=11 // pred_fallthru
          _
        // Predicated region
        $region37: #{_lambda_.13} parent=11 // pred_check
          %p363 = pneg %p258
        $region38: #{_lambda_.13} parent=11 // pred_check_branch
          %365 = sbr.rel (%p363) target = $region40
        $region39: #{_lambda_.13} parent=11 // pred_region
          _
        $region40: #{_lambda_.13} parent=11 // pred_fallthru
          _
      $region12: #{_lambda_.13} parent=5 // pred_fallthru
        _
      %p366 = scmp.lt.s32.totalorder %s19, 2
      // Predicated region
      $region41: #{_lambda_.13} parent=5 // pred_check
        %p367 = pneg %p366
      $region42: #{_lambda_.13} parent=5 // pred_check_branch
        %369 = sbr.rel (%p367) target = $region44
      $region43: #{_lambda_.13} parent=5 // pred_region
        // Predicated region
        $region45: #{_lambda_.13} parent=43 // pred_check
          %p370 = pneg %p53
        $region46: #{_lambda_.13} parent=43 // pred_check_branch
          %372 = sbr.rel (%p370) target = $region48
        $region47: #{_lambda_.13} parent=43 // pred_region
          %p373 = scmp.lt.s32.totalorder %s26, 1
          %s374 = scalar_select %p373, %s26, 1
          %p375 = scmp.lt.s32.totalorder %s27, 0
          %s376 = scalar_select %p375, %s27, 0
          %s377 = sadd.s32 %s376, %s374
          %s378 = smul.addr %s377, 4
          %s379 = scalar_lea.vmem %s0, %s378
        $region48: #{_lambda_.13} parent=43 // pred_fallthru
          _
        // Predicated region
        $region49: #{_lambda_.13} parent=43 // pred_check
          %p380 = pneg %p79
        $region50: #{_lambda_.13} parent=43 // pred_check_branch
          %382 = sbr.rel (%p380) target = $region52
        $region51: #{_lambda_.13} parent=43 // pred_region
          %p383 = scmp.lt.s32.totalorder %s26, 1
          %s384 = scalar_select %p383, %s26, 1
          %s385 = smul.addr %s384, 4
          %s386 = scalar_lea.vmem %s1, %s385
        $region52: #{_lambda_.13} parent=43 // pred_fallthru
          _
        // Predicated region
        $region53: #{_lambda_.13} parent=43 // pred_check
          %p387 = pneg %p105
        $region54: #{_lambda_.13} parent=43 // pred_check_branch
          %389 = sbr.rel (%p387) target = $region56
        $region55: #{_lambda_.13} parent=43 // pred_region
          %p390 = scmp.lt.s32.totalorder %s26, 1
          %s391 = scalar_select %p390, %s26, 1
          %s392 = scalar_lea.vmem %s2, %s391
        $region56: #{_lambda_.13} parent=43 // pred_fallthru
          _
      $region44: #{_lambda_.13} parent=5 // pred_fallthru
        _
      %p393 = scmp.le.s32.totalorder 1, %s19
      %p394 = scmp.lt.s32.totalorder %s19, 3
      %p395 = pnand %p393, %p394
      %p396 = pneg %p395
      // Predicated region
      $region57: #{_lambda_.13} parent=5 // pred_check
        _
      $region58: #{_lambda_.13} parent=5 // pred_check_branch
        %398 = sbr.rel (%p395) target = $region60
      $region59: #{_lambda_.13} parent=5 // pred_region
        %s399 = ssub.s32 %s19, 1
        // Predicated region
        $region61: #{_lambda_.13} parent=59 // pred_check
          %p400 = pneg %p132
        $region62: #{_lambda_.13} parent=59 // pred_check_branch
          %402 = sbr.rel (%p400) target = $region64
        $region63: #{_lambda_.13} parent=59 // pred_region
          %404 = dma.done [#allocation4], 1024
        $region64: #{_lambda_.13} parent=59 // pred_fallthru
          _
        // Predicated region
        $region65: #{_lambda_.13} parent=59 // pred_check
          %p405 = pneg %p153
        $region66: #{_lambda_.13} parent=59 // pred_check_branch
          %407 = sbr.rel (%p405) target = $region68
        $region67: #{_lambda_.13} parent=59 // pred_region
          %409 = dma.done [#allocation6], 1024
        $region68: #{_lambda_.13} parent=59 // pred_fallthru
          _
        // Predicated region
        $region69: #{_lambda_.13} parent=59 // pred_check
          %p410 = pneg %p174
        $region70: #{_lambda_.13} parent=59 // pred_check_branch
          %412 = sbr.rel (%p410) target = $region72
        $region71: #{_lambda_.13} parent=59 // pred_region
          %414 = dma.done [#allocation6], 1024
        $region72: #{_lambda_.13} parent=59 // pred_fallthru
          _
        // Predicated region
        $region73: #{_lambda_.13} parent=59 // pred_check
          %p415 = pneg %p195
        $region74: #{_lambda_.13} parent=59 // pred_check_branch
          %417 = sbr.rel (%p415) target = $region76
        $region75: #{_lambda_.13} parent=59 // pred_region
          %419 = dma.done [#allocation9], 1024
        $region76: #{_lambda_.13} parent=59 // pred_fallthru
          _
        %p420 = scmp.lt.s32.totalorder %s28, 1
        %s421 = scalar_select %p420, %s28, 1
        %p422 = scmp.lt.s32.totalorder %s29, 0
        %s423 = scalar_select %p422, %s29, 0
        %s424 = sadd.s32 %s423, %s421
        %s425 = smul.addr %s424, 4
        %s426 = scalar_lea.vmem %s0, %s425
        %p427 = pneg %p59
        %p428 = pneg %p56
        %p429 = scmp.lt.s32.totalorder %s28, 1
        %s430 = scalar_select %p429, %s28, 1
        %s431 = smul.addr %s430, 4
        %s432 = scalar_lea.vmem %s1, %s431
        %p433 = pneg %p85
        %p434 = pneg %p82
        %p435 = scmp.lt.s32.totalorder %s28, 1
        %s436 = scalar_select %p435, %s28, 1
        %s437 = scalar_lea.vmem %s2, %s436
        %p438 = pneg %p111
        %p439 = pneg %p108
        %p440 = pneg %p132
        %p441 = pneg %p129
        %p442 = pneg %p153
        %p443 = pneg %p150
        %p444 = pneg %p174
        %p445 = pneg %p171
        %p446 = pneg %p195
        %p447 = pneg %p192
        %p448 = pneg %p216
        %p449 = pneg %p213
        %p450 = pneg %p237
        %p451 = pneg %p234
        %p452 = pneg %p258
        %p453 = pneg %p255
        %p454 = pneg %p286
        %p455 = pneg %p283
        %p456 = scmp.lt.s32.totalorder %s28, 1
        %s457 = scalar_select %p456, %s28, 1
        %p458 = scmp.lt.s32.totalorder %s29, 0
        %s459 = scalar_select %p458, %s29, 0
        %s460 = sadd.s32 %s459, %s457
        %s461 = smul.addr %s460, 4
        %s462 = scalar_lea.vmem %s10, %s461
        %p463 = scmp.lt.s32.totalorder %s28, 1
        %s464 = scalar_select %p463, %s28, 1
        %p465 = scmp.lt.s32.totalorder %s29, 0
        %s466 = scalar_select %p465, %s29, 0
        %s467 = sadd.s32 %s466, %s464
        %s468 = smul.addr %s467, 4
        %s469 = scalar_lea.vmem %s0, %s468
        %p470 = scmp.lt.s32.totalorder %s28, 1
        %s471 = scalar_select %p470, %s28, 1
        %s472 = smul.addr %s471, 4
        %s473 = scalar_lea.vmem %s1, %s472
        %p474 = scmp.lt.s32.totalorder %s28, 1
        %s475 = scalar_select %p474, %s28, 1
        %s476 = scalar_lea.vmem %s2, %s475
        %p477 = scmp.lt.s32.totalorder %s28, 1
        %s478 = scalar_select %p477, %s28, 1
        %p479 = scmp.lt.s32.totalorder %s29, 0
        %s480 = scalar_select %p479, %s29, 0
        %s481 = sadd.s32 %s480, %s478
        %s482 = smul.addr %s481, 4
        %s483 = scalar_lea.vmem %s10, %s482
        %v485 = vld [vmem:[%s469] sm:$0xf]
        %v486 = vld [vmem:[%s473] sm:$0xf]
        %v487 = vld [vmem:[#allocation3] sm:$0xf]
        %v488 = vld [vmem:[#allocation3 + $0x4] sm:$0xf]
        %v489 = vld [vmem:[#allocation3 + $0x8] sm:$0xf]
        %v490 = vld [vmem:[#allocation3 + $0xc] sm:$0xf]
        %v491 = vld [vmem:[#allocation3 + $0x10] sm:$0xf]
        %v492 = vld [vmem:[#allocation3 + $0x14] sm:$0xf]
        %v493 = vld [vmem:[#allocation3 + $0x18] sm:$0xf]
        %v494 = vld [vmem:[#allocation3 + $0x1c] sm:$0xf]
        %v495 = vld [vmem:[#allocation3 + $0x20] sm:$0xf]
        %v496 = vld [vmem:[#allocation3 + $0x24] sm:$0xf]
        %v497 = vld [vmem:[#allocation3 + $0x28] sm:$0xf]
        %v498 = vld [vmem:[#allocation3 + $0x2c] sm:$0xf]
        %v499 = vld [vmem:[#allocation3 + $0x30] sm:$0xf]
        %v500 = vld [vmem:[#allocation3 + $0x34] sm:$0xf]
        %v501 = vld [vmem:[#allocation3 + $0x38] sm:$0xf]
        %v502 = vld [vmem:[#allocation3 + $0x3c] sm:$0xf]
        %v519 = vunpack.c.l.b16 %v487
        %v520 = vunpack.c.l.b16 %v488
        %v521 = vunpack.c.l.b16 %v489
        %v522 = vunpack.c.l.b16 %v490
        %v523 = vunpack.c.l.b16 %v491
        %v524 = vunpack.c.l.b16 %v492
        %v525 = vunpack.c.l.b16 %v493
        %v526 = vunpack.c.l.b16 %v494
        %v527 = vunpack.c.l.b16 %v495
        %v528 = vunpack.c.l.b16 %v496
        %v529 = vunpack.c.l.b16 %v497
        %v530 = vunpack.c.l.b16 %v498
        %v531 = vunpack.c.l.b16 %v499
        %v532 = vunpack.c.l.b16 %v500
        %v533 = vunpack.c.l.b16 %v501
        %v534 = vunpack.c.l.b16 %v502
        %v535 = vpack.c.b16 %v520, %v519
        %v536 = vpack.c.b16 %v522, %v521
        %v537 = vpack.c.b16 %v524, %v523
        %v538 = vpack.c.b16 %v526, %v525
        %v539 = vpack.c.b16 %v528, %v527
        %v540 = vpack.c.b16 %v530, %v529
        %v541 = vpack.c.b16 %v532, %v531
        %v542 = vpack.c.b16 %v534, %v533
        %551 = vmatpush.bf16.msra.mxu0 %v542
        %552 = vmatpush.bf16.msra.mxu0 %v541
        %553 = vmatpush.bf16.msra.mxu0 %v540
        %554 = vmatpush.bf16.msra.mxu0 %v539
        %555 = vmatpush.bf16.msra.mxu0 %v538
        %556 = vmatpush.bf16.msra.mxu0 %v537
        %557 = vmatpush.bf16.msra.mxu0 %v536
        %558 = vmatpush.bf16.msra.mxu0 %v535
        %559 = vmatmul.bf16.gmra.mxu0 %v485
        %v560 = vpop.f32.mrf.mxu0
        %v561 = vadd.f32 0.0, %v560
        %v562 = vpop.f32.mrf.mxu0
        %563 = vdwg.mxu0
        %v564 = vmul.f32 %v561, 0.088388346
        %v565 = vpack.c.bf16 %v564, %v564
        %v566 = vld [vmem:[#allocation5] sm:$0xf]
        %v567 = vld [vmem:[#allocation5 + $0x4] sm:$0xf]
        %v568 = vld [vmem:[#allocation5 + $0x8] sm:$0xf]
        %v569 = vld [vmem:[#allocation5 + $0xc] sm:$0xf]
        %v570 = vld [vmem:[#allocation5 + $0x10] sm:$0xf]
        %v571 = vld [vmem:[#allocation5 + $0x14] sm:$0xf]
        %v572 = vld [vmem:[#allocation5 + $0x18] sm:$0xf]
        %v573 = vld [vmem:[#allocation5 + $0x1c] sm:$0xf]
        %v574 = vld [vmem:[#allocation5 + $0x20] sm:$0xf]
        %v575 = vld [vmem:[#allocation5 + $0x24] sm:$0xf]
        %v576 = vld [vmem:[#allocation5 + $0x28] sm:$0xf]
        %v577 = vld [vmem:[#allocation5 + $0x2c] sm:$0xf]
        %v578 = vld [vmem:[#allocation5 + $0x30] sm:$0xf]
        %v579 = vld [vmem:[#allocation5 + $0x34] sm:$0xf]
        %v580 = vld [vmem:[#allocation5 + $0x38] sm:$0xf]
        %v581 = vld [vmem:[#allocation5 + $0x3c] sm:$0xf]
        %v598 = vunpack.c.l.b16 %v566
        %v599 = vunpack.c.l.b16 %v567
        %v600 = vunpack.c.l.b16 %v568
        %v601 = vunpack.c.l.b16 %v569
        %v602 = vunpack.c.l.b16 %v570
        %v603 = vunpack.c.l.b16 %v571
        %v604 = vunpack.c.l.b16 %v572
        %v605 = vunpack.c.l.b16 %v573
        %v606 = vunpack.c.l.b16 %v574
        %v607 = vunpack.c.l.b16 %v575
        %v608 = vunpack.c.l.b16 %v576
        %v609 = vunpack.c.l.b16 %v577
        %v610 = vunpack.c.l.b16 %v578
        %v611 = vunpack.c.l.b16 %v579
        %v612 = vunpack.c.l.b16 %v580
        %v613 = vunpack.c.l.b16 %v581
        %v614 = vpack.c.b16 %v599, %v598
        %v615 = vpack.c.b16 %v601, %v600
        %v616 = vpack.c.b16 %v603, %v602
        %v617 = vpack.c.b16 %v605, %v604
        %v618 = vpack.c.b16 %v607, %v606
        %v619 = vpack.c.b16 %v609, %v608
        %v620 = vpack.c.b16 %v611, %v610
        %v621 = vpack.c.b16 %v613, %v612
        %630 = vmatpush.bf16.msra.mxu0 %v621
        %631 = vmatpush.bf16.msra.mxu0 %v620
        %632 = vmatpush.bf16.msra.mxu0 %v619
        %633 = vmatpush.bf16.msra.mxu0 %v618
        %634 = vmatpush.bf16.msra.mxu0 %v617
        %635 = vmatpush.bf16.msra.mxu0 %v616
        %636 = vmatpush.bf16.msra.mxu0 %v615
        %637 = vmatpush.bf16.msra.mxu0 %v614
        %638 = vmatmul.bf16.gmra.mxu0 %v486
        %v639 = vpop.f32.mrf.mxu0
        %v640 = vadd.f32 0.0, %v639
        %v641 = vpop.f32.mrf.mxu0
        %642 = vdwg.mxu0
        %v643 = vpack.c.bf16 %v640, %v640
        %v644 = vld [vmem:[#allocation7] sm:$0xf]
        %v645 = vld [vmem:[#allocation7 + $0x4] sm:$0xf]
        %v646 = vld [vmem:[#allocation7 + $0x8] sm:$0xf]
        %v647 = vld [vmem:[#allocation7 + $0xc] sm:$0xf]
        %v648 = vld [vmem:[#allocation7 + $0x10] sm:$0xf]
        %v649 = vld [vmem:[#allocation7 + $0x14] sm:$0xf]
        %v650 = vld [vmem:[#allocation7 + $0x18] sm:$0xf]
        %v651 = vld [vmem:[#allocation7 + $0x1c] sm:$0xf]
        %v652 = vld [vmem:[#allocation7 + $0x20] sm:$0xf]
        %v653 = vld [vmem:[#allocation7 + $0x24] sm:$0xf]
        %v654 = vld [vmem:[#allocation7 + $0x28] sm:$0xf]
        %v655 = vld [vmem:[#allocation7 + $0x2c] sm:$0xf]
        %v656 = vld [vmem:[#allocation7 + $0x30] sm:$0xf]
        %v657 = vld [vmem:[#allocation7 + $0x34] sm:$0xf]
        %v658 = vld [vmem:[#allocation7 + $0x38] sm:$0xf]
        %v659 = vld [vmem:[#allocation7 + $0x3c] sm:$0xf]
        %v676 = vunpack.c.l.b16 %v644
        %v677 = vunpack.c.l.b16 %v645
        %v678 = vunpack.c.l.b16 %v646
        %v679 = vunpack.c.l.b16 %v647
        %v680 = vunpack.c.l.b16 %v648
        %v681 = vunpack.c.l.b16 %v649
        %v682 = vunpack.c.l.b16 %v650
        %v683 = vunpack.c.l.b16 %v651
        %v684 = vunpack.c.l.b16 %v652
        %v685 = vunpack.c.l.b16 %v653
        %v686 = vunpack.c.l.b16 %v654
        %v687 = vunpack.c.l.b16 %v655
        %v688 = vunpack.c.l.b16 %v656
        %v689 = vunpack.c.l.b16 %v657
        %v690 = vunpack.c.l.b16 %v658
        %v691 = vunpack.c.l.b16 %v659
        %v692 = vpack.c.b16 %v677, %v676
        %v693 = vpack.c.b16 %v679, %v678
        %v694 = vpack.c.b16 %v681, %v680
        %v695 = vpack.c.b16 %v683, %v682
        %v696 = vpack.c.b16 %v685, %v684
        %v697 = vpack.c.b16 %v687, %v686
        %v698 = vpack.c.b16 %v689, %v688
        %v699 = vpack.c.b16 %v691, %v690
        %708 = vmatpush.bf16.msra.mxu0 %v699
        %709 = vmatpush.bf16.msra.mxu0 %v698
        %710 = vmatpush.bf16.msra.mxu0 %v697
        %711 = vmatpush.bf16.msra.mxu0 %v696
        %712 = vmatpush.bf16.msra.mxu0 %v695
        %713 = vmatpush.bf16.msra.mxu0 %v694
        %714 = vmatpush.bf16.msra.mxu0 %v693
        %715 = vmatpush.bf16.msra.mxu0 %v692
        %716 = vmatmul.bf16.gmra.mxu0 %v486
        %v717 = vpop.f32.mrf.mxu0
        %v718 = vadd.f32 0.0, %v717
        %v719 = vpop.f32.mrf.mxu0
        %720 = vdwg.mxu0
        %v721 = vpack.c.bf16 %v718, %v718
        %v722 = vld [vmem:[%s476] sm:$0x1]
        %vm723 = vcmp.gt.s32.totalorder %v722, 0
        %v724 = vsel %vm723, 1, 0
        %v725 = vperm.slane %v724, 0
        %vm726 = vcmp.eq.s32.totalorder %v725, 1
        %vm727 = vcmask 261120
        %v729 = vsel %vm727, %v565, 0
        %v732 = vsel %vm727, %v643, 0
        %734 = vmatpush.bf16.xpose.msra.mxu0 0
        %735 = vmatpush.bf16.xpose.msra.mxu0 0
        %736 = vmatpush.bf16.xpose.msra.mxu0 0
        %737 = vmatpush.bf16.xpose.msra.mxu0 0
        %738 = vmatpush.bf16.xpose.msra.mxu0 0
        %739 = vmatpush.bf16.xpose.msra.mxu0 0
        %740 = vmatpush.bf16.xpose.msra.mxu0 0
        %741 = vmatpush.bf16.xpose.msra.mxu0 %v732
        %742 = vmatmul.bf16.gmra.mxu0 %v729
        %v743 = vpop.f32.mrf.mxu0
        %v744 = vadd.f32 0.0, %v743
        %v745 = vpop.f32.mrf.mxu0
        %746 = vdwg.mxu0
        %v747 = vsel %vm726, -1e+30, %v744
        %vm748 = vcmask 64512
        %v749 = vsel %vm748, %v747, -inf
        %750 = vmax.xlane.f32.xlu0 %v749
        %v751 = vpop.xlane.xlu0 %750
        %v752 = vsub.f32 %v747, %v751
        %v753 = vmul.f32 %v752, 1.442695
        %v754 = vpow.pop %v753
        %v755 = vsel %vm748, %v754, 0.0
        %756 = vadd.xlane.f32.xlu0 %v755
        %v757 = vpop.xlane.xlu0 %756
        %v758 = vrcp.pop %v757
        %v759 = vmul.f32 %v754, %v758
        %v760 = vpack.c.bf16 %v759, %v759
        %v762 = vsel %vm748, %v760, 0
        %vm764 = vcmask 1043456
        %v766 = vsel %vm764, %v721, 0
        %768 = vmatpush.bf16.msra.mxu0 0
        %769 = vmatpush.bf16.msra.mxu0 0
        %770 = vmatpush.bf16.msra.mxu0 0
        %771 = vmatpush.bf16.msra.mxu0 0
        %772 = vmatpush.bf16.msra.mxu0 0
        %773 = vmatpush.bf16.msra.mxu0 0
        %774 = vmatpush.bf16.msra.mxu0 0
        %775 = vmatpush.bf16.msra.mxu0 %v766
        %776 = vmatmul.bf16.gmra.mxu0 %v762
        %v777 = vpop.f32.mrf.mxu0
        %v778 = vadd.f32 0.0, %v777
        %v779 = vpop.f32.mrf.mxu0
        %780 = vdwg.mxu0
        %781 = vst.msk [vmem:[#allocation2] sm:$0xff] %vm727, %v778
        %v783 = vunpack.c.l.b16 %v565
        %v784 = vpack.c.b16 %v783, %v783
        %785 = vrot.lane.b32.xlu0 %v784, 96
        %v786 = vpop.permute.xlu0 %785
        %v788 = vunpack.c.l.b16 %v643
        %v789 = vpack.c.b16 %v788, %v788
        %790 = vrot.lane.b32.xlu0 %v789, 96
        %v791 = vpop.permute.xlu0 %790
        %v793 = vsel %vm727, %v786, 0
        %v796 = vsel %vm727, %v791, 0
        %798 = vmatpush.bf16.xpose.msra.mxu0 0
        %799 = vmatpush.bf16.xpose.msra.mxu0 0
        %800 = vmatpush.bf16.xpose.msra.mxu0 0
        %801 = vmatpush.bf16.xpose.msra.mxu0 0
        %802 = vmatpush.bf16.xpose.msra.mxu0 0
        %803 = vmatpush.bf16.xpose.msra.mxu0 0
        %804 = vmatpush.bf16.xpose.msra.mxu0 0
        %805 = vmatpush.bf16.xpose.msra.mxu0 %v796
        %806 = vmatmul.bf16.gmra.mxu0 %v793
        %v807 = vpop.f32.mrf.mxu0
        %v808 = vadd.f32 0.0, %v807
        %v809 = vpop.f32.mrf.mxu0
        %810 = vdwg.mxu0
        %v811 = vsel %vm726, -1e+30, %v808
        %v812 = vsel %vm748, %v811, -inf
        %813 = vmax.xlane.f32.xlu0 %v812
        %v814 = vpop.xlane.xlu0 %813
        %v815 = vsub.f32 %v811, %v814
        %v816 = vmul.f32 %v815, 1.442695
        %v817 = vpow.pop %v816
        %v818 = vsel %vm748, %v817, 0.0
        %819 = vadd.xlane.f32.xlu0 %v818
        %v820 = vpop.xlane.xlu0 %819
        %v821 = vrcp.pop %v820
        %v822 = vmul.f32 %v817, %v821
        %v823 = vpack.c.bf16 %v822, %v822
        %v825 = vunpack.c.l.b16 %v721
        %v826 = vpack.c.b16 %v825, %v825
        %827 = vrot.lane.b32.xlu0 %v826, 96
        %v828 = vpop.permute.xlu0 %827
        %v830 = vsel %vm748, %v823, 0
        %v833 = vsel %vm764, %v828, 0
        %835 = vmatpush.bf16.msra.mxu0 0
        %836 = vmatpush.bf16.msra.mxu0 0
        %837 = vmatpush.bf16.msra.mxu0 0
        %838 = vmatpush.bf16.msra.mxu0 0
        %839 = vmatpush.bf16.msra.mxu0 0
        %840 = vmatpush.bf16.msra.mxu0 0
        %841 = vmatpush.bf16.msra.mxu0 0
        %842 = vmatpush.bf16.msra.mxu0 %v833
        %843 = vmatmul.bf16.gmra.mxu0 %v830
        %v844 = vpop.f32.mrf.mxu0
        %v845 = vadd.f32 0.0, %v844
        %v846 = vpop.f32.mrf.mxu0
        %847 = vdwg.mxu0
        %849 = vrot.lane.b32.xlu0 %v845, 32
        %v850 = vpop.permute.xlu0 %849
        %vm852 = vcmask 523520
        %853 = vst.msk [vmem:[#allocation2] sm:$0xff] %vm852, %v850
        %854 = vrot.lane.b32.xlu0 %v784, 64
        %v855 = vpop.permute.xlu0 %854
        %856 = vrot.lane.b32.xlu0 %v789, 64
        %v857 = vpop.permute.xlu0 %856
        %v859 = vsel %vm727, %v855, 0
        %v862 = vsel %vm727, %v857, 0
        %864 = vmatpush.bf16.xpose.msra.mxu0 0
        %865 = vmatpush.bf16.xpose.msra.mxu0 0
        %866 = vmatpush.bf16.xpose.msra.mxu0 0
        %867 = vmatpush.bf16.xpose.msra.mxu0 0
        %868 = vmatpush.bf16.xpose.msra.mxu0 0
        %869 = vmatpush.bf16.xpose.msra.mxu0 0
        %870 = vmatpush.bf16.xpose.msra.mxu0 0
        %871 = vmatpush.bf16.xpose.msra.mxu0 %v862
        %872 = vmatmul.bf16.gmra.mxu0 %v859
        %v873 = vpop.f32.mrf.mxu0
        %v874 = vadd.f32 0.0, %v873
        %v875 = vpop.f32.mrf.mxu0
        %876 = vdwg.mxu0
        %v877 = vsel %vm726, -1e+30, %v874
        %v878 = vsel %vm748, %v877, -inf
        %879 = vmax.xlane.f32.xlu0 %v878
        %v880 = vpop.xlane.xlu0 %879
        %v881 = vsub.f32 %v877, %v880
        %v882 = vmul.f32 %v881, 1.442695
        %v883 = vpow.pop %v882
        %v884 = vsel %vm748, %v883, 0.0
        %885 = vadd.xlane.f32.xlu0 %v884
        %v886 = vpop.xlane.xlu0 %885
        %v887 = vrcp.pop %v886
        %v888 = vmul.f32 %v883, %v887
        %v889 = vpack.c.bf16 %v888, %v888
        %890 = vrot.lane.b32.xlu0 %v826, 64
        %v891 = vpop.permute.xlu0 %890
        %v893 = vsel %vm748, %v889, 0
        %v896 = vsel %vm764, %v891, 0
        %898 = vmatpush.bf16.msra.mxu0 0
        %899 = vmatpush.bf16.msra.mxu0 0
        %900 = vmatpush.bf16.msra.mxu0 0
        %901 = vmatpush.bf16.msra.mxu0 0
        %902 = vmatpush.bf16.msra.mxu0 0
        %903 = vmatpush.bf16.msra.mxu0 0
        %904 = vmatpush.bf16.msra.mxu0 0
        %905 = vmatpush.bf16.msra.mxu0 %v896
        %906 = vmatmul.bf16.gmra.mxu0 %v893
        %v907 = vpop.f32.mrf.mxu0
        %v908 = vadd.f32 0.0, %v907
        %v909 = vpop.f32.mrf.mxu0
        %910 = vdwg.mxu0
        %912 = vrot.lane.b32.xlu0 %v908, 64
        %v913 = vpop.permute.xlu0 %912
        %vm915 = vcmask 785920
        %916 = vst.msk [vmem:[#allocation2] sm:$0xff] %vm915, %v913
        %917 = vrot.lane.b32.xlu0 %v784, 32
        %v918 = vpop.permute.xlu0 %917
        %919 = vrot.lane.b32.xlu0 %v789, 32
        %v920 = vpop.permute.xlu0 %919
        %v922 = vsel %vm727, %v918, 0
        %v925 = vsel %vm727, %v920, 0
        %927 = vmatpush.bf16.xpose.msra.mxu0 0
        %928 = vmatpush.bf16.xpose.msra.mxu0 0
        %929 = vmatpush.bf16.xpose.msra.mxu0 0
        %930 = vmatpush.bf16.xpose.msra.mxu0 0
        %931 = vmatpush.bf16.xpose.msra.mxu0 0
        %932 = vmatpush.bf16.xpose.msra.mxu0 0
        %933 = vmatpush.bf16.xpose.msra.mxu0 0
        %934 = vmatpush.bf16.xpose.msra.mxu0 %v925
        %935 = vmatmul.bf16.gmra.mxu0 %v922
        %v936 = vpop.f32.mrf.mxu0
        %v937 = vadd.f32 0.0, %v936
        %v938 = vpop.f32.mrf.mxu0
        %939 = vdwg.mxu0
        %v940 = vsel %vm726, -1e+30, %v937
        %v941 = vsel %vm748, %v940, -inf
        %942 = vmax.xlane.f32.xlu0 %v941
        %v943 = vpop.xlane.xlu0 %942
        %v944 = vsub.f32 %v940, %v943
        %v945 = vmul.f32 %v944, 1.442695
        %v946 = vpow.pop %v945
        %v947 = vsel %vm748, %v946, 0.0
        %948 = vadd.xlane.f32.xlu0 %v947
        %v949 = vpop.xlane.xlu0 %948
        %v950 = vrcp.pop %v949
        %v951 = vmul.f32 %v946, %v950
        %v952 = vpack.c.bf16 %v951, %v951
        %953 = vrot.lane.b32.xlu0 %v826, 32
        %v954 = vpop.permute.xlu0 %953
        %v956 = vsel %vm748, %v952, 0
        %v959 = vsel %vm764, %v954, 0
        %961 = vmatpush.bf16.msra.mxu0 0
        %962 = vmatpush.bf16.msra.mxu0 0
        %963 = vmatpush.bf16.msra.mxu0 0
        %964 = vmatpush.bf16.msra.mxu0 0
        %965 = vmatpush.bf16.msra.mxu0 0
        %966 = vmatpush.bf16.msra.mxu0 0
        %967 = vmatpush.bf16.msra.mxu0 0
        %968 = vmatpush.bf16.msra.mxu0 %v959
        %969 = vmatmul.bf16.gmra.mxu0 %v956
        %v970 = vpop.f32.mrf.mxu0
        %v971 = vadd.f32 0.0, %v970
        %v972 = vpop.f32.mrf.mxu0
        %973 = vdwg.mxu0
        %975 = vrot.lane.b32.xlu0 %v971, 96
        %v976 = vpop.permute.xlu0 %975
        %vm978 = vcmask 1048320
        %979 = vst.msk [vmem:[#allocation2] sm:$0xff] %vm978, %v976
        %v980 = vld [vmem:[#allocation2] sm:$0xff]
        %v981 = vpack.c.bf16 %v980, %v980
        %v982 = vld [vmem:[#allocation8] sm:$0xf]
        %v983 = vld [vmem:[#allocation8 + $0x4] sm:$0xf]
        %v984 = vld [vmem:[#allocation8 + $0x8] sm:$0xf]
        %v985 = vld [vmem:[#allocation8 + $0xc] sm:$0xf]
        %v986 = vld [vmem:[#allocation8 + $0x10] sm:$0xf]
        %v987 = vld [vmem:[#allocation8 + $0x14] sm:$0xf]
        %v988 = vld [vmem:[#allocation8 + $0x18] sm:$0xf]
        %v989 = vld [vmem:[#allocation8 + $0x1c] sm:$0xf]
        %v990 = vld [vmem:[#allocation8 + $0x20] sm:$0xf]
        %v991 = vld [vmem:[#allocation8 + $0x24] sm:$0xf]
        %v992 = vld [vmem:[#allocation8 + $0x28] sm:$0xf]
        %v993 = vld [vmem:[#allocation8 + $0x2c] sm:$0xf]
        %v994 = vld [vmem:[#allocation8 + $0x30] sm:$0xf]
        %v995 = vld [vmem:[#allocation8 + $0x34] sm:$0xf]
        %v996 = vld [vmem:[#allocation8 + $0x38] sm:$0xf]
        %v997 = vld [vmem:[#allocation8 + $0x3c] sm:$0xf]
        %v998 = vld [vmem:[%s7] sm:$0x1]
        %v1000 = vperm.slane %v998, 0
        %v1018 = vunpack.c.l.b16 %v982
        %v1019 = vunpack.c.l.b16 %v983
        %v1020 = vunpack.c.l.b16 %v984
        %v1021 = vunpack.c.l.b16 %v985
        %v1022 = vunpack.c.l.b16 %v986
        %v1023 = vunpack.c.l.b16 %v987
        %v1024 = vunpack.c.l.b16 %v988
        %v1025 = vunpack.c.l.b16 %v989
        %v1026 = vunpack.c.l.b16 %v990
        %v1027 = vunpack.c.l.b16 %v991
        %v1028 = vunpack.c.l.b16 %v992
        %v1029 = vunpack.c.l.b16 %v993
        %v1030 = vunpack.c.l.b16 %v994
        %v1031 = vunpack.c.l.b16 %v995
        %v1032 = vunpack.c.l.b16 %v996
        %v1033 = vunpack.c.l.b16 %v997
        %v1034 = vpack.c.b16 %v1019, %v1018
        %v1035 = vpack.c.b16 %v1021, %v1020
        %v1036 = vpack.c.b16 %v1023, %v1022
        %v1037 = vpack.c.b16 %v1025, %v1024
        %v1038 = vpack.c.b16 %v1027, %v1026
        %v1039 = vpack.c.b16 %v1029, %v1028
        %v1040 = vpack.c.b16 %v1031, %v1030
        %v1041 = vpack.c.b16 %v1033, %v1032
        %1050 = vmatpush.bf16.msra.mxu0 %v1041
        %1051 = vmatpush.bf16.msra.mxu0 %v1040
        %1052 = vmatpush.bf16.msra.mxu0 %v1039
        %1053 = vmatpush.bf16.msra.mxu0 %v1038
        %1054 = vmatpush.bf16.msra.mxu0 %v1037
        %1055 = vmatpush.bf16.msra.mxu0 %v1036
        %1056 = vmatpush.bf16.msra.mxu0 %v1035
        %1057 = vmatpush.bf16.msra.mxu0 %v1034
        %1058 = vmatmul.bf16.gmra.mxu0 %v981
        %v1059 = vpop.f32.mrf.mxu0
        %v1060 = vadd.f32 %v1000, %v1059
        %v1061 = vpop.f32.mrf.mxu0
        %1062 = vdwg.mxu0
        %v1063 = vunpack.c.l.bf16 %v485
        %v1064 = vadd.f32 %v1060, %v1063
        %1065 = vadd.xlane.f32.xlu0 %v1064
        %v1066 = vpop.xlane.xlu0 %1065
        %v1067 = vrcp.pop 128.0
        %v1068 = vmul.f32 128.0, %v1067
        %v1069 = vsub.f32 1.0, %v1068
        %v1070 = vmul.f32 %v1067, %v1069
        %v1071 = vadd.f32 %v1067, %v1070
        %vm1072 = vweird.f32 %v1067
        %v1073 = vsel %vm1072, %v1067, %v1071
        %v1074 = vmul.f32 %v1066, %v1073
        %v1075 = vsub.f32 %v1064, %v1074
        %v1076 = vmul.f32 %v1075, %v1075
        %1077 = vadd.xlane.f32.xlu0 %v1076
        %v1078 = vpop.xlane.xlu0 %1077
        %v1079 = vrcp.pop 127.0
        %v1080 = vmul.f32 127.0, %v1079
        %v1081 = vsub.f32 1.0, %v1080
        %v1082 = vmul.f32 %v1079, %v1081
        %v1083 = vadd.f32 %v1079, %v1082
        %vm1084 = vweird.f32 %v1079
        %v1085 = vsel %vm1084, %v1079, %v1083
        %v1086 = vmul.f32 %v1078, %v1085
        %v1087 = vrsqrt.pop %v1086
        %v1088 = vmul.f32 %v1087, %v1086
        %v1089 = vmul.f32 %v1088, %v1087
        %v1090 = vmul.f32 0.5, %v1089
        %v1091 = vsub.f32 1.5, %v1090
        %v1092 = vmul.f32 %v1087, %v1091
        %v1093 = vmul.f32 %v1086, %v1092
        %vm1094 = vcmp.eq.f32.partialorder %v1086, inf
        %v1095 = vsel %vm1094, %v1086, %v1093
        %vm1096 = vcmp.eq.f32.partialorder %v1086, 0.0
        %v1097 = vand.u32 %v1086, 2147483648
        %v1098 = vsel %vm1096, %v1097, %v1095
        %v1099 = vadd.f32 %v1098, 0.001
        %v1100 = vrcp.pop %v1099
        %v1101 = vmul.f32 %v1099, %v1100
        %v1102 = vsub.f32 1.0, %v1101
        %v1103 = vmul.f32 %v1100, %v1102
        %v1104 = vadd.f32 %v1100, %v1103
        %vm1105 = vweird.f32 %v1099
        %vm1106 = vweird.f32 %v1100
        %vm1107 = vmor %vm1105, %vm1106
        %v1108 = vsel %vm1107, %v1100, %v1104
        %v1109 = vand.u32 2147483647, %v1099
        %vm1110 = vcmp.eq.f32.partialorder %v1109, 8.507059e+37
        %v1111 = vand.u32 %v1099, 2147483648
        %v1112 = vor.u32 1.1754944e-38, %v1111
        %v1113 = vsel %vm1110, %v1112, %v1108
        %v1114 = vmul.f32 1.0, %v1113
        %v1115 = vmul.f32 %v1075, %v1114
        %v1116 = vld [vmem:[%s8] sm:$0x1]
        %v1118 = vperm.slane %v1116, 0
        %v1120 = vmul.f32 %v1115, %v1118
        %v1121 = vld [vmem:[%s9] sm:$0x1]
        %v1123 = vperm.slane %v1121, 0
        %v1125 = vadd.f32 %v1120, %v1123
        %v1126 = vpack.c.bf16 %v1125, %v1125
        %1127 = vst [vmem:[%s483] sm:$0xf] %v1126
        %p1128 = scmp.lt.s32.totalorder %s28, 1
        %s1129 = scalar_select %p1128, %s28, 1
        %p1130 = scmp.lt.s32.totalorder %s29, 0
        %s1131 = scalar_select %p1130, %s29, 0
        %s1132 = sadd.s32 %s1131, %s1129
        %s1133 = smul.addr %s1132, 4
        %s1134 = scalar_lea.vmem %s10, %s1133
        // Predicated region
        $region77: #{_lambda_.13} parent=59 // pred_check
          %p1135 = pneg %p283
        $region78: #{_lambda_.13} parent=59 // pred_check_branch
          %1137 = sbr.rel (%p1135) target = $region80
        $region79: #{_lambda_.13} parent=59 // pred_region
          _
        $region80: #{_lambda_.13} parent=59 // pred_fallthru
          _
      $region60: #{_lambda_.13} parent=5 // pred_fallthru
        _
      %p1138 = scmp.le.s32.totalorder 2, %s19
      // Predicated region
      $region81: #{_lambda_.13} parent=5 // pred_check
        %p1139 = pneg %p1138
      $region82: #{_lambda_.13} parent=5 // pred_check_branch
        %1141 = sbr.rel (%p1139) target = $region84
      $region83: #{_lambda_.13} parent=5 // pred_region
        %s1142 = ssub.s32 %s19, 2
        // Predicated region
        $region85: #{_lambda_.13} parent=83 // pred_check
          %p1143 = pneg %p289
        $region86: #{_lambda_.13} parent=83 // pred_check_branch
          %1145 = sbr.rel (%p1143) target = $region88
        $region87: #{_lambda_.13} parent=83 // pred_region
          %p1146 = scmp.lt.s32.totalorder %s30, 1
          %s1147 = scalar_select %p1146, %s30, 1
          %p1148 = scmp.lt.s32.totalorder %s31, 0
          %s1149 = scalar_select %p1148, %s31, 0
          %s1150 = sadd.s32 %s1149, %s1147
          %s1151 = smul.addr %s1150, 4
          %s1152 = scalar_lea.vmem %s10, %s1151
        $region88: #{_lambda_.13} parent=83 // pred_fallthru
          _
      $region84: #{_lambda_.13} parent=5 // pred_fallthru
        _
    $region6: #{_lambda_.13} parent=1 // loop_footer
      %s23 = sadd.s32 1, %s19
    $region7: #{_lambda_.13} parent=1 // loop_footer_branch
      %18 = sbr.rel target = $region3
    $region8: #{_lambda_.13} parent=1 // loop_exit
      _
    %1153 = vsyncpa [#allocation4], 1
    %s1154 = scalar_lea.sflag [#allocation4], 1
    %1155 = vsyncpa %s1154, 1
    %1156 = vsyncpa [#allocation6], 1
    %1157 = vsyncpa [#allocation9], 1

// kernel: _lambda_.12
$region0: #{_lambda_.12}
  #allocation0 [shape = 'u32[]', space=smem, size = 0x4, offset = 0x4, fixed_abs, tag = 'smem constant byte address 0x4 - core index']
  #allocation1 [shape = 'u32[72,128]{1,0:T(1,128)}', space=vmem, size = 0x9000, scoped, tag = 'internal scratch']
  %s0 = inlined_call_operand.vmem [shape: bf16[16,128], index: 0, kind: input, shape index: {}]
  %s1 = inlined_call_operand.vmem [shape: bf16[128,256], index: 1, kind: input, shape index: {}]
  %s2 = inlined_call_operand.vmem [shape: f32[1,256], index: 2, kind: input, shape index: {}]
  %s3 = inlined_call_operand.hbm [shape: bf16[256,128], index: 3, kind: input, shape index: {}]
  %s4 = inlined_call_operand.vmem [shape: f32[1,128], index: 4, kind: input, shape index: {}]
  %s5 = inlined_call_operand.vmem [shape: f32[1,128], index: 5, kind: input, shape index: {}]
  %s6 = inlined_call_operand.vmem [shape: f32[1,128], index: 6, kind: input, shape index: {}]
  %s7 = inlined_call_operand.vmem [shape: bf16[16,128], index: 7, kind: output, shape index: {}]
  %s8 = sld [smem:[#allocation0]]
  $region42: #{_lambda_.12} parent=0
    _
  %s10 = ssub.s32 1, %s8
  %s11 = scalar_select 0, %s10, %s8
  $region1: #{_lambda_.12} parent=0
    #allocation2 [shape = 'u8[65536]{0}', space=vmem, size = 0x10000, scoped, tag = 'input window, operand 3, single buffered']
    #allocation3 [shape = 's32[1]{0}', space=sflag, size = 0x4, scoped, tag = 'scoped memory for _lambda_.12']
    %12 = vsyncpa [#allocation3], 0
    // Predicated region
    $region2: #{_lambda_.12} parent=1 // pred_check
      _
    $region3: #{_lambda_.12} parent=1 // pred_check_branch
      %14 = sbr.rel (0) target = $region5
    $region4: #{_lambda_.12} parent=1 // pred_region
      _
    $region5: #{_lambda_.12} parent=1 // pred_fallthru
      _
    // Predicated region
    $region6: #{_lambda_.12} parent=1 // pred_check
      _
    $region7: #{_lambda_.12} parent=1 // pred_check_branch
      %16 = sbr.rel (0) target = $region9
    $region8: #{_lambda_.12} parent=1 // pred_region
      _
    $region9: #{_lambda_.12} parent=1 // pred_fallthru
      _
    // Predicated region
    $region10: #{_lambda_.12} parent=1 // pred_check
      _
    $region11: #{_lambda_.12} parent=1 // pred_check_branch
      %18 = sbr.rel (0) target = $region13
    $region12: #{_lambda_.12} parent=1 // pred_region
      _
    $region13: #{_lambda_.12} parent=1 // pred_fallthru
      _
    // Predicated region
    $region14: #{_lambda_.12} parent=1 // pred_check
      _
    $region15: #{_lambda_.12} parent=1 // pred_check_branch
      %20 = sbr.rel (0) target = $region17
    $region16: #{_lambda_.12} parent=1 // pred_region
      %22 = vsyncadd [#allocation3], 0
      %s23 = sshll.u32 %s3, 4
      %s24 = int_to_ptr.hbm [resolvable:$true] %s23
      %s25 = sshll.u32 [#allocation2], 4
      %s26 = int_to_ptr.vmem [resolvable:$true] %s25
      %31 = dma.hbm_to_vmem [thread:$0]  %s24, 2048, %s26, [#allocation3], 64, 64, 4
    $region17: #{_lambda_.12} parent=1 // pred_fallthru
      _
    // Predicated region
    $region18: #{_lambda_.12} parent=1 // pred_check
      _
    $region19: #{_lambda_.12} parent=1 // pred_check_branch
      %33 = sbr.rel (0) target = $region21
    $region20: #{_lambda_.12} parent=1 // pred_region
      _
    $region21: #{_lambda_.12} parent=1 // pred_fallthru
      _
    // Predicated region
    $region22: #{_lambda_.12} parent=1 // pred_check
      _
    $region23: #{_lambda_.12} parent=1 // pred_check_branch
      %35 = sbr.rel (0) target = $region25
    $region24: #{_lambda_.12} parent=1 // pred_region
      _
    $region25: #{_lambda_.12} parent=1 // pred_fallthru
      _
    // Predicated region
    $region26: #{_lambda_.12} parent=1 // pred_check
      _
    $region27: #{_lambda_.12} parent=1 // pred_check_branch
      %37 = sbr.rel (0) target = $region29
    $region28: #{_lambda_.12} parent=1 // pred_region
      _
    $region29: #{_lambda_.12} parent=1 // pred_fallthru
      _
    // Predicated region
    $region30: #{_lambda_.12} parent=1 // pred_check
      _
    $region31: #{_lambda_.12} parent=1 // pred_check_branch
      %39 = sbr.rel (0) target = $region33
    $region32: #{_lambda_.12} parent=1 // pred_region
      %41 = dma.done [#allocation3], 2048
    $region33: #{_lambda_.12} parent=1 // pred_fallthru
      _
    %v42 = vld [vmem:[%s0] sm:$0xf]
    %v43 = vld [vmem:[%s0 + $0x4] sm:$0xf]
    %v44 = vld [vmem:[%s1] sm:$0xff]
    %v45 = vld [vmem:[%s1 + $0x8] sm:$0xff]
    %v46 = vld [vmem:[%s1 + $0x10] sm:$0xff]
    %v47 = vld [vmem:[%s1 + $0x18] sm:$0xff]
    %v48 = vld [vmem:[%s1 + $0x20] sm:$0xff]
    %v49 = vld [vmem:[%s1 + $0x28] sm:$0xff]
    %v50 = vld [vmem:[%s1 + $0x30] sm:$0xff]
    %v51 = vld [vmem:[%s1 + $0x38] sm:$0xff]
    %v52 = vld [vmem:[%s1 + $0x40] sm:$0xff]
    %v53 = vld [vmem:[%s1 + $0x48] sm:$0xff]
    %v54 = vld [vmem:[%s1 + $0x50] sm:$0xff]
    %v55 = vld [vmem:[%s1 + $0x58] sm:$0xff]
    %v56 = vld [vmem:[%s1 + $0x60] sm:$0xff]
    %v57 = vld [vmem:[%s1 + $0x68] sm:$0xff]
    %v58 = vld [vmem:[%s1 + $0x70] sm:$0xff]
    %v59 = vld [vmem:[%s1 + $0x78] sm:$0xff]
    %v60 = vld [vmem:[%s2] sm:$0x3]
    %v62 = vperm.slane %v60, 0
    %v63 = vperm.slane %v60, 1
    %v68 = vunpack.c.l.b16 %v42
    %v69 = vunpack.c.l.b16 %v43
    %v70 = vpack.c.b16 %v69, %v68
    %v88 = vunpack.c.l.b16 %v44
    %v89 = vunpack.c.h.b16 %v44
    %v90 = vunpack.c.l.b16 %v45
    %v91 = vunpack.c.h.b16 %v45
    %v92 = vunpack.c.l.b16 %v46
    %v93 = vunpack.c.h.b16 %v46
    %v94 = vunpack.c.l.b16 %v47
    %v95 = vunpack.c.h.b16 %v47
    %v96 = vunpack.c.l.b16 %v48
    %v97 = vunpack.c.h.b16 %v48
    %v98 = vunpack.c.l.b16 %v49
    %v99 = vunpack.c.h.b16 %v49
    %v100 = vunpack.c.l.b16 %v50
    %v101 = vunpack.c.h.b16 %v50
    %v102 = vunpack.c.l.b16 %v51
    %v103 = vunpack.c.h.b16 %v51
    %v104 = vunpack.c.l.b16 %v52
    %v105 = vunpack.c.h.b16 %v52
    %v106 = vunpack.c.l.b16 %v53
    %v107 = vunpack.c.h.b16 %v53
    %v108 = vunpack.c.l.b16 %v54
    %v109 = vunpack.c.h.b16 %v54
    %v110 = vunpack.c.l.b16 %v55
    %v111 = vunpack.c.h.b16 %v55
    %v112 = vunpack.c.l.b16 %v56
    %v113 = vunpack.c.h.b16 %v56
    %v114 = vunpack.c.l.b16 %v57
    %v115 = vunpack.c.h.b16 %v57
    %v116 = vunpack.c.l.b16 %v58
    %v117 = vunpack.c.h.b16 %v58
    %v118 = vunpack.c.l.b16 %v59
    %v119 = vunpack.c.h.b16 %v59
    %v120 = vpack.c.b16 %v90, %v88
    %v121 = vpack.c.b16 %v91, %v89
    %v122 = vpack.c.b16 %v94, %v92
    %v123 = vpack.c.b16 %v95, %v93
    %v124 = vpack.c.b16 %v98, %v96
    %v125 = vpack.c.b16 %v99, %v97
    %v126 = vpack.c.b16 %v102, %v100
    %v127 = vpack.c.b16 %v103, %v101
    %v128 = vpack.c.b16 %v106, %v104
    %v129 = vpack.c.b16 %v107, %v105
    %v130 = vpack.c.b16 %v110, %v108
    %v131 = vpack.c.b16 %v111, %v109
    %v132 = vpack.c.b16 %v114, %v112
    %v133 = vpack.c.b16 %v115, %v113
    %v134 = vpack.c.b16 %v118, %v116
    %v135 = vpack.c.b16 %v119, %v117
    %152 = vmatpush.bf16.msra.mxu0 %v134
    %153 = vmatpush.bf16.msra.mxu0 %v132
    %154 = vmatpush.bf16.msra.mxu0 %v130
    %155 = vmatpush.bf16.msra.mxu0 %v128
    %156 = vmatpush.bf16.msra.mxu0 %v126
    %157 = vmatpush.bf16.msra.mxu0 %v124
    %158 = vmatpush.bf16.msra.mxu0 %v122
    %159 = vmatpush.bf16.msra.mxu0 %v120
    %160 = vmatmul.bf16.gmra.mxu0 %v70
    %v161 = vpop.f32.mrf.mxu0
    %v162 = vadd.f32 %v62, %v161
    %v163 = vpop.f32.mrf.mxu0
    %v164 = vadd.f32 %v62, %v163
    %165 = vdwg.mxu0
    %166 = vmatpush.bf16.msra.mxu0 %v135
    %167 = vmatpush.bf16.msra.mxu0 %v133
    %168 = vmatpush.bf16.msra.mxu0 %v131
    %169 = vmatpush.bf16.msra.mxu0 %v129
    %170 = vmatpush.bf16.msra.mxu0 %v127
    %171 = vmatpush.bf16.msra.mxu0 %v125
    %172 = vmatpush.bf16.msra.mxu0 %v123
    %173 = vmatpush.bf16.msra.mxu0 %v121
    %174 = vmatmul.bf16.gmra.mxu0 %v70
    %v175 = vpop.f32.mrf.mxu0
    %v176 = vadd.f32 %v63, %v175
    %v177 = vpop.f32.mrf.mxu0
    %v178 = vadd.f32 %v63, %v177
    %179 = vdwg.mxu0
    %v180 = vmax.f32 %v162, 0.0
    %v181 = vmax.f32 %v176, 0.0
    %v182 = vmax.f32 %v164, 0.0
    %v183 = vmax.f32 %v178, 0.0
    %v184 = vpack.c.bf16 %v182, %v180
    %v185 = vpack.c.bf16 %v183, %v181
    %v186 = vld [vmem:[#allocation2] sm:$0xf]
    %v187 = vld [vmem:[#allocation2 + $0x4] sm:$0xf]
    %v188 = vld [vmem:[#allocation2 + $0x8] sm:$0xf]
    %v189 = vld [vmem:[#allocation2 + $0xc] sm:$0xf]
    %v190 = vld [vmem:[#allocation2 + $0x10] sm:$0xf]
    %v191 = vld [vmem:[#allocation2 + $0x14] sm:$0xf]
    %v192 = vld [vmem:[#allocation2 + $0x18] sm:$0xf]
    %v193 = vld [vmem:[#allocation2 + $0x1c] sm:$0xf]
    %v194 = vld [vmem:[#allocation2 + $0x20] sm:$0xf]
    %v195 = vld [vmem:[#allocation2 + $0x24] sm:$0xf]
    %v196 = vld [vmem:[#allocation2 + $0x28] sm:$0xf]
    %v197 = vld [vmem:[#allocation2 + $0x2c] sm:$0xf]
    %v198 = vld [vmem:[#allocation2 + $0x30] sm:$0xf]
    %v199 = vld [vmem:[#allocation2 + $0x34] sm:$0xf]
    %v200 = vld [vmem:[#allocation2 + $0x38] sm:$0xf]
    %v201 = vld [vmem:[#allocation2 + $0x3c] sm:$0xf]
    %v202 = vld [vmem:[#allocation2 + $0x40] sm:$0xf]
    %v203 = vld [vmem:[#allocation2 + $0x44] sm:$0xf]
    %v204 = vld [vmem:[#allocation2 + $0x48] sm:$0xf]
    %v205 = vld [vmem:[#allocation2 + $0x4c] sm:$0xf]
    %v206 = vld [vmem:[#allocation2 + $0x50] sm:$0xf]
    %v207 = vld [vmem:[#allocation2 + $0x54] sm:$0xf]
    %v208 = vld [vmem:[#allocation2 + $0x58] sm:$0xf]
    %v209 = vld [vmem:[#allocation2 + $0x5c] sm:$0xf]
    %v210 = vld [vmem:[#allocation2 + $0x60] sm:$0xf]
    %v211 = vld [vmem:[#allocation2 + $0x64] sm:$0xf]
    %v212 = vld [vmem:[#allocation2 + $0x68] sm:$0xf]
    %v213 = vld [vmem:[#allocation2 + $0x6c] sm:$0xf]
    %v214 = vld [vmem:[#allocation2 + $0x70] sm:$0xf]
    %v215 = vld [vmem:[#allocation2 + $0x74] sm:$0xf]
    %v216 = vld [vmem:[#allocation2 + $0x78] sm:$0xf]
    %v217 = vld [vmem:[#allocation2 + $0x7c] sm:$0xf]
    %v218 = vld [vmem:[%s4] sm:$0x1]
    %v220 = vperm.slane %v218, 0
    %v254 = vunpack.c.l.b16 %v186
    %v255 = vunpack.c.l.b16 %v187
    %v256 = vunpack.c.l.b16 %v188
    %v257 = vunpack.c.l.b16 %v189
    %v258 = vunpack.c.l.b16 %v190
    %v259 = vunpack.c.l.b16 %v191
    %v260 = vunpack.c.l.b16 %v192
    %v261 = vunpack.c.l.b16 %v193
    %v262 = vunpack.c.l.b16 %v194
    %v263 = vunpack.c.l.b16 %v195
    %v264 = vunpack.c.l.b16 %v196
    %v265 = vunpack.c.l.b16 %v197
    %v266 = vunpack.c.l.b16 %v198
    %v267 = vunpack.c.l.b16 %v199
    %v268 = vunpack.c.l.b16 %v200
    %v269 = vunpack.c.l.b16 %v201
    %v270 = vunpack.c.l.b16 %v202
    %v271 = vunpack.c.l.b16 %v203
    %v272 = vunpack.c.l.b16 %v204
    %v273 = vunpack.c.l.b16 %v205
    %v274 = vunpack.c.l.b16 %v206
    %v275 = vunpack.c.l.b16 %v207
    %v276 = vunpack.c.l.b16 %v208
    %v277 = vunpack.c.l.b16 %v209
    %v278 = vunpack.c.l.b16 %v210
    %v279 = vunpack.c.l.b16 %v211
    %v280 = vunpack.c.l.b16 %v212
    %v281 = vunpack.c.l.b16 %v213
    %v282 = vunpack.c.l.b16 %v214
    %v283 = vunpack.c.l.b16 %v215
    %v284 = vunpack.c.l.b16 %v216
    %v285 = vunpack.c.l.b16 %v217
    %v286 = vpack.c.b16 %v255, %v254
    %v287 = vpack.c.b16 %v257, %v256
    %v288 = vpack.c.b16 %v259, %v258
    %v289 = vpack.c.b16 %v261, %v260
    %v290 = vpack.c.b16 %v263, %v262
    %v291 = vpack.c.b16 %v265, %v264
    %v292 = vpack.c.b16 %v267, %v266
    %v293 = vpack.c.b16 %v269, %v268
    %v294 = vpack.c.b16 %v271, %v270
    %v295 = vpack.c.b16 %v273, %v272
    %v296 = vpack.c.b16 %v275, %v274
    %v297 = vpack.c.b16 %v277, %v276
    %v298 = vpack.c.b16 %v279, %v278
    %v299 = vpack.c.b16 %v281, %v280
    %v300 = vpack.c.b16 %v283, %v282
    %v301 = vpack.c.b16 %v285, %v284
    %318 = vmatpush.bf16.msra.mxu0 %v293
    %319 = vmatpush.bf16.msra.mxu0 %v292
    %320 = vmatpush.bf16.msra.mxu0 %v291
    %321 = vmatpush.bf16.msra.mxu0 %v290
    %322 = vmatpush.bf16.msra.mxu0 %v289
    %323 = vmatpush.bf16.msra.mxu0 %v288
    %324 = vmatpush.bf16.msra.mxu0 %v287
    %325 = vmatpush.bf16.msra.mxu0 %v286
    %326 = vmatmul.bf16.gmra.mxu0 %v184
    %v327 = vpop.f32.mrf.mxu0
    %v328 = vadd.f32 %v220, %v327
    %v329 = vpop.f32.mrf.mxu0
    %v330 = vadd.f32 %v220, %v329
    %331 = vdwg.mxu0
    %332 = vmatpush.bf16.msra.mxu0 %v301
    %333 = vmatpush.bf16.msra.mxu0 %v300
    %334 = vmatpush.bf16.msra.mxu0 %v299
    %335 = vmatpush.bf16.msra.mxu0 %v298
    %336 = vmatpush.bf16.msra.mxu0 %v297
    %337 = vmatpush.bf16.msra.mxu0 %v296
    %338 = vmatpush.bf16.msra.mxu0 %v295
    %339 = vmatpush.bf16.msra.mxu0 %v294
    %340 = vmatmul.bf16.gmra.mxu0 %v185
    %v341 = vpop.f32.mrf.mxu0
    %v342 = vadd.f32 %v328, %v341
    %v343 = vpop.f32.mrf.mxu0
    %v344 = vadd.f32 %v330, %v343
    %345 = vdwg.mxu0
    %v346 = vunpack.c.l.bf16 %v42
    %v347 = vunpack.c.l.bf16 %v43
    %v348 = vadd.f32 %v342, %v346
    %v349 = vadd.f32 %v344, %v347
    %350 = vadd.xlane.f32.xlu0 %v348
    %v351 = vpop.xlane.xlu0 %350
    %352 = vadd.xlane.f32.xlu0 %v349
    %v353 = vpop.xlane.xlu0 %352
    %v354 = vrcp.pop 128.0
    %v355 = vmul.f32 128.0, %v354
    %v356 = vsub.f32 1.0, %v355
    %v357 = vmul.f32 %v354, %v356
    %v358 = vadd.f32 %v354, %v357
    %vm359 = vweird.f32 %v354
    %v360 = vsel %vm359, %v354, %v358
    %v361 = vmul.f32 %v351, %v360
    %v362 = vmul.f32 %v353, %v360
    %v363 = vsub.f32 %v348, %v361
    %v364 = vsub.f32 %v349, %v362
    %v365 = vmul.f32 %v363, %v363
    %v366 = vmul.f32 %v364, %v364
    %367 = vadd.xlane.f32.xlu0 %v365
    %v368 = vpop.xlane.xlu0 %367
    %369 = vadd.xlane.f32.xlu0 %v366
    %v370 = vpop.xlane.xlu0 %369
    %v371 = vrcp.pop 127.0
    %v372 = vmul.f32 127.0, %v371
    %v373 = vsub.f32 1.0, %v372
    %v374 = vmul.f32 %v371, %v373
    %v375 = vadd.f32 %v371, %v374
    %vm376 = vweird.f32 %v371
    %v377 = vsel %vm376, %v371, %v375
    %v378 = vmul.f32 %v368, %v377
    %v379 = vmul.f32 %v370, %v377
    %v380 = vrsqrt.pop %v378
    %v381 = vmul.f32 %v380, %v378
    %v382 = vmul.f32 %v381, %v380
    %v383 = vmul.f32 0.5, %v382
    %v384 = vsub.f32 1.5, %v383
    %v385 = vmul.f32 %v380, %v384
    %v386 = vmul.f32 %v378, %v385
    %vm387 = vcmp.eq.f32.partialorder %v378, inf
    %v388 = vsel %vm387, %v378, %v386
    %vm389 = vcmp.eq.f32.partialorder %v378, 0.0
    %v390 = vand.u32 %v378, 2147483648
    %v391 = vsel %vm389, %v390, %v388
    %v392 = vrsqrt.pop %v379
    %v393 = vmul.f32 %v392, %v379
    %v394 = vmul.f32 %v393, %v392
    %v395 = vmul.f32 0.5, %v394
    %v396 = vsub.f32 1.5, %v395
    %v397 = vmul.f32 %v392, %v396
    %v398 = vmul.f32 %v379, %v397
    %vm399 = vcmp.eq.f32.partialorder %v379, inf
    %v400 = vsel %vm399, %v379, %v398
    %vm401 = vcmp.eq.f32.partialorder %v379, 0.0
    %v402 = vand.u32 %v379, 2147483648
    %v403 = vsel %vm401, %v402, %v400
    %v404 = vadd.f32 %v391, 0.001
    %v405 = vadd.f32 %v403, 0.001
    %v406 = vrcp.pop %v404
    %v407 = vmul.f32 %v404, %v406
    %v408 = vsub.f32 1.0, %v407
    %v409 = vmul.f32 %v406, %v408
    %v410 = vadd.f32 %v406, %v409
    %vm411 = vweird.f32 %v404
    %vm412 = vweird.f32 %v406
    %vm413 = vmor %vm411, %vm412
    %v414 = vsel %vm413, %v406, %v410
    %v415 = vand.u32 2147483647, %v404
    %vm416 = vcmp.eq.f32.partialorder %v415, 8.507059e+37
    %v417 = vand.u32 %v404, 2147483648
    %v418 = vor.u32 1.1754944e-38, %v417
    %v419 = vsel %vm416, %v418, %v414
    %v420 = vmul.f32 1.0, %v419
    %v421 = vrcp.pop %v405
    %v422 = vmul.f32 %v405, %v421
    %v423 = vsub.f32 1.0, %v422
    %v424 = vmul.f32 %v421, %v423
    %v425 = vadd.f32 %v421, %v424
    %vm426 = vweird.f32 %v405
    %vm427 = vweird.f32 %v421
    %vm428 = vmor %vm426, %vm427
    %v429 = vsel %vm428, %v421, %v425
    %v430 = vand.u32 2147483647, %v405
    %vm431 = vcmp.eq.f32.partialorder %v430, 8.507059e+37
    %v432 = vand.u32 %v405, 2147483648
    %v433 = vor.u32 1.1754944e-38, %v432
    %v434 = vsel %vm431, %v433, %v429
    %v435 = vmul.f32 1.0, %v434
    %v436 = vmul.f32 %v363, %v420
    %v437 = vmul.f32 %v364, %v435
    %v438 = vld [vmem:[%s5] sm:$0x1]
    %v440 = vperm.slane %v438, 0
    %v442 = vmul.f32 %v436, %v440
    %v443 = vmul.f32 %v437, %v440
    %v444 = vld [vmem:[%s6] sm:$0x1]
    %v446 = vperm.slane %v444, 0
    %v448 = vadd.f32 %v442, %v446
    %v449 = vadd.f32 %v443, %v446
    %v450 = vpack.c.bf16 %v448, %v448
    %v451 = vpack.c.bf16 %v449, %v449
    %452 = vst [vmem:[%s7] sm:$0xf] %v450
    %453 = vst [vmem:[%s7 + $0x4] sm:$0xf] %v451
    // Predicated region
    $region34: #{_lambda_.12} parent=1 // pred_check
      _
    $region35: #{_lambda_.12} parent=1 // pred_check_branch
      %455 = sbr.rel (0) target = $region37
    $region36: #{_lambda_.12} parent=1 // pred_region
      _
    $region37: #{_lambda_.12} parent=1 // pred_fallthru
      _
    // Predicated region
    $region38: #{_lambda_.12} parent=1 // pred_check
      _
    $region39: #{_lambda_.12} parent=1 // pred_check_branch
      %457 = sbr.rel (0) target = $region41
    $region40: #{_lambda_.12} parent=1 // pred_region
      _
    $region41: #{_lambda_.12} parent=1 // pred_fallthru
      _
    %458 = vsyncpa [#allocation3], 1

// kernel: _lambda_.14
$region0: #{_lambda_.14}
  #allocation0 [shape = 'u32[]', space=smem, size = 0x4, offset = 0x4, fixed_abs, tag = 'smem constant byte address 0x4 - core index']
  #allocation1 [shape = 'u32[72,128]{1,0:T(1,128)}', space=vmem, size = 0x9000, scoped, tag = 'internal scratch']
  %s0 = inlined_call_operand.vmem [shape: bf16[16,128], index: 0, kind: input, shape index: {}]
  %s1 = inlined_call_operand.vmem [shape: bf16[128,256], index: 1, kind: input, shape index: {}]
  %s2 = inlined_call_operand.vmem [shape: f32[1,256], index: 2, kind: input, shape index: {}]
  %s3 = inlined_call_operand.vmem [shape: bf16[256,128], index: 3, kind: input, shape index: {}]
  %s4 = inlined_call_operand.vmem [shape: f32[1,128], index: 4, kind: input, shape index: {}]
  %s5 = inlined_call_operand.vmem [shape: f32[1,128], index: 5, kind: input, shape index: {}]
  %s6 = inlined_call_operand.vmem [shape: f32[1,128], index: 6, kind: input, shape index: {}]
  %s7 = inlined_call_operand.vmem [shape: bf16[16,128], index: 7, kind: output, shape index: {}]
  %s8 = sld [smem:[#allocation0]]
  $region38: #{_lambda_.14} parent=0
    _
  %s10 = ssub.s32 1, %s8
  %s11 = scalar_select 0, %s10, %s8
  // Predicated region
  $region2: #{_lambda_.14} parent=0 // pred_check
    _
  $region3: #{_lambda_.14} parent=0 // pred_check_branch
    %13 = sbr.rel (0) target = $region5
  $region4: #{_lambda_.14} parent=0 // pred_region
    _
  $region5: #{_lambda_.14} parent=0 // pred_fallthru
    _
  // Predicated region
  $region6: #{_lambda_.14} parent=0 // pred_check
    _
  $region7: #{_lambda_.14} parent=0 // pred_check_branch
    %15 = sbr.rel (0) target = $region9
  $region8: #{_lambda_.14} parent=0 // pred_region
    _
  $region9: #{_lambda_.14} parent=0 // pred_fallthru
    _
  // Predicated region
  $region10: #{_lambda_.14} parent=0 // pred_check
    _
  $region11: #{_lambda_.14} parent=0 // pred_check_branch
    %17 = sbr.rel (0) target = $region13
  $region12: #{_lambda_.14} parent=0 // pred_region
    _
  $region13: #{_lambda_.14} parent=0 // pred_fallthru
    _
  // Predicated region
  $region14: #{_lambda_.14} parent=0 // pred_check
    _
  $region15: #{_lambda_.14} parent=0 // pred_check_branch
    %19 = sbr.rel (0) target = $region17
  $region16: #{_lambda_.14} parent=0 // pred_region
    _
  $region17: #{_lambda_.14} parent=0 // pred_fallthru
    _
  // Predicated region
  $region18: #{_lambda_.14} parent=0 // pred_check
    _
  $region19: #{_lambda_.14} parent=0 // pred_check_branch
    %21 = sbr.rel (0) target = $region21
  $region20: #{_lambda_.14} parent=0 // pred_region
    _
  $region21: #{_lambda_.14} parent=0 // pred_fallthru
    _
  // Predicated region
  $region22: #{_lambda_.14} parent=0 // pred_check
    _
  $region23: #{_lambda_.14} parent=0 // pred_check_branch
    %23 = sbr.rel (0) target = $region25
  $region24: #{_lambda_.14} parent=0 // pred_region
    _
  $region25: #{_lambda_.14} parent=0 // pred_fallthru
    _
  // Predicated region
  $region26: #{_lambda_.14} parent=0 // pred_check
    _
  $region27: #{_lambda_.14} parent=0 // pred_check_branch
    %25 = sbr.rel (0) target = $region29
  $region28: #{_lambda_.14} parent=0 // pred_region
    _
  $region29: #{_lambda_.14} parent=0 // pred_fallthru
    _
  %v26 = vld [vmem:[%s0] sm:$0xf]
  %v27 = vld [vmem:[%s0 + $0x4] sm:$0xf]
  %v28 = vld [vmem:[%s1] sm:$0xff]
  %v29 = vld [vmem:[%s1 + $0x8] sm:$0xff]
  %v30 = vld [vmem:[%s1 + $0x10] sm:$0xff]
  %v31 = vld [vmem:[%s1 + $0x18] sm:$0xff]
  %v32 = vld [vmem:[%s1 + $0x20] sm:$0xff]
  %v33 = vld [vmem:[%s1 + $0x28] sm:$0xff]
  %v34 = vld [vmem:[%s1 + $0x30] sm:$0xff]
  %v35 = vld [vmem:[%s1 + $0x38] sm:$0xff]
  %v36 = vld [vmem:[%s1 + $0x40] sm:$0xff]
  %v37 = vld [vmem:[%s1 + $0x48] sm:$0xff]
  %v38 = vld [vmem:[%s1 + $0x50] sm:$0xff]
  %v39 = vld [vmem:[%s1 + $0x58] sm:$0xff]
  %v40 = vld [vmem:[%s1 + $0x60] sm:$0xff]
  %v41 = vld [vmem:[%s1 + $0x68] sm:$0xff]
  %v42 = vld [vmem:[%s1 + $0x70] sm:$0xff]
  %v43 = vld [vmem:[%s1 + $0x78] sm:$0xff]
  %v44 = vld [vmem:[%s2] sm:$0x3]
  %v46 = vperm.slane %v44, 0
  %v47 = vperm.slane %v44, 1
  %v52 = vunpack.c.l.b16 %v26
  %v53 = vunpack.c.l.b16 %v27
  %v54 = vpack.c.b16 %v53, %v52
  %v72 = vunpack.c.l.b16 %v28
  %v73 = vunpack.c.h.b16 %v28
  %v74 = vunpack.c.l.b16 %v29
  %v75 = vunpack.c.h.b16 %v29
  %v76 = vunpack.c.l.b16 %v30
  %v77 = vunpack.c.h.b16 %v30
  %v78 = vunpack.c.l.b16 %v31
  %v79 = vunpack.c.h.b16 %v31
  %v80 = vunpack.c.l.b16 %v32
  %v81 = vunpack.c.h.b16 %v32
  %v82 = vunpack.c.l.b16 %v33
  %v83 = vunpack.c.h.b16 %v33
  %v84 = vunpack.c.l.b16 %v34
  %v85 = vunpack.c.h.b16 %v34
  %v86 = vunpack.c.l.b16 %v35
  %v87 = vunpack.c.h.b16 %v35
  %v88 = vunpack.c.l.b16 %v36
  %v89 = vunpack.c.h.b16 %v36
  %v90 = vunpack.c.l.b16 %v37
  %v91 = vunpack.c.h.b16 %v37
  %v92 = vunpack.c.l.b16 %v38
  %v93 = vunpack.c.h.b16 %v38
  %v94 = vunpack.c.l.b16 %v39
  %v95 = vunpack.c.h.b16 %v39
  %v96 = vunpack.c.l.b16 %v40
  %v97 = vunpack.c.h.b16 %v40
  %v98 = vunpack.c.l.b16 %v41
  %v99 = vunpack.c.h.b16 %v41
  %v100 = vunpack.c.l.b16 %v42
  %v101 = vunpack.c.h.b16 %v42
  %v102 = vunpack.c.l.b16 %v43
  %v103 = vunpack.c.h.b16 %v43
  %v104 = vpack.c.b16 %v74, %v72
  %v105 = vpack.c.b16 %v75, %v73
  %v106 = vpack.c.b16 %v78, %v76
  %v107 = vpack.c.b16 %v79, %v77
  %v108 = vpack.c.b16 %v82, %v80
  %v109 = vpack.c.b16 %v83, %v81
  %v110 = vpack.c.b16 %v86, %v84
  %v111 = vpack.c.b16 %v87, %v85
  %v112 = vpack.c.b16 %v90, %v88
  %v113 = vpack.c.b16 %v91, %v89
  %v114 = vpack.c.b16 %v94, %v92
  %v115 = vpack.c.b16 %v95, %v93
  %v116 = vpack.c.b16 %v98, %v96
  %v117 = vpack.c.b16 %v99, %v97
  %v118 = vpack.c.b16 %v102, %v100
  %v119 = vpack.c.b16 %v103, %v101
  %136 = vmatpush.bf16.msra.mxu0 %v118
  %137 = vmatpush.bf16.msra.mxu0 %v116
  %138 = vmatpush.bf16.msra.mxu0 %v114
  %139 = vmatpush.bf16.msra.mxu0 %v112
  %140 = vmatpush.bf16.msra.mxu0 %v110
  %141 = vmatpush.bf16.msra.mxu0 %v108
  %142 = vmatpush.bf16.msra.mxu0 %v106
  %143 = vmatpush.bf16.msra.mxu0 %v104
  %144 = vmatmul.bf16.gmra.mxu0 %v54
  %v145 = vpop.f32.mrf.mxu0
  %v146 = vadd.f32 %v46, %v145
  %v147 = vpop.f32.mrf.mxu0
  %v148 = vadd.f32 %v46, %v147
  %149 = vdwg.mxu0
  %150 = vmatpush.bf16.msra.mxu0 %v119
  %151 = vmatpush.bf16.msra.mxu0 %v117
  %152 = vmatpush.bf16.msra.mxu0 %v115
  %153 = vmatpush.bf16.msra.mxu0 %v113
  %154 = vmatpush.bf16.msra.mxu0 %v111
  %155 = vmatpush.bf16.msra.mxu0 %v109
  %156 = vmatpush.bf16.msra.mxu0 %v107
  %157 = vmatpush.bf16.msra.mxu0 %v105
  %158 = vmatmul.bf16.gmra.mxu0 %v54
  %v159 = vpop.f32.mrf.mxu0
  %v160 = vadd.f32 %v47, %v159
  %v161 = vpop.f32.mrf.mxu0
  %v162 = vadd.f32 %v47, %v161
  %163 = vdwg.mxu0
  %v164 = vmax.f32 %v146, 0.0
  %v165 = vmax.f32 %v160, 0.0
  %v166 = vmax.f32 %v148, 0.0
  %v167 = vmax.f32 %v162, 0.0
  %v168 = vpack.c.bf16 %v166, %v164
  %v169 = vpack.c.bf16 %v167, %v165
  %v170 = vld [vmem:[%s3] sm:$0xf]
  %v171 = vld [vmem:[%s3 + $0x4] sm:$0xf]
  %v172 = vld [vmem:[%s3 + $0x8] sm:$0xf]
  %v173 = vld [vmem:[%s3 + $0xc] sm:$0xf]
  %v174 = vld [vmem:[%s3 + $0x10] sm:$0xf]
  %v175 = vld [vmem:[%s3 + $0x14] sm:$0xf]
  %v176 = vld [vmem:[%s3 + $0x18] sm:$0xf]
  %v177 = vld [vmem:[%s3 + $0x1c] sm:$0xf]
  %v178 = vld [vmem:[%s3 + $0x20] sm:$0xf]
  %v179 = vld [vmem:[%s3 + $0x24] sm:$0xf]
  %v180 = vld [vmem:[%s3 + $0x28] sm:$0xf]
  %v181 = vld [vmem:[%s3 + $0x2c] sm:$0xf]
  %v182 = vld [vmem:[%s3 + $0x30] sm:$0xf]
  %v183 = vld [vmem:[%s3 + $0x34] sm:$0xf]
  %v184 = vld [vmem:[%s3 + $0x38] sm:$0xf]
  %v185 = vld [vmem:[%s3 + $0x3c] sm:$0xf]
  %v186 = vld [vmem:[%s3 + $0x40] sm:$0xf]
  %v187 = vld [vmem:[%s3 + $0x44] sm:$0xf]
  %v188 = vld [vmem:[%s3 + $0x48] sm:$0xf]
  %v189 = vld [vmem:[%s3 + $0x4c] sm:$0xf]
  %v190 = vld [vmem:[%s3 + $0x50] sm:$0xf]
  %v191 = vld [vmem:[%s3 + $0x54] sm:$0xf]
  %v192 = vld [vmem:[%s3 + $0x58] sm:$0xf]
  %v193 = vld [vmem:[%s3 + $0x5c] sm:$0xf]
  %v194 = vld [vmem:[%s3 + $0x60] sm:$0xf]
  %v195 = vld [vmem:[%s3 + $0x64] sm:$0xf]
  %v196 = vld [vmem:[%s3 + $0x68] sm:$0xf]
  %v197 = vld [vmem:[%s3 + $0x6c] sm:$0xf]
  %v198 = vld [vmem:[%s3 + $0x70] sm:$0xf]
  %v199 = vld [vmem:[%s3 + $0x74] sm:$0xf]
  %v200 = vld [vmem:[%s3 + $0x78] sm:$0xf]
  %v201 = vld [vmem:[%s3 + $0x7c] sm:$0xf]
  %v202 = vld [vmem:[%s4] sm:$0x1]
  %v204 = vperm.slane %v202, 0
  %v238 = vunpack.c.l.b16 %v170
  %v239 = vunpack.c.l.b16 %v171
  %v240 = vunpack.c.l.b16 %v172
  %v241 = vunpack.c.l.b16 %v173
  %v242 = vunpack.c.l.b16 %v174
  %v243 = vunpack.c.l.b16 %v175
  %v244 = vunpack.c.l.b16 %v176
  %v245 = vunpack.c.l.b16 %v177
  %v246 = vunpack.c.l.b16 %v178
  %v247 = vunpack.c.l.b16 %v179
  %v248 = vunpack.c.l.b16 %v180
  %v249 = vunpack.c.l.b16 %v181
  %v250 = vunpack.c.l.b16 %v182
  %v251 = vunpack.c.l.b16 %v183
  %v252 = vunpack.c.l.b16 %v184
  %v253 = vunpack.c.l.b16 %v185
  %v254 = vunpack.c.l.b16 %v186
  %v255 = vunpack.c.l.b16 %v187
  %v256 = vunpack.c.l.b16 %v188
  %v257 = vunpack.c.l.b16 %v189
  %v258 = vunpack.c.l.b16 %v190
  %v259 = vunpack.c.l.b16 %v191
  %v260 = vunpack.c.l.b16 %v192
  %v261 = vunpack.c.l.b16 %v193
  %v262 = vunpack.c.l.b16 %v194
  %v263 = vunpack.c.l.b16 %v195
  %v264 = vunpack.c.l.b16 %v196
  %v265 = vunpack.c.l.b16 %v197
  %v266 = vunpack.c.l.b16 %v198
  %v267 = vunpack.c.l.b16 %v199
  %v268 = vunpack.c.l.b16 %v200
  %v269 = vunpack.c.l.b16 %v201
  %v270 = vpack.c.b16 %v239, %v238
  %v271 = vpack.c.b16 %v241, %v240
  %v272 = vpack.c.b16 %v243, %v242
  %v273 = vpack.c.b16 %v245, %v244
  %v274 = vpack.c.b16 %v247, %v246
  %v275 = vpack.c.b16 %v249, %v248
  %v276 = vpack.c.b16 %v251, %v250
  %v277 = vpack.c.b16 %v253, %v252
  %v278 = vpack.c.b16 %v255, %v254
  %v279 = vpack.c.b16 %v257, %v256
  %v280 = vpack.c.b16 %v259, %v258
  %v281 = vpack.c.b16 %v261, %v260
  %v282 = vpack.c.b16 %v263, %v262
  %v283 = vpack.c.b16 %v265, %v264
  %v284 = vpack.c.b16 %v267, %v266
  %v285 = vpack.c.b16 %v269, %v268
  %302 = vmatpush.bf16.msra.mxu0 %v277
  %303 = vmatpush.bf16.msra.mxu0 %v276
  %304 = vmatpush.bf16.msra.mxu0 %v275
  %305 = vmatpush.bf16.msra.mxu0 %v274
  %306 = vmatpush.bf16.msra.mxu0 %v273
  %307 = vmatpush.bf16.msra.mxu0 %v272
  %308 = vmatpush.bf16.msra.mxu0 %v271
  %309 = vmatpush.bf16.msra.mxu0 %v270
  %310 = vmatmul.bf16.gmra.mxu0 %v168
  %v311 = vpop.f32.mrf.mxu0
  %v312 = vadd.f32 %v204, %v311
  %v313 = vpop.f32.mrf.mxu0
  %v314 = vadd.f32 %v204, %v313
  %315 = vdwg.mxu0
  %316 = vmatpush.bf16.msra.mxu0 %v285
  %317 = vmatpush.bf16.msra.mxu0 %v284
  %318 = vmatpush.bf16.msra.mxu0 %v283
  %319 = vmatpush.bf16.msra.mxu0 %v282
  %320 = vmatpush.bf16.msra.mxu0 %v281
  %321 = vmatpush.bf16.msra.mxu0 %v280
  %322 = vmatpush.bf16.msra.mxu0 %v279
  %323 = vmatpush.bf16.msra.mxu0 %v278
  %324 = vmatmul.bf16.gmra.mxu0 %v169
  %v325 = vpop.f32.mrf.mxu0
  %v326 = vadd.f32 %v312, %v325
  %v327 = vpop.f32.mrf.mxu0
  %v328 = vadd.f32 %v314, %v327
  %329 = vdwg.mxu0
  %v330 = vunpack.c.l.bf16 %v26
  %v331 = vunpack.c.l.bf16 %v27
  %v332 = vadd.f32 %v326, %v330
  %v333 = vadd.f32 %v328, %v331
  %334 = vadd.xlane.f32.xlu0 %v332
  %v335 = vpop.xlane.xlu0 %334
  %336 = vadd.xlane.f32.xlu0 %v333
  %v337 = vpop.xlane.xlu0 %336
  %v338 = vrcp.pop 128.0
  %v339 = vmul.f32 128.0, %v338
  %v340 = vsub.f32 1.0, %v339
  %v341 = vmul.f32 %v338, %v340
  %v342 = vadd.f32 %v338, %v341
  %vm343 = vweird.f32 %v338
  %v344 = vsel %vm343, %v338, %v342
  %v345 = vmul.f32 %v335, %v344
  %v346 = vmul.f32 %v337, %v344
  %v347 = vsub.f32 %v332, %v345
  %v348 = vsub.f32 %v333, %v346
  %v349 = vmul.f32 %v347, %v347
  %v350 = vmul.f32 %v348, %v348
  %351 = vadd.xlane.f32.xlu0 %v349
  %v352 = vpop.xlane.xlu0 %351
  %353 = vadd.xlane.f32.xlu0 %v350
  %v354 = vpop.xlane.xlu0 %353
  %v355 = vrcp.pop 127.0
  %v356 = vmul.f32 127.0, %v355
  %v357 = vsub.f32 1.0, %v356
  %v358 = vmul.f32 %v355, %v357
  %v359 = vadd.f32 %v355, %v358
  %vm360 = vweird.f32 %v355
  %v361 = vsel %vm360, %v355, %v359
  %v362 = vmul.f32 %v352, %v361
  %v363 = vmul.f32 %v354, %v361
  %v364 = vrsqrt.pop %v362
  %v365 = vmul.f32 %v364, %v362
  %v366 = vmul.f32 %v365, %v364
  %v367 = vmul.f32 0.5, %v366
  %v368 = vsub.f32 1.5, %v367
  %v369 = vmul.f32 %v364, %v368
  %v370 = vmul.f32 %v362, %v369
  %vm371 = vcmp.eq.f32.partialorder %v362, inf
  %v372 = vsel %vm371, %v362, %v370
  %vm373 = vcmp.eq.f32.partialorder %v362, 0.0
  %v374 = vand.u32 %v362, 2147483648
  %v375 = vsel %vm373, %v374, %v372
  %v376 = vrsqrt.pop %v363
  %v377 = vmul.f32 %v376, %v363
  %v378 = vmul.f32 %v377, %v376
  %v379 = vmul.f32 0.5, %v378
  %v380 = vsub.f32 1.5, %v379
  %v381 = vmul.f32 %v376, %v380
  %v382 = vmul.f32 %v363, %v381
  %vm383 = vcmp.eq.f32.partialorder %v363, inf
  %v384 = vsel %vm383, %v363, %v382
  %vm385 = vcmp.eq.f32.partialorder %v363, 0.0
  %v386 = vand.u32 %v363, 2147483648
  %v387 = vsel %vm385, %v386, %v384
  %v388 = vadd.f32 %v375, 0.001
  %v389 = vadd.f32 %v387, 0.001
  %v390 = vrcp.pop %v388
  %v391 = vmul.f32 %v388, %v390
  %v392 = vsub.f32 1.0, %v391
  %v393 = vmul.f32 %v390, %v392
  %v394 = vadd.f32 %v390, %v393
  %vm395 = vweird.f32 %v388
  %vm396 = vweird.f32 %v390
  %vm397 = vmor %vm395, %vm396
  %v398 = vsel %vm397, %v390, %v394
  %v399 = vand.u32 2147483647, %v388
  %vm400 = vcmp.eq.f32.partialorder %v399, 8.507059e+37
  %v401 = vand.u32 %v388, 2147483648
  %v402 = vor.u32 1.1754944e-38, %v401
  %v403 = vsel %vm400, %v402, %v398
  %v404 = vmul.f32 1.0, %v403
  %v405 = vrcp.pop %v389
  %v406 = vmul.f32 %v389, %v405
  %v407 = vsub.f32 1.0, %v406
  %v408 = vmul.f32 %v405, %v407
  %v409 = vadd.f32 %v405, %v408
  %vm410 = vweird.f32 %v389
  %vm411 = vweird.f32 %v405
  %vm412 = vmor %vm410, %vm411
  %v413 = vsel %vm412, %v405, %v409
  %v414 = vand.u32 2147483647, %v389
  %vm415 = vcmp.eq.f32.partialorder %v414, 8.507059e+37
  %v416 = vand.u32 %v389, 2147483648
  %v417 = vor.u32 1.1754944e-38, %v416
  %v418 = vsel %vm415, %v417, %v413
  %v419 = vmul.f32 1.0, %v418
  %v420 = vmul.f32 %v347, %v404
  %v421 = vmul.f32 %v348, %v419
  %v422 = vld [vmem:[%s5] sm:$0x1]
  %v424 = vperm.slane %v422, 0
  %v426 = vmul.f32 %v420, %v424
  %v427 = vmul.f32 %v421, %v424
  %v428 = vld [vmem:[%s6] sm:$0x1]
  %v430 = vperm.slane %v428, 0
  %v432 = vadd.f32 %v426, %v430
  %v433 = vadd.f32 %v427, %v430
  %v434 = vpack.c.bf16 %v432, %v432
  %v435 = vpack.c.bf16 %v433, %v433
  %436 = vst [vmem:[%s7] sm:$0xf] %v434
  %437 = vst [vmem:[%s7 + $0x4] sm:$0xf] %v435
  // Predicated region
  $region30: #{_lambda_.14} parent=0 // pred_check
    _
  $region31: #{_lambda_.14} parent=0 // pred_check_branch
    %439 = sbr.rel (0) target = $region33
  $region32: #{_lambda_.14} parent=0 // pred_region
    _
  $region33: #{_lambda_.14} parent=0 // pred_fallthru
    _
  // Predicated region
  $region34: #{_lambda_.14} parent=0 // pred_check
    _
  $region35: #{_lambda_.14} parent=0 // pred_check_branch
    %441 = sbr.rel (0) target = $region37
  $region36: #{_lambda_.14} parent=0 // pred_region
    _
  $region37: #{_lambda_.14} parent=0 // pred_fallthru
    _

// kernel: _lambda_.11
$region0: #{_lambda_.11}
  #allocation0 [shape = 'u32[]', space=smem, size = 0x4, offset = 0x4, fixed_abs, tag = 'smem constant byte address 0x4 - core index']
  #allocation1 [shape = 'u32[72,128]{1,0:T(1,128)}', space=vmem, size = 0x9000, scoped, tag = 'internal scratch']
  #allocation2 [shape = 'f32[8,128]{1,0:T(8,128)}', space=vmem, size = 0x1000, scoped, tag = 'scratch operand']
  %s0 = inlined_call_operand.vmem [shape: bf16[2,8,128], index: 0, kind: input, shape index: {}, may-alias: {0,1}]
  %s1 = inlined_call_operand.vmem [shape: bf16[2,8,128], index: 1, kind: input, shape index: {}, may-alias: {0,1}]
  %s2 = inlined_call_operand.vmem [shape: s32[2,1,8], index: 2, kind: input, shape index: {}]
  %s3 = inlined_call_operand.vmem [shape: bf16[128,128], index: 3, kind: input, shape index: {}]
  %s4 = inlined_call_operand.hbm [shape: bf16[128,128], index: 4, kind: input, shape index: {}]
  %s5 = inlined_call_operand.hbm [shape: bf16[128,128], index: 5, kind: input, shape index: {}]
  %s6 = inlined_call_operand.hbm [shape: bf16[128,128], index: 6, kind: input, shape index: {}]
  %s7 = inlined_call_operand.vmem [shape: f32[1,128], index: 7, kind: input, shape index: {}]
  %s8 = inlined_call_operand.vmem [shape: f32[1,128], index: 8, kind: input, shape index: {}]
  %s9 = inlined_call_operand.vmem [shape: f32[1,128], index: 9, kind: input, shape index: {}]
  %s10 = inlined_call_operand.vmem [shape: bf16[2,8,128], index: 10, kind: output, shape index: {}]
  %s11 = sld [smem:[#allocation0]]
  $region85: #{_lambda_.11} parent=0
    _
  %s13 = ssub.s32 1, %s11
  %s14 = scalar_select 0, %s13, %s11
  $region1: #{_lambda_.11} parent=0
    #allocation3 [shape = 'u8[32768]{0}', space=vmem, size = 0x8000, scoped, tag = 'input window, operand 4, single buffered']
    #allocation4 [shape = 's32[2]{0}', space=sflag, size = 0x8, scoped, tag = 'scoped memory for _lambda_.11']
    #allocation5 [shape = 'u8[32768]{0}', space=vmem, size = 0x8000, scoped, tag = 'input window, operand 5, single buffered']
    #allocation6 [shape = 's32[1]{0}', space=sflag, size = 0x4, scoped, tag = 'scoped memory for _lambda_.11']
    #allocation7 [shape = 'u8[32768]{0}', space=vmem, size = 0x8000, scoped, tag = 'input window, operand 6, single buffered']
    %15 = vsyncpa [#allocation4], 0
    %16 = vsyncpa [#allocation6], 0
    loop: start=0, step=1, limit=4
    $region2: #{_lambda_.11} parent=1 // loop_pre_header
      _
    $region3: #{_lambda_.11} parent=1 // loop_header
      %s18 = sphi 0, %s22
      %p19 = scmp.ge.s32.totalorder %s18, 4
      %s25 = sphi 0, %s37
      %s26 = sphi 0, %s33
      %s27 = sphi 0, %s25
      %s28 = sphi 0, %s26
      %s29 = sphi 0, %s27
      %s30 = sphi 0, %s28
      %s42 = sphi 0, %s44
      %s45 = sphi 0, %s42
      %s46 = sphi 0, %s45
      %s62 = sphi 0, %s46
      %s68 = sphi 0, %s70
      %s71 = sphi 0, %s68
      %s72 = sphi 0, %s71
      %s88 = sphi 0, %s72
      %s94 = sphi 0, %s96
      %s97 = sphi 0, %s94
      %s98 = sphi 0, %s97
      %s114 = sphi 0, %s98
      %s118 = sphi 0, %s118
      %s120 = sphi 0, %s118
      %s121 = sphi 0, %s120
      %s135 = sphi 0, %s121
      %s139 = sphi 0, %s139
      %s141 = sphi 0, %s139
      %s142 = sphi 0, %s141
      %s156 = sphi 0, %s142
      %s160 = sphi 0, %s160
      %s162 = sphi 0, %s160
      %s163 = sphi 0, %s162
      %s177 = sphi 0, %s163
      %s181 = sphi 0, %s181
      %s183 = sphi 0, %s181
      %s184 = sphi 0, %s183
      %s198 = sphi 0, %s184
      %s202 = sphi 0, %s202
      %s204 = sphi 0, %s202
      %s205 = sphi 0, %s204
      %s219 = sphi 0, %s205
      %s223 = sphi 0, %s223
      %s225 = sphi 0, %s223
      %s226 = sphi 0, %s225
      %s240 = sphi 0, %s226
      %s244 = sphi 0, %s244
      %s246 = sphi 0, %s244
      %s247 = sphi 0, %s246
      %s261 = sphi 0, %s247
      %s269 = sphi 0, %s271
      %s272 = sphi 0, %s269
      %s273 = sphi 0, %s272
      %s289 = sphi 0, %s273
    $region4: #{_lambda_.11} parent=1 // loop_header_branch
      %21 = sbr.rel (%p19) target = $region8
    $region5: #{_lambda_.11} parent=1 // loop_body
      %s23 = ssub.s32 %s18, 1
      %s24 = ssub.s32 %s18, 2
      %s31 = sadd.s32 1, %s26
      %p32 = scmp.ge.s32.totalorder %s31, 1
      %s33 = scalar_select %p32, 0, %s31
      %s34 = sadd.s32 1, %s25
      %s35 = scalar_select %p32, %s34, %s25
      %p36 = scmp.ge.s32.totalorder %s35, 2
      %s37 = scalar_select %p36, 0, %s35
      %s38 = ssub.s32 %s25, %s37
      %s39 = ssub.s32 %s26, %s33
      %s40 = sor.u32 %s38, %s39
      %p41 = scmp.eq.s32.totalorder %s40, 0
      %s43 = sadd.s32 %s42, 1
      %s44 = scalar_select %p41, %s42, %s43
      %p47 = pneg %p41
      %p48 = scmp.eq.s32.totalorder %s18, 1
      %p49 = por %p47, %p48
      %p50 = scmp.ne.s32.totalorder %s42, %s45
      %p51 = scmp.eq.s32.totalorder %s18, 0
      %p52 = por %p50, %p51
      %p53 = scmp.ne.s32.totalorder %s42, %s45
      %p54 = scmp.eq.s32.totalorder %s23, 1
      %p55 = por %p53, %p54
      %p56 = scmp.ne.s32.totalorder %s45, %s46
      %p57 = scmp.eq.s32.totalorder %s23, 0
      %p58 = por %p56, %p57
      %p59 = scmp.ne.s32.totalorder %s45, %s46
      %p60 = scmp.eq.s32.totalorder %s24, 1
      %p61 = por %p59, %p60
      %p63 = scmp.ne.s32.totalorder %s46, %s62
      %p64 = scmp.eq.s32.totalorder %s24, 0
      %p65 = por %p63, %p64
      %s66 = ssub.s32 %s25, %s37
      %p67 = scmp.eq.s32.totalorder %s66, 0
      %s69 = sadd.s32 %s68, 1
      %s70 = scalar_select %p67, %s68, %s69
      %p73 = pneg %p67
      %p74 = scmp.eq.s32.totalorder %s18, 1
      %p75 = por %p73, %p74
      %p76 = scmp.ne.s32.totalorder %s68, %s71
      %p77 = scmp.eq.s32.totalorder %s18, 0
      %p78 = por %p76, %p77
      %p79 = scmp.ne.s32.totalorder %s68, %s71
      %p80 = scmp.eq.s32.totalorder %s23, 1
      %p81 = por %p79, %p80
      %p82 = scmp.ne.s32.totalorder %s71, %s72
      %p83 = scmp.eq.s32.totalorder %s23, 0
      %p84 = por %p82, %p83
      %p85 = scmp.ne.s32.totalorder %s71, %s72
      %p86 = scmp.eq.s32.totalorder %s24, 1
      %p87 = por %p85, %p86
      %p89 = scmp.ne.s32.totalorder %s72, %s88
      %p90 = scmp.eq.s32.totalorder %s24, 0
      %p91 = por %p89, %p90
      %s92 = ssub.s32 %s25, %s37
      %p93 = scmp.eq.s32.totalorder %s92, 0
      %s95 = sadd.s32 %s94, 1
      %s96 = scalar_select %p93, %s94, %s95
      %p99 = pneg %p93
      %p100 = scmp.eq.s32.totalorder %s18, 1
      %p101 = por %p99, %p100
      %p102 = scmp.ne.s32.totalorder %s94, %s97
      %p103 = scmp.eq.s32.totalorder %s18, 0
      %p104 = por %p102, %p103
      %p105 = scmp.ne.s32.totalorder %s94, %s97
      %p106 = scmp.eq.s32.totalorder %s23, 1
      %p107 = por %p105, %p106
      %p108 = scmp.ne.s32.totalorder %s97, %s98
      %p109 = scmp.eq.s32.totalorder %s23, 0
      %p110 = por %p108, %p109
      %p111 = scmp.ne.s32.totalorder %s97, %s98
      %p112 = scmp.eq.s32.totalorder %s24, 1
      %p113 = por %p111, %p112
      %p115 = scmp.ne.s32.totalorder %s98, %s114
      %p116 = scmp.eq.s32.totalorder %s24, 0
      %p117 = por %p115, %p116
      %s119 = sadd.s32 %s118, 1
      %p122 = scmp.eq.s32.totalorder %s18, 1
      %p123 = scmp.ne.s32.totalorder %s118, %s120
      %p124 = scmp.eq.s32.totalorder %s18, 0
      %p125 = por %p123, %p124
      %p126 = scmp.ne.s32.totalorder %s118, %s120
      %p127 = scmp.eq.s32.totalorder %s23, 1
      %p128 = por %p126, %p127
      %p129 = scmp.ne.s32.totalorder %s120, %s121
      %p130 = scmp.eq.s32.totalorder %s23, 0
      %p131 = por %p129, %p130
      %p132 = scmp.ne.s32.totalorder %s120, %s121
      %p133 = scmp.eq.s32.totalorder %s24, 1
      %p134 = por %p132, %p133
      %p136 = scmp.ne.s32.totalorder %s121, %s135
      %p137 = scmp.eq.s32.totalorder %s24, 0
      %p138 = por %p136, %p137
      %s140 = sadd.s32 %s139, 1
      %p143 = scmp.eq.s32.totalorder %s18, 1
      %p144 = scmp.ne.s32.totalorder %s139, %s141
      %p145 = scmp.eq.s32.totalorder %s18, 0
      %p146 = por %p144, %p145
      %p147 = scmp.ne.s32.totalorder %s139, %s141
      %p148 = scmp.eq.s32.totalorder %s23, 1
      %p149 = por %p147, %p148
      %p150 = scmp.ne.s32.totalorder %s141, %s142
      %p151 = scmp.eq.s32.totalorder %s23, 0
      %p152 = por %p150, %p151
      %p153 = scmp.ne.s32.totalorder %s141, %s142
      %p154 = scmp.eq.s32.totalorder %s24, 1
      %p155 = por %p153, %p154
      %p157 = scmp.ne.s32.totalorder %s142, %s156
      %p158 = scmp.eq.s32.totalorder %s24, 0
      %p159 = por %p157, %p158
      %s161 = sadd.s32 %s160, 1
      %p164 = scmp.eq.s32.totalorder %s18, 1
      %p165 = scmp.ne.s32.totalorder %s160, %s162
      %p166 = scmp.eq.s32.totalorder %s18, 0
      %p167 = por %p165, %p166
      %p168 = scmp.ne.s32.totalorder %s160, %s162
      %p169 = scmp.eq.s32.totalorder %s23, 1
      %p170 = por %p168, %p169
      %p171 = scmp.ne.s32.totalorder %s162, %s163
      %p172 = scmp.eq.s32.totalorder %s23, 0
      %p173 = por %p171, %p172
      %p174 = scmp.ne.s32.totalorder %s162, %s163
      %p175 = scmp.eq.s32.totalorder %s24, 1
      %p176 = por %p174, %p175
      %p178 = scmp.ne.s32.totalorder %s163, %s177
      %p179 = scmp.eq.s32.totalorder %s24, 0
      %p180 = por %p178, %p179
      %s182 = sadd.s32 %s181, 1
      %p185 = scmp.eq.s32.totalorder %s18, 1
      %p186 = scmp.ne.s32.totalorder %s181, %s183
      %p187 = scmp.eq.s32.totalorder %s18, 0
      %p188 = por %p186, %p187
      %p189 = scmp.ne.s32.totalorder %s181, %s183
      %p190 = scmp.eq.s32.totalorder %s23, 1
      %p191 = por %p189, %p190
      %p192 = scmp.ne.s32.totalorder %s183, %s184
      %p193 = scmp.eq.s32.totalorder %s23, 0
      %p194 = por %p192, %p193
      %p195 = scmp.ne.s32.totalorder %s183, %s184
      %p196 = scmp.eq.s32.totalorder %s24, 1
      %p197 = por %p195, %p196
      %p199 = scmp.ne.s32.totalorder %s184, %s198
      %p200 = scmp.eq.s32.totalorder %s24, 0
      %p201 = por %p199, %p200
      %s203 = sadd.s32 %s202, 1
      %p206 = scmp.eq.s32.totalorder %s18, 1
      %p207 = scmp.ne.s32.totalorder %s202, %s204
      %p208 = scmp.eq.s32.totalorder %s18, 0
      %p209 = por %p207, %p208
      %p210 = scmp.ne.s32.totalorder %s202, %s204
      %p211 = scmp.eq.s32.totalorder %s23, 1
      %p212 = por %p210, %p211
      %p213 = scmp.ne.s32.totalorder %s204, %s205
      %p214 = scmp.eq.s32.totalorder %s23, 0
      %p215 = por %p213, %p214
      %p216 = scmp.ne.s32.totalorder %s204, %s205
      %p217 = scmp.eq.s32.totalorder %s24, 1
      %p218 = por %p216, %p217
      %p220 = scmp.ne.s32.totalorder %s205, %s219
      %p221 = scmp.eq.s32.totalorder %s24, 0
      %p222 = por %p220, %p221
      %s224 = sadd.s32 %s223, 1
      %p227 = scmp.eq.s32.totalorder %s18, 1
      %p228 = scmp.ne.s32.totalorder %s223, %s225
      %p229 = scmp.eq.s32.totalorder %s18, 0
      %p230 = por %p228, %p229
      %p231 = scmp.ne.s32.totalorder %s223, %s225
      %p232 = scmp.eq.s32.totalorder %s23, 1
      %p233 = por %p231, %p232
      %p234 = scmp.ne.s32.totalorder %s225, %s226
      %p235 = scmp.eq.s32.totalorder %s23, 0
      %p236 = por %p234, %p235
      %p237 = scmp.ne.s32.totalorder %s225, %s226
      %p238 = scmp.eq.s32.totalorder %s24, 1
      %p239 = por %p237, %p238
      %p241 = scmp.ne.s32.totalorder %s226, %s240
      %p242 = scmp.eq.s32.totalorder %s24, 0
      %p243 = por %p241, %p242
      %s245 = sadd.s32 %s244, 1
      %p248 = scmp.eq.s32.totalorder %s18, 1
      %p249 = scmp.ne.s32.totalorder %s244, %s246
      %p250 = scmp.eq.s32.totalorder %s18, 0
      %p251 = por %p249, %p250
      %p252 = scmp.ne.s32.totalorder %s244, %s246
      %p253 = scmp.eq.s32.totalorder %s23, 1
      %p254 = por %p252, %p253
      %p255 = scmp.ne.s32.totalorder %s246, %s247
      %p256 = scmp.eq.s32.totalorder %s23, 0
      %p257 = por %p255, %p256
      %p258 = scmp.ne.s32.totalorder %s246, %s247
      %p259 = scmp.eq.s32.totalorder %s24, 1
      %p260 = por %p258, %p259
      %p262 = scmp.ne.s32.totalorder %s247, %s261
      %p263 = scmp.eq.s32.totalorder %s24, 0
      %p264 = por %p262, %p263
      %s265 = ssub.s32 %s25, %s37
      %s266 = ssub.s32 %s26, %s33
      %s267 = sor.u32 %s265, %s266
      %p268 = scmp.eq.s32.totalorder %s267, 0
      %s270 = sadd.s32 %s269, 1
      %s271 = scalar_select %p268, %s269, %s270
      %p274 = pneg %p268
      %p275 = scmp.eq.s32.totalorder %s18, 1
      %p276 = por %p274, %p275
      %p277 = scmp.ne.s32.totalorder %s269, %s272
      %p278 = scmp.eq.s32.totalorder %s18, 0
      %p279 = por %p277, %p278
      %p280 = scmp.ne.s32.totalorder %s269, %s272
      %p281 = scmp.eq.s32.totalorder %s23, 1
      %p282 = por %p280, %p281
      %p283 = scmp.ne.s32.totalorder %s272, %s273
      %p284 = scmp.eq.s32.totalorder %s23, 0
      %p285 = por %p283, %p284
      %p286 = scmp.ne.s32.totalorder %s272, %s273
      %p287 = scmp.eq.s32.totalorder %s24, 1
      %p288 = por %p286, %p287
      %p290 = scmp.ne.s32.totalorder %s273, %s289
      %p291 = scmp.eq.s32.totalorder %s24, 0
      %p292 = por %p290, %p291
      %p293 = scmp.le.s32.totalorder 1, %s18
      %p294 = scmp.lt.s32.totalorder %s18, 3
      %p295 = pnand %p293, %p294
      %p296 = pneg %p295
      // Predicated region
      $region9: #{_lambda_.11} parent=5 // pred_check
        _
      $region10: #{_lambda_.11} parent=5 // pred_check_branch
        %298 = sbr.rel (%p295) target = $region12
      $region11: #{_lambda_.11} parent=5 // pred_region
        %s299 = ssub.s32 %s18, 1
        // Predicated region
        $region13: #{_lambda_.11} parent=11 // pred_check
          %p300 = pneg %p131
        $region14: #{_lambda_.11} parent=11 // pred_check_branch
          %302 = sbr.rel (%p300) target = $region16
        $region15: #{_lambda_.11} parent=11 // pred_region
          _
        $region16: #{_lambda_.11} parent=11 // pred_fallthru
          _
        // Predicated region
        $region17: #{_lambda_.11} parent=11 // pred_check
          %p303 = pneg %p152
        $region18: #{_lambda_.11} parent=11 // pred_check_branch
          %305 = sbr.rel (%p303) target = $region20
        $region19: #{_lambda_.11} parent=11 // pred_region
          %307 = vsyncadd [#allocation4], 0
          %s308 = sshll.u32 %s4, 4
          %s309 = int_to_ptr.hbm [resolvable:$true] %s308
          %s310 = sshll.u32 [#allocation3], 4
          %s311 = int_to_ptr.vmem [resolvable:$true] %s310
          %316 = dma.hbm_to_vmem [thread:$0]  %s309, 1024, %s311, [#allocation4], 64, 64, 4
        $region20: #{_lambda_.11} parent=11 // pred_fallthru
          _
        // Predicated region
        $region21: #{_lambda_.11} parent=11 // pred_check
          %p317 = pneg %p173
        $region22: #{_lambda_.11} parent=11 // pred_check_branch
          %319 = sbr.rel (%p317) target = $region24
        $region23: #{_lambda_.11} parent=11 // pred_region
          %321 = vsyncadd [#allocation6], 0
          %s322 = sshll.u32 %s5, 4
          %s323 = int_to_ptr.hbm [resolvable:$true] %s322
          %s324 = sshll.u32 [#allocation5], 4
          %s325 = int_to_ptr.vmem [resolvable:$true] %s324
          %330 = dma.hbm_to_vmem [thread:$0]  %s323, 1024, %s325, [#allocation6], 64, 64, 4
        $region24: #{_lambda_.11} parent=11 // pred_fallthru
          _
        // Predicated region
        $region25: #{_lambda_.11} parent=11 // pred_check
          %p331 = pneg %p194
        $region26: #{_lambda_.11} parent=11 // pred_check_branch
          %333 = sbr.rel (%p331) target = $region28
        $region27: #{_lambda_.11} parent=11 // pred_region
          %335 = vsyncadd [#allocation6], 0
          %s336 = sshll.u32 %s6, 4
          %s337 = int_to_ptr.hbm [resolvable:$true] %s336
          %s338 = sshll.u32 [#allocation7], 4
          %s339 = int_to_ptr.vmem [resolvable:$true] %s338
          %344 = dma.hbm_to_vmem [thread:$0]  %s337, 1024, %s339, [#allocation6], 64, 64, 4
        $region28: #{_lambda_.11} parent=11 // pred_fallthru
          _
        // Predicated region
        $region29: #{_lambda_.11} parent=11 // pred_check
          %p345 = pneg %p215
        $region30: #{_lambda_.11} parent=11 // pred_check_branch
          %347 = sbr.rel (%p345) target = $region32
        $region31: #{_lambda_.11} parent=11 // pred_region
          _
        $region32: #{_lambda_.11} parent=11 // pred_fallthru
          _
        // Predicated region
        $region33: #{_lambda_.11} parent=11 // pred_check
          %p348 = pneg %p236
        $region34: #{_lambda_.11} parent=11 // pred_check_branch
          %350 = sbr.rel (%p348) target = $region36
        $region35: #{_lambda_.11} parent=11 // pred_region
          _
        $region36: #{_lambda_.11} parent=11 // pred_fallthru
          _
        // Predicated region
        $region37: #{_lambda_.11} parent=11 // pred_check
          %p351 = pneg %p257
        $region38: #{_lambda_.11} parent=11 // pred_check_branch
          %353 = sbr.rel (%p351) target = $region40
        $region39: #{_lambda_.11} parent=11 // pred_region
          _
        $region40: #{_lambda_.11} parent=11 // pred_fallthru
          _
      $region12: #{_lambda_.11} parent=5 // pred_fallthru
        _
      %p354 = scmp.lt.s32.totalorder %s18, 2
      // Predicated region
      $region41: #{_lambda_.11} parent=5 // pred_check
        %p355 = pneg %p354
      $region42: #{_lambda_.11} parent=5 // pred_check_branch
        %357 = sbr.rel (%p355) target = $region44
      $region43: #{_lambda_.11} parent=5 // pred_region
        // Predicated region
        $region45: #{_lambda_.11} parent=43 // pred_check
          %p358 = pneg %p52
        $region46: #{_lambda_.11} parent=43 // pred_check_branch
          %360 = sbr.rel (%p358) target = $region48
        $region47: #{_lambda_.11} parent=43 // pred_region
          %p361 = scmp.lt.s32.totalorder %s25, 1
          %s362 = scalar_select %p361, %s25, 1
          %p363 = scmp.lt.s32.totalorder %s26, 0
          %s364 = scalar_select %p363, %s26, 0
          %s365 = sadd.s32 %s364, %s362
          %s366 = smul.addr %s365, 4
          %s367 = scalar_lea.vmem %s0, %s366
        $region48: #{_lambda_.11} parent=43 // pred_fallthru
          _
        // Predicated region
        $region49: #{_lambda_.11} parent=43 // pred_check
          %p368 = pneg %p78
        $region50: #{_lambda_.11} parent=43 // pred_check_branch
          %370 = sbr.rel (%p368) target = $region52
        $region51: #{_lambda_.11} parent=43 // pred_region
          %p371 = scmp.lt.s32.totalorder %s25, 1
          %s372 = scalar_select %p371, %s25, 1
          %s373 = smul.addr %s372, 4
          %s374 = scalar_lea.vmem %s1, %s373
        $region52: #{_lambda_.11} parent=43 // pred_fallthru
          _
        // Predicated region
        $region53: #{_lambda_.11} parent=43 // pred_check
          %p375 = pneg %p104
        $region54: #{_lambda_.11} parent=43 // pred_check_branch
          %377 = sbr.rel (%p375) target = $region56
        $region55: #{_lambda_.11} parent=43 // pred_region
          %p378 = scmp.lt.s32.totalorder %s25, 1
          %s379 = scalar_select %p378, %s25, 1
          %s380 = scalar_lea.vmem %s2, %s379
        $region56: #{_lambda_.11} parent=43 // pred_fallthru
          _
      $region44: #{_lambda_.11} parent=5 // pred_fallthru
        _
      %p381 = scmp.le.s32.totalorder 1, %s18
      %p382 = scmp.lt.s32.totalorder %s18, 3
      %p383 = pnand %p381, %p382
      %p384 = pneg %p383
      // Predicated region
      $region57: #{_lambda_.11} parent=5 // pred_check
        _
      $region58: #{_lambda_.11} parent=5 // pred_check_branch
        %386 = sbr.rel (%p383) target = $region60
      $region59: #{_lambda_.11} parent=5 // pred_region
        %s387 = ssub.s32 %s18, 1
        // Predicated region
        $region61: #{_lambda_.11} parent=59 // pred_check
          %p388 = pneg %p152
        $region62: #{_lambda_.11} parent=59 // pred_check_branch
          %390 = sbr.rel (%p388) target = $region64
        $region63: #{_lambda_.11} parent=59 // pred_region
          %392 = dma.done [#allocation4], 1024
        $region64: #{_lambda_.11} parent=59 // pred_fallthru
          _
        // Predicated region
        $region65: #{_lambda_.11} parent=59 // pred_check
          %p393 = pneg %p173
        $region66: #{_lambda_.11} parent=59 // pred_check_branch
          %395 = sbr.rel (%p393) target = $region68
        $region67: #{_lambda_.11} parent=59 // pred_region
          %397 = dma.done [#allocation6], 1024
        $region68: #{_lambda_.11} parent=59 // pred_fallthru
          _
        // Predicated region
        $region69: #{_lambda_.11} parent=59 // pred_check
          %p398 = pneg %p194
        $region70: #{_lambda_.11} parent=59 // pred_check_branch
          %400 = sbr.rel (%p398) target = $region72
        $region71: #{_lambda_.11} parent=59 // pred_region
          %402 = dma.done [#allocation6], 1024
        $region72: #{_lambda_.11} parent=59 // pred_fallthru
          _
        %p403 = scmp.lt.s32.totalorder %s27, 1
        %s404 = scalar_select %p403, %s27, 1
        %p405 = scmp.lt.s32.totalorder %s28, 0
        %s406 = scalar_select %p405, %s28, 0
        %s407 = sadd.s32 %s406, %s404
        %s408 = smul.addr %s407, 4
        %s409 = scalar_lea.vmem %s0, %s408
        %p410 = pneg %p58
        %p411 = pneg %p55
        %p412 = scmp.lt.s32.totalorder %s27, 1
        %s413 = scalar_select %p412, %s27, 1
        %s414 = smul.addr %s413, 4
        %s415 = scalar_lea.vmem %s1, %s414
        %p416 = pneg %p84
        %p417 = pneg %p81
        %p418 = scmp.lt.s32.totalorder %s27, 1
        %s419 = scalar_select %p418, %s27, 1
        %s420 = scalar_lea.vmem %s2, %s419
        %p421 = pneg %p110
        %p422 = pneg %p107
        %p423 = pneg %p131
        %p424 = pneg %p128
        %p425 = pneg %p152
        %p426 = pneg %p149
        %p427 = pneg %p173
        %p428 = pneg %p170
        %p429 = pneg %p194
        %p430 = pneg %p191
        %p431 = pneg %p215
        %p432 = pneg %p212
        %p433 = pneg %p236
        %p434 = pneg %p233
        %p435 = pneg %p257
        %p436 = pneg %p254
        %p437 = pneg %p285
        %p438 = pneg %p282
        %p439 = scmp.lt.s32.totalorder %s27, 1
        %s440 = scalar_select %p439, %s27, 1
        %p441 = scmp.lt.s32.totalorder %s28, 0
        %s442 = scalar_select %p441, %s28, 0
        %s443 = sadd.s32 %s442, %s440
        %s444 = smul.addr %s443, 4
        %s445 = scalar_lea.vmem %s10, %s444
        %p446 = scmp.lt.s32.totalorder %s27, 1
        %s447 = scalar_select %p446, %s27, 1
        %p448 = scmp.lt.s32.totalorder %s28, 0
        %s449 = scalar_select %p448, %s28, 0
        %s450 = sadd.s32 %s449, %s447
        %s451 = smul.addr %s450, 4
        %s452 = scalar_lea.vmem %s0, %s451
        %p453 = scmp.lt.s32.totalorder %s27, 1
        %s454 = scalar_select %p453, %s27, 1
        %s455 = smul.addr %s454, 4
        %s456 = scalar_lea.vmem %s1, %s455
        %p457 = scmp.lt.s32.totalorder %s27, 1
        %s458 = scalar_select %p457, %s27, 1
        %s459 = scalar_lea.vmem %s2, %s458
        %p460 = scmp.lt.s32.totalorder %s27, 1
        %s461 = scalar_select %p460, %s27, 1
        %p462 = scmp.lt.s32.totalorder %s28, 0
        %s463 = scalar_select %p462, %s28, 0
        %s464 = sadd.s32 %s463, %s461
        %s465 = smul.addr %s464, 4
        %s466 = scalar_lea.vmem %s10, %s465
        %v468 = vld [vmem:[%s452] sm:$0xf]
        %v469 = vld [vmem:[%s456] sm:$0xf]
        %v470 = vld [vmem:[%s3] sm:$0xf]
        %v471 = vld [vmem:[%s3 + $0x4] sm:$0xf]
        %v472 = vld [vmem:[%s3 + $0x8] sm:$0xf]
        %v473 = vld [vmem:[%s3 + $0xc] sm:$0xf]
        %v474 = vld [vmem:[%s3 + $0x10] sm:$0xf]
        %v475 = vld [vmem:[%s3 + $0x14] sm:$0xf]
        %v476 = vld [vmem:[%s3 + $0x18] sm:$0xf]
        %v477 = vld [vmem:[%s3 + $0x1c] sm:$0xf]
        %v478 = vld [vmem:[%s3 + $0x20] sm:$0xf]
        %v479 = vld [vmem:[%s3 + $0x24] sm:$0xf]
        %v480 = vld [vmem:[%s3 + $0x28] sm:$0xf]
        %v481 = vld [vmem:[%s3 + $0x2c] sm:$0xf]
        %v482 = vld [vmem:[%s3 + $0x30] sm:$0xf]
        %v483 = vld [vmem:[%s3 + $0x34] sm:$0xf]
        %v484 = vld [vmem:[%s3 + $0x38] sm:$0xf]
        %v485 = vld [vmem:[%s3 + $0x3c] sm:$0xf]
        %v502 = vunpack.c.l.b16 %v470
        %v503 = vunpack.c.l.b16 %v471
        %v504 = vunpack.c.l.b16 %v472
        %v505 = vunpack.c.l.b16 %v473
        %v506 = vunpack.c.l.b16 %v474
        %v507 = vunpack.c.l.b16 %v475
        %v508 = vunpack.c.l.b16 %v476
        %v509 = vunpack.c.l.b16 %v477
        %v510 = vunpack.c.l.b16 %v478
        %v511 = vunpack.c.l.b16 %v479
        %v512 = vunpack.c.l.b16 %v480
        %v513 = vunpack.c.l.b16 %v481
        %v514 = vunpack.c.l.b16 %v482
        %v515 = vunpack.c.l.b16 %v483
        %v516 = vunpack.c.l.b16 %v484
        %v517 = vunpack.c.l.b16 %v485
        %v518 = vpack.c.b16 %v503, %v502
        %v519 = vpack.c.b16 %v505, %v504
        %v520 = vpack.c.b16 %v507, %v506
        %v521 = vpack.c.b16 %v509, %v508
        %v522 = vpack.c.b16 %v511, %v510
        %v523 = vpack.c.b16 %v513, %v512
        %v524 = vpack.c.b16 %v515, %v514
        %v525 = vpack.c.b16 %v517, %v516
        %534 = vmatpush.bf16.msra.mxu0 %v525
        %535 = vmatpush.bf16.msra.mxu0 %v524
        %536 = vmatpush.bf16.msra.mxu0 %v523
        %537 = vmatpush.bf16.msra.mxu0 %v522
        %538 = vmatpush.bf16.msra.mxu0 %v521
        %539 = vmatpush.bf16.msra.mxu0 %v520
        %540 = vmatpush.bf16.msra.mxu0 %v519
        %541 = vmatpush.bf16.msra.mxu0 %v518
        %542 = vmatmul.bf16.gmra.mxu0 %v468
        %v543 = vpop.f32.mrf.mxu0
        %v544 = vadd.f32 0.0, %v543
        %v545 = vpop.f32.mrf.mxu0
        %546 = vdwg.mxu0
        %v547 = vmul.f32 %v544, 0.088388346
        %v548 = vpack.c.bf16 %v547, %v547
        %v549 = vld [vmem:[#allocation3] sm:$0xf]
        %v550 = vld [vmem:[#allocation3 + $0x4] sm:$0xf]
        %v551 = vld [vmem:[#allocation3 + $0x8] sm:$0xf]
        %v552 = vld [vmem:[#allocation3 + $0xc] sm:$0xf]
        %v553 = vld [vmem:[#allocation3 + $0x10] sm:$0xf]
        %v554 = vld [vmem:[#allocation3 + $0x14] sm:$0xf]
        %v555 = vld [vmem:[#allocation3 + $0x18] sm:$0xf]
        %v556 = vld [vmem:[#allocation3 + $0x1c] sm:$0xf]
        %v557 = vld [vmem:[#allocation3 + $0x20] sm:$0xf]
        %v558 = vld [vmem:[#allocation3 + $0x24] sm:$0xf]
        %v559 = vld [vmem:[#allocation3 + $0x28] sm:$0xf]
        %v560 = vld [vmem:[#allocation3 + $0x2c] sm:$0xf]
        %v561 = vld [vmem:[#allocation3 + $0x30] sm:$0xf]
        %v562 = vld [vmem:[#allocation3 + $0x34] sm:$0xf]
        %v563 = vld [vmem:[#allocation3 + $0x38] sm:$0xf]
        %v564 = vld [vmem:[#allocation3 + $0x3c] sm:$0xf]
        %v581 = vunpack.c.l.b16 %v549
        %v582 = vunpack.c.l.b16 %v550
        %v583 = vunpack.c.l.b16 %v551
        %v584 = vunpack.c.l.b16 %v552
        %v585 = vunpack.c.l.b16 %v553
        %v586 = vunpack.c.l.b16 %v554
        %v587 = vunpack.c.l.b16 %v555
        %v588 = vunpack.c.l.b16 %v556
        %v589 = vunpack.c.l.b16 %v557
        %v590 = vunpack.c.l.b16 %v558
        %v591 = vunpack.c.l.b16 %v559
        %v592 = vunpack.c.l.b16 %v560
        %v593 = vunpack.c.l.b16 %v561
        %v594 = vunpack.c.l.b16 %v562
        %v595 = vunpack.c.l.b16 %v563
        %v596 = vunpack.c.l.b16 %v564
        %v597 = vpack.c.b16 %v582, %v581
        %v598 = vpack.c.b16 %v584, %v583
        %v599 = vpack.c.b16 %v586, %v585
        %v600 = vpack.c.b16 %v588, %v587
        %v601 = vpack.c.b16 %v590, %v589
        %v602 = vpack.c.b16 %v592, %v591
        %v603 = vpack.c.b16 %v594, %v593
        %v604 = vpack.c.b16 %v596, %v595
        %613 = vmatpush.bf16.msra.mxu0 %v604
        %614 = vmatpush.bf16.msra.mxu0 %v603
        %615 = vmatpush.bf16.msra.mxu0 %v602
        %616 = vmatpush.bf16.msra.mxu0 %v601
        %617 = vmatpush.bf16.msra.mxu0 %v600
        %618 = vmatpush.bf16.msra.mxu0 %v599
        %619 = vmatpush.bf16.msra.mxu0 %v598
        %620 = vmatpush.bf16.msra.mxu0 %v597
        %621 = vmatmul.bf16.gmra.mxu0 %v469
        %v622 = vpop.f32.mrf.mxu0
        %v623 = vadd.f32 0.0, %v622
        %v624 = vpop.f32.mrf.mxu0
        %625 = vdwg.mxu0
        %v626 = vpack.c.bf16 %v623, %v623
        %v627 = vld [vmem:[#allocation5] sm:$0xf]
        %v628 = vld [vmem:[#allocation5 + $0x4] sm:$0xf]
        %v629 = vld [vmem:[#allocation5 + $0x8] sm:$0xf]
        %v630 = vld [vmem:[#allocation5 + $0xc] sm:$0xf]
        %v631 = vld [vmem:[#allocation5 + $0x10] sm:$0xf]
        %v632 = vld [vmem:[#allocation5 + $0x14] sm:$0xf]
        %v633 = vld [vmem:[#allocation5 + $0x18] sm:$0xf]
        %v634 = vld [vmem:[#allocation5 + $0x1c] sm:$0xf]
        %v635 = vld [vmem:[#allocation5 + $0x20] sm:$0xf]
        %v636 = vld [vmem:[#allocation5 + $0x24] sm:$0xf]
        %v637 = vld [vmem:[#allocation5 + $0x28] sm:$0xf]
        %v638 = vld [vmem:[#allocation5 + $0x2c] sm:$0xf]
        %v639 = vld [vmem:[#allocation5 + $0x30] sm:$0xf]
        %v640 = vld [vmem:[#allocation5 + $0x34] sm:$0xf]
        %v641 = vld [vmem:[#allocation5 + $0x38] sm:$0xf]
        %v642 = vld [vmem:[#allocation5 + $0x3c] sm:$0xf]
        %v659 = vunpack.c.l.b16 %v627
        %v660 = vunpack.c.l.b16 %v628
        %v661 = vunpack.c.l.b16 %v629
        %v662 = vunpack.c.l.b16 %v630
        %v663 = vunpack.c.l.b16 %v631
        %v664 = vunpack.c.l.b16 %v632
        %v665 = vunpack.c.l.b16 %v633
        %v666 = vunpack.c.l.b16 %v634
        %v667 = vunpack.c.l.b16 %v635
        %v668 = vunpack.c.l.b16 %v636
        %v669 = vunpack.c.l.b16 %v637
        %v670 = vunpack.c.l.b16 %v638
        %v671 = vunpack.c.l.b16 %v639
        %v672 = vunpack.c.l.b16 %v640
        %v673 = vunpack.c.l.b16 %v641
        %v674 = vunpack.c.l.b16 %v642
        %v675 = vpack.c.b16 %v660, %v659
        %v676 = vpack.c.b16 %v662, %v661
        %v677 = vpack.c.b16 %v664, %v663
        %v678 = vpack.c.b16 %v666, %v665
        %v679 = vpack.c.b16 %v668, %v667
        %v680 = vpack.c.b16 %v670, %v669
        %v681 = vpack.c.b16 %v672, %v671
        %v682 = vpack.c.b16 %v674, %v673
        %691 = vmatpush.bf16.msra.mxu0 %v682
        %692 = vmatpush.bf16.msra.mxu0 %v681
        %693 = vmatpush.bf16.msra.mxu0 %v680
        %694 = vmatpush.bf16.msra.mxu0 %v679
        %695 = vmatpush.bf16.msra.mxu0 %v678
        %696 = vmatpush.bf16.msra.mxu0 %v677
        %697 = vmatpush.bf16.msra.mxu0 %v676
        %698 = vmatpush.bf16.msra.mxu0 %v675
        %699 = vmatmul.bf16.gmra.mxu0 %v469
        %v700 = vpop.f32.mrf.mxu0
        %v701 = vadd.f32 0.0, %v700
        %v702 = vpop.f32.mrf.mxu0
        %703 = vdwg.mxu0
        %v704 = vpack.c.bf16 %v701, %v701
        %v705 = vld [vmem:[%s459] sm:$0x1]
        %vm706 = vcmp.gt.s32.totalorder %v705, 0
        %v707 = vsel %vm706, 1, 0
        %v708 = vperm.slane %v707, 0
        %vm709 = vcmp.eq.s32.totalorder %v708, 1
        %vm710 = vcmask 261120
        %v712 = vsel %vm710, %v548, 0
        %v715 = vsel %vm710, %v626, 0
        %717 = vmatpush.bf16.xpose.msra.mxu0 0
        %718 = vmatpush.bf16.xpose.msra.mxu0 0
        %719 = vmatpush.bf16.xpose.msra.mxu0 0
        %720 = vmatpush.bf16.xpose.msra.mxu0 0
        %721 = vmatpush.bf16.xpose.msra.mxu0 0
        %722 = vmatpush.bf16.xpose.msra.mxu0 0
        %723 = vmatpush.bf16.xpose.msra.mxu0 0
        %724 = vmatpush.bf16.xpose.msra.mxu0 %v715
        %725 = vmatmul.bf16.gmra.mxu0 %v712
        %v726 = vpop.f32.mrf.mxu0
        %v727 = vadd.f32 0.0, %v726
        %v728 = vpop.f32.mrf.mxu0
        %729 = vdwg.mxu0
        %v730 = vsel %vm709, -1e+30, %v727
        %vm731 = vcmask 64512
        %v732 = vsel %vm731, %v730, -inf
        %733 = vmax.xlane.f32.xlu0 %v732
        %v734 = vpop.xlane.xlu0 %733
        %v735 = vsub.f32 %v730, %v734
        %v736 = vmul.f32 %v735, 1.442695
        %v737 = vpow.pop %v736
        %v738 = vsel %vm731, %v737, 0.0
        %739 = vadd.xlane.f32.xlu0 %v738
        %v740 = vpop.xlane.xlu0 %739
        %v741 = vrcp.pop %v740
        %v742 = vmul.f32 %v737, %v741
        %v743 = vpack.c.bf16 %v742, %v742
        %v745 = vsel %vm731, %v743, 0
        %vm747 = vcmask 1043456
        %v749 = vsel %vm747, %v704, 0
        %751 = vmatpush.bf16.msra.mxu0 0
        %752 = vmatpush.bf16.msra.mxu0 0
        %753 = vmatpush.bf16.msra.mxu0 0
        %754 = vmatpush.bf16.msra.mxu0 0
        %755 = vmatpush.bf16.msra.mxu0 0
        %756 = vmatpush.bf16.msra.mxu0 0
        %757 = vmatpush.bf16.msra.mxu0 0
        %758 = vmatpush.bf16.msra.mxu0 %v749
        %759 = vmatmul.bf16.gmra.mxu0 %v745
        %v760 = vpop.f32.mrf.mxu0
        %v761 = vadd.f32 0.0, %v760
        %v762 = vpop.f32.mrf.mxu0
        %763 = vdwg.mxu0
        %764 = vst.msk [vmem:[#allocation2] sm:$0xff] %vm710, %v761
        %v766 = vunpack.c.l.b16 %v548
        %v767 = vpack.c.b16 %v766, %v766
        %768 = vrot.lane.b32.xlu0 %v767, 96
        %v769 = vpop.permute.xlu0 %768
        %v771 = vunpack.c.l.b16 %v626
        %v772 = vpack.c.b16 %v771, %v771
        %773 = vrot.lane.b32.xlu0 %v772, 96
        %v774 = vpop.permute.xlu0 %773
        %v776 = vsel %vm710, %v769, 0
        %v779 = vsel %vm710, %v774, 0
        %781 = vmatpush.bf16.xpose.msra.mxu0 0
        %782 = vmatpush.bf16.xpose.msra.mxu0 0
        %783 = vmatpush.bf16.xpose.msra.mxu0 0
        %784 = vmatpush.bf16.xpose.msra.mxu0 0
        %785 = vmatpush.bf16.xpose.msra.mxu0 0
        %786 = vmatpush.bf16.xpose.msra.mxu0 0
        %787 = vmatpush.bf16.xpose.msra.mxu0 0
        %788 = vmatpush.bf16.xpose.msra.mxu0 %v779
        %789 = vmatmul.bf16.gmra.mxu0 %v776
        %v790 = vpop.f32.mrf.mxu0
        %v791 = vadd.f32 0.0, %v790
        %v792 = vpop.f32.mrf.mxu0
        %793 = vdwg.mxu0
        %v794 = vsel %vm709, -1e+30, %v791
        %v795 = vsel %vm731, %v794, -inf
        %796 = vmax.xlane.f32.xlu0 %v795
        %v797 = vpop.xlane.xlu0 %796
        %v798 = vsub.f32 %v794, %v797
        %v799 = vmul.f32 %v798, 1.442695
        %v800 = vpow.pop %v799
        %v801 = vsel %vm731, %v800, 0.0
        %802 = vadd.xlane.f32.xlu0 %v801
        %v803 = vpop.xlane.xlu0 %802
        %v804 = vrcp.pop %v803
        %v805 = vmul.f32 %v800, %v804
        %v806 = vpack.c.bf16 %v805, %v805
        %v808 = vunpack.c.l.b16 %v704
        %v809 = vpack.c.b16 %v808, %v808
        %810 = vrot.lane.b32.xlu0 %v809, 96
        %v811 = vpop.permute.xlu0 %810
        %v813 = vsel %vm731, %v806, 0
        %v816 = vsel %vm747, %v811, 0
        %818 = vmatpush.bf16.msra.mxu0 0
        %819 = vmatpush.bf16.msra.mxu0 0
        %820 = vmatpush.bf16.msra.mxu0 0
        %821 = vmatpush.bf16.msra.mxu0 0
        %822 = vmatpush.bf16.msra.mxu0 0
        %823 = vmatpush.bf16.msra.mxu0 0
        %824 = vmatpush.bf16.msra.mxu0 0
        %825 = vmatpush.bf16.msra.mxu0 %v816
        %826 = vmatmul.bf16.gmra.mxu0 %v813
        %v827 = vpop.f32.mrf.mxu0
        %v828 = vadd.f32 0.0, %v827
        %v829 = vpop.f32.mrf.mxu0
        %830 = vdwg.mxu0
        %832 = vrot.lane.b32.xlu0 %v828, 32
        %v833 = vpop.permute.xlu0 %832
        %vm835 = vcmask 523520
        %836 = vst.msk [vmem:[#allocation2] sm:$0xff] %vm835, %v833
        %837 = vrot.lane.b32.xlu0 %v767, 64
        %v838 = vpop.permute.xlu0 %837
        %839 = vrot.lane.b32.xlu0 %v772, 64
        %v840 = vpop.permute.xlu0 %839
        %v842 = vsel %vm710, %v838, 0
        %v845 = vsel %vm710, %v840, 0
        %847 = vmatpush.bf16.xpose.msra.mxu0 0
        %848 = vmatpush.bf16.xpose.msra.mxu0 0
        %849 = vmatpush.bf16.xpose.msra.mxu0 0
        %850 = vmatpush.bf16.xpose.msra.mxu0 0
        %851 = vmatpush.bf16.xpose.msra.mxu0 0
        %852 = vmatpush.bf16.xpose.msra.mxu0 0
        %853 = vmatpush.bf16.xpose.msra.mxu0 0
        %854 = vmatpush.bf16.xpose.msra.mxu0 %v845
        %855 = vmatmul.bf16.gmra.mxu0 %v842
        %v856 = vpop.f32.mrf.mxu0
        %v857 = vadd.f32 0.0, %v856
        %v858 = vpop.f32.mrf.mxu0
        %859 = vdwg.mxu0
        %v860 = vsel %vm709, -1e+30, %v857
        %v861 = vsel %vm731, %v860, -inf
        %862 = vmax.xlane.f32.xlu0 %v861
        %v863 = vpop.xlane.xlu0 %862
        %v864 = vsub.f32 %v860, %v863
        %v865 = vmul.f32 %v864, 1.442695
        %v866 = vpow.pop %v865
        %v867 = vsel %vm731, %v866, 0.0
        %868 = vadd.xlane.f32.xlu0 %v867
        %v869 = vpop.xlane.xlu0 %868
        %v870 = vrcp.pop %v869
        %v871 = vmul.f32 %v866, %v870
        %v872 = vpack.c.bf16 %v871, %v871
        %873 = vrot.lane.b32.xlu0 %v809, 64
        %v874 = vpop.permute.xlu0 %873
        %v876 = vsel %vm731, %v872, 0
        %v879 = vsel %vm747, %v874, 0
        %881 = vmatpush.bf16.msra.mxu0 0
        %882 = vmatpush.bf16.msra.mxu0 0
        %883 = vmatpush.bf16.msra.mxu0 0
        %884 = vmatpush.bf16.msra.mxu0 0
        %885 = vmatpush.bf16.msra.mxu0 0
        %886 = vmatpush.bf16.msra.mxu0 0
        %887 = vmatpush.bf16.msra.mxu0 0
        %888 = vmatpush.bf16.msra.mxu0 %v879
        %889 = vmatmul.bf16.gmra.mxu0 %v876
        %v890 = vpop.f32.mrf.mxu0
        %v891 = vadd.f32 0.0, %v890
        %v892 = vpop.f32.mrf.mxu0
        %893 = vdwg.mxu0
        %895 = vrot.lane.b32.xlu0 %v891, 64
        %v896 = vpop.permute.xlu0 %895
        %vm898 = vcmask 785920
        %899 = vst.msk [vmem:[#allocation2] sm:$0xff] %vm898, %v896
        %900 = vrot.lane.b32.xlu0 %v767, 32
        %v901 = vpop.permute.xlu0 %900
        %902 = vrot.lane.b32.xlu0 %v772, 32
        %v903 = vpop.permute.xlu0 %902
        %v905 = vsel %vm710, %v901, 0
        %v908 = vsel %vm710, %v903, 0
        %910 = vmatpush.bf16.xpose.msra.mxu0 0
        %911 = vmatpush.bf16.xpose.msra.mxu0 0
        %912 = vmatpush.bf16.xpose.msra.mxu0 0
        %913 = vmatpush.bf16.xpose.msra.mxu0 0
        %914 = vmatpush.bf16.xpose.msra.mxu0 0
        %915 = vmatpush.bf16.xpose.msra.mxu0 0
        %916 = vmatpush.bf16.xpose.msra.mxu0 0
        %917 = vmatpush.bf16.xpose.msra.mxu0 %v908
        %918 = vmatmul.bf16.gmra.mxu0 %v905
        %v919 = vpop.f32.mrf.mxu0
        %v920 = vadd.f32 0.0, %v919
        %v921 = vpop.f32.mrf.mxu0
        %922 = vdwg.mxu0
        %v923 = vsel %vm709, -1e+30, %v920
        %v924 = vsel %vm731, %v923, -inf
        %925 = vmax.xlane.f32.xlu0 %v924
        %v926 = vpop.xlane.xlu0 %925
        %v927 = vsub.f32 %v923, %v926
        %v928 = vmul.f32 %v927, 1.442695
        %v929 = vpow.pop %v928
        %v930 = vsel %vm731, %v929, 0.0
        %931 = vadd.xlane.f32.xlu0 %v930
        %v932 = vpop.xlane.xlu0 %931
        %v933 = vrcp.pop %v932
        %v934 = vmul.f32 %v929, %v933
        %v935 = vpack.c.bf16 %v934, %v934
        %936 = vrot.lane.b32.xlu0 %v809, 32
        %v937 = vpop.permute.xlu0 %936
        %v939 = vsel %vm731, %v935, 0
        %v942 = vsel %vm747, %v937, 0
        %944 = vmatpush.bf16.msra.mxu0 0
        %945 = vmatpush.bf16.msra.mxu0 0
        %946 = vmatpush.bf16.msra.mxu0 0
        %947 = vmatpush.bf16.msra.mxu0 0
        %948 = vmatpush.bf16.msra.mxu0 0
        %949 = vmatpush.bf16.msra.mxu0 0
        %950 = vmatpush.bf16.msra.mxu0 0
        %951 = vmatpush.bf16.msra.mxu0 %v942
        %952 = vmatmul.bf16.gmra.mxu0 %v939
        %v953 = vpop.f32.mrf.mxu0
        %v954 = vadd.f32 0.0, %v953
        %v955 = vpop.f32.mrf.mxu0
        %956 = vdwg.mxu0
        %958 = vrot.lane.b32.xlu0 %v954, 96
        %v959 = vpop.permute.xlu0 %958
        %vm961 = vcmask 1048320
        %962 = vst.msk [vmem:[#allocation2] sm:$0xff] %vm961, %v959
        %v963 = vld [vmem:[#allocation2] sm:$0xff]
        %v964 = vpack.c.bf16 %v963, %v963
        %v965 = vld [vmem:[#allocation7] sm:$0xf]
        %v966 = vld [vmem:[#allocation7 + $0x4] sm:$0xf]
        %v967 = vld [vmem:[#allocation7 + $0x8] sm:$0xf]
        %v968 = vld [vmem:[#allocation7 + $0xc] sm:$0xf]
        %v969 = vld [vmem:[#allocation7 + $0x10] sm:$0xf]
        %v970 = vld [vmem:[#allocation7 + $0x14] sm:$0xf]
        %v971 = vld [vmem:[#allocation7 + $0x18] sm:$0xf]
        %v972 = vld [vmem:[#allocation7 + $0x1c] sm:$0xf]
        %v973 = vld [vmem:[#allocation7 + $0x20] sm:$0xf]
        %v974 = vld [vmem:[#allocation7 + $0x24] sm:$0xf]
        %v975 = vld [vmem:[#allocation7 + $0x28] sm:$0xf]
        %v976 = vld [vmem:[#allocation7 + $0x2c] sm:$0xf]
        %v977 = vld [vmem:[#allocation7 + $0x30] sm:$0xf]
        %v978 = vld [vmem:[#allocation7 + $0x34] sm:$0xf]
        %v979 = vld [vmem:[#allocation7 + $0x38] sm:$0xf]
        %v980 = vld [vmem:[#allocation7 + $0x3c] sm:$0xf]
        %v981 = vld [vmem:[%s7] sm:$0x1]
        %v983 = vperm.slane %v981, 0
        %v1001 = vunpack.c.l.b16 %v965
        %v1002 = vunpack.c.l.b16 %v966
        %v1003 = vunpack.c.l.b16 %v967
        %v1004 = vunpack.c.l.b16 %v968
        %v1005 = vunpack.c.l.b16 %v969
        %v1006 = vunpack.c.l.b16 %v970
        %v1007 = vunpack.c.l.b16 %v971
        %v1008 = vunpack.c.l.b16 %v972
        %v1009 = vunpack.c.l.b16 %v973
        %v1010 = vunpack.c.l.b16 %v974
        %v1011 = vunpack.c.l.b16 %v975
        %v1012 = vunpack.c.l.b16 %v976
        %v1013 = vunpack.c.l.b16 %v977
        %v1014 = vunpack.c.l.b16 %v978
        %v1015 = vunpack.c.l.b16 %v979
        %v1016 = vunpack.c.l.b16 %v980
        %v1017 = vpack.c.b16 %v1002, %v1001
        %v1018 = vpack.c.b16 %v1004, %v1003
        %v1019 = vpack.c.b16 %v1006, %v1005
        %v1020 = vpack.c.b16 %v1008, %v1007
        %v1021 = vpack.c.b16 %v1010, %v1009
        %v1022 = vpack.c.b16 %v1012, %v1011
        %v1023 = vpack.c.b16 %v1014, %v1013
        %v1024 = vpack.c.b16 %v1016, %v1015
        %1033 = vmatpush.bf16.msra.mxu0 %v1024
        %1034 = vmatpush.bf16.msra.mxu0 %v1023
        %1035 = vmatpush.bf16.msra.mxu0 %v1022
        %1036 = vmatpush.bf16.msra.mxu0 %v1021
        %1037 = vmatpush.bf16.msra.mxu0 %v1020
        %1038 = vmatpush.bf16.msra.mxu0 %v1019
        %1039 = vmatpush.bf16.msra.mxu0 %v1018
        %1040 = vmatpush.bf16.msra.mxu0 %v1017
        %1041 = vmatmul.bf16.gmra.mxu0 %v964
        %v1042 = vpop.f32.mrf.mxu0
        %v1043 = vadd.f32 %v983, %v1042
        %v1044 = vpop.f32.mrf.mxu0
        %1045 = vdwg.mxu0
        %v1046 = vunpack.c.l.bf16 %v468
        %v1047 = vadd.f32 %v1043, %v1046
        %1048 = vadd.xlane.f32.xlu0 %v1047
        %v1049 = vpop.xlane.xlu0 %1048
        %v1050 = vrcp.pop 128.0
        %v1051 = vmul.f32 128.0, %v1050
        %v1052 = vsub.f32 1.0, %v1051
        %v1053 = vmul.f32 %v1050, %v1052
        %v1054 = vadd.f32 %v1050, %v1053
        %vm1055 = vweird.f32 %v1050
        %v1056 = vsel %vm1055, %v1050, %v1054
        %v1057 = vmul.f32 %v1049, %v1056
        %v1058 = vsub.f32 %v1047, %v1057
        %v1059 = vmul.f32 %v1058, %v1058
        %1060 = vadd.xlane.f32.xlu0 %v1059
        %v1061 = vpop.xlane.xlu0 %1060
        %v1062 = vrcp.pop 127.0
        %v1063 = vmul.f32 127.0, %v1062
        %v1064 = vsub.f32 1.0, %v1063
        %v1065 = vmul.f32 %v1062, %v1064
        %v1066 = vadd.f32 %v1062, %v1065
        %vm1067 = vweird.f32 %v1062
        %v1068 = vsel %vm1067, %v1062, %v1066
        %v1069 = vmul.f32 %v1061, %v1068
        %v1070 = vrsqrt.pop %v1069
        %v1071 = vmul.f32 %v1070, %v1069
        %v1072 = vmul.f32 %v1071, %v1070
        %v1073 = vmul.f32 0.5, %v1072
        %v1074 = vsub.f32 1.5, %v1073
        %v1075 = vmul.f32 %v1070, %v1074
        %v1076 = vmul.f32 %v1069, %v1075
        %vm1077 = vcmp.eq.f32.partialorder %v1069, inf
        %v1078 = vsel %vm1077, %v1069, %v1076
        %vm1079 = vcmp.eq.f32.partialorder %v1069, 0.0
        %v1080 = vand.u32 %v1069, 2147483648
        %v1081 = vsel %vm1079, %v1080, %v1078
        %v1082 = vadd.f32 %v1081, 0.001
        %v1083 = vrcp.pop %v1082
        %v1084 = vmul.f32 %v1082, %v1083
        %v1085 = vsub.f32 1.0, %v1084
        %v1086 = vmul.f32 %v1083, %v1085
        %v1087 = vadd.f32 %v1083, %v1086
        %vm1088 = vweird.f32 %v1082
        %vm1089 = vweird.f32 %v1083
        %vm1090 = vmor %vm1088, %vm1089
        %v1091 = vsel %vm1090, %v1083, %v1087
        %v1092 = vand.u32 2147483647, %v1082
        %vm1093 = vcmp.eq.f32.partialorder %v1092, 8.507059e+37
        %v1094 = vand.u32 %v1082, 2147483648
        %v1095 = vor.u32 1.1754944e-38, %v1094
        %v1096 = vsel %vm1093, %v1095, %v1091
        %v1097 = vmul.f32 1.0, %v1096
        %v1098 = vmul.f32 %v1058, %v1097
        %v1099 = vld [vmem:[%s8] sm:$0x1]
        %v1101 = vperm.slane %v1099, 0
        %v1103 = vmul.f32 %v1098, %v1101
        %v1104 = vld [vmem:[%s9] sm:$0x1]
        %v1106 = vperm.slane %v1104, 0
        %v1108 = vadd.f32 %v1103, %v1106
        %v1109 = vpack.c.bf16 %v1108, %v1108
        %1110 = vst [vmem:[%s466] sm:$0xf] %v1109
        %p1111 = scmp.lt.s32.totalorder %s27, 1
        %s1112 = scalar_select %p1111, %s27, 1
        %p1113 = scmp.lt.s32.totalorder %s28, 0
        %s1114 = scalar_select %p1113, %s28, 0
        %s1115 = sadd.s32 %s1114, %s1112
        %s1116 = smul.addr %s1115, 4
        %s1117 = scalar_lea.vmem %s10, %s1116
        // Predicated region
        $region73: #{_lambda_.11} parent=59 // pred_check
          %p1118 = pneg %p282
        $region74: #{_lambda_.11} parent=59 // pred_check_branch
          %1120 = sbr.rel (%p1118) target = $region76
        $region75: #{_lambda_.11} parent=59 // pred_region
          _
        $region76: #{_lambda_.11} parent=59 // pred_fallthru
          _
      $region60: #{_lambda_.11} parent=5 // pred_fallthru
        _
      %p1121 = scmp.le.s32.totalorder 2, %s18
      // Predicated region
      $region77: #{_lambda_.11} parent=5 // pred_check
        %p1122 = pneg %p1121
      $region78: #{_lambda_.11} parent=5 // pred_check_branch
        %1124 = sbr.rel (%p1122) target = $region80
      $region79: #{_lambda_.11} parent=5 // pred_region
        %s1125 = ssub.s32 %s18, 2
        // Predicated region
        $region81: #{_lambda_.11} parent=79 // pred_check
          %p1126 = pneg %p288
        $region82: #{_lambda_.11} parent=79 // pred_check_branch
          %1128 = sbr.rel (%p1126) target = $region84
        $region83: #{_lambda_.11} parent=79 // pred_region
          %p1129 = scmp.lt.s32.totalorder %s29, 1
          %s1130 = scalar_select %p1129, %s29, 1
          %p1131 = scmp.lt.s32.totalorder %s30, 0
          %s1132 = scalar_select %p1131, %s30, 0
          %s1133 = sadd.s32 %s1132, %s1130
          %s1134 = smul.addr %s1133, 4
          %s1135 = scalar_lea.vmem %s10, %s1134
        $region84: #{_lambda_.11} parent=79 // pred_fallthru
          _
      $region80: #{_lambda_.11} parent=5 // pred_fallthru
        _
    $region6: #{_lambda_.11} parent=1 // loop_footer
      %s22 = sadd.s32 1, %s18
    $region7: #{_lambda_.11} parent=1 // loop_footer_branch
      %17 = sbr.rel target = $region3
    $region8: #{_lambda_.11} parent=1 // loop_exit
      _
    %1136 = vsyncpa [#allocation4], 1
    %s1137 = scalar_lea.sflag [#allocation4], 1
    %1138 = vsyncpa %s1137, 1
    %1139 = vsyncpa [#allocation6], 1

// kernel: _lambda_.21
$region0: #{_lambda_.21}
  #allocation0 [shape = 'u32[]', space=smem, size = 0x4, offset = 0x4, fixed_abs, tag = 'smem constant byte address 0x4 - core index']
  #allocation1 [shape = 'u32[72,128]{1,0:T(1,128)}', space=vmem, size = 0x9000, scoped, tag = 'internal scratch']
  %s0 = inlined_call_operand.vmem [shape: bf16[16,128], index: 0, kind: input, shape index: {}]
  %s1 = inlined_call_operand.vmem [shape: bf16[128,384], index: 1, kind: input, shape index: {}]
  %s2 = inlined_call_operand.hbm [shape: f32[16,384], index: 2, kind: output, shape index: {}]
  %s3 = sld [smem:[#allocation0]]
  $region18: #{_lambda_.21} parent=0
    _
  %s5 = ssub.s32 1, %s3
  %s6 = scalar_select 0, %s5, %s3
  $region1: #{_lambda_.21} parent=0
    #allocation2 [shape = 'u8[24576]{0}', space=vmem, size = 0x6000, scoped, tag = 'output window, operand 0, single buffered']
    #allocation3 [shape = 's32[1]{0}', space=sflag, size = 0x4, scoped, tag = 'scoped memory for _lambda_.21']
    %7 = vsyncpa [#allocation3], 0
    // Predicated region
    $region2: #{_lambda_.21} parent=1 // pred_check
      _
    $region3: #{_lambda_.21} parent=1 // pred_check_branch
      %9 = sbr.rel (0) target = $region5
    $region4: #{_lambda_.21} parent=1 // pred_region
      _
    $region5: #{_lambda_.21} parent=1 // pred_fallthru
      _
    // Predicated region
    $region6: #{_lambda_.21} parent=1 // pred_check
      _
    $region7: #{_lambda_.21} parent=1 // pred_check_branch
      %11 = sbr.rel (0) target = $region9
    $region8: #{_lambda_.21} parent=1 // pred_region
      _
    $region9: #{_lambda_.21} parent=1 // pred_fallthru
      _
    %v12 = vld [vmem:[%s0] sm:$0xf]
    %v13 = vld [vmem:[%s0 + $0x4] sm:$0xf]
    %v14 = vld [vmem:[%s1] sm:$0xff]
    %v15 = vld [vmem:[%s1 + $0x8] sm:$0xf]
    %v16 = vld [vmem:[%s1 + $0xc] sm:$0xff]
    %v17 = vld [vmem:[%s1 + $0x14] sm:$0xf]
    %v18 = vld [vmem:[%s1 + $0x18] sm:$0xff]
    %v19 = vld [vmem:[%s1 + $0x20] sm:$0xf]
    %v20 = vld [vmem:[%s1 + $0x24] sm:$0xff]
    %v21 = vld [vmem:[%s1 + $0x2c] sm:$0xf]
    %v22 = vld [vmem:[%s1 + $0x30] sm:$0xff]
    %v23 = vld [vmem:[%s1 + $0x38] sm:$0xf]
    %v24 = vld [vmem:[%s1 + $0x3c] sm:$0xff]
    %v25 = vld [vmem:[%s1 + $0x44] sm:$0xf]
    %v26 = vld [vmem:[%s1 + $0x48] sm:$0xff]
    %v27 = vld [vmem:[%s1 + $0x50] sm:$0xf]
    %v28 = vld [vmem:[%s1 + $0x54] sm:$0xff]
    %v29 = vld [vmem:[%s1 + $0x5c] sm:$0xf]
    %v30 = vld [vmem:[%s1 + $0x60] sm:$0xff]
    %v31 = vld [vmem:[%s1 + $0x68] sm:$0xf]
    %v32 = vld [vmem:[%s1 + $0x6c] sm:$0xff]
    %v33 = vld [vmem:[%s1 + $0x74] sm:$0xf]
    %v34 = vld [vmem:[%s1 + $0x78] sm:$0xff]
    %v35 = vld [vmem:[%s1 + $0x80] sm:$0xf]
    %v36 = vld [vmem:[%s1 + $0x84] sm:$0xff]
    %v37 = vld [vmem:[%s1 + $0x8c] sm:$0xf]
    %v38 = vld [vmem:[%s1 + $0x90] sm:$0xff]
    %v39 = vld [vmem:[%s1 + $0x98] sm:$0xf]
    %v40 = vld [vmem:[%s1 + $0x9c] sm:$0xff]
    %v41 = vld [vmem:[%s1 + $0xa4] sm:$0xf]
    %v42 = vld [vmem:[%s1 + $0xa8] sm:$0xff]
    %v43 = vld [vmem:[%s1 + $0xb0] sm:$0xf]
    %v44 = vld [vmem:[%s1 + $0xb4] sm:$0xff]
    %v45 = vld [vmem:[%s1 + $0xbc] sm:$0xf]
    %v48 = vunpack.c.l.b16 %v12
    %v49 = vunpack.c.l.b16 %v13
    %v50 = vpack.c.b16 %v49, %v48
    %v84 = vunpack.c.l.b16 %v14
    %v85 = vunpack.c.h.b16 %v14
    %v86 = vunpack.c.l.b16 %v15
    %v87 = vunpack.c.l.b16 %v16
    %v88 = vunpack.c.h.b16 %v16
    %v89 = vunpack.c.l.b16 %v17
    %v90 = vunpack.c.l.b16 %v18
    %v91 = vunpack.c.h.b16 %v18
    %v92 = vunpack.c.l.b16 %v19
    %v93 = vunpack.c.l.b16 %v20
    %v94 = vunpack.c.h.b16 %v20
    %v95 = vunpack.c.l.b16 %v21
    %v96 = vunpack.c.l.b16 %v22
    %v97 = vunpack.c.h.b16 %v22
    %v98 = vunpack.c.l.b16 %v23
    %v99 = vunpack.c.l.b16 %v24
    %v100 = vunpack.c.h.b16 %v24
    %v101 = vunpack.c.l.b16 %v25
    %v102 = vunpack.c.l.b16 %v26
    %v103 = vunpack.c.h.b16 %v26
    %v104 = vunpack.c.l.b16 %v27
    %v105 = vunpack.c.l.b16 %v28
    %v106 = vunpack.c.h.b16 %v28
    %v107 = vunpack.c.l.b16 %v29
    %v108 = vunpack.c.l.b16 %v30
    %v109 = vunpack.c.h.b16 %v30
    %v110 = vunpack.c.l.b16 %v31
    %v111 = vunpack.c.l.b16 %v32
    %v112 = vunpack.c.h.b16 %v32
    %v113 = vunpack.c.l.b16 %v33
    %v114 = vunpack.c.l.b16 %v34
    %v115 = vunpack.c.h.b16 %v34
    %v116 = vunpack.c.l.b16 %v35
    %v117 = vunpack.c.l.b16 %v36
    %v118 = vunpack.c.h.b16 %v36
    %v119 = vunpack.c.l.b16 %v37
    %v120 = vunpack.c.l.b16 %v38
    %v121 = vunpack.c.h.b16 %v38
    %v122 = vunpack.c.l.b16 %v39
    %v123 = vunpack.c.l.b16 %v40
    %v124 = vunpack.c.h.b16 %v40
    %v125 = vunpack.c.l.b16 %v41
    %v126 = vunpack.c.l.b16 %v42
    %v127 = vunpack.c.h.b16 %v42
    %v128 = vunpack.c.l.b16 %v43
    %v129 = vunpack.c.l.b16 %v44
    %v130 = vunpack.c.h.b16 %v44
    %v131 = vunpack.c.l.b16 %v45
    %v132 = vpack.c.b16 %v87, %v84
    %v133 = vpack.c.b16 %v88, %v85
    %v134 = vpack.c.b16 %v89, %v86
    %v135 = vpack.c.b16 %v93, %v90
    %v136 = vpack.c.b16 %v94, %v91
    %v137 = vpack.c.b16 %v95, %v92
    %v138 = vpack.c.b16 %v99, %v96
    %v139 = vpack.c.b16 %v100, %v97
    %v140 = vpack.c.b16 %v101, %v98
    %v141 = vpack.c.b16 %v105, %v102
    %v142 = vpack.c.b16 %v106, %v103
    %v143 = vpack.c.b16 %v107, %v104
    %v144 = vpack.c.b16 %v111, %v108
    %v145 = vpack.c.b16 %v112, %v109
    %v146 = vpack.c.b16 %v113, %v110
    %v147 = vpack.c.b16 %v117, %v114
    %v148 = vpack.c.b16 %v118, %v115
    %v149 = vpack.c.b16 %v119, %v116
    %v150 = vpack.c.b16 %v123, %v120
    %v151 = vpack.c.b16 %v124, %v121
    %v152 = vpack.c.b16 %v125, %v122
    %v153 = vpack.c.b16 %v129, %v126
    %v154 = vpack.c.b16 %v130, %v127
    %v155 = vpack.c.b16 %v131, %v128
    %180 = vmatpush.bf16.msra.mxu0 %v153
    %181 = vmatpush.bf16.msra.mxu0 %v150
    %182 = vmatpush.bf16.msra.mxu0 %v147
    %183 = vmatpush.bf16.msra.mxu0 %v144
    %184 = vmatpush.bf16.msra.mxu0 %v141
    %185 = vmatpush.bf16.msra.mxu0 %v138
    %186 = vmatpush.bf16.msra.mxu0 %v135
    %187 = vmatpush.bf16.msra.mxu0 %v132
    %188 = vmatmul.bf16.gmra.mxu0 %v50
    %v189 = vpop.f32.mrf.mxu0
    %v190 = vadd.f32 0.0, %v189
    %v191 = vpop.f32.mrf.mxu0
    %v192 = vadd.f32 0.0, %v191
    %193 = vdwg.mxu0
    %194 = vmatpush.bf16.msra.mxu0 %v154
    %195 = vmatpush.bf16.msra.mxu0 %v151
    %196 = vmatpush.bf16.msra.mxu0 %v148
    %197 = vmatpush.bf16.msra.mxu0 %v145
    %198 = vmatpush.bf16.msra.mxu0 %v142
    %199 = vmatpush.bf16.msra.mxu0 %v139
    %200 = vmatpush.bf16.msra.mxu0 %v136
    %201 = vmatpush.bf16.msra.mxu0 %v133
    %202 = vmatmul.bf16.gmra.mxu0 %v50
    %v203 = vpop.f32.mrf.mxu0
    %v204 = vadd.f32 0.0, %v203
    %v205 = vpop.f32.mrf.mxu0
    %v206 = vadd.f32 0.0, %v205
    %207 = vdwg.mxu0
    %208 = vmatpush.bf16.msra.mxu0 %v155
    %209 = vmatpush.bf16.msra.mxu0 %v152
    %210 = vmatpush.bf16.msra.mxu0 %v149
    %211 = vmatpush.bf16.msra.mxu0 %v146
    %212 = vmatpush.bf16.msra.mxu0 %v143
    %213 = vmatpush.bf16.msra.mxu0 %v140
    %214 = vmatpush.bf16.msra.mxu0 %v137
    %215 = vmatpush.bf16.msra.mxu0 %v134
    %216 = vmatmul.bf16.gmra.mxu0 %v50
    %v217 = vpop.f32.mrf.mxu0
    %v218 = vadd.f32 0.0, %v217
    %v219 = vpop.f32.mrf.mxu0
    %v220 = vadd.f32 0.0, %v219
    %221 = vdwg.mxu0
    %222 = vst [vmem:[#allocation2] sm:$0xff] %v190
    %223 = vst [vmem:[#allocation2 + $0x8] sm:$0xff] %v204
    %224 = vst [vmem:[#allocation2 + $0x10] sm:$0xff] %v218
    %225 = vst [vmem:[#allocation2 + $0x18] sm:$0xff] %v192
    %226 = vst [vmem:[#allocation2 + $0x20] sm:$0xff] %v206
    %227 = vst [vmem:[#allocation2 + $0x28] sm:$0xff] %v220
    // Predicated region
    $region10: #{_lambda_.21} parent=1 // pred_check
      _
    $region11: #{_lambda_.21} parent=1 // pred_check_branch
      %229 = sbr.rel (0) target = $region13
    $region12: #{_lambda_.21} parent=1 // pred_region
      %231 = vsyncadd [#allocation3], 0
      %s232 = sshll.u32 [#allocation2], 4
      %s233 = int_to_ptr.vmem [resolvable:$true] %s232
      %s234 = sshll.u32 %s2, 4
      %s235 = int_to_ptr.hbm [resolvable:$true] %s234
      %240 = dma.vmem_to_hbm [thread:$0]  %s233, 768, %s235, [#allocation3], 384, 384, 24
    $region13: #{_lambda_.21} parent=1 // pred_fallthru
      _
    // Predicated region
    $region14: #{_lambda_.21} parent=1 // pred_check
      _
    $region15: #{_lambda_.21} parent=1 // pred_check_branch
      %242 = sbr.rel (0) target = $region17
    $region16: #{_lambda_.21} parent=1 // pred_region
      %244 = dma.done [#allocation3], 768
    $region17: #{_lambda_.21} parent=1 // pred_fallthru
      _
    %245 = vsyncpa [#allocation3], 1

// kernel: _lambda_.18
$region0: #{_lambda_.18}
  #allocation0 [shape = 'u32[]', space=smem, size = 0x4, offset = 0x4, fixed_abs, tag = 'smem constant byte address 0x4 - core index']
  #allocation1 [shape = 'u32[72,128]{1,0:T(1,128)}', space=vmem, size = 0x9000, scoped, tag = 'internal scratch']
  #allocation2 [shape = 'f32[8,128]{1,0:T(8,128)}', space=vmem, size = 0x1000, scoped, tag = 'scratch operand']
  %s0 = inlined_call_operand.vmem [shape: bf16[2,8,128], index: 0, kind: input, shape index: {}, may-alias: {0,1}]
  %s1 = inlined_call_operand.vmem [shape: bf16[2,8,128], index: 1, kind: input, shape index: {}, may-alias: {0,1}]
  %s2 = inlined_call_operand.vmem [shape: s32[2,1,8], index: 2, kind: input, shape index: {}]
  %s3 = inlined_call_operand.hbm [shape: bf16[128,128], index: 3, kind: input, shape index: {}]
  %s4 = inlined_call_operand.hbm [shape: bf16[128,128], index: 4, kind: input, shape index: {}]
  %s5 = inlined_call_operand.hbm [shape: bf16[128,128], index: 5, kind: input, shape index: {}]
  %s6 = inlined_call_operand.hbm [shape: bf16[128,128], index: 6, kind: input, shape index: {}]
  %s7 = inlined_call_operand.vmem [shape: f32[1,128], index: 7, kind: input, shape index: {}]
  %s8 = inlined_call_operand.vmem [shape: f32[1,128], index: 8, kind: input, shape index: {}]
  %s9 = inlined_call_operand.vmem [shape: f32[1,128], index: 9, kind: input, shape index: {}]
  %s10 = inlined_call_operand.vmem [shape: bf16[2,8,128], index: 10, kind: output, shape index: {}]
  %s11 = sld [smem:[#allocation0]]
  $region89: #{_lambda_.18} parent=0
    _
  %s13 = ssub.s32 1, %s11
  %s14 = scalar_select 0, %s13, %s11
  $region1: #{_lambda_.18} parent=0
    #allocation3 [shape = 'u8[32768]{0}', space=vmem, size = 0x8000, scoped, tag = 'input window, operand 3, single buffered']
    #allocation4 [shape = 's32[2]{0}', space=sflag, size = 0x8, scoped, tag = 'scoped memory for _lambda_.18']
    #allocation5 [shape = 'u8[32768]{0}', space=vmem, size = 0x8000, scoped, tag = 'input window, operand 4, single buffered']
    #allocation6 [shape = 's32[1]{0}', space=sflag, size = 0x4, scoped, tag = 'scoped memory for _lambda_.18']
    #allocation7 [shape = 'u8[32768]{0}', space=vmem, size = 0x8000, scoped, tag = 'input window, operand 5, single buffered']
    #allocation8 [shape = 'u8[32768]{0}', space=vmem, size = 0x8000, scoped, tag = 'input window, operand 6, single buffered']
    #allocation9 [shape = 's32[1]{0}', space=sflag, size = 0x4, scoped, tag = 'scoped memory for _lambda_.18']
    %15 = vsyncpa [#allocation4], 0
    %16 = vsyncpa [#allocation6], 0
    %17 = vsyncpa [#allocation9], 0
    loop: start=0, step=1, limit=4
    $region2: #{_lambda_.18} parent=1 // loop_pre_header
      _
    $region3: #{_lambda_.18} parent=1 // loop_header
      %s19 = sphi 0, %s23
      %p20 = scmp.ge.s32.totalorder %s19, 4
      %s26 = sphi 0, %s38
      %s27 = sphi 0, %s34
      %s28 = sphi 0, %s26
      %s29 = sphi 0, %s27
      %s30 = sphi 0, %s28
      %s31 = sphi 0, %s29
      %s43 = sphi 0, %s45
      %s46 = sphi 0, %s43
      %s47 = sphi 0, %s46
      %s63 = sphi 0, %s47
      %s69 = sphi 0, %s71
      %s72 = sphi 0, %s69
      %s73 = sphi 0, %s72
      %s89 = sphi 0, %s73
      %s95 = sphi 0, %s97
      %s98 = sphi 0, %s95
      %s99 = sphi 0, %s98
      %s115 = sphi 0, %s99
      %s119 = sphi 0, %s119
      %s121 = sphi 0, %s119
      %s122 = sphi 0, %s121
      %s136 = sphi 0, %s122
      %s140 = sphi 0, %s140
      %s142 = sphi 0, %s140
      %s143 = sphi 0, %s142
      %s157 = sphi 0, %s143
      %s161 = sphi 0, %s161
      %s163 = sphi 0, %s161
      %s164 = sphi 0, %s163
      %s178 = sphi 0, %s164
      %s182 = sphi 0, %s182
      %s184 = sphi 0, %s182
      %s185 = sphi 0, %s184
      %s199 = sphi 0, %s185
      %s203 = sphi 0, %s203
      %s205 = sphi 0, %s203
      %s206 = sphi 0, %s205
      %s220 = sphi 0, %s206
      %s224 = sphi 0, %s224
      %s226 = sphi 0, %s224
      %s227 = sphi 0, %s226
      %s241 = sphi 0, %s227
      %s245 = sphi 0, %s245
      %s247 = sphi 0, %s245
      %s248 = sphi 0, %s247
      %s262 = sphi 0, %s248
      %s270 = sphi 0, %s272
      %s273 = sphi 0, %s270
      %s274 = sphi 0, %s273
      %s290 = sphi 0, %s274
    $region4: #{_lambda_.18} parent=1 // loop_header_branch
      %22 = sbr.rel (%p20) target = $region8
    $region5: #{_lambda_.18} parent=1 // loop_body
      %s24 = ssub.s32 %s19, 1
      %s25 = ssub.s32 %s19, 2
      %s32 = sadd.s32 1, %s27
      %p33 = scmp.ge.s32.totalorder %s32, 1
      %s34 = scalar_select %p33, 0, %s32
      %s35 = sadd.s32 1, %s26
      %s36 = scalar_select %p33, %s35, %s26
      %p37 = scmp.ge.s32.totalorder %s36, 2
      %s38 = scalar_select %p37, 0, %s36
      %s39 = ssub.s32 %s26, %s38
      %s40 = ssub.s32 %s27, %s34
      %s41 = sor.u32 %s39, %s40
      %p42 = scmp.eq.s32.totalorder %s41, 0
      %s44 = sadd.s32 %s43, 1
      %s45 = scalar_select %p42, %s43, %s44
      %p48 = pneg %p42
      %p49 = scmp.eq.s32.totalorder %s19, 1
      %p50 = por %p48, %p49
      %p51 = scmp.ne.s32.totalorder %s43, %s46
      %p52 = scmp.eq.s32.totalorder %s19, 0
      %p53 = por %p51, %p52
      %p54 = scmp.ne.s32.totalorder %s43, %s46
      %p55 = scmp.eq.s32.totalorder %s24, 1
      %p56 = por %p54, %p55
      %p57 = scmp.ne.s32.totalorder %s46, %s47
      %p58 = scmp.eq.s32.totalorder %s24, 0
      %p59 = por %p57, %p58
      %p60 = scmp.ne.s32.totalorder %s46, %s47
      %p61 = scmp.eq.s32.totalorder %s25, 1
      %p62 = por %p60, %p61
      %p64 = scmp.ne.s32.totalorder %s47, %s63
      %p65 = scmp.eq.s32.totalorder %s25, 0
      %p66 = por %p64, %p65
      %s67 = ssub.s32 %s26, %s38
      %p68 = scmp.eq.s32.totalorder %s67, 0
      %s70 = sadd.s32 %s69, 1
      %s71 = scalar_select %p68, %s69, %s70
      %p74 = pneg %p68
      %p75 = scmp.eq.s32.totalorder %s19, 1
      %p76 = por %p74, %p75
      %p77 = scmp.ne.s32.totalorder %s69, %s72
      %p78 = scmp.eq.s32.totalorder %s19, 0
      %p79 = por %p77, %p78
      %p80 = scmp.ne.s32.totalorder %s69, %s72
      %p81 = scmp.eq.s32.totalorder %s24, 1
      %p82 = por %p80, %p81
      %p83 = scmp.ne.s32.totalorder %s72, %s73
      %p84 = scmp.eq.s32.totalorder %s24, 0
      %p85 = por %p83, %p84
      %p86 = scmp.ne.s32.totalorder %s72, %s73
      %p87 = scmp.eq.s32.totalorder %s25, 1
      %p88 = por %p86, %p87
      %p90 = scmp.ne.s32.totalorder %s73, %s89
      %p91 = scmp.eq.s32.totalorder %s25, 0
      %p92 = por %p90, %p91
      %s93 = ssub.s32 %s26, %s38
      %p94 = scmp.eq.s32.totalorder %s93, 0
      %s96 = sadd.s32 %s95, 1
      %s97 = scalar_select %p94, %s95, %s96
      %p100 = pneg %p94
      %p101 = scmp.eq.s32.totalorder %s19, 1
      %p102 = por %p100, %p101
      %p103 = scmp.ne.s32.totalorder %s95, %s98
      %p104 = scmp.eq.s32.totalorder %s19, 0
      %p105 = por %p103, %p104
      %p106 = scmp.ne.s32.totalorder %s95, %s98
      %p107 = scmp.eq.s32.totalorder %s24, 1
      %p108 = por %p106, %p107
      %p109 = scmp.ne.s32.totalorder %s98, %s99
      %p110 = scmp.eq.s32.totalorder %s24, 0
      %p111 = por %p109, %p110
      %p112 = scmp.ne.s32.totalorder %s98, %s99
      %p113 = scmp.eq.s32.totalorder %s25, 1
      %p114 = por %p112, %p113
      %p116 = scmp.ne.s32.totalorder %s99, %s115
      %p117 = scmp.eq.s32.totalorder %s25, 0
      %p118 = por %p116, %p117
      %s120 = sadd.s32 %s119, 1
      %p123 = scmp.eq.s32.totalorder %s19, 1
      %p124 = scmp.ne.s32.totalorder %s119, %s121
      %p125 = scmp.eq.s32.totalorder %s19, 0
      %p126 = por %p124, %p125
      %p127 = scmp.ne.s32.totalorder %s119, %s121
      %p128 = scmp.eq.s32.totalorder %s24, 1
      %p129 = por %p127, %p128
      %p130 = scmp.ne.s32.totalorder %s121, %s122
      %p131 = scmp.eq.s32.totalorder %s24, 0
      %p132 = por %p130, %p131
      %p133 = scmp.ne.s32.totalorder %s121, %s122
      %p134 = scmp.eq.s32.totalorder %s25, 1
      %p135 = por %p133, %p134
      %p137 = scmp.ne.s32.totalorder %s122, %s136
      %p138 = scmp.eq.s32.totalorder %s25, 0
      %p139 = por %p137, %p138
      %s141 = sadd.s32 %s140, 1
      %p144 = scmp.eq.s32.totalorder %s19, 1
      %p145 = scmp.ne.s32.totalorder %s140, %s142
      %p146 = scmp.eq.s32.totalorder %s19, 0
      %p147 = por %p145, %p146
      %p148 = scmp.ne.s32.totalorder %s140, %s142
      %p149 = scmp.eq.s32.totalorder %s24, 1
      %p150 = por %p148, %p149
      %p151 = scmp.ne.s32.totalorder %s142, %s143
      %p152 = scmp.eq.s32.totalorder %s24, 0
      %p153 = por %p151, %p152
      %p154 = scmp.ne.s32.totalorder %s142, %s143
      %p155 = scmp.eq.s32.totalorder %s25, 1
      %p156 = por %p154, %p155
      %p158 = scmp.ne.s32.totalorder %s143, %s157
      %p159 = scmp.eq.s32.totalorder %s25, 0
      %p160 = por %p158, %p159
      %s162 = sadd.s32 %s161, 1
      %p165 = scmp.eq.s32.totalorder %s19, 1
      %p166 = scmp.ne.s32.totalorder %s161, %s163
      %p167 = scmp.eq.s32.totalorder %s19, 0
      %p168 = por %p166, %p167
      %p169 = scmp.ne.s32.totalorder %s161, %s163
      %p170 = scmp.eq.s32.totalorder %s24, 1
      %p171 = por %p169, %p170
      %p172 = scmp.ne.s32.totalorder %s163, %s164
      %p173 = scmp.eq.s32.totalorder %s24, 0
      %p174 = por %p172, %p173
      %p175 = scmp.ne.s32.totalorder %s163, %s164
      %p176 = scmp.eq.s32.totalorder %s25, 1
      %p177 = por %p175, %p176
      %p179 = scmp.ne.s32.totalorder %s164, %s178
      %p180 = scmp.eq.s32.totalorder %s25, 0
      %p181 = por %p179, %p180
      %s183 = sadd.s32 %s182, 1
      %p186 = scmp.eq.s32.totalorder %s19, 1
      %p187 = scmp.ne.s32.totalorder %s182, %s184
      %p188 = scmp.eq.s32.totalorder %s19, 0
      %p189 = por %p187, %p188
      %p190 = scmp.ne.s32.totalorder %s182, %s184
      %p191 = scmp.eq.s32.totalorder %s24, 1
      %p192 = por %p190, %p191
      %p193 = scmp.ne.s32.totalorder %s184, %s185
      %p194 = scmp.eq.s32.totalorder %s24, 0
      %p195 = por %p193, %p194
      %p196 = scmp.ne.s32.totalorder %s184, %s185
      %p197 = scmp.eq.s32.totalorder %s25, 1
      %p198 = por %p196, %p197
      %p200 = scmp.ne.s32.totalorder %s185, %s199
      %p201 = scmp.eq.s32.totalorder %s25, 0
      %p202 = por %p200, %p201
      %s204 = sadd.s32 %s203, 1
      %p207 = scmp.eq.s32.totalorder %s19, 1
      %p208 = scmp.ne.s32.totalorder %s203, %s205
      %p209 = scmp.eq.s32.totalorder %s19, 0
      %p210 = por %p208, %p209
      %p211 = scmp.ne.s32.totalorder %s203, %s205
      %p212 = scmp.eq.s32.totalorder %s24, 1
      %p213 = por %p211, %p212
      %p214 = scmp.ne.s32.totalorder %s205, %s206
      %p215 = scmp.eq.s32.totalorder %s24, 0
      %p216 = por %p214, %p215
      %p217 = scmp.ne.s32.totalorder %s205, %s206
      %p218 = scmp.eq.s32.totalorder %s25, 1
      %p219 = por %p217, %p218
      %p221 = scmp.ne.s32.totalorder %s206, %s220
      %p222 = scmp.eq.s32.totalorder %s25, 0
      %p223 = por %p221, %p222
      %s225 = sadd.s32 %s224, 1
      %p228 = scmp.eq.s32.totalorder %s19, 1
      %p229 = scmp.ne.s32.totalorder %s224, %s226
      %p230 = scmp.eq.s32.totalorder %s19, 0
      %p231 = por %p229, %p230
      %p232 = scmp.ne.s32.totalorder %s224, %s226
      %p233 = scmp.eq.s32.totalorder %s24, 1
      %p234 = por %p232, %p233
      %p235 = scmp.ne.s32.totalorder %s226, %s227
      %p236 = scmp.eq.s32.totalorder %s24, 0
      %p237 = por %p235, %p236
      %p238 = scmp.ne.s32.totalorder %s226, %s227
      %p239 = scmp.eq.s32.totalorder %s25, 1
      %p240 = por %p238, %p239
      %p242 = scmp.ne.s32.totalorder %s227, %s241
      %p243 = scmp.eq.s32.totalorder %s25, 0
      %p244 = por %p242, %p243
      %s246 = sadd.s32 %s245, 1
      %p249 = scmp.eq.s32.totalorder %s19, 1
      %p250 = scmp.ne.s32.totalorder %s245, %s247
      %p251 = scmp.eq.s32.totalorder %s19, 0
      %p252 = por %p250, %p251
      %p253 = scmp.ne.s32.totalorder %s245, %s247
      %p254 = scmp.eq.s32.totalorder %s24, 1
      %p255 = por %p253, %p254
      %p256 = scmp.ne.s32.totalorder %s247, %s248
      %p257 = scmp.eq.s32.totalorder %s24, 0
      %p258 = por %p256, %p257
      %p259 = scmp.ne.s32.totalorder %s247, %s248
      %p260 = scmp.eq.s32.totalorder %s25, 1
      %p261 = por %p259, %p260
      %p263 = scmp.ne.s32.totalorder %s248, %s262
      %p264 = scmp.eq.s32.totalorder %s25, 0
      %p265 = por %p263, %p264
      %s266 = ssub.s32 %s26, %s38
      %s267 = ssub.s32 %s27, %s34
      %s268 = sor.u32 %s266, %s267
      %p269 = scmp.eq.s32.totalorder %s268, 0
      %s271 = sadd.s32 %s270, 1
      %s272 = scalar_select %p269, %s270, %s271
      %p275 = pneg %p269
      %p276 = scmp.eq.s32.totalorder %s19, 1
      %p277 = por %p275, %p276
      %p278 = scmp.ne.s32.totalorder %s270, %s273
      %p279 = scmp.eq.s32.totalorder %s19, 0
      %p280 = por %p278, %p279
      %p281 = scmp.ne.s32.totalorder %s270, %s273
      %p282 = scmp.eq.s32.totalorder %s24, 1
      %p283 = por %p281, %p282
      %p284 = scmp.ne.s32.totalorder %s273, %s274
      %p285 = scmp.eq.s32.totalorder %s24, 0
      %p286 = por %p284, %p285
      %p287 = scmp.ne.s32.totalorder %s273, %s274
      %p288 = scmp.eq.s32.totalorder %s25, 1
      %p289 = por %p287, %p288
      %p291 = scmp.ne.s32.totalorder %s274, %s290
      %p292 = scmp.eq.s32.totalorder %s25, 0
      %p293 = por %p291, %p292
      %p294 = scmp.le.s32.totalorder 1, %s19
      %p295 = scmp.lt.s32.totalorder %s19, 3
      %p296 = pnand %p294, %p295
      %p297 = pneg %p296
      // Predicated region
      $region9: #{_lambda_.18} parent=5 // pred_check
        _
      $region10: #{_lambda_.18} parent=5 // pred_check_branch
        %299 = sbr.rel (%p296) target = $region12
      $region11: #{_lambda_.18} parent=5 // pred_region
        %s300 = ssub.s32 %s19, 1
        // Predicated region
        $region13: #{_lambda_.18} parent=11 // pred_check
          %p301 = pneg %p132
        $region14: #{_lambda_.18} parent=11 // pred_check_branch
          %303 = sbr.rel (%p301) target = $region16
        $region15: #{_lambda_.18} parent=11 // pred_region
          %305 = vsyncadd [#allocation4], 0
          %s306 = sshll.u32 %s3, 4
          %s307 = int_to_ptr.hbm [resolvable:$true] %s306
          %s308 = sshll.u32 [#allocation3], 4
          %s309 = int_to_ptr.vmem [resolvable:$true] %s308
          %314 = dma.hbm_to_vmem [thread:$0]  %s307, 1024, %s309, [#allocation4], 64, 64, 4
        $region16: #{_lambda_.18} parent=11 // pred_fallthru
          _
        // Predicated region
        $region17: #{_lambda_.18} parent=11 // pred_check
          %p315 = pneg %p153
        $region18: #{_lambda_.18} parent=11 // pred_check_branch
          %317 = sbr.rel (%p315) target = $region20
        $region19: #{_lambda_.18} parent=11 // pred_region
          %319 = vsyncadd [#allocation6], 0
          %s320 = sshll.u32 %s4, 4
          %s321 = int_to_ptr.hbm [resolvable:$true] %s320
          %s322 = sshll.u32 [#allocation5], 4
          %s323 = int_to_ptr.vmem [resolvable:$true] %s322
          %328 = dma.hbm_to_vmem [thread:$0]  %s321, 1024, %s323, [#allocation6], 64, 64, 4
        $region20: #{_lambda_.18} parent=11 // pred_fallthru
          _
        // Predicated region
        $region21: #{_lambda_.18} parent=11 // pred_check
          %p329 = pneg %p174
        $region22: #{_lambda_.18} parent=11 // pred_check_branch
          %331 = sbr.rel (%p329) target = $region24
        $region23: #{_lambda_.18} parent=11 // pred_region
          %333 = vsyncadd [#allocation6], 0
          %s334 = sshll.u32 %s5, 4
          %s335 = int_to_ptr.hbm [resolvable:$true] %s334
          %s336 = sshll.u32 [#allocation7], 4
          %s337 = int_to_ptr.vmem [resolvable:$true] %s336
          %342 = dma.hbm_to_vmem [thread:$0]  %s335, 1024, %s337, [#allocation6], 64, 64, 4
        $region24: #{_lambda_.18} parent=11 // pred_fallthru
          _
        // Predicated region
        $region25: #{_lambda_.18} parent=11 // pred_check
          %p343 = pneg %p195
        $region26: #{_lambda_.18} parent=11 // pred_check_branch
          %345 = sbr.rel (%p343) target = $region28
        $region27: #{_lambda_.18} parent=11 // pred_region
          %347 = vsyncadd [#allocation9], 0
          %s348 = sshll.u32 %s6, 4
          %s349 = int_to_ptr.hbm [resolvable:$true] %s348
          %s350 = sshll.u32 [#allocation8], 4
          %s351 = int_to_ptr.vmem [resolvable:$true] %s350
          %356 = dma.hbm_to_vmem [thread:$0]  %s349, 1024, %s351, [#allocation9], 64, 64, 4
        $region28: #{_lambda_.18} parent=11 // pred_fallthru
          _
        // Predicated region
        $region29: #{_lambda_.18} parent=11 // pred_check
          %p357 = pneg %p216
        $region30: #{_lambda_.18} parent=11 // pred_check_branch
          %359 = sbr.rel (%p357) target = $region32
        $region31: #{_lambda_.18} parent=11 // pred_region
          _
        $region32: #{_lambda_.18} parent=11 // pred_fallthru
          _
        // Predicated region
        $region33: #{_lambda_.18} parent=11 // pred_check
          %p360 = pneg %p237
        $region34: #{_lambda_.18} parent=11 // pred_check_branch
          %362 = sbr.rel (%p360) target = $region36
        $region35: #{_lambda_.18} parent=11 // pred_region
          _
        $region36: #{_lambda_.18} parent=11 // pred_fallthru
          _
        // Predicated region
        $region37: #{_lambda_.18} parent=11 // pred_check
          %p363 = pneg %p258
        $region38: #{_lambda_.18} parent=11 // pred_check_branch
          %365 = sbr.rel (%p363) target = $region40
        $region39: #{_lambda_.18} parent=11 // pred_region
          _
        $region40: #{_lambda_.18} parent=11 // pred_fallthru
          _
      $region12: #{_lambda_.18} parent=5 // pred_fallthru
        _
      %p366 = scmp.lt.s32.totalorder %s19, 2
      // Predicated region
      $region41: #{_lambda_.18} parent=5 // pred_check
        %p367 = pneg %p366
      $region42: #{_lambda_.18} parent=5 // pred_check_branch
        %369 = sbr.rel (%p367) target = $region44
      $region43: #{_lambda_.18} parent=5 // pred_region
        // Predicated region
        $region45: #{_lambda_.18} parent=43 // pred_check
          %p370 = pneg %p53
        $region46: #{_lambda_.18} parent=43 // pred_check_branch
          %372 = sbr.rel (%p370) target = $region48
        $region47: #{_lambda_.18} parent=43 // pred_region
          %p373 = scmp.lt.s32.totalorder %s26, 1
          %s374 = scalar_select %p373, %s26, 1
          %p375 = scmp.lt.s32.totalorder %s27, 0
          %s376 = scalar_select %p375, %s27, 0
          %s377 = sadd.s32 %s376, %s374
          %s378 = smul.addr %s377, 4
          %s379 = scalar_lea.vmem %s0, %s378
        $region48: #{_lambda_.18} parent=43 // pred_fallthru
          _
        // Predicated region
        $region49: #{_lambda_.18} parent=43 // pred_check
          %p380 = pneg %p79
        $region50: #{_lambda_.18} parent=43 // pred_check_branch
          %382 = sbr.rel (%p380) target = $region52
        $region51: #{_lambda_.18} parent=43 // pred_region
          %p383 = scmp.lt.s32.totalorder %s26, 1
          %s384 = scalar_select %p383, %s26, 1
          %s385 = smul.addr %s384, 4
          %s386 = scalar_lea.vmem %s1, %s385
        $region52: #{_lambda_.18} parent=43 // pred_fallthru
          _
        // Predicated region
        $region53: #{_lambda_.18} parent=43 // pred_check
          %p387 = pneg %p105
        $region54: #{_lambda_.18} parent=43 // pred_check_branch
          %389 = sbr.rel (%p387) target = $region56
        $region55: #{_lambda_.18} parent=43 // pred_region
          %p390 = scmp.lt.s32.totalorder %s26, 1
          %s391 = scalar_select %p390, %s26, 1
          %s392 = scalar_lea.vmem %s2, %s391
        $region56: #{_lambda_.18} parent=43 // pred_fallthru
          _
      $region44: #{_lambda_.18} parent=5 // pred_fallthru
        _
      %p393 = scmp.le.s32.totalorder 1, %s19
      %p394 = scmp.lt.s32.totalorder %s19, 3
      %p395 = pnand %p393, %p394
      %p396 = pneg %p395
      // Predicated region
      $region57: #{_lambda_.18} parent=5 // pred_check
        _
      $region58: #{_lambda_.18} parent=5 // pred_check_branch
        %398 = sbr.rel (%p395) target = $region60
      $region59: #{_lambda_.18} parent=5 // pred_region
        %s399 = ssub.s32 %s19, 1
        // Predicated region
        $region61: #{_lambda_.18} parent=59 // pred_check
          %p400 = pneg %p132
        $region62: #{_lambda_.18} parent=59 // pred_check_branch
          %402 = sbr.rel (%p400) target = $region64
        $region63: #{_lambda_.18} parent=59 // pred_region
          %404 = dma.done [#allocation4], 1024
        $region64: #{_lambda_.18} parent=59 // pred_fallthru
          _
        // Predicated region
        $region65: #{_lambda_.18} parent=59 // pred_check
          %p405 = pneg %p153
        $region66: #{_lambda_.18} parent=59 // pred_check_branch
          %407 = sbr.rel (%p405) target = $region68
        $region67: #{_lambda_.18} parent=59 // pred_region
          %409 = dma.done [#allocation6], 1024
        $region68: #{_lambda_.18} parent=59 // pred_fallthru
          _
        // Predicated region
        $region69: #{_lambda_.18} parent=59 // pred_check
          %p410 = pneg %p174
        $region70: #{_lambda_.18} parent=59 // pred_check_branch
          %412 = sbr.rel (%p410) target = $region72
        $region71: #{_lambda_.18} parent=59 // pred_region
          %414 = dma.done [#allocation6], 1024
        $region72: #{_lambda_.18} parent=59 // pred_fallthru
          _
        // Predicated region
        $region73: #{_lambda_.18} parent=59 // pred_check
          %p415 = pneg %p195
        $region74: #{_lambda_.18} parent=59 // pred_check_branch
          %417 = sbr.rel (%p415) target = $region76
        $region75: #{_lambda_.18} parent=59 // pred_region
          %419 = dma.done [#allocation9], 1024
        $region76: #{_lambda_.18} parent=59 // pred_fallthru
          _
        %p420 = scmp.lt.s32.totalorder %s28, 1
        %s421 = scalar_select %p420, %s28, 1
        %p422 = scmp.lt.s32.totalorder %s29, 0
        %s423 = scalar_select %p422, %s29, 0
        %s424 = sadd.s32 %s423, %s421
        %s425 = smul.addr %s424, 4
        %s426 = scalar_lea.vmem %s0, %s425
        %p427 = pneg %p59
        %p428 = pneg %p56
        %p429 = scmp.lt.s32.totalorder %s28, 1
        %s430 = scalar_select %p429, %s28, 1
        %s431 = smul.addr %s430, 4
        %s432 = scalar_lea.vmem %s1, %s431
        %p433 = pneg %p85
        %p434 = pneg %p82
        %p435 = scmp.lt.s32.totalorder %s28, 1
        %s436 = scalar_select %p435, %s28, 1
        %s437 = scalar_lea.vmem %s2, %s436
        %p438 = pneg %p111
        %p439 = pneg %p108
        %p440 = pneg %p132
        %p441 = pneg %p129
        %p442 = pneg %p153
        %p443 = pneg %p150
        %p444 = pneg %p174
        %p445 = pneg %p171
        %p446 = pneg %p195
        %p447 = pneg %p192
        %p448 = pneg %p216
        %p449 = pneg %p213
        %p450 = pneg %p237
        %p451 = pneg %p234
        %p452 = pneg %p258
        %p453 = pneg %p255
        %p454 = pneg %p286
        %p455 = pneg %p283
        %p456 = scmp.lt.s32.totalorder %s28, 1
        %s457 = scalar_select %p456, %s28, 1
        %p458 = scmp.lt.s32.totalorder %s29, 0
        %s459 = scalar_select %p458, %s29, 0
        %s460 = sadd.s32 %s459, %s457
        %s461 = smul.addr %s460, 4
        %s462 = scalar_lea.vmem %s10, %s461
        %p463 = scmp.lt.s32.totalorder %s28, 1
        %s464 = scalar_select %p463, %s28, 1
        %p465 = scmp.lt.s32.totalorder %s29, 0
        %s466 = scalar_select %p465, %s29, 0
        %s467 = sadd.s32 %s466, %s464
        %s468 = smul.addr %s467, 4
        %s469 = scalar_lea.vmem %s0, %s468
        %p470 = scmp.lt.s32.totalorder %s28, 1
        %s471 = scalar_select %p470, %s28, 1
        %s472 = smul.addr %s471, 4
        %s473 = scalar_lea.vmem %s1, %s472
        %p474 = scmp.lt.s32.totalorder %s28, 1
        %s475 = scalar_select %p474, %s28, 1
        %s476 = scalar_lea.vmem %s2, %s475
        %p477 = scmp.lt.s32.totalorder %s28, 1
        %s478 = scalar_select %p477, %s28, 1
        %p479 = scmp.lt.s32.totalorder %s29, 0
        %s480 = scalar_select %p479, %s29, 0
        %s481 = sadd.s32 %s480, %s478
        %s482 = smul.addr %s481, 4
        %s483 = scalar_lea.vmem %s10, %s482
        %v485 = vld [vmem:[%s469] sm:$0xf]
        %v486 = vld [vmem:[%s473] sm:$0xf]
        %v487 = vld [vmem:[#allocation3] sm:$0xf]
        %v488 = vld [vmem:[#allocation3 + $0x4] sm:$0xf]
        %v489 = vld [vmem:[#allocation3 + $0x8] sm:$0xf]
        %v490 = vld [vmem:[#allocation3 + $0xc] sm:$0xf]
        %v491 = vld [vmem:[#allocation3 + $0x10] sm:$0xf]
        %v492 = vld [vmem:[#allocation3 + $0x14] sm:$0xf]
        %v493 = vld [vmem:[#allocation3 + $0x18] sm:$0xf]
        %v494 = vld [vmem:[#allocation3 + $0x1c] sm:$0xf]
        %v495 = vld [vmem:[#allocation3 + $0x20] sm:$0xf]
        %v496 = vld [vmem:[#allocation3 + $0x24] sm:$0xf]
        %v497 = vld [vmem:[#allocation3 + $0x28] sm:$0xf]
        %v498 = vld [vmem:[#allocation3 + $0x2c] sm:$0xf]
        %v499 = vld [vmem:[#allocation3 + $0x30] sm:$0xf]
        %v500 = vld [vmem:[#allocation3 + $0x34] sm:$0xf]
        %v501 = vld [vmem:[#allocation3 + $0x38] sm:$0xf]
        %v502 = vld [vmem:[#allocation3 + $0x3c] sm:$0xf]
        %v519 = vunpack.c.l.b16 %v487
        %v520 = vunpack.c.l.b16 %v488
        %v521 = vunpack.c.l.b16 %v489
        %v522 = vunpack.c.l.b16 %v490
        %v523 = vunpack.c.l.b16 %v491
        %v524 = vunpack.c.l.b16 %v492
        %v525 = vunpack.c.l.b16 %v493
        %v526 = vunpack.c.l.b16 %v494
        %v527 = vunpack.c.l.b16 %v495
        %v528 = vunpack.c.l.b16 %v496
        %v529 = vunpack.c.l.b16 %v497
        %v530 = vunpack.c.l.b16 %v498
        %v531 = vunpack.c.l.b16 %v499
        %v532 = vunpack.c.l.b16 %v500
        %v533 = vunpack.c.l.b16 %v501
        %v534 = vunpack.c.l.b16 %v502
        %v535 = vpack.c.b16 %v520, %v519
        %v536 = vpack.c.b16 %v522, %v521
        %v537 = vpack.c.b16 %v524, %v523
        %v538 = vpack.c.b16 %v526, %v525
        %v539 = vpack.c.b16 %v528, %v527
        %v540 = vpack.c.b16 %v530, %v529
        %v541 = vpack.c.b16 %v532, %v531
        %v542 = vpack.c.b16 %v534, %v533
        %551 = vmatpush.bf16.msra.mxu0 %v542
        %552 = vmatpush.bf16.msra.mxu0 %v541
        %553 = vmatpush.bf16.msra.mxu0 %v540
        %554 = vmatpush.bf16.msra.mxu0 %v539
        %555 = vmatpush.bf16.msra.mxu0 %v538
        %556 = vmatpush.bf16.msra.mxu0 %v537
        %557 = vmatpush.bf16.msra.mxu0 %v536
        %558 = vmatpush.bf16.msra.mxu0 %v535
        %559 = vmatmul.bf16.gmra.mxu0 %v485
        %v560 = vpop.f32.mrf.mxu0
        %v561 = vadd.f32 0.0, %v560
        %v562 = vpop.f32.mrf.mxu0
        %563 = vdwg.mxu0
        %v564 = vmul.f32 %v561, 0.088388346
        %v565 = vpack.c.bf16 %v564, %v564
        %v566 = vld [vmem:[#allocation5] sm:$0xf]
        %v567 = vld [vmem:[#allocation5 + $0x4] sm:$0xf]
        %v568 = vld [vmem:[#allocation5 + $0x8] sm:$0xf]
        %v569 = vld [vmem:[#allocation5 + $0xc] sm:$0xf]
        %v570 = vld [vmem:[#allocation5 + $0x10] sm:$0xf]
        %v571 = vld [vmem:[#allocation5 + $0x14] sm:$0xf]
        %v572 = vld [vmem:[#allocation5 + $0x18] sm:$0xf]
        %v573 = vld [vmem:[#allocation5 + $0x1c] sm:$0xf]
        %v574 = vld [vmem:[#allocation5 + $0x20] sm:$0xf]
        %v575 = vld [vmem:[#allocation5 + $0x24] sm:$0xf]
        %v576 = vld [vmem:[#allocation5 + $0x28] sm:$0xf]
        %v577 = vld [vmem:[#allocation5 + $0x2c] sm:$0xf]
        %v578 = vld [vmem:[#allocation5 + $0x30] sm:$0xf]
        %v579 = vld [vmem:[#allocation5 + $0x34] sm:$0xf]
        %v580 = vld [vmem:[#allocation5 + $0x38] sm:$0xf]
        %v581 = vld [vmem:[#allocation5 + $0x3c] sm:$0xf]
        %v598 = vunpack.c.l.b16 %v566
        %v599 = vunpack.c.l.b16 %v567
        %v600 = vunpack.c.l.b16 %v568
        %v601 = vunpack.c.l.b16 %v569
        %v602 = vunpack.c.l.b16 %v570
        %v603 = vunpack.c.l.b16 %v571
        %v604 = vunpack.c.l.b16 %v572
        %v605 = vunpack.c.l.b16 %v573
        %v606 = vunpack.c.l.b16 %v574
        %v607 = vunpack.c.l.b16 %v575
        %v608 = vunpack.c.l.b16 %v576
        %v609 = vunpack.c.l.b16 %v577
        %v610 = vunpack.c.l.b16 %v578
        %v611 = vunpack.c.l.b16 %v579
        %v612 = vunpack.c.l.b16 %v580
        %v613 = vunpack.c.l.b16 %v581
        %v614 = vpack.c.b16 %v599, %v598
        %v615 = vpack.c.b16 %v601, %v600
        %v616 = vpack.c.b16 %v603, %v602
        %v617 = vpack.c.b16 %v605, %v604
        %v618 = vpack.c.b16 %v607, %v606
        %v619 = vpack.c.b16 %v609, %v608
        %v620 = vpack.c.b16 %v611, %v610
        %v621 = vpack.c.b16 %v613, %v612
        %630 = vmatpush.bf16.msra.mxu0 %v621
        %631 = vmatpush.bf16.msra.mxu0 %v620
        %632 = vmatpush.bf16.msra.mxu0 %v619
        %633 = vmatpush.bf16.msra.mxu0 %v618
        %634 = vmatpush.bf16.msra.mxu0 %v617
        %635 = vmatpush.bf16.msra.mxu0 %v616
        %636 = vmatpush.bf16.msra.mxu0 %v615
        %637 = vmatpush.bf16.msra.mxu0 %v614
        %638 = vmatmul.bf16.gmra.mxu0 %v486
        %v639 = vpop.f32.mrf.mxu0
        %v640 = vadd.f32 0.0, %v639
        %v641 = vpop.f32.mrf.mxu0
        %642 = vdwg.mxu0
        %v643 = vpack.c.bf16 %v640, %v640
        %v644 = vld [vmem:[#allocation7] sm:$0xf]
        %v645 = vld [vmem:[#allocation7 + $0x4] sm:$0xf]
        %v646 = vld [vmem:[#allocation7 + $0x8] sm:$0xf]
        %v647 = vld [vmem:[#allocation7 + $0xc] sm:$0xf]
        %v648 = vld [vmem:[#allocation7 + $0x10] sm:$0xf]
        %v649 = vld [vmem:[#allocation7 + $0x14] sm:$0xf]
        %v650 = vld [vmem:[#allocation7 + $0x18] sm:$0xf]
        %v651 = vld [vmem:[#allocation7 + $0x1c] sm:$0xf]
        %v652 = vld [vmem:[#allocation7 + $0x20] sm:$0xf]
        %v653 = vld [vmem:[#allocation7 + $0x24] sm:$0xf]
        %v654 = vld [vmem:[#allocation7 + $0x28] sm:$0xf]
        %v655 = vld [vmem:[#allocation7 + $0x2c] sm:$0xf]
        %v656 = vld [vmem:[#allocation7 + $0x30] sm:$0xf]
        %v657 = vld [vmem:[#allocation7 + $0x34] sm:$0xf]
        %v658 = vld [vmem:[#allocation7 + $0x38] sm:$0xf]
        %v659 = vld [vmem:[#allocation7 + $0x3c] sm:$0xf]
        %v676 = vunpack.c.l.b16 %v644
        %v677 = vunpack.c.l.b16 %v645
        %v678 = vunpack.c.l.b16 %v646
        %v679 = vunpack.c.l.b16 %v647
        %v680 = vunpack.c.l.b16 %v648
        %v681 = vunpack.c.l.b16 %v649
        %v682 = vunpack.c.l.b16 %v650
        %v683 = vunpack.c.l.b16 %v651
        %v684 = vunpack.c.l.b16 %v652
        %v685 = vunpack.c.l.b16 %v653
        %v686 = vunpack.c.l.b16 %v654
        %v687 = vunpack.c.l.b16 %v655
        %v688 = vunpack.c.l.b16 %v656
        %v689 = vunpack.c.l.b16 %v657
        %v690 = vunpack.c.l.b16 %v658
        %v691 = vunpack.c.l.b16 %v659
        %v692 = vpack.c.b16 %v677, %v676
        %v693 = vpack.c.b16 %v679, %v678
        %v694 = vpack.c.b16 %v681, %v680
        %v695 = vpack.c.b16 %v683, %v682
        %v696 = vpack.c.b16 %v685, %v684
        %v697 = vpack.c.b16 %v687, %v686
        %v698 = vpack.c.b16 %v689, %v688
        %v699 = vpack.c.b16 %v691, %v690
        %708 = vmatpush.bf16.msra.mxu0 %v699
        %709 = vmatpush.bf16.msra.mxu0 %v698
        %710 = vmatpush.bf16.msra.mxu0 %v697
        %711 = vmatpush.bf16.msra.mxu0 %v696
        %712 = vmatpush.bf16.msra.mxu0 %v695
        %713 = vmatpush.bf16.msra.mxu0 %v694
        %714 = vmatpush.bf16.msra.mxu0 %v693
        %715 = vmatpush.bf16.msra.mxu0 %v692
        %716 = vmatmul.bf16.gmra.mxu0 %v486
        %v717 = vpop.f32.mrf.mxu0
        %v718 = vadd.f32 0.0, %v717
        %v719 = vpop.f32.mrf.mxu0
        %720 = vdwg.mxu0
        %v721 = vpack.c.bf16 %v718, %v718
        %v722 = vld [vmem:[%s476] sm:$0x1]
        %vm723 = vcmp.gt.s32.totalorder %v722, 0
        %v724 = vsel %vm723, 1, 0
        %v725 = vperm.slane %v724, 0
        %vm726 = vcmp.eq.s32.totalorder %v725, 1
        %v727 = vlaneseq
        %v728 = vshrl.u32 %v727, 7
        %s729 = smul.u32 %s29, 8
        %v730 = vstv %s729
        %v731 = vadd.s32 %v728, %v730
        %v732 = vlaneseq
        %v733 = vand.u32 %v732, 127
        %vm734 = vcmp.gt.s32.totalorder %v733, %v731
        %vm735 = vmor %vm726, %vm734
        %vm736 = vcmask 261120
        %v738 = vsel %vm736, %v565, 0
        %v741 = vsel %vm736, %v643, 0
        %743 = vmatpush.bf16.xpose.msra.mxu0 0
        %744 = vmatpush.bf16.xpose.msra.mxu0 0
        %745 = vmatpush.bf16.xpose.msra.mxu0 0
        %746 = vmatpush.bf16.xpose.msra.mxu0 0
        %747 = vmatpush.bf16.xpose.msra.mxu0 0
        %748 = vmatpush.bf16.xpose.msra.mxu0 0
        %749 = vmatpush.bf16.xpose.msra.mxu0 0
        %750 = vmatpush.bf16.xpose.msra.mxu0 %v741
        %751 = vmatmul.bf16.gmra.mxu0 %v738
        %v752 = vpop.f32.mrf.mxu0
        %v753 = vadd.f32 0.0, %v752
        %v754 = vpop.f32.mrf.mxu0
        %755 = vdwg.mxu0
        %v756 = vsel %vm735, -1e+30, %v753
        %vm757 = vcmask 64512
        %v758 = vsel %vm757, %v756, -inf
        %759 = vmax.xlane.f32.xlu0 %v758
        %v760 = vpop.xlane.xlu0 %759
        %v761 = vsub.f32 %v756, %v760
        %v762 = vmul.f32 %v761, 1.442695
        %v763 = vpow.pop %v762
        %v764 = vsel %vm757, %v763, 0.0
        %765 = vadd.xlane.f32.xlu0 %v764
        %v766 = vpop.xlane.xlu0 %765
        %v767 = vrcp.pop %v766
        %v768 = vmul.f32 %v763, %v767
        %v769 = vpack.c.bf16 %v768, %v768
        %v771 = vsel %vm757, %v769, 0
        %vm773 = vcmask 1043456
        %v775 = vsel %vm773, %v721, 0
        %777 = vmatpush.bf16.msra.mxu0 0
        %778 = vmatpush.bf16.msra.mxu0 0
        %779 = vmatpush.bf16.msra.mxu0 0
        %780 = vmatpush.bf16.msra.mxu0 0
        %781 = vmatpush.bf16.msra.mxu0 0
        %782 = vmatpush.bf16.msra.mxu0 0
        %783 = vmatpush.bf16.msra.mxu0 0
        %784 = vmatpush.bf16.msra.mxu0 %v775
        %785 = vmatmul.bf16.gmra.mxu0 %v771
        %v786 = vpop.f32.mrf.mxu0
        %v787 = vadd.f32 0.0, %v786
        %v788 = vpop.f32.mrf.mxu0
        %789 = vdwg.mxu0
        %790 = vst.msk [vmem:[#allocation2] sm:$0xff] %vm736, %v787
        %v792 = vunpack.c.l.b16 %v565
        %v793 = vpack.c.b16 %v792, %v792
        %794 = vrot.lane.b32.xlu0 %v793, 96
        %v795 = vpop.permute.xlu0 %794
        %v797 = vunpack.c.l.b16 %v643
        %v798 = vpack.c.b16 %v797, %v797
        %799 = vrot.lane.b32.xlu0 %v798, 96
        %v800 = vpop.permute.xlu0 %799
        %v802 = vsel %vm736, %v795, 0
        %v805 = vsel %vm736, %v800, 0
        %807 = vmatpush.bf16.xpose.msra.mxu0 0
        %808 = vmatpush.bf16.xpose.msra.mxu0 0
        %809 = vmatpush.bf16.xpose.msra.mxu0 0
        %810 = vmatpush.bf16.xpose.msra.mxu0 0
        %811 = vmatpush.bf16.xpose.msra.mxu0 0
        %812 = vmatpush.bf16.xpose.msra.mxu0 0
        %813 = vmatpush.bf16.xpose.msra.mxu0 0
        %814 = vmatpush.bf16.xpose.msra.mxu0 %v805
        %815 = vmatmul.bf16.gmra.mxu0 %v802
        %v816 = vpop.f32.mrf.mxu0
        %v817 = vadd.f32 0.0, %v816
        %v818 = vpop.f32.mrf.mxu0
        %819 = vdwg.mxu0
        %v820 = vsel %vm735, -1e+30, %v817
        %v821 = vsel %vm757, %v820, -inf
        %822 = vmax.xlane.f32.xlu0 %v821
        %v823 = vpop.xlane.xlu0 %822
        %v824 = vsub.f32 %v820, %v823
        %v825 = vmul.f32 %v824, 1.442695
        %v826 = vpow.pop %v825
        %v827 = vsel %vm757, %v826, 0.0
        %828 = vadd.xlane.f32.xlu0 %v827
        %v829 = vpop.xlane.xlu0 %828
        %v830 = vrcp.pop %v829
        %v831 = vmul.f32 %v826, %v830
        %v832 = vpack.c.bf16 %v831, %v831
        %v834 = vunpack.c.l.b16 %v721
        %v835 = vpack.c.b16 %v834, %v834
        %836 = vrot.lane.b32.xlu0 %v835, 96
        %v837 = vpop.permute.xlu0 %836
        %v839 = vsel %vm757, %v832, 0
        %v842 = vsel %vm773, %v837, 0
        %844 = vmatpush.bf16.msra.mxu0 0
        %845 = vmatpush.bf16.msra.mxu0 0
        %846 = vmatpush.bf16.msra.mxu0 0
        %847 = vmatpush.bf16.msra.mxu0 0
        %848 = vmatpush.bf16.msra.mxu0 0
        %849 = vmatpush.bf16.msra.mxu0 0
        %850 = vmatpush.bf16.msra.mxu0 0
        %851 = vmatpush.bf16.msra.mxu0 %v842
        %852 = vmatmul.bf16.gmra.mxu0 %v839
        %v853 = vpop.f32.mrf.mxu0
        %v854 = vadd.f32 0.0, %v853
        %v855 = vpop.f32.mrf.mxu0
        %856 = vdwg.mxu0
        %858 = vrot.lane.b32.xlu0 %v854, 32
        %v859 = vpop.permute.xlu0 %858
        %vm861 = vcmask 523520
        %862 = vst.msk [vmem:[#allocation2] sm:$0xff] %vm861, %v859
        %863 = vrot.lane.b32.xlu0 %v793, 64
        %v864 = vpop.permute.xlu0 %863
        %865 = vrot.lane.b32.xlu0 %v798, 64
        %v866 = vpop.permute.xlu0 %865
        %v868 = vsel %vm736, %v864, 0
        %v871 = vsel %vm736, %v866, 0
        %873 = vmatpush.bf16.xpose.msra.mxu0 0
        %874 = vmatpush.bf16.xpose.msra.mxu0 0
        %875 = vmatpush.bf16.xpose.msra.mxu0 0
        %876 = vmatpush.bf16.xpose.msra.mxu0 0
        %877 = vmatpush.bf16.xpose.msra.mxu0 0
        %878 = vmatpush.bf16.xpose.msra.mxu0 0
        %879 = vmatpush.bf16.xpose.msra.mxu0 0
        %880 = vmatpush.bf16.xpose.msra.mxu0 %v871
        %881 = vmatmul.bf16.gmra.mxu0 %v868
        %v882 = vpop.f32.mrf.mxu0
        %v883 = vadd.f32 0.0, %v882
        %v884 = vpop.f32.mrf.mxu0
        %885 = vdwg.mxu0
        %v886 = vsel %vm735, -1e+30, %v883
        %v887 = vsel %vm757, %v886, -inf
        %888 = vmax.xlane.f32.xlu0 %v887
        %v889 = vpop.xlane.xlu0 %888
        %v890 = vsub.f32 %v886, %v889
        %v891 = vmul.f32 %v890, 1.442695
        %v892 = vpow.pop %v891
        %v893 = vsel %vm757, %v892, 0.0
        %894 = vadd.xlane.f32.xlu0 %v893
        %v895 = vpop.xlane.xlu0 %894
        %v896 = vrcp.pop %v895
        %v897 = vmul.f32 %v892, %v896
        %v898 = vpack.c.bf16 %v897, %v897
        %899 = vrot.lane.b32.xlu0 %v835, 64
        %v900 = vpop.permute.xlu0 %899
        %v902 = vsel %vm757, %v898, 0
        %v905 = vsel %vm773, %v900, 0
        %907 = vmatpush.bf16.msra.mxu0 0
        %908 = vmatpush.bf16.msra.mxu0 0
        %909 = vmatpush.bf16.msra.mxu0 0
        %910 = vmatpush.bf16.msra.mxu0 0
        %911 = vmatpush.bf16.msra.mxu0 0
        %912 = vmatpush.bf16.msra.mxu0 0
        %913 = vmatpush.bf16.msra.mxu0 0
        %914 = vmatpush.bf16.msra.mxu0 %v905
        %915 = vmatmul.bf16.gmra.mxu0 %v902
        %v916 = vpop.f32.mrf.mxu0
        %v917 = vadd.f32 0.0, %v916
        %v918 = vpop.f32.mrf.mxu0
        %919 = vdwg.mxu0
        %921 = vrot.lane.b32.xlu0 %v917, 64
        %v922 = vpop.permute.xlu0 %921
        %vm924 = vcmask 785920
        %925 = vst.msk [vmem:[#allocation2] sm:$0xff] %vm924, %v922
        %926 = vrot.lane.b32.xlu0 %v793, 32
        %v927 = vpop.permute.xlu0 %926
        %928 = vrot.lane.b32.xlu0 %v798, 32
        %v929 = vpop.permute.xlu0 %928
        %v931 = vsel %vm736, %v927, 0
        %v934 = vsel %vm736, %v929, 0
        %936 = vmatpush.bf16.xpose.msra.mxu0 0
        %937 = vmatpush.bf16.xpose.msra.mxu0 0
        %938 = vmatpush.bf16.xpose.msra.mxu0 0
        %939 = vmatpush.bf16.xpose.msra.mxu0 0
        %940 = vmatpush.bf16.xpose.msra.mxu0 0
        %941 = vmatpush.bf16.xpose.msra.mxu0 0
        %942 = vmatpush.bf16.xpose.msra.mxu0 0
        %943 = vmatpush.bf16.xpose.msra.mxu0 %v934
        %944 = vmatmul.bf16.gmra.mxu0 %v931
        %v945 = vpop.f32.mrf.mxu0
        %v946 = vadd.f32 0.0, %v945
        %v947 = vpop.f32.mrf.mxu0
        %948 = vdwg.mxu0
        %v949 = vsel %vm735, -1e+30, %v946
        %v950 = vsel %vm757, %v949, -inf
        %951 = vmax.xlane.f32.xlu0 %v950
        %v952 = vpop.xlane.xlu0 %951
        %v953 = vsub.f32 %v949, %v952
        %v954 = vmul.f32 %v953, 1.442695
        %v955 = vpow.pop %v954
        %v956 = vsel %vm757, %v955, 0.0
        %957 = vadd.xlane.f32.xlu0 %v956
        %v958 = vpop.xlane.xlu0 %957
        %v959 = vrcp.pop %v958
        %v960 = vmul.f32 %v955, %v959
        %v961 = vpack.c.bf16 %v960, %v960
        %962 = vrot.lane.b32.xlu0 %v835, 32
        %v963 = vpop.permute.xlu0 %962
        %v965 = vsel %vm757, %v961, 0
        %v968 = vsel %vm773, %v963, 0
        %970 = vmatpush.bf16.msra.mxu0 0
        %971 = vmatpush.bf16.msra.mxu0 0
        %972 = vmatpush.bf16.msra.mxu0 0
        %973 = vmatpush.bf16.msra.mxu0 0
        %974 = vmatpush.bf16.msra.mxu0 0
        %975 = vmatpush.bf16.msra.mxu0 0
        %976 = vmatpush.bf16.msra.mxu0 0
        %977 = vmatpush.bf16.msra.mxu0 %v968
        %978 = vmatmul.bf16.gmra.mxu0 %v965
        %v979 = vpop.f32.mrf.mxu0
        %v980 = vadd.f32 0.0, %v979
        %v981 = vpop.f32.mrf.mxu0
        %982 = vdwg.mxu0
        %984 = vrot.lane.b32.xlu0 %v980, 96
        %v985 = vpop.permute.xlu0 %984
        %vm987 = vcmask 1048320
        %988 = vst.msk [vmem:[#allocation2] sm:$0xff] %vm987, %v985
        %v989 = vld [vmem:[#allocation2] sm:$0xff]
        %v990 = vpack.c.bf16 %v989, %v989
        %v991 = vld [vmem:[#allocation8] sm:$0xf]
        %v992 = vld [vmem:[#allocation8 + $0x4] sm:$0xf]
        %v993 = vld [vmem:[#allocation8 + $0x8] sm:$0xf]
        %v994 = vld [vmem:[#allocation8 + $0xc] sm:$0xf]
        %v995 = vld [vmem:[#allocation8 + $0x10] sm:$0xf]
        %v996 = vld [vmem:[#allocation8 + $0x14] sm:$0xf]
        %v997 = vld [vmem:[#allocation8 + $0x18] sm:$0xf]
        %v998 = vld [vmem:[#allocation8 + $0x1c] sm:$0xf]
        %v999 = vld [vmem:[#allocation8 + $0x20] sm:$0xf]
        %v1000 = vld [vmem:[#allocation8 + $0x24] sm:$0xf]
        %v1001 = vld [vmem:[#allocation8 + $0x28] sm:$0xf]
        %v1002 = vld [vmem:[#allocation8 + $0x2c] sm:$0xf]
        %v1003 = vld [vmem:[#allocation8 + $0x30] sm:$0xf]
        %v1004 = vld [vmem:[#allocation8 + $0x34] sm:$0xf]
        %v1005 = vld [vmem:[#allocation8 + $0x38] sm:$0xf]
        %v1006 = vld [vmem:[#allocation8 + $0x3c] sm:$0xf]
        %v1007 = vld [vmem:[%s7] sm:$0x1]
        %v1009 = vperm.slane %v1007, 0
        %v1027 = vunpack.c.l.b16 %v991
        %v1028 = vunpack.c.l.b16 %v992
        %v1029 = vunpack.c.l.b16 %v993
        %v1030 = vunpack.c.l.b16 %v994
        %v1031 = vunpack.c.l.b16 %v995
        %v1032 = vunpack.c.l.b16 %v996
        %v1033 = vunpack.c.l.b16 %v997
        %v1034 = vunpack.c.l.b16 %v998
        %v1035 = vunpack.c.l.b16 %v999
        %v1036 = vunpack.c.l.b16 %v1000
        %v1037 = vunpack.c.l.b16 %v1001
        %v1038 = vunpack.c.l.b16 %v1002
        %v1039 = vunpack.c.l.b16 %v1003
        %v1040 = vunpack.c.l.b16 %v1004
        %v1041 = vunpack.c.l.b16 %v1005
        %v1042 = vunpack.c.l.b16 %v1006
        %v1043 = vpack.c.b16 %v1028, %v1027
        %v1044 = vpack.c.b16 %v1030, %v1029
        %v1045 = vpack.c.b16 %v1032, %v1031
        %v1046 = vpack.c.b16 %v1034, %v1033
        %v1047 = vpack.c.b16 %v1036, %v1035
        %v1048 = vpack.c.b16 %v1038, %v1037
        %v1049 = vpack.c.b16 %v1040, %v1039
        %v1050 = vpack.c.b16 %v1042, %v1041
        %1059 = vmatpush.bf16.msra.mxu0 %v1050
        %1060 = vmatpush.bf16.msra.mxu0 %v1049
        %1061 = vmatpush.bf16.msra.mxu0 %v1048
        %1062 = vmatpush.bf16.msra.mxu0 %v1047
        %1063 = vmatpush.bf16.msra.mxu0 %v1046
        %1064 = vmatpush.bf16.msra.mxu0 %v1045
        %1065 = vmatpush.bf16.msra.mxu0 %v1044
        %1066 = vmatpush.bf16.msra.mxu0 %v1043
        %1067 = vmatmul.bf16.gmra.mxu0 %v990
        %v1068 = vpop.f32.mrf.mxu0
        %v1069 = vadd.f32 %v1009, %v1068
        %v1070 = vpop.f32.mrf.mxu0
        %1071 = vdwg.mxu0
        %v1072 = vunpack.c.l.bf16 %v485
        %v1073 = vadd.f32 %v1069, %v1072
        %1074 = vadd.xlane.f32.xlu0 %v1073
        %v1075 = vpop.xlane.xlu0 %1074
        %v1076 = vrcp.pop 128.0
        %v1077 = vmul.f32 128.0, %v1076
        %v1078 = vsub.f32 1.0, %v1077
        %v1079 = vmul.f32 %v1076, %v1078
        %v1080 = vadd.f32 %v1076, %v1079
        %vm1081 = vweird.f32 %v1076
        %v1082 = vsel %vm1081, %v1076, %v1080
        %v1083 = vmul.f32 %v1075, %v1082
        %v1084 = vsub.f32 %v1073, %v1083
        %v1085 = vmul.f32 %v1084, %v1084
        %1086 = vadd.xlane.f32.xlu0 %v1085
        %v1087 = vpop.xlane.xlu0 %1086
        %v1088 = vrcp.pop 127.0
        %v1089 = vmul.f32 127.0, %v1088
        %v1090 = vsub.f32 1.0, %v1089
        %v1091 = vmul.f32 %v1088, %v1090
        %v1092 = vadd.f32 %v1088, %v1091
        %vm1093 = vweird.f32 %v1088
        %v1094 = vsel %vm1093, %v1088, %v1092
        %v1095 = vmul.f32 %v1087, %v1094
        %v1096 = vrsqrt.pop %v1095
        %v1097 = vmul.f32 %v1096, %v1095
        %v1098 = vmul.f32 %v1097, %v1096
        %v1099 = vmul.f32 0.5, %v1098
        %v1100 = vsub.f32 1.5, %v1099
        %v1101 = vmul.f32 %v1096, %v1100
        %v1102 = vmul.f32 %v1095, %v1101
        %vm1103 = vcmp.eq.f32.partialorder %v1095, inf
        %v1104 = vsel %vm1103, %v1095, %v1102
        %vm1105 = vcmp.eq.f32.partialorder %v1095, 0.0
        %v1106 = vand.u32 %v1095, 2147483648
        %v1107 = vsel %vm1105, %v1106, %v1104
        %v1108 = vadd.f32 %v1107, 0.001
        %v1109 = vrcp.pop %v1108
        %v1110 = vmul.f32 %v1108, %v1109
        %v1111 = vsub.f32 1.0, %v1110
        %v1112 = vmul.f32 %v1109, %v1111
        %v1113 = vadd.f32 %v1109, %v1112
        %vm1114 = vweird.f32 %v1108
        %vm1115 = vweird.f32 %v1109
        %vm1116 = vmor %vm1114, %vm1115
        %v1117 = vsel %vm1116, %v1109, %v1113
        %v1118 = vand.u32 2147483647, %v1108
        %vm1119 = vcmp.eq.f32.partialorder %v1118, 8.507059e+37
        %v1120 = vand.u32 %v1108, 2147483648
        %v1121 = vor.u32 1.1754944e-38, %v1120
        %v1122 = vsel %vm1119, %v1121, %v1117
        %v1123 = vmul.f32 1.0, %v1122
        %v1124 = vmul.f32 %v1084, %v1123
        %v1125 = vld [vmem:[%s8] sm:$0x1]
        %v1127 = vperm.slane %v1125, 0
        %v1129 = vmul.f32 %v1124, %v1127
        %v1130 = vld [vmem:[%s9] sm:$0x1]
        %v1132 = vperm.slane %v1130, 0
        %v1134 = vadd.f32 %v1129, %v1132
        %v1135 = vpack.c.bf16 %v1134, %v1134
        %1136 = vst [vmem:[%s483] sm:$0xf] %v1135
        %p1137 = scmp.lt.s32.totalorder %s28, 1
        %s1138 = scalar_select %p1137, %s28, 1
        %p1139 = scmp.lt.s32.totalorder %s29, 0
        %s1140 = scalar_select %p1139, %s29, 0
        %s1141 = sadd.s32 %s1140, %s1138
        %s1142 = smul.addr %s1141, 4
        %s1143 = scalar_lea.vmem %s10, %s1142
        // Predicated region
        $region77: #{_lambda_.18} parent=59 // pred_check
          %p1144 = pneg %p283
        $region78: #{_lambda_.18} parent=59 // pred_check_branch
          %1146 = sbr.rel (%p1144) target = $region80
        $region79: #{_lambda_.18} parent=59 // pred_region
          _
        $region80: #{_lambda_.18} parent=59 // pred_fallthru
          _
      $region60: #{_lambda_.18} parent=5 // pred_fallthru
        _
      %p1147 = scmp.le.s32.totalorder 2, %s19
      // Predicated region
      $region81: #{_lambda_.18} parent=5 // pred_check
        %p1148 = pneg %p1147
      $region82: #{_lambda_.18} parent=5 // pred_check_branch
        %1150 = sbr.rel (%p1148) target = $region84
      $region83: #{_lambda_.18} parent=5 // pred_region
        %s1151 = ssub.s32 %s19, 2
        // Predicated region
        $region85: #{_lambda_.18} parent=83 // pred_check
          %p1152 = pneg %p289
        $region86: #{_lambda_.18} parent=83 // pred_check_branch
          %1154 = sbr.rel (%p1152) target = $region88
        $region87: #{_lambda_.18} parent=83 // pred_region
          %p1155 = scmp.lt.s32.totalorder %s30, 1
          %s1156 = scalar_select %p1155, %s30, 1
          %p1157 = scmp.lt.s32.totalorder %s31, 0
          %s1158 = scalar_select %p1157, %s31, 0
          %s1159 = sadd.s32 %s1158, %s1156
          %s1160 = smul.addr %s1159, 4
          %s1161 = scalar_lea.vmem %s10, %s1160
        $region88: #{_lambda_.18} parent=83 // pred_fallthru
          _
      $region84: #{_lambda_.18} parent=5 // pred_fallthru
        _
    $region6: #{_lambda_.18} parent=1 // loop_footer
      %s23 = sadd.s32 1, %s19
    $region7: #{_lambda_.18} parent=1 // loop_footer_branch
      %18 = sbr.rel target = $region3
    $region8: #{_lambda_.18} parent=1 // loop_exit
      _
    %1162 = vsyncpa [#allocation4], 1
    %s1163 = scalar_lea.sflag [#allocation4], 1
    %1164 = vsyncpa %s1163, 1
    %1165 = vsyncpa [#allocation6], 1
    %1166 = vsyncpa [#allocation9], 1

// kernel: _lambda_.15
$region0: #{_lambda_.15}
  #allocation0 [shape = 'u32[]', space=smem, size = 0x4, offset = 0x4, fixed_abs, tag = 'smem constant byte address 0x4 - core index']
  #allocation1 [shape = 'u32[72,128]{1,0:T(1,128)}', space=vmem, size = 0x9000, scoped, tag = 'internal scratch']
  #allocation2 [shape = 'f32[8,128]{1,0:T(8,128)}', space=vmem, size = 0x1000, scoped, tag = 'scratch operand']
  %s0 = inlined_call_operand.vmem [shape: bf16[2,8,128], index: 0, kind: input, shape index: {}, may-alias: {0,1}]
  %s1 = inlined_call_operand.vmem [shape: bf16[2,8,128], index: 1, kind: input, shape index: {}, may-alias: {0,1}]
  %s2 = inlined_call_operand.vmem [shape: s32[2,1,8], index: 2, kind: input, shape index: {}]
  %s3 = inlined_call_operand.vmem [shape: bf16[128,128], index: 3, kind: input, shape index: {}]
  %s4 = inlined_call_operand.vmem [shape: bf16[128,128], index: 4, kind: input, shape index: {}]
  %s5 = inlined_call_operand.hbm [shape: bf16[128,128], index: 5, kind: input, shape index: {}]
  %s6 = inlined_call_operand.hbm [shape: bf16[128,128], index: 6, kind: input, shape index: {}]
  %s7 = inlined_call_operand.vmem [shape: f32[1,128], index: 7, kind: input, shape index: {}]
  %s8 = inlined_call_operand.vmem [shape: f32[1,128], index: 8, kind: input, shape index: {}]
  %s9 = inlined_call_operand.vmem [shape: f32[1,128], index: 9, kind: input, shape index: {}]
  %s10 = inlined_call_operand.vmem [shape: bf16[2,8,128], index: 10, kind: output, shape index: {}]
  %s11 = sld [smem:[#allocation0]]
  $region81: #{_lambda_.15} parent=0
    _
  %s13 = ssub.s32 1, %s11
  %s14 = scalar_select 0, %s13, %s11
  $region1: #{_lambda_.15} parent=0
    #allocation3 [shape = 'u8[32768]{0}', space=vmem, size = 0x8000, scoped, tag = 'input window, operand 5, single buffered']
    #allocation4 [shape = 's32[2]{0}', space=sflag, size = 0x8, scoped, tag = 'scoped memory for _lambda_.15']
    #allocation5 [shape = 'u8[32768]{0}', space=vmem, size = 0x8000, scoped, tag = 'input window, operand 6, single buffered']
    #allocation6 [shape = 's32[1]{0}', space=sflag, size = 0x4, scoped, tag = 'scoped memory for _lambda_.15']
    %15 = vsyncpa [#allocation4], 0
    %16 = vsyncpa [#allocation6], 0
    loop: start=0, step=1, limit=4
    $region2: #{_lambda_.15} parent=1 // loop_pre_header
      _
    $region3: #{_lambda_.15} parent=1 // loop_header
      %s18 = sphi 0, %s22
      %p19 = scmp.ge.s32.totalorder %s18, 4
      %s25 = sphi 0, %s37
      %s26 = sphi 0, %s33
      %s27 = sphi 0, %s25
      %s28 = sphi 0, %s26
      %s29 = sphi 0, %s27
      %s30 = sphi 0, %s28
      %s42 = sphi 0, %s44
      %s45 = sphi 0, %s42
      %s46 = sphi 0, %s45
      %s62 = sphi 0, %s46
      %s68 = sphi 0, %s70
      %s71 = sphi 0, %s68
      %s72 = sphi 0, %s71
      %s88 = sphi 0, %s72
      %s94 = sphi 0, %s96
      %s97 = sphi 0, %s94
      %s98 = sphi 0, %s97
      %s114 = sphi 0, %s98
      %s118 = sphi 0, %s118
      %s120 = sphi 0, %s118
      %s121 = sphi 0, %s120
      %s135 = sphi 0, %s121
      %s139 = sphi 0, %s139
      %s141 = sphi 0, %s139
      %s142 = sphi 0, %s141
      %s156 = sphi 0, %s142
      %s160 = sphi 0, %s160
      %s162 = sphi 0, %s160
      %s163 = sphi 0, %s162
      %s177 = sphi 0, %s163
      %s181 = sphi 0, %s181
      %s183 = sphi 0, %s181
      %s184 = sphi 0, %s183
      %s198 = sphi 0, %s184
      %s202 = sphi 0, %s202
      %s204 = sphi 0, %s202
      %s205 = sphi 0, %s204
      %s219 = sphi 0, %s205
      %s223 = sphi 0, %s223
      %s225 = sphi 0, %s223
      %s226 = sphi 0, %s225
      %s240 = sphi 0, %s226
      %s244 = sphi 0, %s244
      %s246 = sphi 0, %s244
      %s247 = sphi 0, %s246
      %s261 = sphi 0, %s247
      %s269 = sphi 0, %s271
      %s272 = sphi 0, %s269
      %s273 = sphi 0, %s272
      %s289 = sphi 0, %s273
    $region4: #{_lambda_.15} parent=1 // loop_header_branch
      %21 = sbr.rel (%p19) target = $region8
    $region5: #{_lambda_.15} parent=1 // loop_body
      %s23 = ssub.s32 %s18, 1
      %s24 = ssub.s32 %s18, 2
      %s31 = sadd.s32 1, %s26
      %p32 = scmp.ge.s32.totalorder %s31, 1
      %s33 = scalar_select %p32, 0, %s31
      %s34 = sadd.s32 1, %s25
      %s35 = scalar_select %p32, %s34, %s25
      %p36 = scmp.ge.s32.totalorder %s35, 2
      %s37 = scalar_select %p36, 0, %s35
      %s38 = ssub.s32 %s25, %s37
      %s39 = ssub.s32 %s26, %s33
      %s40 = sor.u32 %s38, %s39
      %p41 = scmp.eq.s32.totalorder %s40, 0
      %s43 = sadd.s32 %s42, 1
      %s44 = scalar_select %p41, %s42, %s43
      %p47 = pneg %p41
      %p48 = scmp.eq.s32.totalorder %s18, 1
      %p49 = por %p47, %p48
      %p50 = scmp.ne.s32.totalorder %s42, %s45
      %p51 = scmp.eq.s32.totalorder %s18, 0
      %p52 = por %p50, %p51
      %p53 = scmp.ne.s32.totalorder %s42, %s45
      %p54 = scmp.eq.s32.totalorder %s23, 1
      %p55 = por %p53, %p54
      %p56 = scmp.ne.s32.totalorder %s45, %s46
      %p57 = scmp.eq.s32.totalorder %s23, 0
      %p58 = por %p56, %p57
      %p59 = scmp.ne.s32.totalorder %s45, %s46
      %p60 = scmp.eq.s32.totalorder %s24, 1
      %p61 = por %p59, %p60
      %p63 = scmp.ne.s32.totalorder %s46, %s62
      %p64 = scmp.eq.s32.totalorder %s24, 0
      %p65 = por %p63, %p64
      %s66 = ssub.s32 %s25, %s37
      %p67 = scmp.eq.s32.totalorder %s66, 0
      %s69 = sadd.s32 %s68, 1
      %s70 = scalar_select %p67, %s68, %s69
      %p73 = pneg %p67
      %p74 = scmp.eq.s32.totalorder %s18, 1
      %p75 = por %p73, %p74
      %p76 = scmp.ne.s32.totalorder %s68, %s71
      %p77 = scmp.eq.s32.totalorder %s18, 0
      %p78 = por %p76, %p77
      %p79 = scmp.ne.s32.totalorder %s68, %s71
      %p80 = scmp.eq.s32.totalorder %s23, 1
      %p81 = por %p79, %p80
      %p82 = scmp.ne.s32.totalorder %s71, %s72
      %p83 = scmp.eq.s32.totalorder %s23, 0
      %p84 = por %p82, %p83
      %p85 = scmp.ne.s32.totalorder %s71, %s72
      %p86 = scmp.eq.s32.totalorder %s24, 1
      %p87 = por %p85, %p86
      %p89 = scmp.ne.s32.totalorder %s72, %s88
      %p90 = scmp.eq.s32.totalorder %s24, 0
      %p91 = por %p89, %p90
      %s92 = ssub.s32 %s25, %s37
      %p93 = scmp.eq.s32.totalorder %s92, 0
      %s95 = sadd.s32 %s94, 1
      %s96 = scalar_select %p93, %s94, %s95
      %p99 = pneg %p93
      %p100 = scmp.eq.s32.totalorder %s18, 1
      %p101 = por %p99, %p100
      %p102 = scmp.ne.s32.totalorder %s94, %s97
      %p103 = scmp.eq.s32.totalorder %s18, 0
      %p104 = por %p102, %p103
      %p105 = scmp.ne.s32.totalorder %s94, %s97
      %p106 = scmp.eq.s32.totalorder %s23, 1
      %p107 = por %p105, %p106
      %p108 = scmp.ne.s32.totalorder %s97, %s98
      %p109 = scmp.eq.s32.totalorder %s23, 0
      %p110 = por %p108, %p109
      %p111 = scmp.ne.s32.totalorder %s97, %s98
      %p112 = scmp.eq.s32.totalorder %s24, 1
      %p113 = por %p111, %p112
      %p115 = scmp.ne.s32.totalorder %s98, %s114
      %p116 = scmp.eq.s32.totalorder %s24, 0
      %p117 = por %p115, %p116
      %s119 = sadd.s32 %s118, 1
      %p122 = scmp.eq.s32.totalorder %s18, 1
      %p123 = scmp.ne.s32.totalorder %s118, %s120
      %p124 = scmp.eq.s32.totalorder %s18, 0
      %p125 = por %p123, %p124
      %p126 = scmp.ne.s32.totalorder %s118, %s120
      %p127 = scmp.eq.s32.totalorder %s23, 1
      %p128 = por %p126, %p127
      %p129 = scmp.ne.s32.totalorder %s120, %s121
      %p130 = scmp.eq.s32.totalorder %s23, 0
      %p131 = por %p129, %p130
      %p132 = scmp.ne.s32.totalorder %s120, %s121
      %p133 = scmp.eq.s32.totalorder %s24, 1
      %p134 = por %p132, %p133
      %p136 = scmp.ne.s32.totalorder %s121, %s135
      %p137 = scmp.eq.s32.totalorder %s24, 0
      %p138 = por %p136, %p137
      %s140 = sadd.s32 %s139, 1
      %p143 = scmp.eq.s32.totalorder %s18, 1
      %p144 = scmp.ne.s32.totalorder %s139, %s141
      %p145 = scmp.eq.s32.totalorder %s18, 0
      %p146 = por %p144, %p145
      %p147 = scmp.ne.s32.totalorder %s139, %s141
      %p148 = scmp.eq.s32.totalorder %s23, 1
      %p149 = por %p147, %p148
      %p150 = scmp.ne.s32.totalorder %s141, %s142
      %p151 = scmp.eq.s32.totalorder %s23, 0
      %p152 = por %p150, %p151
      %p153 = scmp.ne.s32.totalorder %s141, %s142
      %p154 = scmp.eq.s32.totalorder %s24, 1
      %p155 = por %p153, %p154
      %p157 = scmp.ne.s32.totalorder %s142, %s156
      %p158 = scmp.eq.s32.totalorder %s24, 0
      %p159 = por %p157, %p158
      %s161 = sadd.s32 %s160, 1
      %p164 = scmp.eq.s32.totalorder %s18, 1
      %p165 = scmp.ne.s32.totalorder %s160, %s162
      %p166 = scmp.eq.s32.totalorder %s18, 0
      %p167 = por %p165, %p166
      %p168 = scmp.ne.s32.totalorder %s160, %s162
      %p169 = scmp.eq.s32.totalorder %s23, 1
      %p170 = por %p168, %p169
      %p171 = scmp.ne.s32.totalorder %s162, %s163
      %p172 = scmp.eq.s32.totalorder %s23, 0
      %p173 = por %p171, %p172
      %p174 = scmp.ne.s32.totalorder %s162, %s163
      %p175 = scmp.eq.s32.totalorder %s24, 1
      %p176 = por %p174, %p175
      %p178 = scmp.ne.s32.totalorder %s163, %s177
      %p179 = scmp.eq.s32.totalorder %s24, 0
      %p180 = por %p178, %p179
      %s182 = sadd.s32 %s181, 1
      %p185 = scmp.eq.s32.totalorder %s18, 1
      %p186 = scmp.ne.s32.totalorder %s181, %s183
      %p187 = scmp.eq.s32.totalorder %s18, 0
      %p188 = por %p186, %p187
      %p189 = scmp.ne.s32.totalorder %s181, %s183
      %p190 = scmp.eq.s32.totalorder %s23, 1
      %p191 = por %p189, %p190
      %p192 = scmp.ne.s32.totalorder %s183, %s184
      %p193 = scmp.eq.s32.totalorder %s23, 0
      %p194 = por %p192, %p193
      %p195 = scmp.ne.s32.totalorder %s183, %s184
      %p196 = scmp.eq.s32.totalorder %s24, 1
      %p197 = por %p195, %p196
      %p199 = scmp.ne.s32.totalorder %s184, %s198
      %p200 = scmp.eq.s32.totalorder %s24, 0
      %p201 = por %p199, %p200
      %s203 = sadd.s32 %s202, 1
      %p206 = scmp.eq.s32.totalorder %s18, 1
      %p207 = scmp.ne.s32.totalorder %s202, %s204
      %p208 = scmp.eq.s32.totalorder %s18, 0
      %p209 = por %p207, %p208
      %p210 = scmp.ne.s32.totalorder %s202, %s204
      %p211 = scmp.eq.s32.totalorder %s23, 1
      %p212 = por %p210, %p211
      %p213 = scmp.ne.s32.totalorder %s204, %s205
      %p214 = scmp.eq.s32.totalorder %s23, 0
      %p215 = por %p213, %p214
      %p216 = scmp.ne.s32.totalorder %s204, %s205
      %p217 = scmp.eq.s32.totalorder %s24, 1
      %p218 = por %p216, %p217
      %p220 = scmp.ne.s32.totalorder %s205, %s219
      %p221 = scmp.eq.s32.totalorder %s24, 0
      %p222 = por %p220, %p221
      %s224 = sadd.s32 %s223, 1
      %p227 = scmp.eq.s32.totalorder %s18, 1
      %p228 = scmp.ne.s32.totalorder %s223, %s225
      %p229 = scmp.eq.s32.totalorder %s18, 0
      %p230 = por %p228, %p229
      %p231 = scmp.ne.s32.totalorder %s223, %s225
      %p232 = scmp.eq.s32.totalorder %s23, 1
      %p233 = por %p231, %p232
      %p234 = scmp.ne.s32.totalorder %s225, %s226
      %p235 = scmp.eq.s32.totalorder %s23, 0
      %p236 = por %p234, %p235
      %p237 = scmp.ne.s32.totalorder %s225, %s226
      %p238 = scmp.eq.s32.totalorder %s24, 1
      %p239 = por %p237, %p238
      %p241 = scmp.ne.s32.totalorder %s226, %s240
      %p242 = scmp.eq.s32.totalorder %s24, 0
      %p243 = por %p241, %p242
      %s245 = sadd.s32 %s244, 1
      %p248 = scmp.eq.s32.totalorder %s18, 1
      %p249 = scmp.ne.s32.totalorder %s244, %s246
      %p250 = scmp.eq.s32.totalorder %s18, 0
      %p251 = por %p249, %p250
      %p252 = scmp.ne.s32.totalorder %s244, %s246
      %p253 = scmp.eq.s32.totalorder %s23, 1
      %p254 = por %p252, %p253
      %p255 = scmp.ne.s32.totalorder %s246, %s247
      %p256 = scmp.eq.s32.totalorder %s23, 0
      %p257 = por %p255, %p256
      %p258 = scmp.ne.s32.totalorder %s246, %s247
      %p259 = scmp.eq.s32.totalorder %s24, 1
      %p260 = por %p258, %p259
      %p262 = scmp.ne.s32.totalorder %s247, %s261
      %p263 = scmp.eq.s32.totalorder %s24, 0
      %p264 = por %p262, %p263
      %s265 = ssub.s32 %s25, %s37
      %s266 = ssub.s32 %s26, %s33
      %s267 = sor.u32 %s265, %s266
      %p268 = scmp.eq.s32.totalorder %s267, 0
      %s270 = sadd.s32 %s269, 1
      %s271 = scalar_select %p268, %s269, %s270
      %p274 = pneg %p268
      %p275 = scmp.eq.s32.totalorder %s18, 1
      %p276 = por %p274, %p275
      %p277 = scmp.ne.s32.totalorder %s269, %s272
      %p278 = scmp.eq.s32.totalorder %s18, 0
      %p279 = por %p277, %p278
      %p280 = scmp.ne.s32.totalorder %s269, %s272
      %p281 = scmp.eq.s32.totalorder %s23, 1
      %p282 = por %p280, %p281
      %p283 = scmp.ne.s32.totalorder %s272, %s273
      %p284 = scmp.eq.s32.totalorder %s23, 0
      %p285 = por %p283, %p284
      %p286 = scmp.ne.s32.totalorder %s272, %s273
      %p287 = scmp.eq.s32.totalorder %s24, 1
      %p288 = por %p286, %p287
      %p290 = scmp.ne.s32.totalorder %s273, %s289
      %p291 = scmp.eq.s32.totalorder %s24, 0
      %p292 = por %p290, %p291
      %p293 = scmp.le.s32.totalorder 1, %s18
      %p294 = scmp.lt.s32.totalorder %s18, 3
      %p295 = pnand %p293, %p294
      %p296 = pneg %p295
      // Predicated region
      $region9: #{_lambda_.15} parent=5 // pred_check
        _
      $region10: #{_lambda_.15} parent=5 // pred_check_branch
        %298 = sbr.rel (%p295) target = $region12
      $region11: #{_lambda_.15} parent=5 // pred_region
        %s299 = ssub.s32 %s18, 1
        // Predicated region
        $region13: #{_lambda_.15} parent=11 // pred_check
          %p300 = pneg %p131
        $region14: #{_lambda_.15} parent=11 // pred_check_branch
          %302 = sbr.rel (%p300) target = $region16
        $region15: #{_lambda_.15} parent=11 // pred_region
          _
        $region16: #{_lambda_.15} parent=11 // pred_fallthru
          _
        // Predicated region
        $region17: #{_lambda_.15} parent=11 // pred_check
          %p303 = pneg %p152
        $region18: #{_lambda_.15} parent=11 // pred_check_branch
          %305 = sbr.rel (%p303) target = $region20
        $region19: #{_lambda_.15} parent=11 // pred_region
          _
        $region20: #{_lambda_.15} parent=11 // pred_fallthru
          _
        // Predicated region
        $region21: #{_lambda_.15} parent=11 // pred_check
          %p306 = pneg %p173
        $region22: #{_lambda_.15} parent=11 // pred_check_branch
          %308 = sbr.rel (%p306) target = $region24
        $region23: #{_lambda_.15} parent=11 // pred_region
          %310 = vsyncadd [#allocation4], 0
          %s311 = sshll.u32 %s5, 4
          %s312 = int_to_ptr.hbm [resolvable:$true] %s311
          %s313 = sshll.u32 [#allocation3], 4
          %s314 = int_to_ptr.vmem [resolvable:$true] %s313
          %319 = dma.hbm_to_vmem [thread:$0]  %s312, 1024, %s314, [#allocation4], 64, 64, 4
        $region24: #{_lambda_.15} parent=11 // pred_fallthru
          _
        // Predicated region
        $region25: #{_lambda_.15} parent=11 // pred_check
          %p320 = pneg %p194
        $region26: #{_lambda_.15} parent=11 // pred_check_branch
          %322 = sbr.rel (%p320) target = $region28
        $region27: #{_lambda_.15} parent=11 // pred_region
          %324 = vsyncadd [#allocation6], 0
          %s325 = sshll.u32 %s6, 4
          %s326 = int_to_ptr.hbm [resolvable:$true] %s325
          %s327 = sshll.u32 [#allocation5], 4
          %s328 = int_to_ptr.vmem [resolvable:$true] %s327
          %333 = dma.hbm_to_vmem [thread:$0]  %s326, 1024, %s328, [#allocation6], 64, 64, 4
        $region28: #{_lambda_.15} parent=11 // pred_fallthru
          _
        // Predicated region
        $region29: #{_lambda_.15} parent=11 // pred_check
          %p334 = pneg %p215
        $region30: #{_lambda_.15} parent=11 // pred_check_branch
          %336 = sbr.rel (%p334) target = $region32
        $region31: #{_lambda_.15} parent=11 // pred_region
          _
        $region32: #{_lambda_.15} parent=11 // pred_fallthru
          _
        // Predicated region
        $region33: #{_lambda_.15} parent=11 // pred_check
          %p337 = pneg %p236
        $region34: #{_lambda_.15} parent=11 // pred_check_branch
          %339 = sbr.rel (%p337) target = $region36
        $region35: #{_lambda_.15} parent=11 // pred_region
          _
        $region36: #{_lambda_.15} parent=11 // pred_fallthru
          _
        // Predicated region
        $region37: #{_lambda_.15} parent=11 // pred_check
          %p340 = pneg %p257
        $region38: #{_lambda_.15} parent=11 // pred_check_branch
          %342 = sbr.rel (%p340) target = $region40
        $region39: #{_lambda_.15} parent=11 // pred_region
          _
        $region40: #{_lambda_.15} parent=11 // pred_fallthru
          _
      $region12: #{_lambda_.15} parent=5 // pred_fallthru
        _
      %p343 = scmp.lt.s32.totalorder %s18, 2
      // Predicated region
      $region41: #{_lambda_.15} parent=5 // pred_check
        %p344 = pneg %p343
      $region42: #{_lambda_.15} parent=5 // pred_check_branch
        %346 = sbr.rel (%p344) target = $region44
      $region43: #{_lambda_.15} parent=5 // pred_region
        // Predicated region
        $region45: #{_lambda_.15} parent=43 // pred_check
          %p347 = pneg %p52
        $region46: #{_lambda_.15} parent=43 // pred_check_branch
          %349 = sbr.rel (%p347) target = $region48
        $region47: #{_lambda_.15} parent=43 // pred_region
          %p350 = scmp.lt.s32.totalorder %s25, 1
          %s351 = scalar_select %p350, %s25, 1
          %p352 = scmp.lt.s32.totalorder %s26, 0
          %s353 = scalar_select %p352, %s26, 0
          %s354 = sadd.s32 %s353, %s351
          %s355 = smul.addr %s354, 4
          %s356 = scalar_lea.vmem %s0, %s355
        $region48: #{_lambda_.15} parent=43 // pred_fallthru
          _
        // Predicated region
        $region49: #{_lambda_.15} parent=43 // pred_check
          %p357 = pneg %p78
        $region50: #{_lambda_.15} parent=43 // pred_check_branch
          %359 = sbr.rel (%p357) target = $region52
        $region51: #{_lambda_.15} parent=43 // pred_region
          %p360 = scmp.lt.s32.totalorder %s25, 1
          %s361 = scalar_select %p360, %s25, 1
          %s362 = smul.addr %s361, 4
          %s363 = scalar_lea.vmem %s1, %s362
        $region52: #{_lambda_.15} parent=43 // pred_fallthru
          _
        // Predicated region
        $region53: #{_lambda_.15} parent=43 // pred_check
          %p364 = pneg %p104
        $region54: #{_lambda_.15} parent=43 // pred_check_branch
          %366 = sbr.rel (%p364) target = $region56
        $region55: #{_lambda_.15} parent=43 // pred_region
          %p367 = scmp.lt.s32.totalorder %s25, 1
          %s368 = scalar_select %p367, %s25, 1
          %s369 = scalar_lea.vmem %s2, %s368
        $region56: #{_lambda_.15} parent=43 // pred_fallthru
          _
      $region44: #{_lambda_.15} parent=5 // pred_fallthru
        _
      %p370 = scmp.le.s32.totalorder 1, %s18
      %p371 = scmp.lt.s32.totalorder %s18, 3
      %p372 = pnand %p370, %p371
      %p373 = pneg %p372
      // Predicated region
      $region57: #{_lambda_.15} parent=5 // pred_check
        _
      $region58: #{_lambda_.15} parent=5 // pred_check_branch
        %375 = sbr.rel (%p372) target = $region60
      $region59: #{_lambda_.15} parent=5 // pred_region
        %s376 = ssub.s32 %s18, 1
        // Predicated region
        $region61: #{_lambda_.15} parent=59 // pred_check
          %p377 = pneg %p173
        $region62: #{_lambda_.15} parent=59 // pred_check_branch
          %379 = sbr.rel (%p377) target = $region64
        $region63: #{_lambda_.15} parent=59 // pred_region
          %381 = dma.done [#allocation4], 1024
        $region64: #{_lambda_.15} parent=59 // pred_fallthru
          _
        // Predicated region
        $region65: #{_lambda_.15} parent=59 // pred_check
          %p382 = pneg %p194
        $region66: #{_lambda_.15} parent=59 // pred_check_branch
          %384 = sbr.rel (%p382) target = $region68
        $region67: #{_lambda_.15} parent=59 // pred_region
          %386 = dma.done [#allocation6], 1024
        $region68: #{_lambda_.15} parent=59 // pred_fallthru
          _
        %p387 = scmp.lt.s32.totalorder %s27, 1
        %s388 = scalar_select %p387, %s27, 1
        %p389 = scmp.lt.s32.totalorder %s28, 0
        %s390 = scalar_select %p389, %s28, 0
        %s391 = sadd.s32 %s390, %s388
        %s392 = smul.addr %s391, 4
        %s393 = scalar_lea.vmem %s0, %s392
        %p394 = pneg %p58
        %p395 = pneg %p55
        %p396 = scmp.lt.s32.totalorder %s27, 1
        %s397 = scalar_select %p396, %s27, 1
        %s398 = smul.addr %s397, 4
        %s399 = scalar_lea.vmem %s1, %s398
        %p400 = pneg %p84
        %p401 = pneg %p81
        %p402 = scmp.lt.s32.totalorder %s27, 1
        %s403 = scalar_select %p402, %s27, 1
        %s404 = scalar_lea.vmem %s2, %s403
        %p405 = pneg %p110
        %p406 = pneg %p107
        %p407 = pneg %p131
        %p408 = pneg %p128
        %p409 = pneg %p152
        %p410 = pneg %p149
        %p411 = pneg %p173
        %p412 = pneg %p170
        %p413 = pneg %p194
        %p414 = pneg %p191
        %p415 = pneg %p215
        %p416 = pneg %p212
        %p417 = pneg %p236
        %p418 = pneg %p233
        %p419 = pneg %p257
        %p420 = pneg %p254
        %p421 = pneg %p285
        %p422 = pneg %p282
        %p423 = scmp.lt.s32.totalorder %s27, 1
        %s424 = scalar_select %p423, %s27, 1
        %p425 = scmp.lt.s32.totalorder %s28, 0
        %s426 = scalar_select %p425, %s28, 0
        %s427 = sadd.s32 %s426, %s424
        %s428 = smul.addr %s427, 4
        %s429 = scalar_lea.vmem %s10, %s428
        %p430 = scmp.lt.s32.totalorder %s27, 1
        %s431 = scalar_select %p430, %s27, 1
        %p432 = scmp.lt.s32.totalorder %s28, 0
        %s433 = scalar_select %p432, %s28, 0
        %s434 = sadd.s32 %s433, %s431
        %s435 = smul.addr %s434, 4
        %s436 = scalar_lea.vmem %s0, %s435
        %p437 = scmp.lt.s32.totalorder %s27, 1
        %s438 = scalar_select %p437, %s27, 1
        %s439 = smul.addr %s438, 4
        %s440 = scalar_lea.vmem %s1, %s439
        %p441 = scmp.lt.s32.totalorder %s27, 1
        %s442 = scalar_select %p441, %s27, 1
        %s443 = scalar_lea.vmem %s2, %s442
        %p444 = scmp.lt.s32.totalorder %s27, 1
        %s445 = scalar_select %p444, %s27, 1
        %p446 = scmp.lt.s32.totalorder %s28, 0
        %s447 = scalar_select %p446, %s28, 0
        %s448 = sadd.s32 %s447, %s445
        %s449 = smul.addr %s448, 4
        %s450 = scalar_lea.vmem %s10, %s449
        %v452 = vld [vmem:[%s436] sm:$0xf]
        %v453 = vld [vmem:[%s440] sm:$0xf]
        %v454 = vld [vmem:[%s3] sm:$0xf]
        %v455 = vld [vmem:[%s3 + $0x4] sm:$0xf]
        %v456 = vld [vmem:[%s3 + $0x8] sm:$0xf]
        %v457 = vld [vmem:[%s3 + $0xc] sm:$0xf]
        %v458 = vld [vmem:[%s3 + $0x10] sm:$0xf]
        %v459 = vld [vmem:[%s3 + $0x14] sm:$0xf]
        %v460 = vld [vmem:[%s3 + $0x18] sm:$0xf]
        %v461 = vld [vmem:[%s3 + $0x1c] sm:$0xf]
        %v462 = vld [vmem:[%s3 + $0x20] sm:$0xf]
        %v463 = vld [vmem:[%s3 + $0x24] sm:$0xf]
        %v464 = vld [vmem:[%s3 + $0x28] sm:$0xf]
        %v465 = vld [vmem:[%s3 + $0x2c] sm:$0xf]
        %v466 = vld [vmem:[%s3 + $0x30] sm:$0xf]
        %v467 = vld [vmem:[%s3 + $0x34] sm:$0xf]
        %v468 = vld [vmem:[%s3 + $0x38] sm:$0xf]
        %v469 = vld [vmem:[%s3 + $0x3c] sm:$0xf]
        %v486 = vunpack.c.l.b16 %v454
        %v487 = vunpack.c.l.b16 %v455
        %v488 = vunpack.c.l.b16 %v456
        %v489 = vunpack.c.l.b16 %v457
        %v490 = vunpack.c.l.b16 %v458
        %v491 = vunpack.c.l.b16 %v459
        %v492 = vunpack.c.l.b16 %v460
        %v493 = vunpack.c.l.b16 %v461
        %v494 = vunpack.c.l.b16 %v462
        %v495 = vunpack.c.l.b16 %v463
        %v496 = vunpack.c.l.b16 %v464
        %v497 = vunpack.c.l.b16 %v465
        %v498 = vunpack.c.l.b16 %v466
        %v499 = vunpack.c.l.b16 %v467
        %v500 = vunpack.c.l.b16 %v468
        %v501 = vunpack.c.l.b16 %v469
        %v502 = vpack.c.b16 %v487, %v486
        %v503 = vpack.c.b16 %v489, %v488
        %v504 = vpack.c.b16 %v491, %v490
        %v505 = vpack.c.b16 %v493, %v492
        %v506 = vpack.c.b16 %v495, %v494
        %v507 = vpack.c.b16 %v497, %v496
        %v508 = vpack.c.b16 %v499, %v498
        %v509 = vpack.c.b16 %v501, %v500
        %518 = vmatpush.bf16.msra.mxu0 %v509
        %519 = vmatpush.bf16.msra.mxu0 %v508
        %520 = vmatpush.bf16.msra.mxu0 %v507
        %521 = vmatpush.bf16.msra.mxu0 %v506
        %522 = vmatpush.bf16.msra.mxu0 %v505
        %523 = vmatpush.bf16.msra.mxu0 %v504
        %524 = vmatpush.bf16.msra.mxu0 %v503
        %525 = vmatpush.bf16.msra.mxu0 %v502
        %526 = vmatmul.bf16.gmra.mxu0 %v452
        %v527 = vpop.f32.mrf.mxu0
        %v528 = vadd.f32 0.0, %v527
        %v529 = vpop.f32.mrf.mxu0
        %530 = vdwg.mxu0
        %v531 = vmul.f32 %v528, 0.088388346
        %v532 = vpack.c.bf16 %v531, %v531
        %v533 = vld [vmem:[%s4] sm:$0xf]
        %v534 = vld [vmem:[%s4 + $0x4] sm:$0xf]
        %v535 = vld [vmem:[%s4 + $0x8] sm:$0xf]
        %v536 = vld [vmem:[%s4 + $0xc] sm:$0xf]
        %v537 = vld [vmem:[%s4 + $0x10] sm:$0xf]
        %v538 = vld [vmem:[%s4 + $0x14] sm:$0xf]
        %v539 = vld [vmem:[%s4 + $0x18] sm:$0xf]
        %v540 = vld [vmem:[%s4 + $0x1c] sm:$0xf]
        %v541 = vld [vmem:[%s4 + $0x20] sm:$0xf]
        %v542 = vld [vmem:[%s4 + $0x24] sm:$0xf]
        %v543 = vld [vmem:[%s4 + $0x28] sm:$0xf]
        %v544 = vld [vmem:[%s4 + $0x2c] sm:$0xf]
        %v545 = vld [vmem:[%s4 + $0x30] sm:$0xf]
        %v546 = vld [vmem:[%s4 + $0x34] sm:$0xf]
        %v547 = vld [vmem:[%s4 + $0x38] sm:$0xf]
        %v548 = vld [vmem:[%s4 + $0x3c] sm:$0xf]
        %v565 = vunpack.c.l.b16 %v533
        %v566 = vunpack.c.l.b16 %v534
        %v567 = vunpack.c.l.b16 %v535
        %v568 = vunpack.c.l.b16 %v536
        %v569 = vunpack.c.l.b16 %v537
        %v570 = vunpack.c.l.b16 %v538
        %v571 = vunpack.c.l.b16 %v539
        %v572 = vunpack.c.l.b16 %v540
        %v573 = vunpack.c.l.b16 %v541
        %v574 = vunpack.c.l.b16 %v542
        %v575 = vunpack.c.l.b16 %v543
        %v576 = vunpack.c.l.b16 %v544
        %v577 = vunpack.c.l.b16 %v545
        %v578 = vunpack.c.l.b16 %v546
        %v579 = vunpack.c.l.b16 %v547
        %v580 = vunpack.c.l.b16 %v548
        %v581 = vpack.c.b16 %v566, %v565
        %v582 = vpack.c.b16 %v568, %v567
        %v583 = vpack.c.b16 %v570, %v569
        %v584 = vpack.c.b16 %v572, %v571
        %v585 = vpack.c.b16 %v574, %v573
        %v586 = vpack.c.b16 %v576, %v575
        %v587 = vpack.c.b16 %v578, %v577
        %v588 = vpack.c.b16 %v580, %v579
        %597 = vmatpush.bf16.msra.mxu0 %v588
        %598 = vmatpush.bf16.msra.mxu0 %v587
        %599 = vmatpush.bf16.msra.mxu0 %v586
        %600 = vmatpush.bf16.msra.mxu0 %v585
        %601 = vmatpush.bf16.msra.mxu0 %v584
        %602 = vmatpush.bf16.msra.mxu0 %v583
        %603 = vmatpush.bf16.msra.mxu0 %v582
        %604 = vmatpush.bf16.msra.mxu0 %v581
        %605 = vmatmul.bf16.gmra.mxu0 %v453
        %v606 = vpop.f32.mrf.mxu0
        %v607 = vadd.f32 0.0, %v606
        %v608 = vpop.f32.mrf.mxu0
        %609 = vdwg.mxu0
        %v610 = vpack.c.bf16 %v607, %v607
        %v611 = vld [vmem:[#allocation3] sm:$0xf]
        %v612 = vld [vmem:[#allocation3 + $0x4] sm:$0xf]
        %v613 = vld [vmem:[#allocation3 + $0x8] sm:$0xf]
        %v614 = vld [vmem:[#allocation3 + $0xc] sm:$0xf]
        %v615 = vld [vmem:[#allocation3 + $0x10] sm:$0xf]
        %v616 = vld [vmem:[#allocation3 + $0x14] sm:$0xf]
        %v617 = vld [vmem:[#allocation3 + $0x18] sm:$0xf]
        %v618 = vld [vmem:[#allocation3 + $0x1c] sm:$0xf]
        %v619 = vld [vmem:[#allocation3 + $0x20] sm:$0xf]
        %v620 = vld [vmem:[#allocation3 + $0x24] sm:$0xf]
        %v621 = vld [vmem:[#allocation3 + $0x28] sm:$0xf]
        %v622 = vld [vmem:[#allocation3 + $0x2c] sm:$0xf]
        %v623 = vld [vmem:[#allocation3 + $0x30] sm:$0xf]
        %v624 = vld [vmem:[#allocation3 + $0x34] sm:$0xf]
        %v625 = vld [vmem:[#allocation3 + $0x38] sm:$0xf]
        %v626 = vld [vmem:[#allocation3 + $0x3c] sm:$0xf]
        %v643 = vunpack.c.l.b16 %v611
        %v644 = vunpack.c.l.b16 %v612
        %v645 = vunpack.c.l.b16 %v613
        %v646 = vunpack.c.l.b16 %v614
        %v647 = vunpack.c.l.b16 %v615
        %v648 = vunpack.c.l.b16 %v616
        %v649 = vunpack.c.l.b16 %v617
        %v650 = vunpack.c.l.b16 %v618
        %v651 = vunpack.c.l.b16 %v619
        %v652 = vunpack.c.l.b16 %v620
        %v653 = vunpack.c.l.b16 %v621
        %v654 = vunpack.c.l.b16 %v622
        %v655 = vunpack.c.l.b16 %v623
        %v656 = vunpack.c.l.b16 %v624
        %v657 = vunpack.c.l.b16 %v625
        %v658 = vunpack.c.l.b16 %v626
        %v659 = vpack.c.b16 %v644, %v643
        %v660 = vpack.c.b16 %v646, %v645
        %v661 = vpack.c.b16 %v648, %v647
        %v662 = vpack.c.b16 %v650, %v649
        %v663 = vpack.c.b16 %v652, %v651
        %v664 = vpack.c.b16 %v654, %v653
        %v665 = vpack.c.b16 %v656, %v655
        %v666 = vpack.c.b16 %v658, %v657
        %675 = vmatpush.bf16.msra.mxu0 %v666
        %676 = vmatpush.bf16.msra.mxu0 %v665
        %677 = vmatpush.bf16.msra.mxu0 %v664
        %678 = vmatpush.bf16.msra.mxu0 %v663
        %679 = vmatpush.bf16.msra.mxu0 %v662
        %680 = vmatpush.bf16.msra.mxu0 %v661
        %681 = vmatpush.bf16.msra.mxu0 %v660
        %682 = vmatpush.bf16.msra.mxu0 %v659
        %683 = vmatmul.bf16.gmra.mxu0 %v453
        %v684 = vpop.f32.mrf.mxu0
        %v685 = vadd.f32 0.0, %v684
        %v686 = vpop.f32.mrf.mxu0
        %687 = vdwg.mxu0
        %v688 = vpack.c.bf16 %v685, %v685
        %v689 = vld [vmem:[%s443] sm:$0x1]
        %vm690 = vcmp.gt.s32.totalorder %v689, 0
        %v691 = vsel %vm690, 1, 0
        %v692 = vperm.slane %v691, 0
        %vm693 = vcmp.eq.s32.totalorder %v692, 1
        %v694 = vlaneseq
        %v695 = vshrl.u32 %v694, 7
        %s696 = smul.u32 %s28, 8
        %v697 = vstv %s696
        %v698 = vadd.s32 %v695, %v697
        %v699 = vlaneseq
        %v700 = vand.u32 %v699, 127
        %vm701 = vcmp.gt.s32.totalorder %v700, %v698
        %vm702 = vmor %vm693, %vm701
        %vm703 = vcmask 261120
        %v705 = vsel %vm703, %v532, 0
        %v708 = vsel %vm703, %v610, 0
        %710 = vmatpush.bf16.xpose.msra.mxu0 0
        %711 = vmatpush.bf16.xpose.msra.mxu0 0
        %712 = vmatpush.bf16.xpose.msra.mxu0 0
        %713 = vmatpush.bf16.xpose.msra.mxu0 0
        %714 = vmatpush.bf16.xpose.msra.mxu0 0
        %715 = vmatpush.bf16.xpose.msra.mxu0 0
        %716 = vmatpush.bf16.xpose.msra.mxu0 0
        %717 = vmatpush.bf16.xpose.msra.mxu0 %v708
        %718 = vmatmul.bf16.gmra.mxu0 %v705
        %v719 = vpop.f32.mrf.mxu0
        %v720 = vadd.f32 0.0, %v719
        %v721 = vpop.f32.mrf.mxu0
        %722 = vdwg.mxu0
        %v723 = vsel %vm702, -1e+30, %v720
        %vm724 = vcmask 64512
        %v725 = vsel %vm724, %v723, -inf
        %726 = vmax.xlane.f32.xlu0 %v725
        %v727 = vpop.xlane.xlu0 %726
        %v728 = vsub.f32 %v723, %v727
        %v729 = vmul.f32 %v728, 1.442695
        %v730 = vpow.pop %v729
        %v731 = vsel %vm724, %v730, 0.0
        %732 = vadd.xlane.f32.xlu0 %v731
        %v733 = vpop.xlane.xlu0 %732
        %v734 = vrcp.pop %v733
        %v735 = vmul.f32 %v730, %v734
        %v736 = vpack.c.bf16 %v735, %v735
        %v738 = vsel %vm724, %v736, 0
        %vm740 = vcmask 1043456
        %v742 = vsel %vm740, %v688, 0
        %744 = vmatpush.bf16.msra.mxu0 0
        %745 = vmatpush.bf16.msra.mxu0 0
        %746 = vmatpush.bf16.msra.mxu0 0
        %747 = vmatpush.bf16.msra.mxu0 0
        %748 = vmatpush.bf16.msra.mxu0 0
        %749 = vmatpush.bf16.msra.mxu0 0
        %750 = vmatpush.bf16.msra.mxu0 0
        %751 = vmatpush.bf16.msra.mxu0 %v742
        %752 = vmatmul.bf16.gmra.mxu0 %v738
        %v753 = vpop.f32.mrf.mxu0
        %v754 = vadd.f32 0.0, %v753
        %v755 = vpop.f32.mrf.mxu0
        %756 = vdwg.mxu0
        %757 = vst.msk [vmem:[#allocation2] sm:$0xff] %vm703, %v754
        %v759 = vunpack.c.l.b16 %v532
        %v760 = vpack.c.b16 %v759, %v759
        %761 = vrot.lane.b32.xlu0 %v760, 96
        %v762 = vpop.permute.xlu0 %761
        %v764 = vunpack.c.l.b16 %v610
        %v765 = vpack.c.b16 %v764, %v764
        %766 = vrot.lane.b32.xlu0 %v765, 96
        %v767 = vpop.permute.xlu0 %766
        %v769 = vsel %vm703, %v762, 0
        %v772 = vsel %vm703, %v767, 0
        %774 = vmatpush.bf16.xpose.msra.mxu0 0
        %775 = vmatpush.bf16.xpose.msra.mxu0 0
        %776 = vmatpush.bf16.xpose.msra.mxu0 0
        %777 = vmatpush.bf16.xpose.msra.mxu0 0
        %778 = vmatpush.bf16.xpose.msra.mxu0 0
        %779 = vmatpush.bf16.xpose.msra.mxu0 0
        %780 = vmatpush.bf16.xpose.msra.mxu0 0
        %781 = vmatpush.bf16.xpose.msra.mxu0 %v772
        %782 = vmatmul.bf16.gmra.mxu0 %v769
        %v783 = vpop.f32.mrf.mxu0
        %v784 = vadd.f32 0.0, %v783
        %v785 = vpop.f32.mrf.mxu0
        %786 = vdwg.mxu0
        %v787 = vsel %vm702, -1e+30, %v784
        %v788 = vsel %vm724, %v787, -inf
        %789 = vmax.xlane.f32.xlu0 %v788
        %v790 = vpop.xlane.xlu0 %789
        %v791 = vsub.f32 %v787, %v790
        %v792 = vmul.f32 %v791, 1.442695
        %v793 = vpow.pop %v792
        %v794 = vsel %vm724, %v793, 0.0
        %795 = vadd.xlane.f32.xlu0 %v794
        %v796 = vpop.xlane.xlu0 %795
        %v797 = vrcp.pop %v796
        %v798 = vmul.f32 %v793, %v797
        %v799 = vpack.c.bf16 %v798, %v798
        %v801 = vunpack.c.l.b16 %v688
        %v802 = vpack.c.b16 %v801, %v801
        %803 = vrot.lane.b32.xlu0 %v802, 96
        %v804 = vpop.permute.xlu0 %803
        %v806 = vsel %vm724, %v799, 0
        %v809 = vsel %vm740, %v804, 0
        %811 = vmatpush.bf16.msra.mxu0 0
        %812 = vmatpush.bf16.msra.mxu0 0
        %813 = vmatpush.bf16.msra.mxu0 0
        %814 = vmatpush.bf16.msra.mxu0 0
        %815 = vmatpush.bf16.msra.mxu0 0
        %816 = vmatpush.bf16.msra.mxu0 0
        %817 = vmatpush.bf16.msra.mxu0 0
        %818 = vmatpush.bf16.msra.mxu0 %v809
        %819 = vmatmul.bf16.gmra.mxu0 %v806
        %v820 = vpop.f32.mrf.mxu0
        %v821 = vadd.f32 0.0, %v820
        %v822 = vpop.f32.mrf.mxu0
        %823 = vdwg.mxu0
        %825 = vrot.lane.b32.xlu0 %v821, 32
        %v826 = vpop.permute.xlu0 %825
        %vm828 = vcmask 523520
        %829 = vst.msk [vmem:[#allocation2] sm:$0xff] %vm828, %v826
        %830 = vrot.lane.b32.xlu0 %v760, 64
        %v831 = vpop.permute.xlu0 %830
        %832 = vrot.lane.b32.xlu0 %v765, 64
        %v833 = vpop.permute.xlu0 %832
        %v835 = vsel %vm703, %v831, 0
        %v838 = vsel %vm703, %v833, 0
        %840 = vmatpush.bf16.xpose.msra.mxu0 0
        %841 = vmatpush.bf16.xpose.msra.mxu0 0
        %842 = vmatpush.bf16.xpose.msra.mxu0 0
        %843 = vmatpush.bf16.xpose.msra.mxu0 0
        %844 = vmatpush.bf16.xpose.msra.mxu0 0
        %845 = vmatpush.bf16.xpose.msra.mxu0 0
        %846 = vmatpush.bf16.xpose.msra.mxu0 0
        %847 = vmatpush.bf16.xpose.msra.mxu0 %v838
        %848 = vmatmul.bf16.gmra.mxu0 %v835
        %v849 = vpop.f32.mrf.mxu0
        %v850 = vadd.f32 0.0, %v849
        %v851 = vpop.f32.mrf.mxu0
        %852 = vdwg.mxu0
        %v853 = vsel %vm702, -1e+30, %v850
        %v854 = vsel %vm724, %v853, -inf
        %855 = vmax.xlane.f32.xlu0 %v854
        %v856 = vpop.xlane.xlu0 %855
        %v857 = vsub.f32 %v853, %v856
        %v858 = vmul.f32 %v857, 1.442695
        %v859 = vpow.pop %v858
        %v860 = vsel %vm724, %v859, 0.0
        %861 = vadd.xlane.f32.xlu0 %v860
        %v862 = vpop.xlane.xlu0 %861
        %v863 = vrcp.pop %v862
        %v864 = vmul.f32 %v859, %v863
        %v865 = vpack.c.bf16 %v864, %v864
        %866 = vrot.lane.b32.xlu0 %v802, 64
        %v867 = vpop.permute.xlu0 %866
        %v869 = vsel %vm724, %v865, 0
        %v872 = vsel %vm740, %v867, 0
        %874 = vmatpush.bf16.msra.mxu0 0
        %875 = vmatpush.bf16.msra.mxu0 0
        %876 = vmatpush.bf16.msra.mxu0 0
        %877 = vmatpush.bf16.msra.mxu0 0
        %878 = vmatpush.bf16.msra.mxu0 0
        %879 = vmatpush.bf16.msra.mxu0 0
        %880 = vmatpush.bf16.msra.mxu0 0
        %881 = vmatpush.bf16.msra.mxu0 %v872
        %882 = vmatmul.bf16.gmra.mxu0 %v869
        %v883 = vpop.f32.mrf.mxu0
        %v884 = vadd.f32 0.0, %v883
        %v885 = vpop.f32.mrf.mxu0
        %886 = vdwg.mxu0
        %888 = vrot.lane.b32.xlu0 %v884, 64
        %v889 = vpop.permute.xlu0 %888
        %vm891 = vcmask 785920
        %892 = vst.msk [vmem:[#allocation2] sm:$0xff] %vm891, %v889
        %893 = vrot.lane.b32.xlu0 %v760, 32
        %v894 = vpop.permute.xlu0 %893
        %895 = vrot.lane.b32.xlu0 %v765, 32
        %v896 = vpop.permute.xlu0 %895
        %v898 = vsel %vm703, %v894, 0
        %v901 = vsel %vm703, %v896, 0
        %903 = vmatpush.bf16.xpose.msra.mxu0 0
        %904 = vmatpush.bf16.xpose.msra.mxu0 0
        %905 = vmatpush.bf16.xpose.msra.mxu0 0
        %906 = vmatpush.bf16.xpose.msra.mxu0 0
        %907 = vmatpush.bf16.xpose.msra.mxu0 0
        %908 = vmatpush.bf16.xpose.msra.mxu0 0
        %909 = vmatpush.bf16.xpose.msra.mxu0 0
        %910 = vmatpush.bf16.xpose.msra.mxu0 %v901
        %911 = vmatmul.bf16.gmra.mxu0 %v898
        %v912 = vpop.f32.mrf.mxu0
        %v913 = vadd.f32 0.0, %v912
        %v914 = vpop.f32.mrf.mxu0
        %915 = vdwg.mxu0
        %v916 = vsel %vm702, -1e+30, %v913
        %v917 = vsel %vm724, %v916, -inf
        %918 = vmax.xlane.f32.xlu0 %v917
        %v919 = vpop.xlane.xlu0 %918
        %v920 = vsub.f32 %v916, %v919
        %v921 = vmul.f32 %v920, 1.442695
        %v922 = vpow.pop %v921
        %v923 = vsel %vm724, %v922, 0.0
        %924 = vadd.xlane.f32.xlu0 %v923
        %v925 = vpop.xlane.xlu0 %924
        %v926 = vrcp.pop %v925
        %v927 = vmul.f32 %v922, %v926
        %v928 = vpack.c.bf16 %v927, %v927
        %929 = vrot.lane.b32.xlu0 %v802, 32
        %v930 = vpop.permute.xlu0 %929
        %v932 = vsel %vm724, %v928, 0
        %v935 = vsel %vm740, %v930, 0
        %937 = vmatpush.bf16.msra.mxu0 0
        %938 = vmatpush.bf16.msra.mxu0 0
        %939 = vmatpush.bf16.msra.mxu0 0
        %940 = vmatpush.bf16.msra.mxu0 0
        %941 = vmatpush.bf16.msra.mxu0 0
        %942 = vmatpush.bf16.msra.mxu0 0
        %943 = vmatpush.bf16.msra.mxu0 0
        %944 = vmatpush.bf16.msra.mxu0 %v935
        %945 = vmatmul.bf16.gmra.mxu0 %v932
        %v946 = vpop.f32.mrf.mxu0
        %v947 = vadd.f32 0.0, %v946
        %v948 = vpop.f32.mrf.mxu0
        %949 = vdwg.mxu0
        %951 = vrot.lane.b32.xlu0 %v947, 96
        %v952 = vpop.permute.xlu0 %951
        %vm954 = vcmask 1048320
        %955 = vst.msk [vmem:[#allocation2] sm:$0xff] %vm954, %v952
        %v956 = vld [vmem:[#allocation2] sm:$0xff]
        %v957 = vpack.c.bf16 %v956, %v956
        %v958 = vld [vmem:[#allocation5] sm:$0xf]
        %v959 = vld [vmem:[#allocation5 + $0x4] sm:$0xf]
        %v960 = vld [vmem:[#allocation5 + $0x8] sm:$0xf]
        %v961 = vld [vmem:[#allocation5 + $0xc] sm:$0xf]
        %v962 = vld [vmem:[#allocation5 + $0x10] sm:$0xf]
        %v963 = vld [vmem:[#allocation5 + $0x14] sm:$0xf]
        %v964 = vld [vmem:[#allocation5 + $0x18] sm:$0xf]
        %v965 = vld [vmem:[#allocation5 + $0x1c] sm:$0xf]
        %v966 = vld [vmem:[#allocation5 + $0x20] sm:$0xf]
        %v967 = vld [vmem:[#allocation5 + $0x24] sm:$0xf]
        %v968 = vld [vmem:[#allocation5 + $0x28] sm:$0xf]
        %v969 = vld [vmem:[#allocation5 + $0x2c] sm:$0xf]
        %v970 = vld [vmem:[#allocation5 + $0x30] sm:$0xf]
        %v971 = vld [vmem:[#allocation5 + $0x34] sm:$0xf]
        %v972 = vld [vmem:[#allocation5 + $0x38] sm:$0xf]
        %v973 = vld [vmem:[#allocation5 + $0x3c] sm:$0xf]
        %v974 = vld [vmem:[%s7] sm:$0x1]
        %v976 = vperm.slane %v974, 0
        %v994 = vunpack.c.l.b16 %v958
        %v995 = vunpack.c.l.b16 %v959
        %v996 = vunpack.c.l.b16 %v960
        %v997 = vunpack.c.l.b16 %v961
        %v998 = vunpack.c.l.b16 %v962
        %v999 = vunpack.c.l.b16 %v963
        %v1000 = vunpack.c.l.b16 %v964
        %v1001 = vunpack.c.l.b16 %v965
        %v1002 = vunpack.c.l.b16 %v966
        %v1003 = vunpack.c.l.b16 %v967
        %v1004 = vunpack.c.l.b16 %v968
        %v1005 = vunpack.c.l.b16 %v969
        %v1006 = vunpack.c.l.b16 %v970
        %v1007 = vunpack.c.l.b16 %v971
        %v1008 = vunpack.c.l.b16 %v972
        %v1009 = vunpack.c.l.b16 %v973
        %v1010 = vpack.c.b16 %v995, %v994
        %v1011 = vpack.c.b16 %v997, %v996
        %v1012 = vpack.c.b16 %v999, %v998
        %v1013 = vpack.c.b16 %v1001, %v1000
        %v1014 = vpack.c.b16 %v1003, %v1002
        %v1015 = vpack.c.b16 %v1005, %v1004
        %v1016 = vpack.c.b16 %v1007, %v1006
        %v1017 = vpack.c.b16 %v1009, %v1008
        %1026 = vmatpush.bf16.msra.mxu0 %v1017
        %1027 = vmatpush.bf16.msra.mxu0 %v1016
        %1028 = vmatpush.bf16.msra.mxu0 %v1015
        %1029 = vmatpush.bf16.msra.mxu0 %v1014
        %1030 = vmatpush.bf16.msra.mxu0 %v1013
        %1031 = vmatpush.bf16.msra.mxu0 %v1012
        %1032 = vmatpush.bf16.msra.mxu0 %v1011
        %1033 = vmatpush.bf16.msra.mxu0 %v1010
        %1034 = vmatmul.bf16.gmra.mxu0 %v957
        %v1035 = vpop.f32.mrf.mxu0
        %v1036 = vadd.f32 %v976, %v1035
        %v1037 = vpop.f32.mrf.mxu0
        %1038 = vdwg.mxu0
        %v1039 = vunpack.c.l.bf16 %v452
        %v1040 = vadd.f32 %v1036, %v1039
        %1041 = vadd.xlane.f32.xlu0 %v1040
        %v1042 = vpop.xlane.xlu0 %1041
        %v1043 = vrcp.pop 128.0
        %v1044 = vmul.f32 128.0, %v1043
        %v1045 = vsub.f32 1.0, %v1044
        %v1046 = vmul.f32 %v1043, %v1045
        %v1047 = vadd.f32 %v1043, %v1046
        %vm1048 = vweird.f32 %v1043
        %v1049 = vsel %vm1048, %v1043, %v1047
        %v1050 = vmul.f32 %v1042, %v1049
        %v1051 = vsub.f32 %v1040, %v1050
        %v1052 = vmul.f32 %v1051, %v1051
        %1053 = vadd.xlane.f32.xlu0 %v1052
        %v1054 = vpop.xlane.xlu0 %1053
        %v1055 = vrcp.pop 127.0
        %v1056 = vmul.f32 127.0, %v1055
        %v1057 = vsub.f32 1.0, %v1056
        %v1058 = vmul.f32 %v1055, %v1057
        %v1059 = vadd.f32 %v1055, %v1058
        %vm1060 = vweird.f32 %v1055
        %v1061 = vsel %vm1060, %v1055, %v1059
        %v1062 = vmul.f32 %v1054, %v1061
        %v1063 = vrsqrt.pop %v1062
        %v1064 = vmul.f32 %v1063, %v1062
        %v1065 = vmul.f32 %v1064, %v1063
        %v1066 = vmul.f32 0.5, %v1065
        %v1067 = vsub.f32 1.5, %v1066
        %v1068 = vmul.f32 %v1063, %v1067
        %v1069 = vmul.f32 %v1062, %v1068
        %vm1070 = vcmp.eq.f32.partialorder %v1062, inf
        %v1071 = vsel %vm1070, %v1062, %v1069
        %vm1072 = vcmp.eq.f32.partialorder %v1062, 0.0
        %v1073 = vand.u32 %v1062, 2147483648
        %v1074 = vsel %vm1072, %v1073, %v1071
        %v1075 = vadd.f32 %v1074, 0.001
        %v1076 = vrcp.pop %v1075
        %v1077 = vmul.f32 %v1075, %v1076
        %v1078 = vsub.f32 1.0, %v1077
        %v1079 = vmul.f32 %v1076, %v1078
        %v1080 = vadd.f32 %v1076, %v1079
        %vm1081 = vweird.f32 %v1075
        %vm1082 = vweird.f32 %v1076
        %vm1083 = vmor %vm1081, %vm1082
        %v1084 = vsel %vm1083, %v1076, %v1080
        %v1085 = vand.u32 2147483647, %v1075
        %vm1086 = vcmp.eq.f32.partialorder %v1085, 8.507059e+37
        %v1087 = vand.u32 %v1075, 2147483648
        %v1088 = vor.u32 1.1754944e-38, %v1087
        %v1089 = vsel %vm1086, %v1088, %v1084
        %v1090 = vmul.f32 1.0, %v1089
        %v1091 = vmul.f32 %v1051, %v1090
        %v1092 = vld [vmem:[%s8] sm:$0x1]
        %v1094 = vperm.slane %v1092, 0
        %v1096 = vmul.f32 %v1091, %v1094
        %v1097 = vld [vmem:[%s9] sm:$0x1]
        %v1099 = vperm.slane %v1097, 0
        %v1101 = vadd.f32 %v1096, %v1099
        %v1102 = vpack.c.bf16 %v1101, %v1101
        %1103 = vst [vmem:[%s450] sm:$0xf] %v1102
        %p1104 = scmp.lt.s32.totalorder %s27, 1
        %s1105 = scalar_select %p1104, %s27, 1
        %p1106 = scmp.lt.s32.totalorder %s28, 0
        %s1107 = scalar_select %p1106, %s28, 0
        %s1108 = sadd.s32 %s1107, %s1105
        %s1109 = smul.addr %s1108, 4
        %s1110 = scalar_lea.vmem %s10, %s1109
        // Predicated region
        $region69: #{_lambda_.15} parent=59 // pred_check
          %p1111 = pneg %p282
        $region70: #{_lambda_.15} parent=59 // pred_check_branch
          %1113 = sbr.rel (%p1111) target = $region72
        $region71: #{_lambda_.15} parent=59 // pred_region
          _
        $region72: #{_lambda_.15} parent=59 // pred_fallthru
          _
      $region60: #{_lambda_.15} parent=5 // pred_fallthru
        _
      %p1114 = scmp.le.s32.totalorder 2, %s18
      // Predicated region
      $region73: #{_lambda_.15} parent=5 // pred_check
        %p1115 = pneg %p1114
      $region74: #{_lambda_.15} parent=5 // pred_check_branch
        %1117 = sbr.rel (%p1115) target = $region76
      $region75: #{_lambda_.15} parent=5 // pred_region
        %s1118 = ssub.s32 %s18, 2
        // Predicated region
        $region77: #{_lambda_.15} parent=75 // pred_check
          %p1119 = pneg %p288
        $region78: #{_lambda_.15} parent=75 // pred_check_branch
          %1121 = sbr.rel (%p1119) target = $region80
        $region79: #{_lambda_.15} parent=75 // pred_region
          %p1122 = scmp.lt.s32.totalorder %s29, 1
          %s1123 = scalar_select %p1122, %s29, 1
          %p1124 = scmp.lt.s32.totalorder %s30, 0
          %s1125 = scalar_select %p1124, %s30, 0
          %s1126 = sadd.s32 %s1125, %s1123
          %s1127 = smul.addr %s1126, 4
          %s1128 = scalar_lea.vmem %s10, %s1127
        $region80: #{_lambda_.15} parent=75 // pred_fallthru
          _
      $region76: #{_lambda_.15} parent=5 // pred_fallthru
        _
    $region6: #{_lambda_.15} parent=1 // loop_footer
      %s22 = sadd.s32 1, %s18
    $region7: #{_lambda_.15} parent=1 // loop_footer_branch
      %17 = sbr.rel target = $region3
    $region8: #{_lambda_.15} parent=1 // loop_exit
      _
    %1129 = vsyncpa [#allocation4], 1
    %s1130 = scalar_lea.sflag [#allocation4], 1
    %1131 = vsyncpa %s1130, 1
    %1132 = vsyncpa [#allocation6], 1

</llo_original>
